<compile_context>
chip_gen: v7x
topology: tpu7x:2x2x1
jax: 0.10.0
libtpu: 0.0.40
codegen_flags: <defaults>
</compile_context>

<pallas_src>
import functools

import jax
import jax.numpy as jnp
import numpy as np
from jax import lax
from jax.experimental import pallas as pl
from jax.experimental.pallas import tpu as pltpu


def _round_up(x, m):
    return (x + m - 1) // m * m


def _pad_axis(x, axis, new_size):
    pad = new_size - x.shape[axis]
    if pad == 0:
        return x
    widths = [(0, 0)] * x.ndim
    widths[axis] = (0, pad)
    return jnp.pad(x, widths)


def _pick_b_blk(B):
    """Batch tile: multiple of 8 (sublane rule) or the full batch. Fill the MXU M
    dimension (up to 256 rows) but keep >=2 tiles when each tile still has >=128 rows
    so 2-TensorCore chips (v7x) can split the parallel batch axis."""
    if B % 8 != 0:
        return B
    if B >= 256 and B % 128 == 0:
        return 128
    for cand in (256, 128, 64, 32, 16):
        if B % cand == 0:
            return cand
    return B


def _pick_t_blk(seq, requested):
    """Prefer an exact divisor of seq (no padded serial steps) close to `requested`;
    otherwise accept a padded tail (< requested wasted steps total)."""
    requested = max(1, min(requested, seq))
    best = 1
    for cand in range(requested, 0, -1):
        if seq % cand == 0:
            best = cand
            break
    return best if best * 2 > requested else requested


def _vmem_limit_bytes(frac=0.75):
    """Generation-aware VMEM limit (v5e/v6e: 128 MiB, v7x: 64 MiB) with headroom."""
    try:
        cap = int(pltpu.get_tpu_info().vmem_capacity_bytes)
    except Exception:  # pragma: no cover - conservative fallback
        cap = 64 * 1024 * 1024
    return max(32 * 1024 * 1024, int(cap * frac))


# ----------------------------------------------------------------------------
# Pallas kernel: one grid step == T_BLK time steps of the recurrence for one
# batch tile.  grid = (batch_tiles [parallel], time_blocks [arbitrary/serial]).
# ----------------------------------------------------------------------------
def _rhn_recurrent_kernel(
    ht_all_ref,     # (T_BLK, B_BLK, 2*HID_P) fused hoisted [input_H | input_T] projections
    sh_ref,         # (B_BLK, HID_P)          hidden dropout mask (H path)
    st_ref,         # (B_BLK, HID_P)          hidden dropout mask (T path)
    wf_ref,         # (depth, HID_P, 2*HID_P) fused [W_H | W_T] recurrent weights
    bf_ref,         # (depth, 1, 2*HID_P)     fused biases (row 0 unused: bias=False)
    h0_ref,         # (B_BLK, HID_P)          initial hidden state
    out_ref,        # (T_BLK, B_BLK, HID_P)   per-block output slab
    state_ref,      # scratch VMEM (B_BLK, HID_P) f32: hidden state carried over time
    *,
    depth: int,
    hid_p: int,
    t_blk: int,
    tied: bool,
):
    f32 = jnp.float32
    t_block = pl.program_id(1)
    b_blk = state_ref.shape[0]

    sh = sh_ref[...]
    st = sh if tied else st_ref[...]
    w_dtype = wf_ref.dtype   # bf16 on v6e/v7x; matmuls still accumulate in f32

    # Hoist bias broadcasts out of the unrolled time loop (JAX doesn't CSE
    # broadcast_in_dim; inline it would be re-emitted t_blk*(depth-1) times).
    bias_full, bias_h, bias_t = [None], [None], [None]
    for l in range(1, depth):
        bl = bf_ref[l]                                    # (1, 2*hid_p)
        if tied:
            bias_full.append(jnp.broadcast_to(bl, (b_blk, 2 * hid_p)))
            bias_h.append(None)
            bias_t.append(None)
        else:
            bias_full.append(None)
            bias_h.append(jnp.broadcast_to(bl[:, :hid_p], (b_blk, hid_p)))
            bias_t.append(jnp.broadcast_to(bl[:, hid_p:], (b_blk, hid_p)))

    def step(tt, s):
        ht = ht_all_ref[tt].astype(f32)                   # (B_BLK, 2*HID_P)
        h_in = ht[:, :hid_p]
        t_in = ht[:, hid_p:]
        for l in range(depth):                            # depth small & static -> unrolled
            w_l = wf_ref[l]                               # (HID_P, 2*HID_P)
            if tied:
                # Fused H|T recurrent matmul: one MXU push per layer, f32 accumulation.
                lhs = (sh * s).astype(w_dtype)
                pre = jnp.dot(lhs, w_l, preferred_element_type=f32)
                if l > 0:                                 # layer 0 has bias=False
                    pre = pre + bias_full[l]
                pre_h = pre[:, :hid_p]
                pre_t = pre[:, hid_p:]
            else:
                # Two half-width matmuls (no block-diag zeros through the MXU).
                pre_h = jnp.dot((sh * s).astype(w_dtype), w_l[:, :hid_p],
                                preferred_element_type=f32)
                pre_t = jnp.dot((st * s).astype(w_dtype), w_l[:, hid_p:],
                                preferred_element_type=f32)
                if l > 0:
                    pre_h = pre_h + bias_h[l]
                    pre_t = pre_t + bias_t[l]
            if l == 0:
                H = jnp.tanh(h_in + pre_h)
                T = jax.nn.sigmoid(t_in + pre_t)
            else:
                H = jnp.tanh(pre_h)
                T = jax.nn.sigmoid(pre_t)
            s = (H - s) * T + s                           # coupled highway: c = 1 - t
        out_ref[tt] = s.astype(out_ref.dtype)
        return s

    # Direct select for the fori_loop init (no store->reload round trip at t_block==0).
    init = jnp.where(t_block == 0, h0_ref[...], state_ref[...])
    state_ref[...] = lax.fori_loop(0, t_blk, step, init, unroll=True)


# ----------------------------------------------------------------------------
# Wrapper
# ----------------------------------------------------------------------------
def rhn_coupled_forward(inp, h0, params, masks, *, depth, tied_noise=True,
                        t_blk=32, b_blk=None, weights_dtype=jnp.float32,
                        io_dtype=jnp.float32):
    """inp: (seq, B, in_dim); h0: (B, hid). Returns (outs (seq,B,hid), last (B,hid))."""
    seq, B, in_dim = inp.shape
    hid = h0.shape[-1]
    f32 = jnp.float32

    (win_h, bin_h, win_t, bin_t, wh, bh, wt, bt) = params
    (h_mask, t_mask, sh_mask, st_mask) = masks

    # --- Hoisted, sequence-parallel input projections (fused into one matmul when tied).
    if tied_noise:
        x = (h_mask[None] * inp).reshape(seq * B, in_dim).astype(weights_dtype)
        w_in = jnp.concatenate([win_h, win_t], axis=-1).astype(weights_dtype)   # (in, 2*hid)
        b_in = jnp.concatenate([bin_h, bin_t], axis=-1)
        HT = jnp.dot(x, w_in, preferred_element_type=f32) + b_in
        H_all, T_all = HT[:, :hid], HT[:, hid:]
    else:
        xh = (h_mask[None] * inp).reshape(seq * B, in_dim).astype(weights_dtype)
        xt = (t_mask[None] * inp).reshape(seq * B, in_dim).astype(weights_dtype)
        H_all = jnp.dot(xh, win_h.astype(weights_dtype), preferred_element_type=f32) + bin_h
        T_all = jnp.dot(xt, win_t.astype(weights_dtype), preferred_element_type=f32) + bin_t
    H_all = H_all.reshape(seq, B, hid)
    T_all = T_all.reshape(seq, B, hid)

    # --- Lane-dense layout: pad hidden to a multiple of 128 (exact: pads stay 0),
    #     and fuse H/T into one slab -> one input DMA stream for the kernel.
    hid_p = max(128, _round_up(hid, 128))
    HT_all = jnp.concatenate([_pad_axis(H_all.astype(f32), 2, hid_p),
                              _pad_axis(T_all.astype(f32), 2, hid_p)],
                             axis=-1).astype(io_dtype)                 # (seq, B, 2*hid_p)
    sh_p = _pad_axis(sh_mask.astype(f32), 1, hid_p)
    st_p = _pad_axis(st_mask.astype(f32), 1, hid_p)
    h0_p = _pad_axis(h0.astype(f32), 1, hid_p)
    wh_p = _pad_axis(_pad_axis(wh.astype(f32), 1, hid_p), 2, hid_p)
    wt_p = _pad_axis(_pad_axis(wt.astype(f32), 1, hid_p), 2, hid_p)
    bh_p = _pad_axis(bh.astype(f32), 2, hid_p)
    bt_p = _pad_axis(bt.astype(f32), 2, hid_p)

    # --- Fused [W_H | W_T] recurrent weights (N-fused; never block-diagonal).
    wf = jnp.concatenate([wh_p, wt_p], axis=-1).astype(weights_dtype)   # (depth, hid_p, 2*hid_p)
    bf = jnp.concatenate([bh_p, bt_p], axis=-1).astype(f32)             # (depth, 1, 2*hid_p)

    # --- Block timesteps (amortize per-grid-step overhead, no padded serial steps
    #     when a divisor of seq is available).
    t_blk = _pick_t_blk(seq, t_blk)
    seq_p = _round_up(seq, t_blk)
    HT_all = _pad_axis(HT_all, 0, seq_p)
    n_tb = seq_p // t_blk

    # --- Batch tiling: fill the MXU M dimension; >=2 tiles when big enough for v7x.
    if b_blk is None:
        b_blk = _pick_b_blk(B)
    if not (B % b_blk == 0 and (b_blk % 8 == 0 or b_blk == B)):
        b_blk = B
    n_bb = B // b_blk

    # --- Single-buffer the time-invariant weights when their double buffer is big
    #     (recovers VMEM on v7x's 64 MiB); tiny weights keep the default pipeline.
    wf_nbytes = int(np.prod(wf.shape)) * jnp.dtype(weights_dtype).itemsize
    inv_kw = {"pipeline_mode": pl.Buffered(1)} if 2 * wf_nbytes > (8 << 20) else {}

    kernel = functools.partial(_rhn_recurrent_kernel, depth=depth, hid_p=hid_p,
                               t_blk=t_blk, tied=tied_noise)

    grid_spec = pltpu.PrefetchScalarGridSpec(
        num_scalar_prefetch=0,
        grid=(n_bb, n_tb),
        in_specs=[
            pl.BlockSpec((t_blk, b_blk, 2 * hid_p), lambda b, t: (t, b, 0)),   # HT_all
            pl.BlockSpec((b_blk, hid_p), lambda b, t: (b, 0)),                 # sh_mask
            pl.BlockSpec((b_blk, hid_p), lambda b, t: (b, 0)),                 # st_mask
            pl.BlockSpec(wf.shape, lambda b, t: (0, 0, 0), **inv_kw),          # fused W
            pl.BlockSpec(bf.shape, lambda b, t: (0, 0, 0), **inv_kw),          # fused bias
            pl.BlockSpec((b_blk, hid_p), lambda b, t: (b, 0)),                 # h0
        ],
        out_specs=pl.BlockSpec((t_blk, b_blk, hid_p), lambda b, t: (t, b, 0)),
        scratch_shapes=[pltpu.VMEM((b_blk, hid_p), jnp.float32)],
    )

    outs_p = pl.pallas_call(
        kernel,
        out_shape=jax.ShapeDtypeStruct((seq_p, B, hid_p), jnp.float32),
        grid_spec=grid_spec,
        compiler_params=pltpu.CompilerParams(
            dimension_semantics=("parallel", "arbitrary"),   # batch ∥ (2 TCs), time serial
            vmem_limit_bytes=_vmem_limit_bytes(),
        ),
    )(HT_all, sh_p, st_p, wf, bf, h0_p)

    outs = outs_p[:seq, :, :hid]
    return outs, outs[seq - 1]          # `last` is just the final step's output


# ----------------------------------------------------------------------------
# Pure-JAX reference (mirrors the PyTorch forward exactly)
# ----------------------------------------------------------------------------
def rhn_coupled_reference(inp, h0, params, masks, *, depth):
    (win_h, bin_h, win_t, bin_t, wh, bh, wt, bt) = params
    (h_mask, t_mask, sh_mask, st_mask) = masks

    H_all = (h_mask[None] * inp) @ win_h + bin_h[0]
    T_all = (t_mask[None] * inp) @ win_t + bin_t[0]

    s = h0
    outs = []
    for step in range(inp.shape[0]):
        H_t, T_t = H_all[step], T_all[step]
        for l in range(depth):
            pre_h = (sh_mask * s) @ wh[l] + bh[l, 0]
            pre_t = (st_mask * s) @ wt[l] + bt[l, 0]
            if l == 0:
                H = jnp.tanh(H_t + pre_h)
                T = jax.nn.sigmoid(T_t + pre_t)
            else:
                H = jnp.tanh(pre_h)
                T = jax.nn.sigmoid(pre_t)
            s = (H - s) * T + s
        outs.append(s)
    return jnp.stack(outs), outs[-1]


# ----------------------------------------------------------------------------
# Main
# ----------------------------------------------------------------------------
if __name__ == "__main__":
    SEQ, B, IN_DIM, HID, DEPTH = 16, 16, 32, 32, 2
    INPUT_DROPOUT, HIDDEN_DROPOUT = 0.75, 0.25

    key = jax.random.PRNGKey(0)
    keys = jax.random.split(key, 16)

    # --- deterministic parameter init (Linear weights stored as (in, out)) ---
    def lin_w(k, fan_in, fan_out):
        bound = 1.0 / np.sqrt(fan_in)
        return jax.random.uniform(k, (fan_in, fan_out), jnp.float32, -bound, bound)

    def lin_b(k, fan_in, fan_out):
        bound = 1.0 / np.sqrt(fan_in)
        return jax.random.uniform(k, (1, fan_out), jnp.float32, -bound, bound)

    win_h = lin_w(keys[0], IN_DIM, HID)
    bin_h = lin_b(keys[1], IN_DIM, HID)
    win_t = lin_w(keys[2], IN_DIM, HID)
    # custom_init sets T biases to -3 (emulated deterministically here)
    bin_t = jnp.full((1, HID), -3.0, jnp.float32)

    wh = jnp.stack([lin_w(keys[3 + l], HID, HID) for l in range(DEPTH)])
    wt = jnp.stack([lin_w(keys[3 + DEPTH + l], HID, HID) for l in range(DEPTH)])
    # layer 0 has bias=False -> keep a zero row; T biases for l>0 set to -3
    bh = jnp.stack([jnp.zeros((1, HID), jnp.float32) if l == 0
                    else lin_b(keys[3 + 2 * DEPTH + l], HID, HID)
                    for l in range(DEPTH)])
    bt = jnp.stack([jnp.zeros((1, HID), jnp.float32) if l == 0
                    else jnp.full((1, HID), -3.0, jnp.float32)
                    for l in range(DEPTH)])
    params = (win_h, bin_h, win_t, bin_t, wh, bh, wt, bt)

    # --- dropout masks (Bernoulli(keep)/keep), shared across time steps ------
    def make_mask(k, p, shape):
        keep = 1.0 - p
        return jax.random.bernoulli(k, keep, shape).astype(jnp.float32) / keep

    h_mask = make_mask(keys[10], INPUT_DROPOUT, (B, IN_DIM))
    sh_mask = make_mask(keys[12], HIDDEN_DROPOUT, (B, HID))
    t_mask_u = make_mask(keys[11], INPUT_DROPOUT, (B, IN_DIM))
    st_mask_u = make_mask(keys[13], HIDDEN_DROPOUT, (B, HID))
    masks_tied = (h_mask, h_mask, sh_mask, sh_mask)
    masks_untied = (h_mask, t_mask_u, sh_mask, st_mask_u)

    # --- inputs --------------------------------------------------------------
    inp = jax.random.normal(keys[14], (SEQ, B, IN_DIM), jnp.float32)
    h0 = jax.random.normal(keys[15], (B, HID), jnp.float32)

    # 1) tied-noise, f32 path: exact correctness check vs. the reference.
    outs, last = rhn_coupled_forward(inp, h0, params, masks_tied, depth=DEPTH,
                                     tied_noise=True)
    outs = jax.block_until_ready(outs)
    last = jax.block_until_ready(last)
    ref_outs, ref_last = rhn_coupled_reference(inp, h0, params, masks_tied, depth=DEPTH)
    assert outs.shape == (SEQ, B, HID) and last.shape == (B, HID)
    np.testing.assert_allclose(np.asarray(outs), np.asarray(ref_outs), rtol=1e-4, atol=1e-4)
    np.testing.assert_allclose(np.asarray(last), np.asarray(ref_last), rtol=1e-4, atol=1e-4)

    # 2) untied-noise, f32 path (two half-width matmuls per layer): correctness.
    outs_u, last_u = rhn_coupled_forward(inp, h0, params, masks_untied, depth=DEPTH,
                                         tied_noise=False)
    outs_u = jax.block_until_ready(outs_u)
    ref_outs_u, ref_last_u = rhn_coupled_reference(inp, h0, params, masks_untied, depth=DEPTH)
    np.testing.assert_allclose(np.asarray(outs_u), np.asarray(ref_outs_u), rtol=1e-4, atol=1e-4)
    np.testing.assert_allclose(np.asarray(last_u), np.asarray(ref_last_u), rtol=1e-4, atol=1e-4)

    # 3) bf16 weights + bf16 I/O slab (v5e/v6e/v7x fast path): sanity run only.
    #    (Rounding compounds over depth*seq recurrence steps; validate drift before
    #     shipping bf16 for long sequences.)
    outs_bf, last_bf = rhn_coupled_forward(inp, h0, params, masks_tied, depth=DEPTH,
                                           tied_noise=True,
                                           weights_dtype=jnp.bfloat16,
                                           io_dtype=jnp.bfloat16)
    outs_bf = jax.block_until_ready(outs_bf)
    assert outs_bf.shape == (SEQ, B, HID)
    assert bool(jnp.isfinite(outs_bf).all()) and bool(jnp.isfinite(last_bf).all())
    np.testing.assert_allclose(np.asarray(outs_bf), np.asarray(ref_outs), rtol=5e-2, atol=5e-2)

    print("KERNEL_OK")
</pallas_src>

<mosaic_0001>
module attributes {stable_mosaic.version = 11 : i64} {
  func.func @_rhn_recurrent_kernel(%arg0: i32, %arg1: i32, %arg2: memref<16x16x256xf32, #tpu.memory_space<vmem>>, %arg3: memref<16x128xf32, #tpu.memory_space<vmem>>, %arg4: memref<16x128xf32, #tpu.memory_space<vmem>>, %arg5: memref<2x128x256xf32, #tpu.memory_space<vmem>>, %arg6: memref<2x1x256xf32, #tpu.memory_space<vmem>>, %arg7: memref<16x128xf32, #tpu.memory_space<vmem>>, %arg8: memref<16x16x128xf32, #tpu.memory_space<vmem>>, %arg9: memref<16x128xf32, #tpu.memory_space<vmem>>) attributes {dimension_semantics = [#tpu.dimension_semantics<parallel>, #tpu.dimension_semantics<arbitrary>], iteration_bounds = array<i64: 1, 1>, scalar_prefetch = 0 : i64, scratch_operands = 1 : i64, tpu.core_type = #tpu.core_type<tc>, window_params = [{transform_indices = @transform_0, window_bounds = array<i64: 16, 16, 256>}, {transform_indices = @transform_1, window_bounds = array<i64: 16, 128>}, {transform_indices = @transform_2, window_bounds = array<i64: 16, 128>}, {pipeline_mode = #tpu.pipeline_mode<synchronous>, transform_indices = @transform_3, window_bounds = array<i64: 2, 128, 256>}, {pipeline_mode = #tpu.pipeline_mode<synchronous>, transform_indices = @transform_4, window_bounds = array<i64: 2, 1, 256>}, {transform_indices = @transform_5, window_bounds = array<i64: 16, 128>}, {transform_indices = @transform_6, window_bounds = array<i64: 16, 16, 128>}]} {
    %c0 = arith.constant 0 : index
    %c0_0 = arith.constant 0 : index
    %0 = vector.load %arg3[%c0, %c0_0] : memref<16x128xf32, #tpu.memory_space<vmem>>, vector<16x128xf32>
    %c1 = arith.constant 1 : index
    %c0_1 = arith.constant 0 : index
    %c0_2 = arith.constant 0 : index
    %1 = vector.load %arg6[%c1, %c0_1, %c0_2] : memref<2x1x256xf32, #tpu.memory_space<vmem>>, vector<1x1x256xf32>
    %2 = vector.shape_cast %1 : vector<1x1x256xf32> to vector<1x256xf32>
    %3 = vector.shape_cast %2 : vector<1x256xf32> to vector<1x256xf32>
    %4 = vector.broadcast %3 : vector<1x256xf32> to vector<16x256xf32>
    %c0_i32 = arith.constant 0 : i32
    %5 = arith.cmpi eq, %arg1, %c0_i32 : i32
    %c0_3 = arith.constant 0 : index
    %c0_4 = arith.constant 0 : index
    %6 = vector.load %arg7[%c0_3, %c0_4] : memref<16x128xf32, #tpu.memory_space<vmem>>, vector<16x128xf32>
    %c0_5 = arith.constant 0 : index
    %c0_6 = arith.constant 0 : index
    %7 = vector.load %arg9[%c0_5, %c0_6] : memref<16x128xf32, #tpu.memory_space<vmem>>, vector<16x128xf32>
    %8 = arith.select %5, %6, %7 : vector<16x128xf32>
    %c0_i32_7 = arith.constant 0 : i32
    %9 = arith.index_cast %c0_i32_7 : i32 to index
    %c0_8 = arith.constant 0 : index
    %c0_9 = arith.constant 0 : index
    %10 = vector.load %arg2[%9, %c0_8, %c0_9] : memref<16x16x256xf32, #tpu.memory_space<vmem>>, vector<1x16x256xf32>
    %11 = vector.shape_cast %10 : vector<1x16x256xf32> to vector<16x256xf32>
    %12 = vector.extract_strided_slice %11 {offsets = [0, 0], sizes = [16, 128], strides = [1, 1]} : vector<16x256xf32> to vector<16x128xf32>
    %13 = vector.extract_strided_slice %11 {offsets = [0, 128], sizes = [16, 128], strides = [1, 1]} : vector<16x256xf32> to vector<16x128xf32>
    %c0_10 = arith.constant 0 : index
    %c0_11 = arith.constant 0 : index
    %c0_12 = arith.constant 0 : index
    %14 = vector.load %arg5[%c0_10, %c0_11, %c0_12] : memref<2x128x256xf32, #tpu.memory_space<vmem>>, vector<1x128x256xf32>
    %15 = vector.shape_cast %14 : vector<1x128x256xf32> to vector<128x256xf32>
    %16 = arith.mulf %0, %8 : vector<16x128xf32>
    %cst = arith.constant dense<0.000000e+00> : vector<16x256xf32>
    %17 = tpu.matmul %16, %15, %cst {dimension_numbers = #tpu.dot_dimension_numbers<[1], [0], [0], [1], [0, 0, 1, 1], [], []>} : vector<16x128xf32>, vector<128x256xf32>, vector<16x256xf32> -> vector<16x256xf32>
    %18 = vector.extract_strided_slice %17 {offsets = [0, 0], sizes = [16, 128], strides = [1, 1]} : vector<16x256xf32> to vector<16x128xf32>
    %19 = vector.extract_strided_slice %17 {offsets = [0, 128], sizes = [16, 128], strides = [1, 1]} : vector<16x256xf32> to vector<16x128xf32>
    %20 = arith.addf %12, %18 : vector<16x128xf32>
    %21 = math.tanh %20 : vector<16x128xf32>
    %22 = arith.addf %13, %19 : vector<16x128xf32>
    %23 = arith.negf %22 : vector<16x128xf32>
    %24 = math.exp %23 : vector<16x128xf32>
    %cst_13 = arith.constant 1.000000e+00 : f32
    %25 = vector.broadcast %cst_13 : f32 to vector<16x128xf32>
    %26 = arith.addf %25, %24 : vector<16x128xf32>
    %27 = arith.divf %25, %26 : vector<16x128xf32>
    %28 = arith.subf %21, %8 : vector<16x128xf32>
    %29 = arith.mulf %28, %27 : vector<16x128xf32>
    %30 = arith.addf %29, %8 : vector<16x128xf32>
    %c1_14 = arith.constant 1 : index
    %c0_15 = arith.constant 0 : index
    %c0_16 = arith.constant 0 : index
    %31 = vector.load %arg5[%c1_14, %c0_15, %c0_16] : memref<2x128x256xf32, #tpu.memory_space<vmem>>, vector<1x128x256xf32>
    %32 = vector.shape_cast %31 : vector<1x128x256xf32> to vector<128x256xf32>
    %33 = arith.mulf %0, %30 : vector<16x128xf32>
    %cst_17 = arith.constant dense<0.000000e+00> : vector<16x256xf32>
    %34 = tpu.matmul %33, %32, %cst_17 {dimension_numbers = #tpu.dot_dimension_numbers<[1], [0], [0], [1], [0, 0, 1, 1], [], []>} : vector<16x128xf32>, vector<128x256xf32>, vector<16x256xf32> -> vector<16x256xf32>
    %35 = arith.addf %34, %4 : vector<16x256xf32>
    %36 = vector.extract_strided_slice %35 {offsets = [0, 0], sizes = [16, 128], strides = [1, 1]} : vector<16x256xf32> to vector<16x128xf32>
    %37 = vector.extract_strided_slice %35 {offsets = [0, 128], sizes = [16, 128], strides = [1, 1]} : vector<16x256xf32> to vector<16x128xf32>
    %38 = math.tanh %36 : vector<16x128xf32>
    %39 = arith.negf %37 : vector<16x128xf32>
    %40 = math.exp %39 : vector<16x128xf32>
    %cst_18 = arith.constant 1.000000e+00 : f32
    %41 = vector.broadcast %cst_18 : f32 to vector<16x128xf32>
    %42 = arith.addf %41, %40 : vector<16x128xf32>
    %43 = arith.divf %41, %42 : vector<16x128xf32>
    %44 = arith.subf %38, %30 : vector<16x128xf32>
    %45 = arith.mulf %44, %43 : vector<16x128xf32>
    %46 = arith.addf %45, %30 : vector<16x128xf32>
    %47 = arith.index_cast %c0_i32_7 : i32 to index
    %c0_19 = arith.constant 0 : index
    %c0_20 = arith.constant 0 : index
    %48 = vector.load %arg8[%47, %c0_19, %c0_20] : memref<16x16x128xf32, #tpu.memory_space<vmem>>, vector<1x16x128xf32>
    %49 = vector.shape_cast %48 : vector<1x16x128xf32> to vector<16x128xf32>
    %50 = vector.shape_cast %46 : vector<16x128xf32> to vector<1x16x128xf32>
    tpu.vector_store %arg8[%47, %c0_19, %c0_20], %50 {strides = array<i32>} : memref<16x16x128xf32, #tpu.memory_space<vmem>>, vector<1x16x128xf32>,
    %c1_i32 = arith.constant 1 : i32
    %51 = arith.index_cast %c1_i32 : i32 to index
    %c0_21 = arith.constant 0 : index
    %c0_22 = arith.constant 0 : index
    %52 = vector.load %arg2[%51, %c0_21, %c0_22] : memref<16x16x256xf32, #tpu.memory_space<vmem>>, vector<1x16x256xf32>
    %53 = vector.shape_cast %52 : vector<1x16x256xf32> to vector<16x256xf32>
    %54 = vector.extract_strided_slice %53 {offsets = [0, 0], sizes = [16, 128], strides = [1, 1]} : vector<16x256xf32> to vector<16x128xf32>
    %55 = vector.extract_strided_slice %53 {offsets = [0, 128], sizes = [16, 128], strides = [1, 1]} : vector<16x256xf32> to vector<16x128xf32>
    %c0_23 = arith.constant 0 : index
    %c0_24 = arith.constant 0 : index
    %c0_25 = arith.constant 0 : index
    %56 = vector.load %arg5[%c0_23, %c0_24, %c0_25] : memref<2x128x256xf32, #tpu.memory_space<vmem>>, vector<1x128x256xf32>
    %57 = vector.shape_cast %56 : vector<1x128x256xf32> to vector<128x256xf32>
    %58 = arith.mulf %0, %46 : vector<16x128xf32>
    %cst_26 = arith.constant dense<0.000000e+00> : vector<16x256xf32>
    %59 = tpu.matmul %58, %57, %cst_26 {dimension_numbers = #tpu.dot_dimension_numbers<[1], [0], [0], [1], [0, 0, 1, 1], [], []>} : vector<16x128xf32>, vector<128x256xf32>, vector<16x256xf32> -> vector<16x256xf32>
    %60 = vector.extract_strided_slice %59 {offsets = [0, 0], sizes = [16, 128], strides = [1, 1]} : vector<16x256xf32> to vector<16x128xf32>
    %61 = vector.extract_strided_slice %59 {offsets = [0, 128], sizes = [16, 128], strides = [1, 1]} : vector<16x256xf32> to vector<16x128xf32>
    %62 = arith.addf %54, %60 : vector<16x128xf32>
    %63 = math.tanh %62 : vector<16x128xf32>
    %64 = arith.addf %55, %61 : vector<16x128xf32>
    %65 = arith.negf %64 : vector<16x128xf32>
    %66 = math.exp %65 : vector<16x128xf32>
    %cst_27 = arith.constant 1.000000e+00 : f32
    %67 = vector.broadcast %cst_27 : f32 to vector<16x128xf32>
    %68 = arith.addf %67, %66 : vector<16x128xf32>
    %69 = arith.divf %67, %68 : vector<16x128xf32>
    %70 = arith.subf %63, %46 : vector<16x128xf32>
    %71 = arith.mulf %70, %69 : vector<16x128xf32>
    %72 = arith.addf %71, %46 : vector<16x128xf32>
    %c1_28 = arith.constant 1 : index
    %c0_29 = arith.constant 0 : index
    %c0_30 = arith.constant 0 : index
    %73 = vector.load %arg5[%c1_28, %c0_29, %c0_30] : memref<2x128x256xf32, #tpu.memory_space<vmem>>, vector<1x128x256xf32>
    %74 = vector.shape_cast %73 : vector<1x128x256xf32> to vector<128x256xf32>
    %75 = arith.mulf %0, %72 : vector<16x128xf32>
    %cst_31 = arith.constant dense<0.000000e+00> : vector<16x256xf32>
    %76 = tpu.matmul %75, %74, %cst_31 {dimension_numbers = #tpu.dot_dimension_numbers<[1], [0], [0], [1], [0, 0, 1, 1], [], []>} : vector<16x128xf32>, vector<128x256xf32>, vector<16x256xf32> -> vector<16x256xf32>
    %77 = arith.addf %76, %4 : vector<16x256xf32>
    %78 = vector.extract_strided_slice %77 {offsets = [0, 0], sizes = [16, 128], strides = [1, 1]} : vector<16x256xf32> to vector<16x128xf32>
    %79 = vector.extract_strided_slice %77 {offsets = [0, 128], sizes = [16, 128], strides = [1, 1]} : vector<16x256xf32> to vector<16x128xf32>
    %80 = math.tanh %78 : vector<16x128xf32>
    %81 = arith.negf %79 : vector<16x128xf32>
    %82 = math.exp %81 : vector<16x128xf32>
    %cst_32 = arith.constant 1.000000e+00 : f32
    %83 = vector.broadcast %cst_32 : f32 to vector<16x128xf32>
    %84 = arith.addf %83, %82 : vector<16x128xf32>
    %85 = arith.divf %83, %84 : vector<16x128xf32>
    %86 = arith.subf %80, %72 : vector<16x128xf32>
    %87 = arith.mulf %86, %85 : vector<16x128xf32>
    %88 = arith.addf %87, %72 : vector<16x128xf32>
    %89 = arith.index_cast %c1_i32 : i32 to index
    %c0_33 = arith.constant 0 : index
    %c0_34 = arith.constant 0 : index
    %90 = vector.load %arg8[%89, %c0_33, %c0_34] : memref<16x16x128xf32, #tpu.memory_space<vmem>>, vector<1x16x128xf32>
    %91 = vector.shape_cast %90 : vector<1x16x128xf32> to vector<16x128xf32>
    %92 = vector.shape_cast %88 : vector<16x128xf32> to vector<1x16x128xf32>
    tpu.vector_store %arg8[%89, %c0_33, %c0_34], %92 {strides = array<i32>} : memref<16x16x128xf32, #tpu.memory_space<vmem>>, vector<1x16x128xf32>,
    %c2_i32 = arith.constant 2 : i32
    %93 = arith.index_cast %c2_i32 : i32 to index
    %c0_35 = arith.constant 0 : index
    %c0_36 = arith.constant 0 : index
    %94 = vector.load %arg2[%93, %c0_35, %c0_36] : memref<16x16x256xf32, #tpu.memory_space<vmem>>, vector<1x16x256xf32>
    %95 = vector.shape_cast %94 : vector<1x16x256xf32> to vector<16x256xf32>
    %96 = vector.extract_strided_slice %95 {offsets = [0, 0], sizes = [16, 128], strides = [1, 1]} : vector<16x256xf32> to vector<16x128xf32>
    %97 = vector.extract_strided_slice %95 {offsets = [0, 128], sizes = [16, 128], strides = [1, 1]} : vector<16x256xf32> to vector<16x128xf32>
    %c0_37 = arith.constant 0 : index
    %c0_38 = arith.constant 0 : index
    %c0_39 = arith.constant 0 : index
    %98 = vector.load %arg5[%c0_37, %c0_38, %c0_39] : memref<2x128x256xf32, #tpu.memory_space<vmem>>, vector<1x128x256xf32>
    %99 = vector.shape_cast %98 : vector<1x128x256xf32> to vector<128x256xf32>
    %100 = arith.mulf %0, %88 : vector<16x128xf32>
    %cst_40 = arith.constant dense<0.000000e+00> : vector<16x256xf32>
    %101 = tpu.matmul %100, %99, %cst_40 {dimension_numbers = #tpu.dot_dimension_numbers<[1], [0], [0], [1], [0, 0, 1, 1], [], []>} : vector<16x128xf32>, vector<128x256xf32>, vector<16x256xf32> -> vector<16x256xf32>
    %102 = vector.extract_strided_slice %101 {offsets = [0, 0], sizes = [16, 128], strides = [1, 1]} : vector<16x256xf32> to vector<16x128xf32>
    %103 = vector.extract_strided_slice %101 {offsets = [0, 128], sizes = [16, 128], strides = [1, 1]} : vector<16x256xf32> to vector<16x128xf32>
    %104 = arith.addf %96, %102 : vector<16x128xf32>
    %105 = math.tanh %104 : vector<16x128xf32>
    %106 = arith.addf %97, %103 : vector<16x128xf32>
    %107 = arith.negf %106 : vector<16x128xf32>
    %108 = math.exp %107 : vector<16x128xf32>
    %cst_41 = arith.constant 1.000000e+00 : f32
    %109 = vector.broadcast %cst_41 : f32 to vector<16x128xf32>
    %110 = arith.addf %109, %108 : vector<16x128xf32>
    %111 = arith.divf %109, %110 : vector<16x128xf32>
    %112 = arith.subf %105, %88 : vector<16x128xf32>
    %113 = arith.mulf %112, %111 : vector<16x128xf32>
    %114 = arith.addf %113, %88 : vector<16x128xf32>
    %c1_42 = arith.constant 1 : index
    %c0_43 = arith.constant 0 : index
    %c0_44 = arith.constant 0 : index
    %115 = vector.load %arg5[%c1_42, %c0_43, %c0_44] : memref<2x128x256xf32, #tpu.memory_space<vmem>>, vector<1x128x256xf32>
    %116 = vector.shape_cast %115 : vector<1x128x256xf32> to vector<128x256xf32>
    %117 = arith.mulf %0, %114 : vector<16x128xf32>
    %cst_45 = arith.constant dense<0.000000e+00> : vector<16x256xf32>
    %118 = tpu.matmul %117, %116, %cst_45 {dimension_numbers = #tpu.dot_dimension_numbers<[1], [0], [0], [1], [0, 0, 1, 1], [], []>} : vector<16x128xf32>, vector<128x256xf32>, vector<16x256xf32> -> vector<16x256xf32>
    %119 = arith.addf %118, %4 : vector<16x256xf32>
    %120 = vector.extract_strided_slice %119 {offsets = [0, 0], sizes = [16, 128], strides = [1, 1]} : vector<16x256xf32> to vector<16x128xf32>
    %121 = vector.extract_strided_slice %119 {offsets = [0, 128], sizes = [16, 128], strides = [1, 1]} : vector<16x256xf32> to vector<16x128xf32>
    %122 = math.tanh %120 : vector<16x128xf32>
    %123 = arith.negf %121 : vector<16x128xf32>
    %124 = math.exp %123 : vector<16x128xf32>
    %cst_46 = arith.constant 1.000000e+00 : f32
    %125 = vector.broadcast %cst_46 : f32 to vector<16x128xf32>
    %126 = arith.addf %125, %124 : vector<16x128xf32>
    %127 = arith.divf %125, %126 : vector<16x128xf32>
    %128 = arith.subf %122, %114 : vector<16x128xf32>
    %129 = arith.mulf %128, %127 : vector<16x128xf32>
    %130 = arith.addf %129, %114 : vector<16x128xf32>
    %131 = arith.index_cast %c2_i32 : i32 to index
    %c0_47 = arith.constant 0 : index
    %c0_48 = arith.constant 0 : index
    %132 = vector.load %arg8[%131, %c0_47, %c0_48] : memref<16x16x128xf32, #tpu.memory_space<vmem>>, vector<1x16x128xf32>
    %133 = vector.shape_cast %132 : vector<1x16x128xf32> to vector<16x128xf32>
    %134 = vector.shape_cast %130 : vector<16x128xf32> to vector<1x16x128xf32>
    tpu.vector_store %arg8[%131, %c0_47, %c0_48], %134 {strides = array<i32>} : memref<16x16x128xf32, #tpu.memory_space<vmem>>, vector<1x16x128xf32>,
    %c3_i32 = arith.constant 3 : i32
    %135 = arith.index_cast %c3_i32 : i32 to index
    %c0_49 = arith.constant 0 : index
    %c0_50 = arith.constant 0 : index
    %136 = vector.load %arg2[%135, %c0_49, %c0_50] : memref<16x16x256xf32, #tpu.memory_space<vmem>>, vector<1x16x256xf32>
    %137 = vector.shape_cast %136 : vector<1x16x256xf32> to vector<16x256xf32>
    %138 = vector.extract_strided_slice %137 {offsets = [0, 0], sizes = [16, 128], strides = [1, 1]} : vector<16x256xf32> to vector<16x128xf32>
    %139 = vector.extract_strided_slice %137 {offsets = [0, 128], sizes = [16, 128], strides = [1, 1]} : vector<16x256xf32> to vector<16x128xf32>
    %c0_51 = arith.constant 0 : index
    %c0_52 = arith.constant 0 : index
    %c0_53 = arith.constant 0 : index
    %140 = vector.load %arg5[%c0_51, %c0_52, %c0_53] : memref<2x128x256xf32, #tpu.memory_space<vmem>>, vector<1x128x256xf32>
    %141 = vector.shape_cast %140 : vector<1x128x256xf32> to vector<128x256xf32>
    %142 = arith.mulf %0, %130 : vector<16x128xf32>
    %cst_54 = arith.constant dense<0.000000e+00> : vector<16x256xf32>
    %143 = tpu.matmul %142, %141, %cst_54 {dimension_numbers = #tpu.dot_dimension_numbers<[1], [0], [0], [1], [0, 0, 1, 1], [], []>} : vector<16x128xf32>, vector<128x256xf32>, vector<16x256xf32> -> vector<16x256xf32>
    %144 = vector.extract_strided_slice %143 {offsets = [0, 0], sizes = [16, 128], strides = [1, 1]} : vector<16x256xf32> to vector<16x128xf32>
    %145 = vector.extract_strided_slice %143 {offsets = [0, 128], sizes = [16, 128], strides = [1, 1]} : vector<16x256xf32> to vector<16x128xf32>
    %146 = arith.addf %138, %144 : vector<16x128xf32>
    %147 = math.tanh %146 : vector<16x128xf32>
    %148 = arith.addf %139, %145 : vector<16x128xf32>
    %149 = arith.negf %148 : vector<16x128xf32>
    %150 = math.exp %149 : vector<16x128xf32>
    %cst_55 = arith.constant 1.000000e+00 : f32
    %151 = vector.broadcast %cst_55 : f32 to vector<16x128xf32>
    %152 = arith.addf %151, %150 : vector<16x128xf32>
    %153 = arith.divf %151, %152 : vector<16x128xf32>
    %154 = arith.subf %147, %130 : vector<16x128xf32>
    %155 = arith.mulf %154, %153 : vector<16x128xf32>
    %156 = arith.addf %155, %130 : vector<16x128xf32>
    %c1_56 = arith.constant 1 : index
    %c0_57 = arith.constant 0 : index
    %c0_58 = arith.constant 0 : index
    %157 = vector.load %arg5[%c1_56, %c0_57, %c0_58] : memref<2x128x256xf32, #tpu.memory_space<vmem>>, vector<1x128x256xf32>
    %158 = vector.shape_cast %157 : vector<1x128x256xf32> to vector<128x256xf32>
    %159 = arith.mulf %0, %156 : vector<16x128xf32>
    %cst_59 = arith.constant dense<0.000000e+00> : vector<16x256xf32>
    %160 = tpu.matmul %159, %158, %cst_59 {dimension_numbers = #tpu.dot_dimension_numbers<[1], [0], [0], [1], [0, 0, 1, 1], [], []>} : vector<16x128xf32>, vector<128x256xf32>, vector<16x256xf32> -> vector<16x256xf32>
    %161 = arith.addf %160, %4 : vector<16x256xf32>
    %162 = vector.extract_strided_slice %161 {offsets = [0, 0], sizes = [16, 128], strides = [1, 1]} : vector<16x256xf32> to vector<16x128xf32>
    %163 = vector.extract_strided_slice %161 {offsets = [0, 128], sizes = [16, 128], strides = [1, 1]} : vector<16x256xf32> to vector<16x128xf32>
    %164 = math.tanh %162 : vector<16x128xf32>
    %165 = arith.negf %163 : vector<16x128xf32>
    %166 = math.exp %165 : vector<16x128xf32>
    %cst_60 = arith.constant 1.000000e+00 : f32
    %167 = vector.broadcast %cst_60 : f32 to vector<16x128xf32>
    %168 = arith.addf %167, %166 : vector<16x128xf32>
    %169 = arith.divf %167, %168 : vector<16x128xf32>
    %170 = arith.subf %164, %156 : vector<16x128xf32>
    %171 = arith.mulf %170, %169 : vector<16x128xf32>
    %172 = arith.addf %171, %156 : vector<16x128xf32>
    %173 = arith.index_cast %c3_i32 : i32 to index
    %c0_61 = arith.constant 0 : index
    %c0_62 = arith.constant 0 : index
    %174 = vector.load %arg8[%173, %c0_61, %c0_62] : memref<16x16x128xf32, #tpu.memory_space<vmem>>, vector<1x16x128xf32>
    %175 = vector.shape_cast %174 : vector<1x16x128xf32> to vector<16x128xf32>
    %176 = vector.shape_cast %172 : vector<16x128xf32> to vector<1x16x128xf32>
    tpu.vector_store %arg8[%173, %c0_61, %c0_62], %176 {strides = array<i32>} : memref<16x16x128xf32, #tpu.memory_space<vmem>>, vector<1x16x128xf32>,
    %c4_i32 = arith.constant 4 : i32
    %177 = arith.index_cast %c4_i32 : i32 to index
    %c0_63 = arith.constant 0 : index
    %c0_64 = arith.constant 0 : index
    %178 = vector.load %arg2[%177, %c0_63, %c0_64] : memref<16x16x256xf32, #tpu.memory_space<vmem>>, vector<1x16x256xf32>
    %179 = vector.shape_cast %178 : vector<1x16x256xf32> to vector<16x256xf32>
    %180 = vector.extract_strided_slice %179 {offsets = [0, 0], sizes = [16, 128], strides = [1, 1]} : vector<16x256xf32> to vector<16x128xf32>
    %181 = vector.extract_strided_slice %179 {offsets = [0, 128], sizes = [16, 128], strides = [1, 1]} : vector<16x256xf32> to vector<16x128xf32>
    %c0_65 = arith.constant 0 : index
    %c0_66 = arith.constant 0 : index
    %c0_67 = arith.constant 0 : index
    %182 = vector.load %arg5[%c0_65, %c0_66, %c0_67] : memref<2x128x256xf32, #tpu.memory_space<vmem>>, vector<1x128x256xf32>
    %183 = vector.shape_cast %182 : vector<1x128x256xf32> to vector<128x256xf32>
    %184 = arith.mulf %0, %172 : vector<16x128xf32>
    %cst_68 = arith.constant dense<0.000000e+00> : vector<16x256xf32>
    %185 = tpu.matmul %184, %183, %cst_68 {dimension_numbers = #tpu.dot_dimension_numbers<[1], [0], [0], [1], [0, 0, 1, 1], [], []>} : vector<16x128xf32>, vector<128x256xf32>, vector<16x256xf32> -> vector<16x256xf32>
    %186 = vector.extract_strided_slice %185 {offsets = [0, 0], sizes = [16, 128], strides = [1, 1]} : vector<16x256xf32> to vector<16x128xf32>
    %187 = vector.extract_strided_slice %185 {offsets = [0, 128], sizes = [16, 128], strides = [1, 1]} : vector<16x256xf32> to vector<16x128xf32>
    %188 = arith.addf %180, %186 : vector<16x128xf32>
    %189 = math.tanh %188 : vector<16x128xf32>
    %190 = arith.addf %181, %187 : vector<16x128xf32>
    %191 = arith.negf %190 : vector<16x128xf32>
    %192 = math.exp %191 : vector<16x128xf32>
    %cst_69 = arith.constant 1.000000e+00 : f32
    %193 = vector.broadcast %cst_69 : f32 to vector<16x128xf32>
    %194 = arith.addf %193, %192 : vector<16x128xf32>
    %195 = arith.divf %193, %194 : vector<16x128xf32>
    %196 = arith.subf %189, %172 : vector<16x128xf32>
    %197 = arith.mulf %196, %195 : vector<16x128xf32>
    %198 = arith.addf %197, %172 : vector<16x128xf32>
    %c1_70 = arith.constant 1 : index
    %c0_71 = arith.constant 0 : index
    %c0_72 = arith.constant 0 : index
    %199 = vector.load %arg5[%c1_70, %c0_71, %c0_72] : memref<2x128x256xf32, #tpu.memory_space<vmem>>, vector<1x128x256xf32>
    %200 = vector.shape_cast %199 : vector<1x128x256xf32> to vector<128x256xf32>
    %201 = arith.mulf %0, %198 : vector<16x128xf32>
    %cst_73 = arith.constant dense<0.000000e+00> : vector<16x256xf32>
    %202 = tpu.matmul %201, %200, %cst_73 {dimension_numbers = #tpu.dot_dimension_numbers<[1], [0], [0], [1], [0, 0, 1, 1], [], []>} : vector<16x128xf32>, vector<128x256xf32>, vector<16x256xf32> -> vector<16x256xf32>
    %203 = arith.addf %202, %4 : vector<16x256xf32>
    %204 = vector.extract_strided_slice %203 {offsets = [0, 0], sizes = [16, 128], strides = [1, 1]} : vector<16x256xf32> to vector<16x128xf32>
    %205 = vector.extract_strided_slice %203 {offsets = [0, 128], sizes = [16, 128], strides = [1, 1]} : vector<16x256xf32> to vector<16x128xf32>
    %206 = math.tanh %204 : vector<16x128xf32>
    %207 = arith.negf %205 : vector<16x128xf32>
    %208 = math.exp %207 : vector<16x128xf32>
    %cst_74 = arith.constant 1.000000e+00 : f32
    %209 = vector.broadcast %cst_74 : f32 to vector<16x128xf32>
    %210 = arith.addf %209, %208 : vector<16x128xf32>
    %211 = arith.divf %209, %210 : vector<16x128xf32>
    %212 = arith.subf %206, %198 : vector<16x128xf32>
    %213 = arith.mulf %212, %211 : vector<16x128xf32>
    %214 = arith.addf %213, %198 : vector<16x128xf32>
    %215 = arith.index_cast %c4_i32 : i32 to index
    %c0_75 = arith.constant 0 : index
    %c0_76 = arith.constant 0 : index
    %216 = vector.load %arg8[%215, %c0_75, %c0_76] : memref<16x16x128xf32, #tpu.memory_space<vmem>>, vector<1x16x128xf32>
    %217 = vector.shape_cast %216 : vector<1x16x128xf32> to vector<16x128xf32>
    %218 = vector.shape_cast %214 : vector<16x128xf32> to vector<1x16x128xf32>
    tpu.vector_store %arg8[%215, %c0_75, %c0_76], %218 {strides = array<i32>} : memref<16x16x128xf32, #tpu.memory_space<vmem>>, vector<1x16x128xf32>,
    %c5_i32 = arith.constant 5 : i32
    %219 = arith.index_cast %c5_i32 : i32 to index
    %c0_77 = arith.constant 0 : index
    %c0_78 = arith.constant 0 : index
    %220 = vector.load %arg2[%219, %c0_77, %c0_78] : memref<16x16x256xf32, #tpu.memory_space<vmem>>, vector<1x16x256xf32>
    %221 = vector.shape_cast %220 : vector<1x16x256xf32> to vector<16x256xf32>
    %222 = vector.extract_strided_slice %221 {offsets = [0, 0], sizes = [16, 128], strides = [1, 1]} : vector<16x256xf32> to vector<16x128xf32>
    %223 = vector.extract_strided_slice %221 {offsets = [0, 128], sizes = [16, 128], strides = [1, 1]} : vector<16x256xf32> to vector<16x128xf32>
    %c0_79 = arith.constant 0 : index
    %c0_80 = arith.constant 0 : index
    %c0_81 = arith.constant 0 : index
    %224 = vector.load %arg5[%c0_79, %c0_80, %c0_81] : memref<2x128x256xf32, #tpu.memory_space<vmem>>, vector<1x128x256xf32>
    %225 = vector.shape_cast %224 : vector<1x128x256xf32> to vector<128x256xf32>
    %226 = arith.mulf %0, %214 : vector<16x128xf32>
    %cst_82 = arith.constant dense<0.000000e+00> : vector<16x256xf32>
    %227 = tpu.matmul %226, %225, %cst_82 {dimension_numbers = #tpu.dot_dimension_numbers<[1], [0], [0], [1], [0, 0, 1, 1], [], []>} : vector<16x128xf32>, vector<128x256xf32>, vector<16x256xf32> -> vector<16x256xf32>
    %228 = vector.extract_strided_slice %227 {offsets = [0, 0], sizes = [16, 128], strides = [1, 1]} : vector<16x256xf32> to vector<16x128xf32>
    %229 = vector.extract_strided_slice %227 {offsets = [0, 128], sizes = [16, 128], strides = [1, 1]} : vector<16x256xf32> to vector<16x128xf32>
    %230 = arith.addf %222, %228 : vector<16x128xf32>
    %231 = math.tanh %230 : vector<16x128xf32>
    %232 = arith.addf %223, %229 : vector<16x128xf32>
    %233 = arith.negf %232 : vector<16x128xf32>
    %234 = math.exp %233 : vector<16x128xf32>
    %cst_83 = arith.constant 1.000000e+00 : f32
    %235 = vector.broadcast %cst_83 : f32 to vector<16x128xf32>
    %236 = arith.addf %235, %234 : vector<16x128xf32>
    %237 = arith.divf %235, %236 : vector<16x128xf32>
    %238 = arith.subf %231, %214 : vector<16x128xf32>
    %239 = arith.mulf %238, %237 : vector<16x128xf32>
    %240 = arith.addf %239, %214 : vector<16x128xf32>
    %c1_84 = arith.constant 1 : index
    %c0_85 = arith.constant 0 : index
    %c0_86 = arith.constant 0 : index
    %241 = vector.load %arg5[%c1_84, %c0_85, %c0_86] : memref<2x128x256xf32, #tpu.memory_space<vmem>>, vector<1x128x256xf32>
    %242 = vector.shape_cast %241 : vector<1x128x256xf32> to vector<128x256xf32>
    %243 = arith.mulf %0, %240 : vector<16x128xf32>
    %cst_87 = arith.constant dense<0.000000e+00> : vector<16x256xf32>
    %244 = tpu.matmul %243, %242, %cst_87 {dimension_numbers = #tpu.dot_dimension_numbers<[1], [0], [0], [1], [0, 0, 1, 1], [], []>} : vector<16x128xf32>, vector<128x256xf32>, vector<16x256xf32> -> vector<16x256xf32>
    %245 = arith.addf %244, %4 : vector<16x256xf32>
    %246 = vector.extract_strided_slice %245 {offsets = [0, 0], sizes = [16, 128], strides = [1, 1]} : vector<16x256xf32> to vector<16x128xf32>
    %247 = vector.extract_strided_slice %245 {offsets = [0, 128], sizes = [16, 128], strides = [1, 1]} : vector<16x256xf32> to vector<16x128xf32>
    %248 = math.tanh %246 : vector<16x128xf32>
    %249 = arith.negf %247 : vector<16x128xf32>
    %250 = math.exp %249 : vector<16x128xf32>
    %cst_88 = arith.constant 1.000000e+00 : f32
    %251 = vector.broadcast %cst_88 : f32 to vector<16x128xf32>
    %252 = arith.addf %251, %250 : vector<16x128xf32>
    %253 = arith.divf %251, %252 : vector<16x128xf32>
    %254 = arith.subf %248, %240 : vector<16x128xf32>
    %255 = arith.mulf %254, %253 : vector<16x128xf32>
    %256 = arith.addf %255, %240 : vector<16x128xf32>
    %257 = arith.index_cast %c5_i32 : i32 to index
    %c0_89 = arith.constant 0 : index
    %c0_90 = arith.constant 0 : index
    %258 = vector.load %arg8[%257, %c0_89, %c0_90] : memref<16x16x128xf32, #tpu.memory_space<vmem>>, vector<1x16x128xf32>
    %259 = vector.shape_cast %258 : vector<1x16x128xf32> to vector<16x128xf32>
    %260 = vector.shape_cast %256 : vector<16x128xf32> to vector<1x16x128xf32>
    tpu.vector_store %arg8[%257, %c0_89, %c0_90], %260 {strides = array<i32>} : memref<16x16x128xf32, #tpu.memory_space<vmem>>, vector<1x16x128xf32>,
    %c6_i32 = arith.constant 6 : i32
    %261 = arith.index_cast %c6_i32 : i32 to index
    %c0_91 = arith.constant 0 : index
    %c0_92 = arith.constant 0 : index
    %262 = vector.load %arg2[%261, %c0_91, %c0_92] : memref<16x16x256xf32, #tpu.memory_space<vmem>>, vector<1x16x256xf32>
    %263 = vector.shape_cast %262 : vector<1x16x256xf32> to vector<16x256xf32>
    %264 = vector.extract_strided_slice %263 {offsets = [0, 0], sizes = [16, 128], strides = [1, 1]} : vector<16x256xf32> to vector<16x128xf32>
    %265 = vector.extract_strided_slice %263 {offsets = [0, 128], sizes = [16, 128], strides = [1, 1]} : vector<16x256xf32> to vector<16x128xf32>
    %c0_93 = arith.constant 0 : index
    %c0_94 = arith.constant 0 : index
    %c0_95 = arith.constant 0 : index
    %266 = vector.load %arg5[%c0_93, %c0_94, %c0_95] : memref<2x128x256xf32, #tpu.memory_space<vmem>>, vector<1x128x256xf32>
    %267 = vector.shape_cast %266 : vector<1x128x256xf32> to vector<128x256xf32>
    %268 = arith.mulf %0, %256 : vector<16x128xf32>
    %cst_96 = arith.constant dense<0.000000e+00> : vector<16x256xf32>
    %269 = tpu.matmul %268, %267, %cst_96 {dimension_numbers = #tpu.dot_dimension_numbers<[1], [0], [0], [1], [0, 0, 1, 1], [], []>} : vector<16x128xf32>, vector<128x256xf32>, vector<16x256xf32> -> vector<16x256xf32>
    %270 = vector.extract_strided_slice %269 {offsets = [0, 0], sizes = [16, 128], strides = [1, 1]} : vector<16x256xf32> to vector<16x128xf32>
    %271 = vector.extract_strided_slice %269 {offsets = [0, 128], sizes = [16, 128], strides = [1, 1]} : vector<16x256xf32> to vector<16x128xf32>
    %272 = arith.addf %264, %270 : vector<16x128xf32>
    %273 = math.tanh %272 : vector<16x128xf32>
    %274 = arith.addf %265, %271 : vector<16x128xf32>
    %275 = arith.negf %274 : vector<16x128xf32>
    %276 = math.exp %275 : vector<16x128xf32>
    %cst_97 = arith.constant 1.000000e+00 : f32
    %277 = vector.broadcast %cst_97 : f32 to vector<16x128xf32>
    %278 = arith.addf %277, %276 : vector<16x128xf32>
    %279 = arith.divf %277, %278 : vector<16x128xf32>
    %280 = arith.subf %273, %256 : vector<16x128xf32>
    %281 = arith.mulf %280, %279 : vector<16x128xf32>
    %282 = arith.addf %281, %256 : vector<16x128xf32>
    %c1_98 = arith.constant 1 : index
    %c0_99 = arith.constant 0 : index
    %c0_100 = arith.constant 0 : index
    %283 = vector.load %arg5[%c1_98, %c0_99, %c0_100] : memref<2x128x256xf32, #tpu.memory_space<vmem>>, vector<1x128x256xf32>
    %284 = vector.shape_cast %283 : vector<1x128x256xf32> to vector<128x256xf32>
    %285 = arith.mulf %0, %282 : vector<16x128xf32>
    %cst_101 = arith.constant dense<0.000000e+00> : vector<16x256xf32>
    %286 = tpu.matmul %285, %284, %cst_101 {dimension_numbers = #tpu.dot_dimension_numbers<[1], [0], [0], [1], [0, 0, 1, 1], [], []>} : vector<16x128xf32>, vector<128x256xf32>, vector<16x256xf32> -> vector<16x256xf32>
    %287 = arith.addf %286, %4 : vector<16x256xf32>
    %288 = vector.extract_strided_slice %287 {offsets = [0, 0], sizes = [16, 128], strides = [1, 1]} : vector<16x256xf32> to vector<16x128xf32>
    %289 = vector.extract_strided_slice %287 {offsets = [0, 128], sizes = [16, 128], strides = [1, 1]} : vector<16x256xf32> to vector<16x128xf32>
    %290 = math.tanh %288 : vector<16x128xf32>
    %291 = arith.negf %289 : vector<16x128xf32>
    %292 = math.exp %291 : vector<16x128xf32>
    %cst_102 = arith.constant 1.000000e+00 : f32
    %293 = vector.broadcast %cst_102 : f32 to vector<16x128xf32>
    %294 = arith.addf %293, %292 : vector<16x128xf32>
    %295 = arith.divf %293, %294 : vector<16x128xf32>
    %296 = arith.subf %290, %282 : vector<16x128xf32>
    %297 = arith.mulf %296, %295 : vector<16x128xf32>
    %298 = arith.addf %297, %282 : vector<16x128xf32>
    %299 = arith.index_cast %c6_i32 : i32 to index
    %c0_103 = arith.constant 0 : index
    %c0_104 = arith.constant 0 : index
    %300 = vector.load %arg8[%299, %c0_103, %c0_104] : memref<16x16x128xf32, #tpu.memory_space<vmem>>, vector<1x16x128xf32>
    %301 = vector.shape_cast %300 : vector<1x16x128xf32> to vector<16x128xf32>
    %302 = vector.shape_cast %298 : vector<16x128xf32> to vector<1x16x128xf32>
    tpu.vector_store %arg8[%299, %c0_103, %c0_104], %302 {strides = array<i32>} : memref<16x16x128xf32, #tpu.memory_space<vmem>>, vector<1x16x128xf32>,
    %c7_i32 = arith.constant 7 : i32
    %303 = arith.index_cast %c7_i32 : i32 to index
    %c0_105 = arith.constant 0 : index
    %c0_106 = arith.constant 0 : index
    %304 = vector.load %arg2[%303, %c0_105, %c0_106] : memref<16x16x256xf32, #tpu.memory_space<vmem>>, vector<1x16x256xf32>
    %305 = vector.shape_cast %304 : vector<1x16x256xf32> to vector<16x256xf32>
    %306 = vector.extract_strided_slice %305 {offsets = [0, 0], sizes = [16, 128], strides = [1, 1]} : vector<16x256xf32> to vector<16x128xf32>
    %307 = vector.extract_strided_slice %305 {offsets = [0, 128], sizes = [16, 128], strides = [1, 1]} : vector<16x256xf32> to vector<16x128xf32>
    %c0_107 = arith.constant 0 : index
    %c0_108 = arith.constant 0 : index
    %c0_109 = arith.constant 0 : index
    %308 = vector.load %arg5[%c0_107, %c0_108, %c0_109] : memref<2x128x256xf32, #tpu.memory_space<vmem>>, vector<1x128x256xf32>
    %309 = vector.shape_cast %308 : vector<1x128x256xf32> to vector<128x256xf32>
    %310 = arith.mulf %0, %298 : vector<16x128xf32>
    %cst_110 = arith.constant dense<0.000000e+00> : vector<16x256xf32>
    %311 = tpu.matmul %310, %309, %cst_110 {dimension_numbers = #tpu.dot_dimension_numbers<[1], [0], [0], [1], [0, 0, 1, 1], [], []>} : vector<16x128xf32>, vector<128x256xf32>, vector<16x256xf32> -> vector<16x256xf32>
    %312 = vector.extract_strided_slice %311 {offsets = [0, 0], sizes = [16, 128], strides = [1, 1]} : vector<16x256xf32> to vector<16x128xf32>
    %313 = vector.extract_strided_slice %311 {offsets = [0, 128], sizes = [16, 128], strides = [1, 1]} : vector<16x256xf32> to vector<16x128xf32>
    %314 = arith.addf %306, %312 : vector<16x128xf32>
    %315 = math.tanh %314 : vector<16x128xf32>
    %316 = arith.addf %307, %313 : vector<16x128xf32>
    %317 = arith.negf %316 : vector<16x128xf32>
    %318 = math.exp %317 : vector<16x128xf32>
    %cst_111 = arith.constant 1.000000e+00 : f32
    %319 = vector.broadcast %cst_111 : f32 to vector<16x128xf32>
    %320 = arith.addf %319, %318 : vector<16x128xf32>
    %321 = arith.divf %319, %320 : vector<16x128xf32>
    %322 = arith.subf %315, %298 : vector<16x128xf32>
    %323 = arith.mulf %322, %321 : vector<16x128xf32>
    %324 = arith.addf %323, %298 : vector<16x128xf32>
    %c1_112 = arith.constant 1 : index
    %c0_113 = arith.constant 0 : index
    %c0_114 = arith.constant 0 : index
    %325 = vector.load %arg5[%c1_112, %c0_113, %c0_114] : memref<2x128x256xf32, #tpu.memory_space<vmem>>, vector<1x128x256xf32>
    %326 = vector.shape_cast %325 : vector<1x128x256xf32> to vector<128x256xf32>
    %327 = arith.mulf %0, %324 : vector<16x128xf32>
    %cst_115 = arith.constant dense<0.000000e+00> : vector<16x256xf32>
    %328 = tpu.matmul %327, %326, %cst_115 {dimension_numbers = #tpu.dot_dimension_numbers<[1], [0], [0], [1], [0, 0, 1, 1], [], []>} : vector<16x128xf32>, vector<128x256xf32>, vector<16x256xf32> -> vector<16x256xf32>
    %329 = arith.addf %328, %4 : vector<16x256xf32>
    %330 = vector.extract_strided_slice %329 {offsets = [0, 0], sizes = [16, 128], strides = [1, 1]} : vector<16x256xf32> to vector<16x128xf32>
    %331 = vector.extract_strided_slice %329 {offsets = [0, 128], sizes = [16, 128], strides = [1, 1]} : vector<16x256xf32> to vector<16x128xf32>
    %332 = math.tanh %330 : vector<16x128xf32>
    %333 = arith.negf %331 : vector<16x128xf32>
    %334 = math.exp %333 : vector<16x128xf32>
    %cst_116 = arith.constant 1.000000e+00 : f32
    %335 = vector.broadcast %cst_116 : f32 to vector<16x128xf32>
    %336 = arith.addf %335, %334 : vector<16x128xf32>
    %337 = arith.divf %335, %336 : vector<16x128xf32>
    %338 = arith.subf %332, %324 : vector<16x128xf32>
    %339 = arith.mulf %338, %337 : vector<16x128xf32>
    %340 = arith.addf %339, %324 : vector<16x128xf32>
    %341 = arith.index_cast %c7_i32 : i32 to index
    %c0_117 = arith.constant 0 : index
    %c0_118 = arith.constant 0 : index
    %342 = vector.load %arg8[%341, %c0_117, %c0_118] : memref<16x16x128xf32, #tpu.memory_space<vmem>>, vector<1x16x128xf32>
    %343 = vector.shape_cast %342 : vector<1x16x128xf32> to vector<16x128xf32>
    %344 = vector.shape_cast %340 : vector<16x128xf32> to vector<1x16x128xf32>
    tpu.vector_store %arg8[%341, %c0_117, %c0_118], %344 {strides = array<i32>} : memref<16x16x128xf32, #tpu.memory_space<vmem>>, vector<1x16x128xf32>,
    %c8_i32 = arith.constant 8 : i32
    %345 = arith.index_cast %c8_i32 : i32 to index
    %c0_119 = arith.constant 0 : index
    %c0_120 = arith.constant 0 : index
    %346 = vector.load %arg2[%345, %c0_119, %c0_120] : memref<16x16x256xf32, #tpu.memory_space<vmem>>, vector<1x16x256xf32>
    %347 = vector.shape_cast %346 : vector<1x16x256xf32> to vector<16x256xf32>
    %348 = vector.extract_strided_slice %347 {offsets = [0, 0], sizes = [16, 128], strides = [1, 1]} : vector<16x256xf32> to vector<16x128xf32>
    %349 = vector.extract_strided_slice %347 {offsets = [0, 128], sizes = [16, 128], strides = [1, 1]} : vector<16x256xf32> to vector<16x128xf32>
    %c0_121 = arith.constant 0 : index
    %c0_122 = arith.constant 0 : index
    %c0_123 = arith.constant 0 : index
    %350 = vector.load %arg5[%c0_121, %c0_122, %c0_123] : memref<2x128x256xf32, #tpu.memory_space<vmem>>, vector<1x128x256xf32>
    %351 = vector.shape_cast %350 : vector<1x128x256xf32> to vector<128x256xf32>
    %352 = arith.mulf %0, %340 : vector<16x128xf32>
    %cst_124 = arith.constant dense<0.000000e+00> : vector<16x256xf32>
    %353 = tpu.matmul %352, %351, %cst_124 {dimension_numbers = #tpu.dot_dimension_numbers<[1], [0], [0], [1], [0, 0, 1, 1], [], []>} : vector<16x128xf32>, vector<128x256xf32>, vector<16x256xf32> -> vector<16x256xf32>
    %354 = vector.extract_strided_slice %353 {offsets = [0, 0], sizes = [16, 128], strides = [1, 1]} : vector<16x256xf32> to vector<16x128xf32>
    %355 = vector.extract_strided_slice %353 {offsets = [0, 128], sizes = [16, 128], strides = [1, 1]} : vector<16x256xf32> to vector<16x128xf32>
    %356 = arith.addf %348, %354 : vector<16x128xf32>
    %357 = math.tanh %356 : vector<16x128xf32>
    %358 = arith.addf %349, %355 : vector<16x128xf32>
    %359 = arith.negf %358 : vector<16x128xf32>
    %360 = math.exp %359 : vector<16x128xf32>
    %cst_125 = arith.constant 1.000000e+00 : f32
    %361 = vector.broadcast %cst_125 : f32 to vector<16x128xf32>
    %362 = arith.addf %361, %360 : vector<16x128xf32>
    %363 = arith.divf %361, %362 : vector<16x128xf32>
    %364 = arith.subf %357, %340 : vector<16x128xf32>
    %365 = arith.mulf %364, %363 : vector<16x128xf32>
    %366 = arith.addf %365, %340 : vector<16x128xf32>
    %c1_126 = arith.constant 1 : index
    %c0_127 = arith.constant 0 : index
    %c0_128 = arith.constant 0 : index
    %367 = vector.load %arg5[%c1_126, %c0_127, %c0_128] : memref<2x128x256xf32, #tpu.memory_space<vmem>>, vector<1x128x256xf32>
    %368 = vector.shape_cast %367 : vector<1x128x256xf32> to vector<128x256xf32>
    %369 = arith.mulf %0, %366 : vector<16x128xf32>
    %cst_129 = arith.constant dense<0.000000e+00> : vector<16x256xf32>
    %370 = tpu.matmul %369, %368, %cst_129 {dimension_numbers = #tpu.dot_dimension_numbers<[1], [0], [0], [1], [0, 0, 1, 1], [], []>} : vector<16x128xf32>, vector<128x256xf32>, vector<16x256xf32> -> vector<16x256xf32>
    %371 = arith.addf %370, %4 : vector<16x256xf32>
    %372 = vector.extract_strided_slice %371 {offsets = [0, 0], sizes = [16, 128], strides = [1, 1]} : vector<16x256xf32> to vector<16x128xf32>
    %373 = vector.extract_strided_slice %371 {offsets = [0, 128], sizes = [16, 128], strides = [1, 1]} : vector<16x256xf32> to vector<16x128xf32>
    %374 = math.tanh %372 : vector<16x128xf32>
    %375 = arith.negf %373 : vector<16x128xf32>
    %376 = math.exp %375 : vector<16x128xf32>
    %cst_130 = arith.constant 1.000000e+00 : f32
    %377 = vector.broadcast %cst_130 : f32 to vector<16x128xf32>
    %378 = arith.addf %377, %376 : vector<16x128xf32>
    %379 = arith.divf %377, %378 : vector<16x128xf32>
    %380 = arith.subf %374, %366 : vector<16x128xf32>
    %381 = arith.mulf %380, %379 : vector<16x128xf32>
    %382 = arith.addf %381, %366 : vector<16x128xf32>
    %383 = arith.index_cast %c8_i32 : i32 to index
    %c0_131 = arith.constant 0 : index
    %c0_132 = arith.constant 0 : index
    %384 = vector.load %arg8[%383, %c0_131, %c0_132] : memref<16x16x128xf32, #tpu.memory_space<vmem>>, vector<1x16x128xf32>
    %385 = vector.shape_cast %384 : vector<1x16x128xf32> to vector<16x128xf32>
    %386 = vector.shape_cast %382 : vector<16x128xf32> to vector<1x16x128xf32>
    tpu.vector_store %arg8[%383, %c0_131, %c0_132], %386 {strides = array<i32>} : memref<16x16x128xf32, #tpu.memory_space<vmem>>, vector<1x16x128xf32>,
    %c9_i32 = arith.constant 9 : i32
    %387 = arith.index_cast %c9_i32 : i32 to index
    %c0_133 = arith.constant 0 : index
    %c0_134 = arith.constant 0 : index
    %388 = vector.load %arg2[%387, %c0_133, %c0_134] : memref<16x16x256xf32, #tpu.memory_space<vmem>>, vector<1x16x256xf32>
    %389 = vector.shape_cast %388 : vector<1x16x256xf32> to vector<16x256xf32>
    %390 = vector.extract_strided_slice %389 {offsets = [0, 0], sizes = [16, 128], strides = [1, 1]} : vector<16x256xf32> to vector<16x128xf32>
    %391 = vector.extract_strided_slice %389 {offsets = [0, 128], sizes = [16, 128], strides = [1, 1]} : vector<16x256xf32> to vector<16x128xf32>
    %c0_135 = arith.constant 0 : index
    %c0_136 = arith.constant 0 : index
    %c0_137 = arith.constant 0 : index
    %392 = vector.load %arg5[%c0_135, %c0_136, %c0_137] : memref<2x128x256xf32, #tpu.memory_space<vmem>>, vector<1x128x256xf32>
    %393 = vector.shape_cast %392 : vector<1x128x256xf32> to vector<128x256xf32>
    %394 = arith.mulf %0, %382 : vector<16x128xf32>
    %cst_138 = arith.constant dense<0.000000e+00> : vector<16x256xf32>
    %395 = tpu.matmul %394, %393, %cst_138 {dimension_numbers = #tpu.dot_dimension_numbers<[1], [0], [0], [1], [0, 0, 1, 1], [], []>} : vector<16x128xf32>, vector<128x256xf32>, vector<16x256xf32> -> vector<16x256xf32>
    %396 = vector.extract_strided_slice %395 {offsets = [0, 0], sizes = [16, 128], strides = [1, 1]} : vector<16x256xf32> to vector<16x128xf32>
    %397 = vector.extract_strided_slice %395 {offsets = [0, 128], sizes = [16, 128], strides = [1, 1]} : vector<16x256xf32> to vector<16x128xf32>
    %398 = arith.addf %390, %396 : vector<16x128xf32>
    %399 = math.tanh %398 : vector<16x128xf32>
    %400 = arith.addf %391, %397 : vector<16x128xf32>
    %401 = arith.negf %400 : vector<16x128xf32>
    %402 = math.exp %401 : vector<16x128xf32>
    %cst_139 = arith.constant 1.000000e+00 : f32
    %403 = vector.broadcast %cst_139 : f32 to vector<16x128xf32>
    %404 = arith.addf %403, %402 : vector<16x128xf32>
    %405 = arith.divf %403, %404 : vector<16x128xf32>
    %406 = arith.subf %399, %382 : vector<16x128xf32>
    %407 = arith.mulf %406, %405 : vector<16x128xf32>
    %408 = arith.addf %407, %382 : vector<16x128xf32>
    %c1_140 = arith.constant 1 : index
    %c0_141 = arith.constant 0 : index
    %c0_142 = arith.constant 0 : index
    %409 = vector.load %arg5[%c1_140, %c0_141, %c0_142] : memref<2x128x256xf32, #tpu.memory_space<vmem>>, vector<1x128x256xf32>
    %410 = vector.shape_cast %409 : vector<1x128x256xf32> to vector<128x256xf32>
    %411 = arith.mulf %0, %408 : vector<16x128xf32>
    %cst_143 = arith.constant dense<0.000000e+00> : vector<16x256xf32>
    %412 = tpu.matmul %411, %410, %cst_143 {dimension_numbers = #tpu.dot_dimension_numbers<[1], [0], [0], [1], [0, 0, 1, 1], [], []>} : vector<16x128xf32>, vector<128x256xf32>, vector<16x256xf32> -> vector<16x256xf32>
    %413 = arith.addf %412, %4 : vector<16x256xf32>
    %414 = vector.extract_strided_slice %413 {offsets = [0, 0], sizes = [16, 128], strides = [1, 1]} : vector<16x256xf32> to vector<16x128xf32>
    %415 = vector.extract_strided_slice %413 {offsets = [0, 128], sizes = [16, 128], strides = [1, 1]} : vector<16x256xf32> to vector<16x128xf32>
    %416 = math.tanh %414 : vector<16x128xf32>
    %417 = arith.negf %415 : vector<16x128xf32>
    %418 = math.exp %417 : vector<16x128xf32>
    %cst_144 = arith.constant 1.000000e+00 : f32
    %419 = vector.broadcast %cst_144 : f32 to vector<16x128xf32>
    %420 = arith.addf %419, %418 : vector<16x128xf32>
    %421 = arith.divf %419, %420 : vector<16x128xf32>
    %422 = arith.subf %416, %408 : vector<16x128xf32>
    %423 = arith.mulf %422, %421 : vector<16x128xf32>
    %424 = arith.addf %423, %408 : vector<16x128xf32>
    %425 = arith.index_cast %c9_i32 : i32 to index
    %c0_145 = arith.constant 0 : index
    %c0_146 = arith.constant 0 : index
    %426 = vector.load %arg8[%425, %c0_145, %c0_146] : memref<16x16x128xf32, #tpu.memory_space<vmem>>, vector<1x16x128xf32>
    %427 = vector.shape_cast %426 : vector<1x16x128xf32> to vector<16x128xf32>
    %428 = vector.shape_cast %424 : vector<16x128xf32> to vector<1x16x128xf32>
    tpu.vector_store %arg8[%425, %c0_145, %c0_146], %428 {strides = array<i32>} : memref<16x16x128xf32, #tpu.memory_space<vmem>>, vector<1x16x128xf32>,
    %c10_i32 = arith.constant 10 : i32
    %429 = arith.index_cast %c10_i32 : i32 to index
    %c0_147 = arith.constant 0 : index
    %c0_148 = arith.constant 0 : index
    %430 = vector.load %arg2[%429, %c0_147, %c0_148] : memref<16x16x256xf32, #tpu.memory_space<vmem>>, vector<1x16x256xf32>
    %431 = vector.shape_cast %430 : vector<1x16x256xf32> to vector<16x256xf32>
    %432 = vector.extract_strided_slice %431 {offsets = [0, 0], sizes = [16, 128], strides = [1, 1]} : vector<16x256xf32> to vector<16x128xf32>
    %433 = vector.extract_strided_slice %431 {offsets = [0, 128], sizes = [16, 128], strides = [1, 1]} : vector<16x256xf32> to vector<16x128xf32>
    %c0_149 = arith.constant 0 : index
    %c0_150 = arith.constant 0 : index
    %c0_151 = arith.constant 0 : index
    %434 = vector.load %arg5[%c0_149, %c0_150, %c0_151] : memref<2x128x256xf32, #tpu.memory_space<vmem>>, vector<1x128x256xf32>
    %435 = vector.shape_cast %434 : vector<1x128x256xf32> to vector<128x256xf32>
    %436 = arith.mulf %0, %424 : vector<16x128xf32>
    %cst_152 = arith.constant dense<0.000000e+00> : vector<16x256xf32>
    %437 = tpu.matmul %436, %435, %cst_152 {dimension_numbers = #tpu.dot_dimension_numbers<[1], [0], [0], [1], [0, 0, 1, 1], [], []>} : vector<16x128xf32>, vector<128x256xf32>, vector<16x256xf32> -> vector<16x256xf32>
    %438 = vector.extract_strided_slice %437 {offsets = [0, 0], sizes = [16, 128], strides = [1, 1]} : vector<16x256xf32> to vector<16x128xf32>
    %439 = vector.extract_strided_slice %437 {offsets = [0, 128], sizes = [16, 128], strides = [1, 1]} : vector<16x256xf32> to vector<16x128xf32>
    %440 = arith.addf %432, %438 : vector<16x128xf32>
    %441 = math.tanh %440 : vector<16x128xf32>
    %442 = arith.addf %433, %439 : vector<16x128xf32>
    %443 = arith.negf %442 : vector<16x128xf32>
    %444 = math.exp %443 : vector<16x128xf32>
    %cst_153 = arith.constant 1.000000e+00 : f32
    %445 = vector.broadcast %cst_153 : f32 to vector<16x128xf32>
    %446 = arith.addf %445, %444 : vector<16x128xf32>
    %447 = arith.divf %445, %446 : vector<16x128xf32>
    %448 = arith.subf %441, %424 : vector<16x128xf32>
    %449 = arith.mulf %448, %447 : vector<16x128xf32>
    %450 = arith.addf %449, %424 : vector<16x128xf32>
    %c1_154 = arith.constant 1 : index
    %c0_155 = arith.constant 0 : index
    %c0_156 = arith.constant 0 : index
    %451 = vector.load %arg5[%c1_154, %c0_155, %c0_156] : memref<2x128x256xf32, #tpu.memory_space<vmem>>, vector<1x128x256xf32>
    %452 = vector.shape_cast %451 : vector<1x128x256xf32> to vector<128x256xf32>
    %453 = arith.mulf %0, %450 : vector<16x128xf32>
    %cst_157 = arith.constant dense<0.000000e+00> : vector<16x256xf32>
    %454 = tpu.matmul %453, %452, %cst_157 {dimension_numbers = #tpu.dot_dimension_numbers<[1], [0], [0], [1], [0, 0, 1, 1], [], []>} : vector<16x128xf32>, vector<128x256xf32>, vector<16x256xf32> -> vector<16x256xf32>
    %455 = arith.addf %454, %4 : vector<16x256xf32>
    %456 = vector.extract_strided_slice %455 {offsets = [0, 0], sizes = [16, 128], strides = [1, 1]} : vector<16x256xf32> to vector<16x128xf32>
    %457 = vector.extract_strided_slice %455 {offsets = [0, 128], sizes = [16, 128], strides = [1, 1]} : vector<16x256xf32> to vector<16x128xf32>
    %458 = math.tanh %456 : vector<16x128xf32>
    %459 = arith.negf %457 : vector<16x128xf32>
    %460 = math.exp %459 : vector<16x128xf32>
    %cst_158 = arith.constant 1.000000e+00 : f32
    %461 = vector.broadcast %cst_158 : f32 to vector<16x128xf32>
    %462 = arith.addf %461, %460 : vector<16x128xf32>
    %463 = arith.divf %461, %462 : vector<16x128xf32>
    %464 = arith.subf %458, %450 : vector<16x128xf32>
    %465 = arith.mulf %464, %463 : vector<16x128xf32>
    %466 = arith.addf %465, %450 : vector<16x128xf32>
    %467 = arith.index_cast %c10_i32 : i32 to index
    %c0_159 = arith.constant 0 : index
    %c0_160 = arith.constant 0 : index
    %468 = vector.load %arg8[%467, %c0_159, %c0_160] : memref<16x16x128xf32, #tpu.memory_space<vmem>>, vector<1x16x128xf32>
    %469 = vector.shape_cast %468 : vector<1x16x128xf32> to vector<16x128xf32>
    %470 = vector.shape_cast %466 : vector<16x128xf32> to vector<1x16x128xf32>
    tpu.vector_store %arg8[%467, %c0_159, %c0_160], %470 {strides = array<i32>} : memref<16x16x128xf32, #tpu.memory_space<vmem>>, vector<1x16x128xf32>,
    %c11_i32 = arith.constant 11 : i32
    %471 = arith.index_cast %c11_i32 : i32 to index
    %c0_161 = arith.constant 0 : index
    %c0_162 = arith.constant 0 : index
    %472 = vector.load %arg2[%471, %c0_161, %c0_162] : memref<16x16x256xf32, #tpu.memory_space<vmem>>, vector<1x16x256xf32>
    %473 = vector.shape_cast %472 : vector<1x16x256xf32> to vector<16x256xf32>
    %474 = vector.extract_strided_slice %473 {offsets = [0, 0], sizes = [16, 128], strides = [1, 1]} : vector<16x256xf32> to vector<16x128xf32>
    %475 = vector.extract_strided_slice %473 {offsets = [0, 128], sizes = [16, 128], strides = [1, 1]} : vector<16x256xf32> to vector<16x128xf32>
    %c0_163 = arith.constant 0 : index
    %c0_164 = arith.constant 0 : index
    %c0_165 = arith.constant 0 : index
    %476 = vector.load %arg5[%c0_163, %c0_164, %c0_165] : memref<2x128x256xf32, #tpu.memory_space<vmem>>, vector<1x128x256xf32>
    %477 = vector.shape_cast %476 : vector<1x128x256xf32> to vector<128x256xf32>
    %478 = arith.mulf %0, %466 : vector<16x128xf32>
    %cst_166 = arith.constant dense<0.000000e+00> : vector<16x256xf32>
    %479 = tpu.matmul %478, %477, %cst_166 {dimension_numbers = #tpu.dot_dimension_numbers<[1], [0], [0], [1], [0, 0, 1, 1], [], []>} : vector<16x128xf32>, vector<128x256xf32>, vector<16x256xf32> -> vector<16x256xf32>
    %480 = vector.extract_strided_slice %479 {offsets = [0, 0], sizes = [16, 128], strides = [1, 1]} : vector<16x256xf32> to vector<16x128xf32>
    %481 = vector.extract_strided_slice %479 {offsets = [0, 128], sizes = [16, 128], strides = [1, 1]} : vector<16x256xf32> to vector<16x128xf32>
    %482 = arith.addf %474, %480 : vector<16x128xf32>
    %483 = math.tanh %482 : vector<16x128xf32>
    %484 = arith.addf %475, %481 : vector<16x128xf32>
    %485 = arith.negf %484 : vector<16x128xf32>
    %486 = math.exp %485 : vector<16x128xf32>
    %cst_167 = arith.constant 1.000000e+00 : f32
    %487 = vector.broadcast %cst_167 : f32 to vector<16x128xf32>
    %488 = arith.addf %487, %486 : vector<16x128xf32>
    %489 = arith.divf %487, %488 : vector<16x128xf32>
    %490 = arith.subf %483, %466 : vector<16x128xf32>
    %491 = arith.mulf %490, %489 : vector<16x128xf32>
    %492 = arith.addf %491, %466 : vector<16x128xf32>
    %c1_168 = arith.constant 1 : index
    %c0_169 = arith.constant 0 : index
    %c0_170 = arith.constant 0 : index
    %493 = vector.load %arg5[%c1_168, %c0_169, %c0_170] : memref<2x128x256xf32, #tpu.memory_space<vmem>>, vector<1x128x256xf32>
    %494 = vector.shape_cast %493 : vector<1x128x256xf32> to vector<128x256xf32>
    %495 = arith.mulf %0, %492 : vector<16x128xf32>
    %cst_171 = arith.constant dense<0.000000e+00> : vector<16x256xf32>
    %496 = tpu.matmul %495, %494, %cst_171 {dimension_numbers = #tpu.dot_dimension_numbers<[1], [0], [0], [1], [0, 0, 1, 1], [], []>} : vector<16x128xf32>, vector<128x256xf32>, vector<16x256xf32> -> vector<16x256xf32>
    %497 = arith.addf %496, %4 : vector<16x256xf32>
    %498 = vector.extract_strided_slice %497 {offsets = [0, 0], sizes = [16, 128], strides = [1, 1]} : vector<16x256xf32> to vector<16x128xf32>
    %499 = vector.extract_strided_slice %497 {offsets = [0, 128], sizes = [16, 128], strides = [1, 1]} : vector<16x256xf32> to vector<16x128xf32>
    %500 = math.tanh %498 : vector<16x128xf32>
    %501 = arith.negf %499 : vector<16x128xf32>
    %502 = math.exp %501 : vector<16x128xf32>
    %cst_172 = arith.constant 1.000000e+00 : f32
    %503 = vector.broadcast %cst_172 : f32 to vector<16x128xf32>
    %504 = arith.addf %503, %502 : vector<16x128xf32>
    %505 = arith.divf %503, %504 : vector<16x128xf32>
    %506 = arith.subf %500, %492 : vector<16x128xf32>
    %507 = arith.mulf %506, %505 : vector<16x128xf32>
    %508 = arith.addf %507, %492 : vector<16x128xf32>
    %509 = arith.index_cast %c11_i32 : i32 to index
    %c0_173 = arith.constant 0 : index
    %c0_174 = arith.constant 0 : index
    %510 = vector.load %arg8[%509, %c0_173, %c0_174] : memref<16x16x128xf32, #tpu.memory_space<vmem>>, vector<1x16x128xf32>
    %511 = vector.shape_cast %510 : vector<1x16x128xf32> to vector<16x128xf32>
    %512 = vector.shape_cast %508 : vector<16x128xf32> to vector<1x16x128xf32>
    tpu.vector_store %arg8[%509, %c0_173, %c0_174], %512 {strides = array<i32>} : memref<16x16x128xf32, #tpu.memory_space<vmem>>, vector<1x16x128xf32>,
    %c12_i32 = arith.constant 12 : i32
    %513 = arith.index_cast %c12_i32 : i32 to index
    %c0_175 = arith.constant 0 : index
    %c0_176 = arith.constant 0 : index
    %514 = vector.load %arg2[%513, %c0_175, %c0_176] : memref<16x16x256xf32, #tpu.memory_space<vmem>>, vector<1x16x256xf32>
    %515 = vector.shape_cast %514 : vector<1x16x256xf32> to vector<16x256xf32>
    %516 = vector.extract_strided_slice %515 {offsets = [0, 0], sizes = [16, 128], strides = [1, 1]} : vector<16x256xf32> to vector<16x128xf32>
    %517 = vector.extract_strided_slice %515 {offsets = [0, 128], sizes = [16, 128], strides = [1, 1]} : vector<16x256xf32> to vector<16x128xf32>
    %c0_177 = arith.constant 0 : index
    %c0_178 = arith.constant 0 : index
    %c0_179 = arith.constant 0 : index
    %518 = vector.load %arg5[%c0_177, %c0_178, %c0_179] : memref<2x128x256xf32, #tpu.memory_space<vmem>>, vector<1x128x256xf32>
    %519 = vector.shape_cast %518 : vector<1x128x256xf32> to vector<128x256xf32>
    %520 = arith.mulf %0, %508 : vector<16x128xf32>
    %cst_180 = arith.constant dense<0.000000e+00> : vector<16x256xf32>
    %521 = tpu.matmul %520, %519, %cst_180 {dimension_numbers = #tpu.dot_dimension_numbers<[1], [0], [0], [1], [0, 0, 1, 1], [], []>} : vector<16x128xf32>, vector<128x256xf32>, vector<16x256xf32> -> vector<16x256xf32>
    %522 = vector.extract_strided_slice %521 {offsets = [0, 0], sizes = [16, 128], strides = [1, 1]} : vector<16x256xf32> to vector<16x128xf32>
    %523 = vector.extract_strided_slice %521 {offsets = [0, 128], sizes = [16, 128], strides = [1, 1]} : vector<16x256xf32> to vector<16x128xf32>
    %524 = arith.addf %516, %522 : vector<16x128xf32>
    %525 = math.tanh %524 : vector<16x128xf32>
    %526 = arith.addf %517, %523 : vector<16x128xf32>
    %527 = arith.negf %526 : vector<16x128xf32>
    %528 = math.exp %527 : vector<16x128xf32>
    %cst_181 = arith.constant 1.000000e+00 : f32
    %529 = vector.broadcast %cst_181 : f32 to vector<16x128xf32>
    %530 = arith.addf %529, %528 : vector<16x128xf32>
    %531 = arith.divf %529, %530 : vector<16x128xf32>
    %532 = arith.subf %525, %508 : vector<16x128xf32>
    %533 = arith.mulf %532, %531 : vector<16x128xf32>
    %534 = arith.addf %533, %508 : vector<16x128xf32>
    %c1_182 = arith.constant 1 : index
    %c0_183 = arith.constant 0 : index
    %c0_184 = arith.constant 0 : index
    %535 = vector.load %arg5[%c1_182, %c0_183, %c0_184] : memref<2x128x256xf32, #tpu.memory_space<vmem>>, vector<1x128x256xf32>
    %536 = vector.shape_cast %535 : vector<1x128x256xf32> to vector<128x256xf32>
    %537 = arith.mulf %0, %534 : vector<16x128xf32>
    %cst_185 = arith.constant dense<0.000000e+00> : vector<16x256xf32>
    %538 = tpu.matmul %537, %536, %cst_185 {dimension_numbers = #tpu.dot_dimension_numbers<[1], [0], [0], [1], [0, 0, 1, 1], [], []>} : vector<16x128xf32>, vector<128x256xf32>, vector<16x256xf32> -> vector<16x256xf32>
    %539 = arith.addf %538, %4 : vector<16x256xf32>
    %540 = vector.extract_strided_slice %539 {offsets = [0, 0], sizes = [16, 128], strides = [1, 1]} : vector<16x256xf32> to vector<16x128xf32>
    %541 = vector.extract_strided_slice %539 {offsets = [0, 128], sizes = [16, 128], strides = [1, 1]} : vector<16x256xf32> to vector<16x128xf32>
    %542 = math.tanh %540 : vector<16x128xf32>
    %543 = arith.negf %541 : vector<16x128xf32>
    %544 = math.exp %543 : vector<16x128xf32>
    %cst_186 = arith.constant 1.000000e+00 : f32
    %545 = vector.broadcast %cst_186 : f32 to vector<16x128xf32>
    %546 = arith.addf %545, %544 : vector<16x128xf32>
    %547 = arith.divf %545, %546 : vector<16x128xf32>
    %548 = arith.subf %542, %534 : vector<16x128xf32>
    %549 = arith.mulf %548, %547 : vector<16x128xf32>
    %550 = arith.addf %549, %534 : vector<16x128xf32>
    %551 = arith.index_cast %c12_i32 : i32 to index
    %c0_187 = arith.constant 0 : index
    %c0_188 = arith.constant 0 : index
    %552 = vector.load %arg8[%551, %c0_187, %c0_188] : memref<16x16x128xf32, #tpu.memory_space<vmem>>, vector<1x16x128xf32>
    %553 = vector.shape_cast %552 : vector<1x16x128xf32> to vector<16x128xf32>
    %554 = vector.shape_cast %550 : vector<16x128xf32> to vector<1x16x128xf32>
    tpu.vector_store %arg8[%551, %c0_187, %c0_188], %554 {strides = array<i32>} : memref<16x16x128xf32, #tpu.memory_space<vmem>>, vector<1x16x128xf32>,
    %c13_i32 = arith.constant 13 : i32
    %555 = arith.index_cast %c13_i32 : i32 to index
    %c0_189 = arith.constant 0 : index
    %c0_190 = arith.constant 0 : index
    %556 = vector.load %arg2[%555, %c0_189, %c0_190] : memref<16x16x256xf32, #tpu.memory_space<vmem>>, vector<1x16x256xf32>
    %557 = vector.shape_cast %556 : vector<1x16x256xf32> to vector<16x256xf32>
    %558 = vector.extract_strided_slice %557 {offsets = [0, 0], sizes = [16, 128], strides = [1, 1]} : vector<16x256xf32> to vector<16x128xf32>
    %559 = vector.extract_strided_slice %557 {offsets = [0, 128], sizes = [16, 128], strides = [1, 1]} : vector<16x256xf32> to vector<16x128xf32>
    %c0_191 = arith.constant 0 : index
    %c0_192 = arith.constant 0 : index
    %c0_193 = arith.constant 0 : index
    %560 = vector.load %arg5[%c0_191, %c0_192, %c0_193] : memref<2x128x256xf32, #tpu.memory_space<vmem>>, vector<1x128x256xf32>
    %561 = vector.shape_cast %560 : vector<1x128x256xf32> to vector<128x256xf32>
    %562 = arith.mulf %0, %550 : vector<16x128xf32>
    %cst_194 = arith.constant dense<0.000000e+00> : vector<16x256xf32>
    %563 = tpu.matmul %562, %561, %cst_194 {dimension_numbers = #tpu.dot_dimension_numbers<[1], [0], [0], [1], [0, 0, 1, 1], [], []>} : vector<16x128xf32>, vector<128x256xf32>, vector<16x256xf32> -> vector<16x256xf32>
    %564 = vector.extract_strided_slice %563 {offsets = [0, 0], sizes = [16, 128], strides = [1, 1]} : vector<16x256xf32> to vector<16x128xf32>
    %565 = vector.extract_strided_slice %563 {offsets = [0, 128], sizes = [16, 128], strides = [1, 1]} : vector<16x256xf32> to vector<16x128xf32>
    %566 = arith.addf %558, %564 : vector<16x128xf32>
    %567 = math.tanh %566 : vector<16x128xf32>
    %568 = arith.addf %559, %565 : vector<16x128xf32>
    %569 = arith.negf %568 : vector<16x128xf32>
    %570 = math.exp %569 : vector<16x128xf32>
    %cst_195 = arith.constant 1.000000e+00 : f32
    %571 = vector.broadcast %cst_195 : f32 to vector<16x128xf32>
    %572 = arith.addf %571, %570 : vector<16x128xf32>
    %573 = arith.divf %571, %572 : vector<16x128xf32>
    %574 = arith.subf %567, %550 : vector<16x128xf32>
    %575 = arith.mulf %574, %573 : vector<16x128xf32>
    %576 = arith.addf %575, %550 : vector<16x128xf32>
    %c1_196 = arith.constant 1 : index
    %c0_197 = arith.constant 0 : index
    %c0_198 = arith.constant 0 : index
    %577 = vector.load %arg5[%c1_196, %c0_197, %c0_198] : memref<2x128x256xf32, #tpu.memory_space<vmem>>, vector<1x128x256xf32>
    %578 = vector.shape_cast %577 : vector<1x128x256xf32> to vector<128x256xf32>
    %579 = arith.mulf %0, %576 : vector<16x128xf32>
    %cst_199 = arith.constant dense<0.000000e+00> : vector<16x256xf32>
    %580 = tpu.matmul %579, %578, %cst_199 {dimension_numbers = #tpu.dot_dimension_numbers<[1], [0], [0], [1], [0, 0, 1, 1], [], []>} : vector<16x128xf32>, vector<128x256xf32>, vector<16x256xf32> -> vector<16x256xf32>
    %581 = arith.addf %580, %4 : vector<16x256xf32>
    %582 = vector.extract_strided_slice %581 {offsets = [0, 0], sizes = [16, 128], strides = [1, 1]} : vector<16x256xf32> to vector<16x128xf32>
    %583 = vector.extract_strided_slice %581 {offsets = [0, 128], sizes = [16, 128], strides = [1, 1]} : vector<16x256xf32> to vector<16x128xf32>
    %584 = math.tanh %582 : vector<16x128xf32>
    %585 = arith.negf %583 : vector<16x128xf32>
    %586 = math.exp %585 : vector<16x128xf32>
    %cst_200 = arith.constant 1.000000e+00 : f32
    %587 = vector.broadcast %cst_200 : f32 to vector<16x128xf32>
    %588 = arith.addf %587, %586 : vector<16x128xf32>
    %589 = arith.divf %587, %588 : vector<16x128xf32>
    %590 = arith.subf %584, %576 : vector<16x128xf32>
    %591 = arith.mulf %590, %589 : vector<16x128xf32>
    %592 = arith.addf %591, %576 : vector<16x128xf32>
    %593 = arith.index_cast %c13_i32 : i32 to index
    %c0_201 = arith.constant 0 : index
    %c0_202 = arith.constant 0 : index
    %594 = vector.load %arg8[%593, %c0_201, %c0_202] : memref<16x16x128xf32, #tpu.memory_space<vmem>>, vector<1x16x128xf32>
    %595 = vector.shape_cast %594 : vector<1x16x128xf32> to vector<16x128xf32>
    %596 = vector.shape_cast %592 : vector<16x128xf32> to vector<1x16x128xf32>
    tpu.vector_store %arg8[%593, %c0_201, %c0_202], %596 {strides = array<i32>} : memref<16x16x128xf32, #tpu.memory_space<vmem>>, vector<1x16x128xf32>,
    %c14_i32 = arith.constant 14 : i32
    %597 = arith.index_cast %c14_i32 : i32 to index
    %c0_203 = arith.constant 0 : index
    %c0_204 = arith.constant 0 : index
    %598 = vector.load %arg2[%597, %c0_203, %c0_204] : memref<16x16x256xf32, #tpu.memory_space<vmem>>, vector<1x16x256xf32>
    %599 = vector.shape_cast %598 : vector<1x16x256xf32> to vector<16x256xf32>
    %600 = vector.extract_strided_slice %599 {offsets = [0, 0], sizes = [16, 128], strides = [1, 1]} : vector<16x256xf32> to vector<16x128xf32>
    %601 = vector.extract_strided_slice %599 {offsets = [0, 128], sizes = [16, 128], strides = [1, 1]} : vector<16x256xf32> to vector<16x128xf32>
    %c0_205 = arith.constant 0 : index
    %c0_206 = arith.constant 0 : index
    %c0_207 = arith.constant 0 : index
    %602 = vector.load %arg5[%c0_205, %c0_206, %c0_207] : memref<2x128x256xf32, #tpu.memory_space<vmem>>, vector<1x128x256xf32>
    %603 = vector.shape_cast %602 : vector<1x128x256xf32> to vector<128x256xf32>
    %604 = arith.mulf %0, %592 : vector<16x128xf32>
    %cst_208 = arith.constant dense<0.000000e+00> : vector<16x256xf32>
    %605 = tpu.matmul %604, %603, %cst_208 {dimension_numbers = #tpu.dot_dimension_numbers<[1], [0], [0], [1], [0, 0, 1, 1], [], []>} : vector<16x128xf32>, vector<128x256xf32>, vector<16x256xf32> -> vector<16x256xf32>
    %606 = vector.extract_strided_slice %605 {offsets = [0, 0], sizes = [16, 128], strides = [1, 1]} : vector<16x256xf32> to vector<16x128xf32>
    %607 = vector.extract_strided_slice %605 {offsets = [0, 128], sizes = [16, 128], strides = [1, 1]} : vector<16x256xf32> to vector<16x128xf32>
    %608 = arith.addf %600, %606 : vector<16x128xf32>
    %609 = math.tanh %608 : vector<16x128xf32>
    %610 = arith.addf %601, %607 : vector<16x128xf32>
    %611 = arith.negf %610 : vector<16x128xf32>
    %612 = math.exp %611 : vector<16x128xf32>
    %cst_209 = arith.constant 1.000000e+00 : f32
    %613 = vector.broadcast %cst_209 : f32 to vector<16x128xf32>
    %614 = arith.addf %613, %612 : vector<16x128xf32>
    %615 = arith.divf %613, %614 : vector<16x128xf32>
    %616 = arith.subf %609, %592 : vector<16x128xf32>
    %617 = arith.mulf %616, %615 : vector<16x128xf32>
    %618 = arith.addf %617, %592 : vector<16x128xf32>
    %c1_210 = arith.constant 1 : index
    %c0_211 = arith.constant 0 : index
    %c0_212 = arith.constant 0 : index
    %619 = vector.load %arg5[%c1_210, %c0_211, %c0_212] : memref<2x128x256xf32, #tpu.memory_space<vmem>>, vector<1x128x256xf32>
    %620 = vector.shape_cast %619 : vector<1x128x256xf32> to vector<128x256xf32>
    %621 = arith.mulf %0, %618 : vector<16x128xf32>
    %cst_213 = arith.constant dense<0.000000e+00> : vector<16x256xf32>
    %622 = tpu.matmul %621, %620, %cst_213 {dimension_numbers = #tpu.dot_dimension_numbers<[1], [0], [0], [1], [0, 0, 1, 1], [], []>} : vector<16x128xf32>, vector<128x256xf32>, vector<16x256xf32> -> vector<16x256xf32>
    %623 = arith.addf %622, %4 : vector<16x256xf32>
    %624 = vector.extract_strided_slice %623 {offsets = [0, 0], sizes = [16, 128], strides = [1, 1]} : vector<16x256xf32> to vector<16x128xf32>
    %625 = vector.extract_strided_slice %623 {offsets = [0, 128], sizes = [16, 128], strides = [1, 1]} : vector<16x256xf32> to vector<16x128xf32>
    %626 = math.tanh %624 : vector<16x128xf32>
    %627 = arith.negf %625 : vector<16x128xf32>
    %628 = math.exp %627 : vector<16x128xf32>
    %cst_214 = arith.constant 1.000000e+00 : f32
    %629 = vector.broadcast %cst_214 : f32 to vector<16x128xf32>
    %630 = arith.addf %629, %628 : vector<16x128xf32>
    %631 = arith.divf %629, %630 : vector<16x128xf32>
    %632 = arith.subf %626, %618 : vector<16x128xf32>
    %633 = arith.mulf %632, %631 : vector<16x128xf32>
    %634 = arith.addf %633, %618 : vector<16x128xf32>
    %635 = arith.index_cast %c14_i32 : i32 to index
    %c0_215 = arith.constant 0 : index
    %c0_216 = arith.constant 0 : index
    %636 = vector.load %arg8[%635, %c0_215, %c0_216] : memref<16x16x128xf32, #tpu.memory_space<vmem>>, vector<1x16x128xf32>
    %637 = vector.shape_cast %636 : vector<1x16x128xf32> to vector<16x128xf32>
    %638 = vector.shape_cast %634 : vector<16x128xf32> to vector<1x16x128xf32>
    tpu.vector_store %arg8[%635, %c0_215, %c0_216], %638 {strides = array<i32>} : memref<16x16x128xf32, #tpu.memory_space<vmem>>, vector<1x16x128xf32>,
    %c15_i32 = arith.constant 15 : i32
    %639 = arith.index_cast %c15_i32 : i32 to index
    %c0_217 = arith.constant 0 : index
    %c0_218 = arith.constant 0 : index
    %640 = vector.load %arg2[%639, %c0_217, %c0_218] : memref<16x16x256xf32, #tpu.memory_space<vmem>>, vector<1x16x256xf32>
    %641 = vector.shape_cast %640 : vector<1x16x256xf32> to vector<16x256xf32>
    %642 = vector.extract_strided_slice %641 {offsets = [0, 0], sizes = [16, 128], strides = [1, 1]} : vector<16x256xf32> to vector<16x128xf32>
    %643 = vector.extract_strided_slice %641 {offsets = [0, 128], sizes = [16, 128], strides = [1, 1]} : vector<16x256xf32> to vector<16x128xf32>
    %c0_219 = arith.constant 0 : index
    %c0_220 = arith.constant 0 : index
    %c0_221 = arith.constant 0 : index
    %644 = vector.load %arg5[%c0_219, %c0_220, %c0_221] : memref<2x128x256xf32, #tpu.memory_space<vmem>>, vector<1x128x256xf32>
    %645 = vector.shape_cast %644 : vector<1x128x256xf32> to vector<128x256xf32>
    %646 = arith.mulf %0, %634 : vector<16x128xf32>
    %cst_222 = arith.constant dense<0.000000e+00> : vector<16x256xf32>
    %647 = tpu.matmul %646, %645, %cst_222 {dimension_numbers = #tpu.dot_dimension_numbers<[1], [0], [0], [1], [0, 0, 1, 1], [], []>} : vector<16x128xf32>, vector<128x256xf32>, vector<16x256xf32> -> vector<16x256xf32>
    %648 = vector.extract_strided_slice %647 {offsets = [0, 0], sizes = [16, 128], strides = [1, 1]} : vector<16x256xf32> to vector<16x128xf32>
    %649 = vector.extract_strided_slice %647 {offsets = [0, 128], sizes = [16, 128], strides = [1, 1]} : vector<16x256xf32> to vector<16x128xf32>
    %650 = arith.addf %642, %648 : vector<16x128xf32>
    %651 = math.tanh %650 : vector<16x128xf32>
    %652 = arith.addf %643, %649 : vector<16x128xf32>
    %653 = arith.negf %652 : vector<16x128xf32>
    %654 = math.exp %653 : vector<16x128xf32>
    %cst_223 = arith.constant 1.000000e+00 : f32
    %655 = vector.broadcast %cst_223 : f32 to vector<16x128xf32>
    %656 = arith.addf %655, %654 : vector<16x128xf32>
    %657 = arith.divf %655, %656 : vector<16x128xf32>
    %658 = arith.subf %651, %634 : vector<16x128xf32>
    %659 = arith.mulf %658, %657 : vector<16x128xf32>
    %660 = arith.addf %659, %634 : vector<16x128xf32>
    %c1_224 = arith.constant 1 : index
    %c0_225 = arith.constant 0 : index
    %c0_226 = arith.constant 0 : index
    %661 = vector.load %arg5[%c1_224, %c0_225, %c0_226] : memref<2x128x256xf32, #tpu.memory_space<vmem>>, vector<1x128x256xf32>
    %662 = vector.shape_cast %661 : vector<1x128x256xf32> to vector<128x256xf32>
    %663 = arith.mulf %0, %660 : vector<16x128xf32>
    %cst_227 = arith.constant dense<0.000000e+00> : vector<16x256xf32>
    %664 = tpu.matmul %663, %662, %cst_227 {dimension_numbers = #tpu.dot_dimension_numbers<[1], [0], [0], [1], [0, 0, 1, 1], [], []>} : vector<16x128xf32>, vector<128x256xf32>, vector<16x256xf32> -> vector<16x256xf32>
    %665 = arith.addf %664, %4 : vector<16x256xf32>
    %666 = vector.extract_strided_slice %665 {offsets = [0, 0], sizes = [16, 128], strides = [1, 1]} : vector<16x256xf32> to vector<16x128xf32>
    %667 = vector.extract_strided_slice %665 {offsets = [0, 128], sizes = [16, 128], strides = [1, 1]} : vector<16x256xf32> to vector<16x128xf32>
    %668 = math.tanh %666 : vector<16x128xf32>
    %669 = arith.negf %667 : vector<16x128xf32>
    %670 = math.exp %669 : vector<16x128xf32>
    %cst_228 = arith.constant 1.000000e+00 : f32
    %671 = vector.broadcast %cst_228 : f32 to vector<16x128xf32>
    %672 = arith.addf %671, %670 : vector<16x128xf32>
    %673 = arith.divf %671, %672 : vector<16x128xf32>
    %674 = arith.subf %668, %660 : vector<16x128xf32>
    %675 = arith.mulf %674, %673 : vector<16x128xf32>
    %676 = arith.addf %675, %660 : vector<16x128xf32>
    %677 = arith.index_cast %c15_i32 : i32 to index
    %c0_229 = arith.constant 0 : index
    %c0_230 = arith.constant 0 : index
    %678 = vector.load %arg8[%677, %c0_229, %c0_230] : memref<16x16x128xf32, #tpu.memory_space<vmem>>, vector<1x16x128xf32>
    %679 = vector.shape_cast %678 : vector<1x16x128xf32> to vector<16x128xf32>
    %680 = vector.shape_cast %676 : vector<16x128xf32> to vector<1x16x128xf32>
    tpu.vector_store %arg8[%677, %c0_229, %c0_230], %680 {strides = array<i32>} : memref<16x16x128xf32, #tpu.memory_space<vmem>>, vector<1x16x128xf32>,
    %c16_i32 = arith.constant 16 : i32
    %c0_231 = arith.constant 0 : index
    %c0_232 = arith.constant 0 : index
    %681 = vector.load %arg9[%c0_231, %c0_232] : memref<16x128xf32, #tpu.memory_space<vmem>>, vector<16x128xf32>
    tpu.vector_store %arg9[%c0_231, %c0_232], %676 {strides = array<i32>} : memref<16x128xf32, #tpu.memory_space<vmem>>, vector<16x128xf32>,
    return
  }
  func.func @transform_0(%arg0: i32, %arg1: i32) -> (i32, i32, i32) {
    %c0_i32 = arith.constant 0 : i32
    %c0_i32_0 = arith.constant 0 : i32
    return %arg1, %arg0, %c0_i32 : i32, i32, i32
  }
  func.func @transform_1(%arg0: i32, %arg1: i32) -> (i32, i32) {
    %c0_i32 = arith.constant 0 : i32
    %c0_i32_0 = arith.constant 0 : i32
    return %arg0, %c0_i32 : i32, i32
  }
  func.func @transform_2(%arg0: i32, %arg1: i32) -> (i32, i32) {
    %c0_i32 = arith.constant 0 : i32
    %c0_i32_0 = arith.constant 0 : i32
    return %arg0, %c0_i32 : i32, i32
  }
  func.func @transform_3(%arg0: i32, %arg1: i32) -> (i32, i32, i32) {
    %c0_i32 = arith.constant 0 : i32
    %c0_i32_0 = arith.constant 0 : i32
    %c0_i32_1 = arith.constant 0 : i32
    %c0_i32_2 = arith.constant 0 : i32
    return %c0_i32, %c0_i32_0, %c0_i32_1 : i32, i32, i32
  }
  func.func @transform_4(%arg0: i32, %arg1: i32) -> (i32, i32, i32) {
    %c0_i32 = arith.constant 0 : i32
    %c0_i32_0 = arith.constant 0 : i32
    %c0_i32_1 = arith.constant 0 : i32
    %c0_i32_2 = arith.constant 0 : i32
    return %c0_i32, %c0_i32_0, %c0_i32_1 : i32, i32, i32
  }
  func.func @transform_5(%arg0: i32, %arg1: i32) -> (i32, i32) {
    %c0_i32 = arith.constant 0 : i32
    %c0_i32_0 = arith.constant 0 : i32
    return %arg0, %c0_i32 : i32, i32
  }
  func.func @transform_6(%arg0: i32, %arg1: i32) -> (i32, i32, i32) {
    %c0_i32 = arith.constant 0 : i32
    %c0_i32_0 = arith.constant 0 : i32
    return %arg1, %arg0, %c0_i32 : i32, i32, i32
  }
}

</mosaic_0001>

<llo_original>
// kernel: tpu_custom_call.1
$region0: #{tpu_custom_call.1}
  #allocation0 [shape = 'u32[]', space=smem, size = 0x4, offset = 0x4, fixed_abs, tag = 'smem constant byte address 0x4 - core index']
  #allocation1 [shape = 'u32[144,128]{1,0:T(1,128)}', space=vmem, size = 0x12000, scoped, tag = 'internal scratch']
  #allocation2 [shape = 'f32[16,128]{1,0:T(8,128)}', space=vmem, size = 0x2000, scoped, tag = 'scratch operand']
  %s0 = inlined_call_operand.hbm [shape: f32[16,16,256], index: 0, kind: input, shape index: {}]
  %s1 = inlined_call_operand.hbm [shape: f32[16,128], index: 1, kind: input, shape index: {}]
  %s2 = inlined_call_operand.hbm [shape: f32[16,128], index: 2, kind: input, shape index: {}]
  %s3 = inlined_call_operand.hbm [shape: f32[2,128,256], index: 3, kind: input, shape index: {}]
  %s4 = inlined_call_operand.hbm [shape: f32[2,1,256], index: 4, kind: input, shape index: {}]
  %s5 = inlined_call_operand.vmem [shape: f32[16,128], index: 5, kind: input, shape index: {}]
  %s6 = inlined_call_operand.hbm [shape: f32[16,16,128], index: 6, kind: output, shape index: {}]
  %s7 = sld [smem:[#allocation0]]
  $region54: #{tpu_custom_call.1} parent=0
    _
  %s9 = ssub.s32 1, %s7
  %s10 = scalar_select 0, %s9, %s7
  $region1: #{tpu_custom_call.1} parent=0
    #allocation3 [shape = 'u8[262144]{0}', space=vmem, size = 0x40000, scoped, tag = 'input window, operand 0, single buffered']
    #allocation4 [shape = 's32[1]{0}', space=sflag, size = 0x4, scoped, tag = 'scoped memory for tpu_custom_call.1']
    #allocation5 [shape = 's32[1]{0}', space=sflag, size = 0x4, scoped, tag = 'scoped memory for tpu_custom_call.1']
    #allocation6 [shape = 'u8[8192]{0}', space=vmem, size = 0x2000, scoped, tag = 'input window, operand 1, single buffered']
    #allocation7 [shape = 's32[1]{0}', space=sflag, size = 0x4, scoped, tag = 'scoped memory for tpu_custom_call.1']
    #allocation8 [shape = 'u8[8192]{0}', space=vmem, size = 0x2000, scoped, tag = 'input window, operand 2, single buffered']
    #allocation9 [shape = 'u8[262144]{0}', space=vmem, size = 0x40000, scoped, tag = 'input window, operand 3, single buffered']
    #allocation10 [shape = 's32[1]{0}', space=sflag, size = 0x4, scoped, tag = 'scoped memory for tpu_custom_call.1']
    #allocation11 [shape = 'u8[2048]{0}', space=vmem, size = 0x800, scoped, tag = 'input window, operand 4, single buffered']
    #allocation12 [shape = 'u8[131072]{0}', space=vmem, size = 0x20000, scoped, tag = 'output window, operand 0, single buffered']
    %11 = vsyncpa [#allocation4], 0
    %12 = vsyncpa [#allocation7], 0
    %13 = vsyncpa [#allocation10], 0
    %14 = vsyncpa [#allocation5], 0
    // Predicated region
    $region2: #{tpu_custom_call.1} parent=1 // pred_check
      _
    $region3: #{tpu_custom_call.1} parent=1 // pred_check_branch
      %16 = sbr.rel (0) target = $region5
    $region4: #{tpu_custom_call.1} parent=1 // pred_region
      %s18 = ssub.s32 8192, 8192
      %19 = vsyncadd [#allocation4], %s18
      %s20 = sshll.u32 [#allocation3], 4
      %s21 = int_to_ptr.vmem [resolvable:$true] %s20
      %26 = dma.hbm_to_vmem [thread:$0]  %s0, 8192, %s21, [#allocation4], 256, 256, 16
    $region5: #{tpu_custom_call.1} parent=1 // pred_fallthru
      _
    // Predicated region
    $region6: #{tpu_custom_call.1} parent=1 // pred_check
      _
    $region7: #{tpu_custom_call.1} parent=1 // pred_check_branch
      %28 = sbr.rel (0) target = $region9
    $region8: #{tpu_custom_call.1} parent=1 // pred_region
      %s30 = ssub.s32 256, 256
      %31 = vsyncadd [#allocation7], %s30
      %s32 = sshll.u32 [#allocation6], 4
      %s33 = int_to_ptr.vmem [resolvable:$true] %s32
      %38 = dma.hbm_to_vmem [thread:$0]  %s1, 256, %s33, [#allocation7], 128, 128, 8
    $region9: #{tpu_custom_call.1} parent=1 // pred_fallthru
      _
    // Predicated region
    $region10: #{tpu_custom_call.1} parent=1 // pred_check
      _
    $region11: #{tpu_custom_call.1} parent=1 // pred_check_branch
      %40 = sbr.rel (0) target = $region13
    $region12: #{tpu_custom_call.1} parent=1 // pred_region
      %s42 = ssub.s32 256, 256
      %43 = vsyncadd [#allocation7], %s42
      %s44 = sshll.u32 [#allocation8], 4
      %s45 = int_to_ptr.vmem [resolvable:$true] %s44
      %50 = dma.hbm_to_vmem [thread:$0]  %s2, 256, %s45, [#allocation7], 128, 128, 8
    $region13: #{tpu_custom_call.1} parent=1 // pred_fallthru
      _
    // Predicated region
    $region14: #{tpu_custom_call.1} parent=1 // pred_check
      _
    $region15: #{tpu_custom_call.1} parent=1 // pred_check_branch
      %52 = sbr.rel (0) target = $region17
    $region16: #{tpu_custom_call.1} parent=1 // pred_region
      %s54 = ssub.s32 8192, 8192
      %55 = vsyncadd [#allocation10], %s54
      %s56 = sshll.u32 [#allocation9], 4
      %s57 = int_to_ptr.vmem [resolvable:$true] %s56
      %62 = dma.hbm_to_vmem [thread:$0]  %s3, 8192, %s57, [#allocation10], 256, 256, 16
    $region17: #{tpu_custom_call.1} parent=1 // pred_fallthru
      _
    // Predicated region
    $region18: #{tpu_custom_call.1} parent=1 // pred_check
      _
    $region19: #{tpu_custom_call.1} parent=1 // pred_check_branch
      %64 = sbr.rel (0) target = $region21
    $region20: #{tpu_custom_call.1} parent=1 // pred_region
      %s66 = ssub.s32 64, 64
      %67 = vsyncadd [#allocation10], %s66
      %s68 = sshll.u32 [#allocation11], 4
      %s69 = int_to_ptr.vmem [resolvable:$true] %s68
      %74 = dma.hbm_to_vmem [thread:$0]  %s4, 64, %s69, [#allocation10], 32, 32, 2
    $region21: #{tpu_custom_call.1} parent=1 // pred_fallthru
      _
    // Predicated region
    $region22: #{tpu_custom_call.1} parent=1 // pred_check
      _
    $region23: #{tpu_custom_call.1} parent=1 // pred_check_branch
      %76 = sbr.rel (0) target = $region25
    $region24: #{tpu_custom_call.1} parent=1 // pred_region
      _
    $region25: #{tpu_custom_call.1} parent=1 // pred_fallthru
      _
    // Predicated region
    $region26: #{tpu_custom_call.1} parent=1 // pred_check
      _
    $region27: #{tpu_custom_call.1} parent=1 // pred_check_branch
      %78 = sbr.rel (0) target = $region29
    $region28: #{tpu_custom_call.1} parent=1 // pred_region
      %79 = dma.done [#allocation4], 8192
    $region29: #{tpu_custom_call.1} parent=1 // pred_fallthru
      _
    // Predicated region
    $region30: #{tpu_custom_call.1} parent=1 // pred_check
      _
    $region31: #{tpu_custom_call.1} parent=1 // pred_check_branch
      %81 = sbr.rel (0) target = $region33
    $region32: #{tpu_custom_call.1} parent=1 // pred_region
      %82 = dma.done [#allocation7], 256
    $region33: #{tpu_custom_call.1} parent=1 // pred_fallthru
      _
    // Predicated region
    $region34: #{tpu_custom_call.1} parent=1 // pred_check
      _
    $region35: #{tpu_custom_call.1} parent=1 // pred_check_branch
      %84 = sbr.rel (0) target = $region37
    $region36: #{tpu_custom_call.1} parent=1 // pred_region
      %85 = dma.done [#allocation7], 256
    $region37: #{tpu_custom_call.1} parent=1 // pred_fallthru
      _
    // Predicated region
    $region38: #{tpu_custom_call.1} parent=1 // pred_check
      _
    $region39: #{tpu_custom_call.1} parent=1 // pred_check_branch
      %87 = sbr.rel (0) target = $region41
    $region40: #{tpu_custom_call.1} parent=1 // pred_region
      %88 = dma.done [#allocation10], 8192
    $region41: #{tpu_custom_call.1} parent=1 // pred_fallthru
      _
    // Predicated region
    $region42: #{tpu_custom_call.1} parent=1 // pred_check
      _
    $region43: #{tpu_custom_call.1} parent=1 // pred_check_branch
      %90 = sbr.rel (0) target = $region45
    $region44: #{tpu_custom_call.1} parent=1 // pred_region
      %91 = dma.done [#allocation10], 64
    $region45: #{tpu_custom_call.1} parent=1 // pred_fallthru
      _
    %v92 = vld [vmem:[#allocation6] sm:$0xff]
    %v93 = vld [vmem:[#allocation6 + $0x8] sm:$0xff]
    %s94 = scalar_lea.vmem [#allocation11], 2
    %v95 = vld [vmem:[%s94] sm:$0x3]
    %v97 = vlaneseq
    %v98 = vshrl.u32 %v97, 7
    %v99 = vsub.s32 0, %v98
    %v100 = vrot.slane %v95, %v99
    %v101 = vlaneseq
    %v102 = vshrl.u32 %v101, 7
    %v103 = vsub.s32 1, %v102
    %v104 = vrot.slane %v95, %v103
    %p107 = scmp.eq.s32.totalorder 0, 0
    %v108 = vld [vmem:[%s5] sm:$0xff]
    %v109 = vld [vmem:[%s5 + $0x8] sm:$0xff]
    %v110 = vld [vmem:[#allocation2] sm:$0xff]
    %v111 = vld [vmem:[#allocation2 + $0x8] sm:$0xff]
    %s112 = scalar_select %p107, 1, 0
    %v113 = vstv %s112
    %vm114 = vcmp.eq.s32.totalorder %v113, 1
    %v115 = vsel %vm114, %v108, %v110
    %v116 = vsel %vm114, %v109, %v111
    %v117 = vld [vmem:[#allocation3] sm:$0xff]
    %v118 = vld [vmem:[#allocation3 + $0x8] sm:$0xff]
    %v119 = vld [vmem:[#allocation3 + $0x10] sm:$0xff]
    %v120 = vld [vmem:[#allocation3 + $0x18] sm:$0xff]
    %v121 = vld [vmem:[#allocation9] sm:$0xff]
    %v122 = vld [vmem:[#allocation9 + $0x8] sm:$0xff]
    %v123 = vld [vmem:[#allocation9 + $0x10] sm:$0xff]
    %v124 = vld [vmem:[#allocation9 + $0x18] sm:$0xff]
    %v125 = vld [vmem:[#allocation9 + $0x20] sm:$0xff]
    %v126 = vld [vmem:[#allocation9 + $0x28] sm:$0xff]
    %v127 = vld [vmem:[#allocation9 + $0x30] sm:$0xff]
    %v128 = vld [vmem:[#allocation9 + $0x38] sm:$0xff]
    %v129 = vld [vmem:[#allocation9 + $0x40] sm:$0xff]
    %v130 = vld [vmem:[#allocation9 + $0x48] sm:$0xff]
    %v131 = vld [vmem:[#allocation9 + $0x50] sm:$0xff]
    %v132 = vld [vmem:[#allocation9 + $0x58] sm:$0xff]
    %v133 = vld [vmem:[#allocation9 + $0x60] sm:$0xff]
    %v134 = vld [vmem:[#allocation9 + $0x68] sm:$0xff]
    %v135 = vld [vmem:[#allocation9 + $0x70] sm:$0xff]
    %v136 = vld [vmem:[#allocation9 + $0x78] sm:$0xff]
    %v137 = vld [vmem:[#allocation9 + $0x80] sm:$0xff]
    %v138 = vld [vmem:[#allocation9 + $0x88] sm:$0xff]
    %v139 = vld [vmem:[#allocation9 + $0x90] sm:$0xff]
    %v140 = vld [vmem:[#allocation9 + $0x98] sm:$0xff]
    %v141 = vld [vmem:[#allocation9 + $0xa0] sm:$0xff]
    %v142 = vld [vmem:[#allocation9 + $0xa8] sm:$0xff]
    %v143 = vld [vmem:[#allocation9 + $0xb0] sm:$0xff]
    %v144 = vld [vmem:[#allocation9 + $0xb8] sm:$0xff]
    %v145 = vld [vmem:[#allocation9 + $0xc0] sm:$0xff]
    %v146 = vld [vmem:[#allocation9 + $0xc8] sm:$0xff]
    %v147 = vld [vmem:[#allocation9 + $0xd0] sm:$0xff]
    %v148 = vld [vmem:[#allocation9 + $0xd8] sm:$0xff]
    %v149 = vld [vmem:[#allocation9 + $0xe0] sm:$0xff]
    %v150 = vld [vmem:[#allocation9 + $0xe8] sm:$0xff]
    %v151 = vld [vmem:[#allocation9 + $0xf0] sm:$0xff]
    %v152 = vld [vmem:[#allocation9 + $0xf8] sm:$0xff]
    %v153 = vmul.f32 %v92, %v115
    %v154 = vmul.f32 %v93, %v116
    %155 = vmatprep.subr.mxu0 %v122
    %156 = vmatpush1.msra.mxu0 %v121
    %157 = vmatprep.subr.mxu0 %v124
    %158 = vmatpush1.msra.mxu0 %v123
    %159 = vmatprep.subr.mxu0 %v126
    %160 = vmatpush1.msra.mxu0 %v125
    %161 = vmatprep.subr.mxu0 %v128
    %162 = vmatpush1.msra.mxu0 %v127
    %163 = vmatprep.subr.mxu0 %v130
    %164 = vmatpush1.msra.mxu0 %v129
    %165 = vmatprep.subr.mxu0 %v132
    %166 = vmatpush1.msra.mxu0 %v131
    %167 = vmatprep.subr.mxu0 %v134
    %168 = vmatpush1.msra.mxu0 %v133
    %169 = vmatprep.subr.mxu0 %v136
    %170 = vmatpush1.msra.mxu0 %v135
    %171 = vmatprep.subr.mxu0 %v138
    %172 = vmatpush1.msra.mxu0 %v137
    %173 = vmatprep.subr.mxu0 %v140
    %174 = vmatpush1.msra.mxu0 %v139
    %175 = vmatprep.subr.mxu0 %v142
    %176 = vmatpush1.msra.mxu0 %v141
    %177 = vmatprep.subr.mxu0 %v144
    %178 = vmatpush1.msra.mxu0 %v143
    %179 = vmatprep.subr.mxu0 %v146
    %180 = vmatpush1.msra.mxu0 %v145
    %181 = vmatprep.subr.mxu0 %v148
    %182 = vmatpush1.msra.mxu0 %v147
    %183 = vmatprep.subr.mxu0 %v150
    %184 = vmatpush1.msra.mxu0 %v149
    %185 = vmatprep.subr.mxu0 %v152
    %186 = vmatpush1.msra.mxu0 %v151
    %187 = vmatprep.subr.mxu0 0.0
    %188 = vmatpush1.msra.mxu0 0.0
    %189 = vmatprep.subr.mxu0 0.0
    %190 = vmatpush1.msra.mxu0 0.0
    %191 = vmatprep.subr.mxu0 0.0
    %192 = vmatpush1.msra.mxu0 0.0
    %193 = vmatprep.subr.mxu0 0.0
    %194 = vmatpush1.msra.mxu0 0.0
    %195 = vmatprep.subr.mxu0 0.0
    %196 = vmatpush1.msra.mxu0 0.0
    %197 = vmatprep.subr.mxu0 0.0
    %198 = vmatpush1.msra.mxu0 0.0
    %199 = vmatprep.subr.mxu0 0.0
    %200 = vmatpush1.msra.mxu0 0.0
    %201 = vmatprep.subr.mxu0 0.0
    %202 = vmatpush1.msra.mxu0 0.0
    %203 = vmatprep.subr.mxu0 0.0
    %204 = vmatpush1.msra.mxu0 0.0
    %205 = vmatprep.subr.mxu0 0.0
    %206 = vmatpush1.msra.mxu0 0.0
    %207 = vmatprep.subr.mxu0 0.0
    %208 = vmatpush1.msra.mxu0 0.0
    %209 = vmatprep.subr.mxu0 0.0
    %210 = vmatpush1.msra.mxu0 0.0
    %211 = vmatprep.subr.mxu0 0.0
    %212 = vmatpush1.msra.mxu0 0.0
    %213 = vmatprep.subr.mxu0 0.0
    %214 = vmatpush1.msra.mxu0 0.0
    %215 = vmatprep.subr.mxu0 0.0
    %216 = vmatpush1.msra.mxu0 0.0
    %217 = vmatprep.subr.mxu0 0.0
    %218 = vmatpush1.msra.mxu0 0.0
    %219 = vmatprep.mubr.f32.mxu0 0.0
    %220 = vmatmul.mubr.f32.gmra.mrb[0].mxu0 %v153
    %v221 = vpop.f32.mrb[0].mxu0
    %v222 = vadd.f32 0.0, %v221
    %v223 = vpop.f32.mrb[0].mxu0
    %v224 = vadd.f32 0.0, %v223
    %225 = vmatprep.mubr.f32.mxu0 0.0
    %226 = vmatmul.mubr.f32.gmra.mrb[0].mxu0 %v154
    %v227 = vpop.f32.mrb[0].mxu0
    %v228 = vadd.f32 0.0, %v227
    %v229 = vpop.f32.mrb[0].mxu0
    %v230 = vadd.f32 0.0, %v229
    %231 = vdwg.mxu0
    %v232 = vadd.f32 %v117, %v222
    %v233 = vadd.f32 %v119, %v228
    %v234 = vtanh.pop %v232
    %v235 = vtanh.pop %v233
    %v236 = vadd.f32 %v118, %v224
    %v237 = vadd.f32 %v120, %v230
    %v238 = vxor.u32 %v236, 2147483648
    %v239 = vxor.u32 %v237, 2147483648
    %v240 = vmul.f32 %v238, 1.442695
    %v241 = vpow.pop %v240
    %v242 = vmul.f32 %v239, 1.442695
    %v243 = vpow.pop %v242
    %v244 = vadd.f32 %v241, 1.0
    %v245 = vadd.f32 %v243, 1.0
    %v246 = vrcp.pop %v244
    %v247 = vmul.f32 1.0, %v246
    %v248 = vrcp.pop %v245
    %v249 = vmul.f32 1.0, %v248
    %v250 = vsub.f32 %v234, %v115
    %v251 = vsub.f32 %v235, %v116
    %v252 = vmul.f32 %v250, %v247
    %v253 = vmul.f32 %v251, %v249
    %v254 = vadd.f32 %v252, %v115
    %v255 = vadd.f32 %v253, %v116
    %s256 = scalar_lea.vmem [#allocation9], 256
    %v257 = vld [vmem:[%s256] sm:$0xff]
    %v258 = vld [vmem:[%s256 + $0x8] sm:$0xff]
    %v259 = vld [vmem:[%s256 + $0x10] sm:$0xff]
    %v260 = vld [vmem:[%s256 + $0x18] sm:$0xff]
    %v261 = vld [vmem:[%s256 + $0x20] sm:$0xff]
    %v262 = vld [vmem:[%s256 + $0x28] sm:$0xff]
    %v263 = vld [vmem:[%s256 + $0x30] sm:$0xff]
    %v264 = vld [vmem:[%s256 + $0x38] sm:$0xff]
    %v265 = vld [vmem:[%s256 + $0x40] sm:$0xff]
    %v266 = vld [vmem:[%s256 + $0x48] sm:$0xff]
    %v267 = vld [vmem:[%s256 + $0x50] sm:$0xff]
    %v268 = vld [vmem:[%s256 + $0x58] sm:$0xff]
    %v269 = vld [vmem:[%s256 + $0x60] sm:$0xff]
    %v270 = vld [vmem:[%s256 + $0x68] sm:$0xff]
    %v271 = vld [vmem:[%s256 + $0x70] sm:$0xff]
    %v272 = vld [vmem:[%s256 + $0x78] sm:$0xff]
    %v273 = vld [vmem:[%s256 + $0x80] sm:$0xff]
    %v274 = vld [vmem:[%s256 + $0x88] sm:$0xff]
    %v275 = vld [vmem:[%s256 + $0x90] sm:$0xff]
    %v276 = vld [vmem:[%s256 + $0x98] sm:$0xff]
    %v277 = vld [vmem:[%s256 + $0xa0] sm:$0xff]
    %v278 = vld [vmem:[%s256 + $0xa8] sm:$0xff]
    %v279 = vld [vmem:[%s256 + $0xb0] sm:$0xff]
    %v280 = vld [vmem:[%s256 + $0xb8] sm:$0xff]
    %v281 = vld [vmem:[%s256 + $0xc0] sm:$0xff]
    %v282 = vld [vmem:[%s256 + $0xc8] sm:$0xff]
    %v283 = vld [vmem:[%s256 + $0xd0] sm:$0xff]
    %v284 = vld [vmem:[%s256 + $0xd8] sm:$0xff]
    %v285 = vld [vmem:[%s256 + $0xe0] sm:$0xff]
    %v286 = vld [vmem:[%s256 + $0xe8] sm:$0xff]
    %v287 = vld [vmem:[%s256 + $0xf0] sm:$0xff]
    %v288 = vld [vmem:[%s256 + $0xf8] sm:$0xff]
    %v289 = vmul.f32 %v92, %v254
    %v290 = vmul.f32 %v93, %v255
    %291 = vmatprep.subr.mxu0 %v258
    %292 = vmatpush1.msra.mxu0 %v257
    %293 = vmatprep.subr.mxu0 %v260
    %294 = vmatpush1.msra.mxu0 %v259
    %295 = vmatprep.subr.mxu0 %v262
    %296 = vmatpush1.msra.mxu0 %v261
    %297 = vmatprep.subr.mxu0 %v264
    %298 = vmatpush1.msra.mxu0 %v263
    %299 = vmatprep.subr.mxu0 %v266
    %300 = vmatpush1.msra.mxu0 %v265
    %301 = vmatprep.subr.mxu0 %v268
    %302 = vmatpush1.msra.mxu0 %v267
    %303 = vmatprep.subr.mxu0 %v270
    %304 = vmatpush1.msra.mxu0 %v269
    %305 = vmatprep.subr.mxu0 %v272
    %306 = vmatpush1.msra.mxu0 %v271
    %307 = vmatprep.subr.mxu0 %v274
    %308 = vmatpush1.msra.mxu0 %v273
    %309 = vmatprep.subr.mxu0 %v276
    %310 = vmatpush1.msra.mxu0 %v275
    %311 = vmatprep.subr.mxu0 %v278
    %312 = vmatpush1.msra.mxu0 %v277
    %313 = vmatprep.subr.mxu0 %v280
    %314 = vmatpush1.msra.mxu0 %v279
    %315 = vmatprep.subr.mxu0 %v282
    %316 = vmatpush1.msra.mxu0 %v281
    %317 = vmatprep.subr.mxu0 %v284
    %318 = vmatpush1.msra.mxu0 %v283
    %319 = vmatprep.subr.mxu0 %v286
    %320 = vmatpush1.msra.mxu0 %v285
    %321 = vmatprep.subr.mxu0 %v288
    %322 = vmatpush1.msra.mxu0 %v287
    %323 = vmatprep.subr.mxu0 0.0
    %324 = vmatpush1.msra.mxu0 0.0
    %325 = vmatprep.subr.mxu0 0.0
    %326 = vmatpush1.msra.mxu0 0.0
    %327 = vmatprep.subr.mxu0 0.0
    %328 = vmatpush1.msra.mxu0 0.0
    %329 = vmatprep.subr.mxu0 0.0
    %330 = vmatpush1.msra.mxu0 0.0
    %331 = vmatprep.subr.mxu0 0.0
    %332 = vmatpush1.msra.mxu0 0.0
    %333 = vmatprep.subr.mxu0 0.0
    %334 = vmatpush1.msra.mxu0 0.0
    %335 = vmatprep.subr.mxu0 0.0
    %336 = vmatpush1.msra.mxu0 0.0
    %337 = vmatprep.subr.mxu0 0.0
    %338 = vmatpush1.msra.mxu0 0.0
    %339 = vmatprep.subr.mxu0 0.0
    %340 = vmatpush1.msra.mxu0 0.0
    %341 = vmatprep.subr.mxu0 0.0
    %342 = vmatpush1.msra.mxu0 0.0
    %343 = vmatprep.subr.mxu0 0.0
    %344 = vmatpush1.msra.mxu0 0.0
    %345 = vmatprep.subr.mxu0 0.0
    %346 = vmatpush1.msra.mxu0 0.0
    %347 = vmatprep.subr.mxu0 0.0
    %348 = vmatpush1.msra.mxu0 0.0
    %349 = vmatprep.subr.mxu0 0.0
    %350 = vmatpush1.msra.mxu0 0.0
    %351 = vmatprep.subr.mxu0 0.0
    %352 = vmatpush1.msra.mxu0 0.0
    %353 = vmatprep.subr.mxu0 0.0
    %354 = vmatpush1.msra.mxu0 0.0
    %355 = vmatprep.mubr.f32.mxu0 0.0
    %356 = vmatmul.mubr.f32.gmra.mrb[0].mxu0 %v289
    %v357 = vpop.f32.mrb[0].mxu0
    %v358 = vadd.f32 %v100, %v357
    %v359 = vpop.f32.mrb[0].mxu0
    %v360 = vadd.f32 %v104, %v359
    %361 = vmatprep.mubr.f32.mxu0 0.0
    %362 = vmatmul.mubr.f32.gmra.mrb[0].mxu0 %v290
    %v363 = vpop.f32.mrb[0].mxu0
    %v364 = vadd.f32 %v100, %v363
    %v365 = vpop.f32.mrb[0].mxu0
    %v366 = vadd.f32 %v104, %v365
    %367 = vdwg.mxu0
    %v368 = vtanh.pop %v358
    %v369 = vtanh.pop %v364
    %v370 = vxor.u32 %v360, 2147483648
    %v371 = vxor.u32 %v366, 2147483648
    %v372 = vmul.f32 %v370, 1.442695
    %v373 = vpow.pop %v372
    %v374 = vmul.f32 %v371, 1.442695
    %v375 = vpow.pop %v374
    %v376 = vadd.f32 %v373, 1.0
    %v377 = vadd.f32 %v375, 1.0
    %v378 = vrcp.pop %v376
    %v379 = vmul.f32 1.0, %v378
    %v380 = vrcp.pop %v377
    %v381 = vmul.f32 1.0, %v380
    %v382 = vsub.f32 %v368, %v254
    %v383 = vsub.f32 %v369, %v255
    %v384 = vmul.f32 %v382, %v379
    %v385 = vmul.f32 %v383, %v381
    %v386 = vadd.f32 %v384, %v254
    %v387 = vadd.f32 %v385, %v255
    %388 = vst [vmem:[#allocation12] sm:$0xff] %v386
    %389 = vst [vmem:[#allocation12 + $0x8] sm:$0xff] %v387
    %s390 = scalar_lea.vmem [#allocation3], 32
    %v391 = vld [vmem:[%s390] sm:$0xff]
    %v392 = vld [vmem:[%s390 + $0x8] sm:$0xff]
    %v393 = vld [vmem:[%s390 + $0x10] sm:$0xff]
    %v394 = vld [vmem:[%s390 + $0x18] sm:$0xff]
    %v395 = vld [vmem:[#allocation9] sm:$0xff]
    %v396 = vld [vmem:[#allocation9 + $0x8] sm:$0xff]
    %v397 = vld [vmem:[#allocation9 + $0x10] sm:$0xff]
    %v398 = vld [vmem:[#allocation9 + $0x18] sm:$0xff]
    %v399 = vld [vmem:[#allocation9 + $0x20] sm:$0xff]
    %v400 = vld [vmem:[#allocation9 + $0x28] sm:$0xff]
    %v401 = vld [vmem:[#allocation9 + $0x30] sm:$0xff]
    %v402 = vld [vmem:[#allocation9 + $0x38] sm:$0xff]
    %v403 = vld [vmem:[#allocation9 + $0x40] sm:$0xff]
    %v404 = vld [vmem:[#allocation9 + $0x48] sm:$0xff]
    %v405 = vld [vmem:[#allocation9 + $0x50] sm:$0xff]
    %v406 = vld [vmem:[#allocation9 + $0x58] sm:$0xff]
    %v407 = vld [vmem:[#allocation9 + $0x60] sm:$0xff]
    %v408 = vld [vmem:[#allocation9 + $0x68] sm:$0xff]
    %v409 = vld [vmem:[#allocation9 + $0x70] sm:$0xff]
    %v410 = vld [vmem:[#allocation9 + $0x78] sm:$0xff]
    %v411 = vld [vmem:[#allocation9 + $0x80] sm:$0xff]
    %v412 = vld [vmem:[#allocation9 + $0x88] sm:$0xff]
    %v413 = vld [vmem:[#allocation9 + $0x90] sm:$0xff]
    %v414 = vld [vmem:[#allocation9 + $0x98] sm:$0xff]
    %v415 = vld [vmem:[#allocation9 + $0xa0] sm:$0xff]
    %v416 = vld [vmem:[#allocation9 + $0xa8] sm:$0xff]
    %v417 = vld [vmem:[#allocation9 + $0xb0] sm:$0xff]
    %v418 = vld [vmem:[#allocation9 + $0xb8] sm:$0xff]
    %v419 = vld [vmem:[#allocation9 + $0xc0] sm:$0xff]
    %v420 = vld [vmem:[#allocation9 + $0xc8] sm:$0xff]
    %v421 = vld [vmem:[#allocation9 + $0xd0] sm:$0xff]
    %v422 = vld [vmem:[#allocation9 + $0xd8] sm:$0xff]
    %v423 = vld [vmem:[#allocation9 + $0xe0] sm:$0xff]
    %v424 = vld [vmem:[#allocation9 + $0xe8] sm:$0xff]
    %v425 = vld [vmem:[#allocation9 + $0xf0] sm:$0xff]
    %v426 = vld [vmem:[#allocation9 + $0xf8] sm:$0xff]
    %v427 = vmul.f32 %v92, %v386
    %v428 = vmul.f32 %v93, %v387
    %429 = vmatprep.subr.mxu0 %v396
    %430 = vmatpush1.msra.mxu0 %v395
    %431 = vmatprep.subr.mxu0 %v398
    %432 = vmatpush1.msra.mxu0 %v397
    %433 = vmatprep.subr.mxu0 %v400
    %434 = vmatpush1.msra.mxu0 %v399
    %435 = vmatprep.subr.mxu0 %v402
    %436 = vmatpush1.msra.mxu0 %v401
    %437 = vmatprep.subr.mxu0 %v404
    %438 = vmatpush1.msra.mxu0 %v403
    %439 = vmatprep.subr.mxu0 %v406
    %440 = vmatpush1.msra.mxu0 %v405
    %441 = vmatprep.subr.mxu0 %v408
    %442 = vmatpush1.msra.mxu0 %v407
    %443 = vmatprep.subr.mxu0 %v410
    %444 = vmatpush1.msra.mxu0 %v409
    %445 = vmatprep.subr.mxu0 %v412
    %446 = vmatpush1.msra.mxu0 %v411
    %447 = vmatprep.subr.mxu0 %v414
    %448 = vmatpush1.msra.mxu0 %v413
    %449 = vmatprep.subr.mxu0 %v416
    %450 = vmatpush1.msra.mxu0 %v415
    %451 = vmatprep.subr.mxu0 %v418
    %452 = vmatpush1.msra.mxu0 %v417
    %453 = vmatprep.subr.mxu0 %v420
    %454 = vmatpush1.msra.mxu0 %v419
    %455 = vmatprep.subr.mxu0 %v422
    %456 = vmatpush1.msra.mxu0 %v421
    %457 = vmatprep.subr.mxu0 %v424
    %458 = vmatpush1.msra.mxu0 %v423
    %459 = vmatprep.subr.mxu0 %v426
    %460 = vmatpush1.msra.mxu0 %v425
    %461 = vmatprep.subr.mxu0 0.0
    %462 = vmatpush1.msra.mxu0 0.0
    %463 = vmatprep.subr.mxu0 0.0
    %464 = vmatpush1.msra.mxu0 0.0
    %465 = vmatprep.subr.mxu0 0.0
    %466 = vmatpush1.msra.mxu0 0.0
    %467 = vmatprep.subr.mxu0 0.0
    %468 = vmatpush1.msra.mxu0 0.0
    %469 = vmatprep.subr.mxu0 0.0
    %470 = vmatpush1.msra.mxu0 0.0
    %471 = vmatprep.subr.mxu0 0.0
    %472 = vmatpush1.msra.mxu0 0.0
    %473 = vmatprep.subr.mxu0 0.0
    %474 = vmatpush1.msra.mxu0 0.0
    %475 = vmatprep.subr.mxu0 0.0
    %476 = vmatpush1.msra.mxu0 0.0
    %477 = vmatprep.subr.mxu0 0.0
    %478 = vmatpush1.msra.mxu0 0.0
    %479 = vmatprep.subr.mxu0 0.0
    %480 = vmatpush1.msra.mxu0 0.0
    %481 = vmatprep.subr.mxu0 0.0
    %482 = vmatpush1.msra.mxu0 0.0
    %483 = vmatprep.subr.mxu0 0.0
    %484 = vmatpush1.msra.mxu0 0.0
    %485 = vmatprep.subr.mxu0 0.0
    %486 = vmatpush1.msra.mxu0 0.0
    %487 = vmatprep.subr.mxu0 0.0
    %488 = vmatpush1.msra.mxu0 0.0
    %489 = vmatprep.subr.mxu0 0.0
    %490 = vmatpush1.msra.mxu0 0.0
    %491 = vmatprep.subr.mxu0 0.0
    %492 = vmatpush1.msra.mxu0 0.0
    %493 = vmatprep.mubr.f32.mxu0 0.0
    %494 = vmatmul.mubr.f32.gmra.mrb[0].mxu0 %v427
    %v495 = vpop.f32.mrb[0].mxu0
    %v496 = vadd.f32 0.0, %v495
    %v497 = vpop.f32.mrb[0].mxu0
    %v498 = vadd.f32 0.0, %v497
    %499 = vmatprep.mubr.f32.mxu0 0.0
    %500 = vmatmul.mubr.f32.gmra.mrb[0].mxu0 %v428
    %v501 = vpop.f32.mrb[0].mxu0
    %v502 = vadd.f32 0.0, %v501
    %v503 = vpop.f32.mrb[0].mxu0
    %v504 = vadd.f32 0.0, %v503
    %505 = vdwg.mxu0
    %v506 = vadd.f32 %v391, %v496
    %v507 = vadd.f32 %v393, %v502
    %v508 = vtanh.pop %v506
    %v509 = vtanh.pop %v507
    %v510 = vadd.f32 %v392, %v498
    %v511 = vadd.f32 %v394, %v504
    %v512 = vxor.u32 %v510, 2147483648
    %v513 = vxor.u32 %v511, 2147483648
    %v514 = vmul.f32 %v512, 1.442695
    %v515 = vpow.pop %v514
    %v516 = vmul.f32 %v513, 1.442695
    %v517 = vpow.pop %v516
    %v518 = vadd.f32 %v515, 1.0
    %v519 = vadd.f32 %v517, 1.0
    %v520 = vrcp.pop %v518
    %v521 = vmul.f32 1.0, %v520
    %v522 = vrcp.pop %v519
    %v523 = vmul.f32 1.0, %v522
    %v524 = vsub.f32 %v508, %v386
    %v525 = vsub.f32 %v509, %v387
    %v526 = vmul.f32 %v524, %v521
    %v527 = vmul.f32 %v525, %v523
    %v528 = vadd.f32 %v526, %v386
    %v529 = vadd.f32 %v527, %v387
    %v530 = vld [vmem:[%s256] sm:$0xff]
    %v531 = vld [vmem:[%s256 + $0x8] sm:$0xff]
    %v532 = vld [vmem:[%s256 + $0x10] sm:$0xff]
    %v533 = vld [vmem:[%s256 + $0x18] sm:$0xff]
    %v534 = vld [vmem:[%s256 + $0x20] sm:$0xff]
    %v535 = vld [vmem:[%s256 + $0x28] sm:$0xff]
    %v536 = vld [vmem:[%s256 + $0x30] sm:$0xff]
    %v537 = vld [vmem:[%s256 + $0x38] sm:$0xff]
    %v538 = vld [vmem:[%s256 + $0x40] sm:$0xff]
    %v539 = vld [vmem:[%s256 + $0x48] sm:$0xff]
    %v540 = vld [vmem:[%s256 + $0x50] sm:$0xff]
    %v541 = vld [vmem:[%s256 + $0x58] sm:$0xff]
    %v542 = vld [vmem:[%s256 + $0x60] sm:$0xff]
    %v543 = vld [vmem:[%s256 + $0x68] sm:$0xff]
    %v544 = vld [vmem:[%s256 + $0x70] sm:$0xff]
    %v545 = vld [vmem:[%s256 + $0x78] sm:$0xff]
    %v546 = vld [vmem:[%s256 + $0x80] sm:$0xff]
    %v547 = vld [vmem:[%s256 + $0x88] sm:$0xff]
    %v548 = vld [vmem:[%s256 + $0x90] sm:$0xff]
    %v549 = vld [vmem:[%s256 + $0x98] sm:$0xff]
    %v550 = vld [vmem:[%s256 + $0xa0] sm:$0xff]
    %v551 = vld [vmem:[%s256 + $0xa8] sm:$0xff]
    %v552 = vld [vmem:[%s256 + $0xb0] sm:$0xff]
    %v553 = vld [vmem:[%s256 + $0xb8] sm:$0xff]
    %v554 = vld [vmem:[%s256 + $0xc0] sm:$0xff]
    %v555 = vld [vmem:[%s256 + $0xc8] sm:$0xff]
    %v556 = vld [vmem:[%s256 + $0xd0] sm:$0xff]
    %v557 = vld [vmem:[%s256 + $0xd8] sm:$0xff]
    %v558 = vld [vmem:[%s256 + $0xe0] sm:$0xff]
    %v559 = vld [vmem:[%s256 + $0xe8] sm:$0xff]
    %v560 = vld [vmem:[%s256 + $0xf0] sm:$0xff]
    %v561 = vld [vmem:[%s256 + $0xf8] sm:$0xff]
    %v562 = vmul.f32 %v92, %v528
    %v563 = vmul.f32 %v93, %v529
    %564 = vmatprep.subr.mxu0 %v531
    %565 = vmatpush1.msra.mxu0 %v530
    %566 = vmatprep.subr.mxu0 %v533
    %567 = vmatpush1.msra.mxu0 %v532
    %568 = vmatprep.subr.mxu0 %v535
    %569 = vmatpush1.msra.mxu0 %v534
    %570 = vmatprep.subr.mxu0 %v537
    %571 = vmatpush1.msra.mxu0 %v536
    %572 = vmatprep.subr.mxu0 %v539
    %573 = vmatpush1.msra.mxu0 %v538
    %574 = vmatprep.subr.mxu0 %v541
    %575 = vmatpush1.msra.mxu0 %v540
    %576 = vmatprep.subr.mxu0 %v543
    %577 = vmatpush1.msra.mxu0 %v542
    %578 = vmatprep.subr.mxu0 %v545
    %579 = vmatpush1.msra.mxu0 %v544
    %580 = vmatprep.subr.mxu0 %v547
    %581 = vmatpush1.msra.mxu0 %v546
    %582 = vmatprep.subr.mxu0 %v549
    %583 = vmatpush1.msra.mxu0 %v548
    %584 = vmatprep.subr.mxu0 %v551
    %585 = vmatpush1.msra.mxu0 %v550
    %586 = vmatprep.subr.mxu0 %v553
    %587 = vmatpush1.msra.mxu0 %v552
    %588 = vmatprep.subr.mxu0 %v555
    %589 = vmatpush1.msra.mxu0 %v554
    %590 = vmatprep.subr.mxu0 %v557
    %591 = vmatpush1.msra.mxu0 %v556
    %592 = vmatprep.subr.mxu0 %v559
    %593 = vmatpush1.msra.mxu0 %v558
    %594 = vmatprep.subr.mxu0 %v561
    %595 = vmatpush1.msra.mxu0 %v560
    %596 = vmatprep.subr.mxu0 0.0
    %597 = vmatpush1.msra.mxu0 0.0
    %598 = vmatprep.subr.mxu0 0.0
    %599 = vmatpush1.msra.mxu0 0.0
    %600 = vmatprep.subr.mxu0 0.0
    %601 = vmatpush1.msra.mxu0 0.0
    %602 = vmatprep.subr.mxu0 0.0
    %603 = vmatpush1.msra.mxu0 0.0
    %604 = vmatprep.subr.mxu0 0.0
    %605 = vmatpush1.msra.mxu0 0.0
    %606 = vmatprep.subr.mxu0 0.0
    %607 = vmatpush1.msra.mxu0 0.0
    %608 = vmatprep.subr.mxu0 0.0
    %609 = vmatpush1.msra.mxu0 0.0
    %610 = vmatprep.subr.mxu0 0.0
    %611 = vmatpush1.msra.mxu0 0.0
    %612 = vmatprep.subr.mxu0 0.0
    %613 = vmatpush1.msra.mxu0 0.0
    %614 = vmatprep.subr.mxu0 0.0
    %615 = vmatpush1.msra.mxu0 0.0
    %616 = vmatprep.subr.mxu0 0.0
    %617 = vmatpush1.msra.mxu0 0.0
    %618 = vmatprep.subr.mxu0 0.0
    %619 = vmatpush1.msra.mxu0 0.0
    %620 = vmatprep.subr.mxu0 0.0
    %621 = vmatpush1.msra.mxu0 0.0
    %622 = vmatprep.subr.mxu0 0.0
    %623 = vmatpush1.msra.mxu0 0.0
    %624 = vmatprep.subr.mxu0 0.0
    %625 = vmatpush1.msra.mxu0 0.0
    %626 = vmatprep.subr.mxu0 0.0
    %627 = vmatpush1.msra.mxu0 0.0
    %628 = vmatprep.mubr.f32.mxu0 0.0
    %629 = vmatmul.mubr.f32.gmra.mrb[0].mxu0 %v562
    %v630 = vpop.f32.mrb[0].mxu0
    %v631 = vadd.f32 %v100, %v630
    %v632 = vpop.f32.mrb[0].mxu0
    %v633 = vadd.f32 %v104, %v632
    %634 = vmatprep.mubr.f32.mxu0 0.0
    %635 = vmatmul.mubr.f32.gmra.mrb[0].mxu0 %v563
    %v636 = vpop.f32.mrb[0].mxu0
    %v637 = vadd.f32 %v100, %v636
    %v638 = vpop.f32.mrb[0].mxu0
    %v639 = vadd.f32 %v104, %v638
    %640 = vdwg.mxu0
    %v641 = vtanh.pop %v631
    %v642 = vtanh.pop %v637
    %v643 = vxor.u32 %v633, 2147483648
    %v644 = vxor.u32 %v639, 2147483648
    %v645 = vmul.f32 %v643, 1.442695
    %v646 = vpow.pop %v645
    %v647 = vmul.f32 %v644, 1.442695
    %v648 = vpow.pop %v647
    %v649 = vadd.f32 %v646, 1.0
    %v650 = vadd.f32 %v648, 1.0
    %v651 = vrcp.pop %v649
    %v652 = vmul.f32 1.0, %v651
    %v653 = vrcp.pop %v650
    %v654 = vmul.f32 1.0, %v653
    %v655 = vsub.f32 %v641, %v528
    %v656 = vsub.f32 %v642, %v529
    %v657 = vmul.f32 %v655, %v652
    %v658 = vmul.f32 %v656, %v654
    %v659 = vadd.f32 %v657, %v528
    %v660 = vadd.f32 %v658, %v529
    %s661 = scalar_lea.vmem [#allocation12], 16
    %662 = vst [vmem:[%s661] sm:$0xff] %v659
    %663 = vst [vmem:[%s661 + $0x8] sm:$0xff] %v660
    %s664 = scalar_lea.vmem [#allocation3], 64
    %v665 = vld [vmem:[%s664] sm:$0xff]
    %v666 = vld [vmem:[%s664 + $0x8] sm:$0xff]
    %v667 = vld [vmem:[%s664 + $0x10] sm:$0xff]
    %v668 = vld [vmem:[%s664 + $0x18] sm:$0xff]
    %v669 = vld [vmem:[#allocation9] sm:$0xff]
    %v670 = vld [vmem:[#allocation9 + $0x8] sm:$0xff]
    %v671 = vld [vmem:[#allocation9 + $0x10] sm:$0xff]
    %v672 = vld [vmem:[#allocation9 + $0x18] sm:$0xff]
    %v673 = vld [vmem:[#allocation9 + $0x20] sm:$0xff]
    %v674 = vld [vmem:[#allocation9 + $0x28] sm:$0xff]
    %v675 = vld [vmem:[#allocation9 + $0x30] sm:$0xff]
    %v676 = vld [vmem:[#allocation9 + $0x38] sm:$0xff]
    %v677 = vld [vmem:[#allocation9 + $0x40] sm:$0xff]
    %v678 = vld [vmem:[#allocation9 + $0x48] sm:$0xff]
    %v679 = vld [vmem:[#allocation9 + $0x50] sm:$0xff]
    %v680 = vld [vmem:[#allocation9 + $0x58] sm:$0xff]
    %v681 = vld [vmem:[#allocation9 + $0x60] sm:$0xff]
    %v682 = vld [vmem:[#allocation9 + $0x68] sm:$0xff]
    %v683 = vld [vmem:[#allocation9 + $0x70] sm:$0xff]
    %v684 = vld [vmem:[#allocation9 + $0x78] sm:$0xff]
    %v685 = vld [vmem:[#allocation9 + $0x80] sm:$0xff]
    %v686 = vld [vmem:[#allocation9 + $0x88] sm:$0xff]
    %v687 = vld [vmem:[#allocation9 + $0x90] sm:$0xff]
    %v688 = vld [vmem:[#allocation9 + $0x98] sm:$0xff]
    %v689 = vld [vmem:[#allocation9 + $0xa0] sm:$0xff]
    %v690 = vld [vmem:[#allocation9 + $0xa8] sm:$0xff]
    %v691 = vld [vmem:[#allocation9 + $0xb0] sm:$0xff]
    %v692 = vld [vmem:[#allocation9 + $0xb8] sm:$0xff]
    %v693 = vld [vmem:[#allocation9 + $0xc0] sm:$0xff]
    %v694 = vld [vmem:[#allocation9 + $0xc8] sm:$0xff]
    %v695 = vld [vmem:[#allocation9 + $0xd0] sm:$0xff]
    %v696 = vld [vmem:[#allocation9 + $0xd8] sm:$0xff]
    %v697 = vld [vmem:[#allocation9 + $0xe0] sm:$0xff]
    %v698 = vld [vmem:[#allocation9 + $0xe8] sm:$0xff]
    %v699 = vld [vmem:[#allocation9 + $0xf0] sm:$0xff]
    %v700 = vld [vmem:[#allocation9 + $0xf8] sm:$0xff]
    %v701 = vmul.f32 %v92, %v659
    %v702 = vmul.f32 %v93, %v660
    %703 = vmatprep.subr.mxu0 %v670
    %704 = vmatpush1.msra.mxu0 %v669
    %705 = vmatprep.subr.mxu0 %v672
    %706 = vmatpush1.msra.mxu0 %v671
    %707 = vmatprep.subr.mxu0 %v674
    %708 = vmatpush1.msra.mxu0 %v673
    %709 = vmatprep.subr.mxu0 %v676
    %710 = vmatpush1.msra.mxu0 %v675
    %711 = vmatprep.subr.mxu0 %v678
    %712 = vmatpush1.msra.mxu0 %v677
    %713 = vmatprep.subr.mxu0 %v680
    %714 = vmatpush1.msra.mxu0 %v679
    %715 = vmatprep.subr.mxu0 %v682
    %716 = vmatpush1.msra.mxu0 %v681
    %717 = vmatprep.subr.mxu0 %v684
    %718 = vmatpush1.msra.mxu0 %v683
    %719 = vmatprep.subr.mxu0 %v686
    %720 = vmatpush1.msra.mxu0 %v685
    %721 = vmatprep.subr.mxu0 %v688
    %722 = vmatpush1.msra.mxu0 %v687
    %723 = vmatprep.subr.mxu0 %v690
    %724 = vmatpush1.msra.mxu0 %v689
    %725 = vmatprep.subr.mxu0 %v692
    %726 = vmatpush1.msra.mxu0 %v691
    %727 = vmatprep.subr.mxu0 %v694
    %728 = vmatpush1.msra.mxu0 %v693
    %729 = vmatprep.subr.mxu0 %v696
    %730 = vmatpush1.msra.mxu0 %v695
    %731 = vmatprep.subr.mxu0 %v698
    %732 = vmatpush1.msra.mxu0 %v697
    %733 = vmatprep.subr.mxu0 %v700
    %734 = vmatpush1.msra.mxu0 %v699
    %735 = vmatprep.subr.mxu0 0.0
    %736 = vmatpush1.msra.mxu0 0.0
    %737 = vmatprep.subr.mxu0 0.0
    %738 = vmatpush1.msra.mxu0 0.0
    %739 = vmatprep.subr.mxu0 0.0
    %740 = vmatpush1.msra.mxu0 0.0
    %741 = vmatprep.subr.mxu0 0.0
    %742 = vmatpush1.msra.mxu0 0.0
    %743 = vmatprep.subr.mxu0 0.0
    %744 = vmatpush1.msra.mxu0 0.0
    %745 = vmatprep.subr.mxu0 0.0
    %746 = vmatpush1.msra.mxu0 0.0
    %747 = vmatprep.subr.mxu0 0.0
    %748 = vmatpush1.msra.mxu0 0.0
    %749 = vmatprep.subr.mxu0 0.0
    %750 = vmatpush1.msra.mxu0 0.0
    %751 = vmatprep.subr.mxu0 0.0
    %752 = vmatpush1.msra.mxu0 0.0
    %753 = vmatprep.subr.mxu0 0.0
    %754 = vmatpush1.msra.mxu0 0.0
    %755 = vmatprep.subr.mxu0 0.0
    %756 = vmatpush1.msra.mxu0 0.0
    %757 = vmatprep.subr.mxu0 0.0
    %758 = vmatpush1.msra.mxu0 0.0
    %759 = vmatprep.subr.mxu0 0.0
    %760 = vmatpush1.msra.mxu0 0.0
    %761 = vmatprep.subr.mxu0 0.0
    %762 = vmatpush1.msra.mxu0 0.0
    %763 = vmatprep.subr.mxu0 0.0
    %764 = vmatpush1.msra.mxu0 0.0
    %765 = vmatprep.subr.mxu0 0.0
    %766 = vmatpush1.msra.mxu0 0.0
    %767 = vmatprep.mubr.f32.mxu0 0.0
    %768 = vmatmul.mubr.f32.gmra.mrb[0].mxu0 %v701
    %v769 = vpop.f32.mrb[0].mxu0
    %v770 = vadd.f32 0.0, %v769
    %v771 = vpop.f32.mrb[0].mxu0
    %v772 = vadd.f32 0.0, %v771
    %773 = vmatprep.mubr.f32.mxu0 0.0
    %774 = vmatmul.mubr.f32.gmra.mrb[0].mxu0 %v702
    %v775 = vpop.f32.mrb[0].mxu0
    %v776 = vadd.f32 0.0, %v775
    %v777 = vpop.f32.mrb[0].mxu0
    %v778 = vadd.f32 0.0, %v777
    %779 = vdwg.mxu0
    %v780 = vadd.f32 %v665, %v770
    %v781 = vadd.f32 %v667, %v776
    %v782 = vtanh.pop %v780
    %v783 = vtanh.pop %v781
    %v784 = vadd.f32 %v666, %v772
    %v785 = vadd.f32 %v668, %v778
    %v786 = vxor.u32 %v784, 2147483648
    %v787 = vxor.u32 %v785, 2147483648
    %v788 = vmul.f32 %v786, 1.442695
    %v789 = vpow.pop %v788
    %v790 = vmul.f32 %v787, 1.442695
    %v791 = vpow.pop %v790
    %v792 = vadd.f32 %v789, 1.0
    %v793 = vadd.f32 %v791, 1.0
    %v794 = vrcp.pop %v792
    %v795 = vmul.f32 1.0, %v794
    %v796 = vrcp.pop %v793
    %v797 = vmul.f32 1.0, %v796
    %v798 = vsub.f32 %v782, %v659
    %v799 = vsub.f32 %v783, %v660
    %v800 = vmul.f32 %v798, %v795
    %v801 = vmul.f32 %v799, %v797
    %v802 = vadd.f32 %v800, %v659
    %v803 = vadd.f32 %v801, %v660
    %v804 = vld [vmem:[%s256] sm:$0xff]
    %v805 = vld [vmem:[%s256 + $0x8] sm:$0xff]
    %v806 = vld [vmem:[%s256 + $0x10] sm:$0xff]
    %v807 = vld [vmem:[%s256 + $0x18] sm:$0xff]
    %v808 = vld [vmem:[%s256 + $0x20] sm:$0xff]
    %v809 = vld [vmem:[%s256 + $0x28] sm:$0xff]
    %v810 = vld [vmem:[%s256 + $0x30] sm:$0xff]
    %v811 = vld [vmem:[%s256 + $0x38] sm:$0xff]
    %v812 = vld [vmem:[%s256 + $0x40] sm:$0xff]
    %v813 = vld [vmem:[%s256 + $0x48] sm:$0xff]
    %v814 = vld [vmem:[%s256 + $0x50] sm:$0xff]
    %v815 = vld [vmem:[%s256 + $0x58] sm:$0xff]
    %v816 = vld [vmem:[%s256 + $0x60] sm:$0xff]
    %v817 = vld [vmem:[%s256 + $0x68] sm:$0xff]
    %v818 = vld [vmem:[%s256 + $0x70] sm:$0xff]
    %v819 = vld [vmem:[%s256 + $0x78] sm:$0xff]
    %v820 = vld [vmem:[%s256 + $0x80] sm:$0xff]
    %v821 = vld [vmem:[%s256 + $0x88] sm:$0xff]
    %v822 = vld [vmem:[%s256 + $0x90] sm:$0xff]
    %v823 = vld [vmem:[%s256 + $0x98] sm:$0xff]
    %v824 = vld [vmem:[%s256 + $0xa0] sm:$0xff]
    %v825 = vld [vmem:[%s256 + $0xa8] sm:$0xff]
    %v826 = vld [vmem:[%s256 + $0xb0] sm:$0xff]
    %v827 = vld [vmem:[%s256 + $0xb8] sm:$0xff]
    %v828 = vld [vmem:[%s256 + $0xc0] sm:$0xff]
    %v829 = vld [vmem:[%s256 + $0xc8] sm:$0xff]
    %v830 = vld [vmem:[%s256 + $0xd0] sm:$0xff]
    %v831 = vld [vmem:[%s256 + $0xd8] sm:$0xff]
    %v832 = vld [vmem:[%s256 + $0xe0] sm:$0xff]
    %v833 = vld [vmem:[%s256 + $0xe8] sm:$0xff]
    %v834 = vld [vmem:[%s256 + $0xf0] sm:$0xff]
    %v835 = vld [vmem:[%s256 + $0xf8] sm:$0xff]
    %v836 = vmul.f32 %v92, %v802
    %v837 = vmul.f32 %v93, %v803
    %838 = vmatprep.subr.mxu0 %v805
    %839 = vmatpush1.msra.mxu0 %v804
    %840 = vmatprep.subr.mxu0 %v807
    %841 = vmatpush1.msra.mxu0 %v806
    %842 = vmatprep.subr.mxu0 %v809
    %843 = vmatpush1.msra.mxu0 %v808
    %844 = vmatprep.subr.mxu0 %v811
    %845 = vmatpush1.msra.mxu0 %v810
    %846 = vmatprep.subr.mxu0 %v813
    %847 = vmatpush1.msra.mxu0 %v812
    %848 = vmatprep.subr.mxu0 %v815
    %849 = vmatpush1.msra.mxu0 %v814
    %850 = vmatprep.subr.mxu0 %v817
    %851 = vmatpush1.msra.mxu0 %v816
    %852 = vmatprep.subr.mxu0 %v819
    %853 = vmatpush1.msra.mxu0 %v818
    %854 = vmatprep.subr.mxu0 %v821
    %855 = vmatpush1.msra.mxu0 %v820
    %856 = vmatprep.subr.mxu0 %v823
    %857 = vmatpush1.msra.mxu0 %v822
    %858 = vmatprep.subr.mxu0 %v825
    %859 = vmatpush1.msra.mxu0 %v824
    %860 = vmatprep.subr.mxu0 %v827
    %861 = vmatpush1.msra.mxu0 %v826
    %862 = vmatprep.subr.mxu0 %v829
    %863 = vmatpush1.msra.mxu0 %v828
    %864 = vmatprep.subr.mxu0 %v831
    %865 = vmatpush1.msra.mxu0 %v830
    %866 = vmatprep.subr.mxu0 %v833
    %867 = vmatpush1.msra.mxu0 %v832
    %868 = vmatprep.subr.mxu0 %v835
    %869 = vmatpush1.msra.mxu0 %v834
    %870 = vmatprep.subr.mxu0 0.0
    %871 = vmatpush1.msra.mxu0 0.0
    %872 = vmatprep.subr.mxu0 0.0
    %873 = vmatpush1.msra.mxu0 0.0
    %874 = vmatprep.subr.mxu0 0.0
    %875 = vmatpush1.msra.mxu0 0.0
    %876 = vmatprep.subr.mxu0 0.0
    %877 = vmatpush1.msra.mxu0 0.0
    %878 = vmatprep.subr.mxu0 0.0
    %879 = vmatpush1.msra.mxu0 0.0
    %880 = vmatprep.subr.mxu0 0.0
    %881 = vmatpush1.msra.mxu0 0.0
    %882 = vmatprep.subr.mxu0 0.0
    %883 = vmatpush1.msra.mxu0 0.0
    %884 = vmatprep.subr.mxu0 0.0
    %885 = vmatpush1.msra.mxu0 0.0
    %886 = vmatprep.subr.mxu0 0.0
    %887 = vmatpush1.msra.mxu0 0.0
    %888 = vmatprep.subr.mxu0 0.0
    %889 = vmatpush1.msra.mxu0 0.0
    %890 = vmatprep.subr.mxu0 0.0
    %891 = vmatpush1.msra.mxu0 0.0
    %892 = vmatprep.subr.mxu0 0.0
    %893 = vmatpush1.msra.mxu0 0.0
    %894 = vmatprep.subr.mxu0 0.0
    %895 = vmatpush1.msra.mxu0 0.0
    %896 = vmatprep.subr.mxu0 0.0
    %897 = vmatpush1.msra.mxu0 0.0
    %898 = vmatprep.subr.mxu0 0.0
    %899 = vmatpush1.msra.mxu0 0.0
    %900 = vmatprep.subr.mxu0 0.0
    %901 = vmatpush1.msra.mxu0 0.0
    %902 = vmatprep.mubr.f32.mxu0 0.0
    %903 = vmatmul.mubr.f32.gmra.mrb[0].mxu0 %v836
    %v904 = vpop.f32.mrb[0].mxu0
    %v905 = vadd.f32 %v100, %v904
    %v906 = vpop.f32.mrb[0].mxu0
    %v907 = vadd.f32 %v104, %v906
    %908 = vmatprep.mubr.f32.mxu0 0.0
    %909 = vmatmul.mubr.f32.gmra.mrb[0].mxu0 %v837
    %v910 = vpop.f32.mrb[0].mxu0
    %v911 = vadd.f32 %v100, %v910
    %v912 = vpop.f32.mrb[0].mxu0
    %v913 = vadd.f32 %v104, %v912
    %914 = vdwg.mxu0
    %v915 = vtanh.pop %v905
    %v916 = vtanh.pop %v911
    %v917 = vxor.u32 %v907, 2147483648
    %v918 = vxor.u32 %v913, 2147483648
    %v919 = vmul.f32 %v917, 1.442695
    %v920 = vpow.pop %v919
    %v921 = vmul.f32 %v918, 1.442695
    %v922 = vpow.pop %v921
    %v923 = vadd.f32 %v920, 1.0
    %v924 = vadd.f32 %v922, 1.0
    %v925 = vrcp.pop %v923
    %v926 = vmul.f32 1.0, %v925
    %v927 = vrcp.pop %v924
    %v928 = vmul.f32 1.0, %v927
    %v929 = vsub.f32 %v915, %v802
    %v930 = vsub.f32 %v916, %v803
    %v931 = vmul.f32 %v929, %v926
    %v932 = vmul.f32 %v930, %v928
    %v933 = vadd.f32 %v931, %v802
    %v934 = vadd.f32 %v932, %v803
    %s935 = scalar_lea.vmem [#allocation12], 32
    %936 = vst [vmem:[%s935] sm:$0xff] %v933
    %937 = vst [vmem:[%s935 + $0x8] sm:$0xff] %v934
    %s938 = scalar_lea.vmem [#allocation3], 96
    %v939 = vld [vmem:[%s938] sm:$0xff]
    %v940 = vld [vmem:[%s938 + $0x8] sm:$0xff]
    %v941 = vld [vmem:[%s938 + $0x10] sm:$0xff]
    %v942 = vld [vmem:[%s938 + $0x18] sm:$0xff]
    %v943 = vld [vmem:[#allocation9] sm:$0xff]
    %v944 = vld [vmem:[#allocation9 + $0x8] sm:$0xff]
    %v945 = vld [vmem:[#allocation9 + $0x10] sm:$0xff]
    %v946 = vld [vmem:[#allocation9 + $0x18] sm:$0xff]
    %v947 = vld [vmem:[#allocation9 + $0x20] sm:$0xff]
    %v948 = vld [vmem:[#allocation9 + $0x28] sm:$0xff]
    %v949 = vld [vmem:[#allocation9 + $0x30] sm:$0xff]
    %v950 = vld [vmem:[#allocation9 + $0x38] sm:$0xff]
    %v951 = vld [vmem:[#allocation9 + $0x40] sm:$0xff]
    %v952 = vld [vmem:[#allocation9 + $0x48] sm:$0xff]
    %v953 = vld [vmem:[#allocation9 + $0x50] sm:$0xff]
    %v954 = vld [vmem:[#allocation9 + $0x58] sm:$0xff]
    %v955 = vld [vmem:[#allocation9 + $0x60] sm:$0xff]
    %v956 = vld [vmem:[#allocation9 + $0x68] sm:$0xff]
    %v957 = vld [vmem:[#allocation9 + $0x70] sm:$0xff]
    %v958 = vld [vmem:[#allocation9 + $0x78] sm:$0xff]
    %v959 = vld [vmem:[#allocation9 + $0x80] sm:$0xff]
    %v960 = vld [vmem:[#allocation9 + $0x88] sm:$0xff]
    %v961 = vld [vmem:[#allocation9 + $0x90] sm:$0xff]
    %v962 = vld [vmem:[#allocation9 + $0x98] sm:$0xff]
    %v963 = vld [vmem:[#allocation9 + $0xa0] sm:$0xff]
    %v964 = vld [vmem:[#allocation9 + $0xa8] sm:$0xff]
    %v965 = vld [vmem:[#allocation9 + $0xb0] sm:$0xff]
    %v966 = vld [vmem:[#allocation9 + $0xb8] sm:$0xff]
    %v967 = vld [vmem:[#allocation9 + $0xc0] sm:$0xff]
    %v968 = vld [vmem:[#allocation9 + $0xc8] sm:$0xff]
    %v969 = vld [vmem:[#allocation9 + $0xd0] sm:$0xff]
    %v970 = vld [vmem:[#allocation9 + $0xd8] sm:$0xff]
    %v971 = vld [vmem:[#allocation9 + $0xe0] sm:$0xff]
    %v972 = vld [vmem:[#allocation9 + $0xe8] sm:$0xff]
    %v973 = vld [vmem:[#allocation9 + $0xf0] sm:$0xff]
    %v974 = vld [vmem:[#allocation9 + $0xf8] sm:$0xff]
    %v975 = vmul.f32 %v92, %v933
    %v976 = vmul.f32 %v93, %v934
    %977 = vmatprep.subr.mxu0 %v944
    %978 = vmatpush1.msra.mxu0 %v943
    %979 = vmatprep.subr.mxu0 %v946
    %980 = vmatpush1.msra.mxu0 %v945
    %981 = vmatprep.subr.mxu0 %v948
    %982 = vmatpush1.msra.mxu0 %v947
    %983 = vmatprep.subr.mxu0 %v950
    %984 = vmatpush1.msra.mxu0 %v949
    %985 = vmatprep.subr.mxu0 %v952
    %986 = vmatpush1.msra.mxu0 %v951
    %987 = vmatprep.subr.mxu0 %v954
    %988 = vmatpush1.msra.mxu0 %v953
    %989 = vmatprep.subr.mxu0 %v956
    %990 = vmatpush1.msra.mxu0 %v955
    %991 = vmatprep.subr.mxu0 %v958
    %992 = vmatpush1.msra.mxu0 %v957
    %993 = vmatprep.subr.mxu0 %v960
    %994 = vmatpush1.msra.mxu0 %v959
    %995 = vmatprep.subr.mxu0 %v962
    %996 = vmatpush1.msra.mxu0 %v961
    %997 = vmatprep.subr.mxu0 %v964
    %998 = vmatpush1.msra.mxu0 %v963
    %999 = vmatprep.subr.mxu0 %v966
    %1000 = vmatpush1.msra.mxu0 %v965
    %1001 = vmatprep.subr.mxu0 %v968
    %1002 = vmatpush1.msra.mxu0 %v967
    %1003 = vmatprep.subr.mxu0 %v970
    %1004 = vmatpush1.msra.mxu0 %v969
    %1005 = vmatprep.subr.mxu0 %v972
    %1006 = vmatpush1.msra.mxu0 %v971
    %1007 = vmatprep.subr.mxu0 %v974
    %1008 = vmatpush1.msra.mxu0 %v973
    %1009 = vmatprep.subr.mxu0 0.0
    %1010 = vmatpush1.msra.mxu0 0.0
    %1011 = vmatprep.subr.mxu0 0.0
    %1012 = vmatpush1.msra.mxu0 0.0
    %1013 = vmatprep.subr.mxu0 0.0
    %1014 = vmatpush1.msra.mxu0 0.0
    %1015 = vmatprep.subr.mxu0 0.0
    %1016 = vmatpush1.msra.mxu0 0.0
    %1017 = vmatprep.subr.mxu0 0.0
    %1018 = vmatpush1.msra.mxu0 0.0
    %1019 = vmatprep.subr.mxu0 0.0
    %1020 = vmatpush1.msra.mxu0 0.0
    %1021 = vmatprep.subr.mxu0 0.0
    %1022 = vmatpush1.msra.mxu0 0.0
    %1023 = vmatprep.subr.mxu0 0.0
    %1024 = vmatpush1.msra.mxu0 0.0
    %1025 = vmatprep.subr.mxu0 0.0
    %1026 = vmatpush1.msra.mxu0 0.0
    %1027 = vmatprep.subr.mxu0 0.0
    %1028 = vmatpush1.msra.mxu0 0.0
    %1029 = vmatprep.subr.mxu0 0.0
    %1030 = vmatpush1.msra.mxu0 0.0
    %1031 = vmatprep.subr.mxu0 0.0
    %1032 = vmatpush1.msra.mxu0 0.0
    %1033 = vmatprep.subr.mxu0 0.0
    %1034 = vmatpush1.msra.mxu0 0.0
    %1035 = vmatprep.subr.mxu0 0.0
    %1036 = vmatpush1.msra.mxu0 0.0
    %1037 = vmatprep.subr.mxu0 0.0
    %1038 = vmatpush1.msra.mxu0 0.0
    %1039 = vmatprep.subr.mxu0 0.0
    %1040 = vmatpush1.msra.mxu0 0.0
    %1041 = vmatprep.mubr.f32.mxu0 0.0
    %1042 = vmatmul.mubr.f32.gmra.mrb[0].mxu0 %v975
    %v1043 = vpop.f32.mrb[0].mxu0
    %v1044 = vadd.f32 0.0, %v1043
    %v1045 = vpop.f32.mrb[0].mxu0
    %v1046 = vadd.f32 0.0, %v1045
    %1047 = vmatprep.mubr.f32.mxu0 0.0
    %1048 = vmatmul.mubr.f32.gmra.mrb[0].mxu0 %v976
    %v1049 = vpop.f32.mrb[0].mxu0
    %v1050 = vadd.f32 0.0, %v1049
    %v1051 = vpop.f32.mrb[0].mxu0
    %v1052 = vadd.f32 0.0, %v1051
    %1053 = vdwg.mxu0
    %v1054 = vadd.f32 %v939, %v1044
    %v1055 = vadd.f32 %v941, %v1050
    %v1056 = vtanh.pop %v1054
    %v1057 = vtanh.pop %v1055
    %v1058 = vadd.f32 %v940, %v1046
    %v1059 = vadd.f32 %v942, %v1052
    %v1060 = vxor.u32 %v1058, 2147483648
    %v1061 = vxor.u32 %v1059, 2147483648
    %v1062 = vmul.f32 %v1060, 1.442695
    %v1063 = vpow.pop %v1062
    %v1064 = vmul.f32 %v1061, 1.442695
    %v1065 = vpow.pop %v1064
    %v1066 = vadd.f32 %v1063, 1.0
    %v1067 = vadd.f32 %v1065, 1.0
    %v1068 = vrcp.pop %v1066
    %v1069 = vmul.f32 1.0, %v1068
    %v1070 = vrcp.pop %v1067
    %v1071 = vmul.f32 1.0, %v1070
    %v1072 = vsub.f32 %v1056, %v933
    %v1073 = vsub.f32 %v1057, %v934
    %v1074 = vmul.f32 %v1072, %v1069
    %v1075 = vmul.f32 %v1073, %v1071
    %v1076 = vadd.f32 %v1074, %v933
    %v1077 = vadd.f32 %v1075, %v934
    %v1078 = vld [vmem:[%s256] sm:$0xff]
    %v1079 = vld [vmem:[%s256 + $0x8] sm:$0xff]
    %v1080 = vld [vmem:[%s256 + $0x10] sm:$0xff]
    %v1081 = vld [vmem:[%s256 + $0x18] sm:$0xff]
    %v1082 = vld [vmem:[%s256 + $0x20] sm:$0xff]
    %v1083 = vld [vmem:[%s256 + $0x28] sm:$0xff]
    %v1084 = vld [vmem:[%s256 + $0x30] sm:$0xff]
    %v1085 = vld [vmem:[%s256 + $0x38] sm:$0xff]
    %v1086 = vld [vmem:[%s256 + $0x40] sm:$0xff]
    %v1087 = vld [vmem:[%s256 + $0x48] sm:$0xff]
    %v1088 = vld [vmem:[%s256 + $0x50] sm:$0xff]
    %v1089 = vld [vmem:[%s256 + $0x58] sm:$0xff]
    %v1090 = vld [vmem:[%s256 + $0x60] sm:$0xff]
    %v1091 = vld [vmem:[%s256 + $0x68] sm:$0xff]
    %v1092 = vld [vmem:[%s256 + $0x70] sm:$0xff]
    %v1093 = vld [vmem:[%s256 + $0x78] sm:$0xff]
    %v1094 = vld [vmem:[%s256 + $0x80] sm:$0xff]
    %v1095 = vld [vmem:[%s256 + $0x88] sm:$0xff]
    %v1096 = vld [vmem:[%s256 + $0x90] sm:$0xff]
    %v1097 = vld [vmem:[%s256 + $0x98] sm:$0xff]
    %v1098 = vld [vmem:[%s256 + $0xa0] sm:$0xff]
    %v1099 = vld [vmem:[%s256 + $0xa8] sm:$0xff]
    %v1100 = vld [vmem:[%s256 + $0xb0] sm:$0xff]
    %v1101 = vld [vmem:[%s256 + $0xb8] sm:$0xff]
    %v1102 = vld [vmem:[%s256 + $0xc0] sm:$0xff]
    %v1103 = vld [vmem:[%s256 + $0xc8] sm:$0xff]
    %v1104 = vld [vmem:[%s256 + $0xd0] sm:$0xff]
    %v1105 = vld [vmem:[%s256 + $0xd8] sm:$0xff]
    %v1106 = vld [vmem:[%s256 + $0xe0] sm:$0xff]
    %v1107 = vld [vmem:[%s256 + $0xe8] sm:$0xff]
    %v1108 = vld [vmem:[%s256 + $0xf0] sm:$0xff]
    %v1109 = vld [vmem:[%s256 + $0xf8] sm:$0xff]
    %v1110 = vmul.f32 %v92, %v1076
    %v1111 = vmul.f32 %v93, %v1077
    %1112 = vmatprep.subr.mxu0 %v1079
    %1113 = vmatpush1.msra.mxu0 %v1078
    %1114 = vmatprep.subr.mxu0 %v1081
    %1115 = vmatpush1.msra.mxu0 %v1080
    %1116 = vmatprep.subr.mxu0 %v1083
    %1117 = vmatpush1.msra.mxu0 %v1082
    %1118 = vmatprep.subr.mxu0 %v1085
    %1119 = vmatpush1.msra.mxu0 %v1084
    %1120 = vmatprep.subr.mxu0 %v1087
    %1121 = vmatpush1.msra.mxu0 %v1086
    %1122 = vmatprep.subr.mxu0 %v1089
    %1123 = vmatpush1.msra.mxu0 %v1088
    %1124 = vmatprep.subr.mxu0 %v1091
    %1125 = vmatpush1.msra.mxu0 %v1090
    %1126 = vmatprep.subr.mxu0 %v1093
    %1127 = vmatpush1.msra.mxu0 %v1092
    %1128 = vmatprep.subr.mxu0 %v1095
    %1129 = vmatpush1.msra.mxu0 %v1094
    %1130 = vmatprep.subr.mxu0 %v1097
    %1131 = vmatpush1.msra.mxu0 %v1096
    %1132 = vmatprep.subr.mxu0 %v1099
    %1133 = vmatpush1.msra.mxu0 %v1098
    %1134 = vmatprep.subr.mxu0 %v1101
    %1135 = vmatpush1.msra.mxu0 %v1100
    %1136 = vmatprep.subr.mxu0 %v1103
    %1137 = vmatpush1.msra.mxu0 %v1102
    %1138 = vmatprep.subr.mxu0 %v1105
    %1139 = vmatpush1.msra.mxu0 %v1104
    %1140 = vmatprep.subr.mxu0 %v1107
    %1141 = vmatpush1.msra.mxu0 %v1106
    %1142 = vmatprep.subr.mxu0 %v1109
    %1143 = vmatpush1.msra.mxu0 %v1108
    %1144 = vmatprep.subr.mxu0 0.0
    %1145 = vmatpush1.msra.mxu0 0.0
    %1146 = vmatprep.subr.mxu0 0.0
    %1147 = vmatpush1.msra.mxu0 0.0
    %1148 = vmatprep.subr.mxu0 0.0
    %1149 = vmatpush1.msra.mxu0 0.0
    %1150 = vmatprep.subr.mxu0 0.0
    %1151 = vmatpush1.msra.mxu0 0.0
    %1152 = vmatprep.subr.mxu0 0.0
    %1153 = vmatpush1.msra.mxu0 0.0
    %1154 = vmatprep.subr.mxu0 0.0
    %1155 = vmatpush1.msra.mxu0 0.0
    %1156 = vmatprep.subr.mxu0 0.0
    %1157 = vmatpush1.msra.mxu0 0.0
    %1158 = vmatprep.subr.mxu0 0.0
    %1159 = vmatpush1.msra.mxu0 0.0
    %1160 = vmatprep.subr.mxu0 0.0
    %1161 = vmatpush1.msra.mxu0 0.0
    %1162 = vmatprep.subr.mxu0 0.0
    %1163 = vmatpush1.msra.mxu0 0.0
    %1164 = vmatprep.subr.mxu0 0.0
    %1165 = vmatpush1.msra.mxu0 0.0
    %1166 = vmatprep.subr.mxu0 0.0
    %1167 = vmatpush1.msra.mxu0 0.0
    %1168 = vmatprep.subr.mxu0 0.0
    %1169 = vmatpush1.msra.mxu0 0.0
    %1170 = vmatprep.subr.mxu0 0.0
    %1171 = vmatpush1.msra.mxu0 0.0
    %1172 = vmatprep.subr.mxu0 0.0
    %1173 = vmatpush1.msra.mxu0 0.0
    %1174 = vmatprep.subr.mxu0 0.0
    %1175 = vmatpush1.msra.mxu0 0.0
    %1176 = vmatprep.mubr.f32.mxu0 0.0
    %1177 = vmatmul.mubr.f32.gmra.mrb[0].mxu0 %v1110
    %v1178 = vpop.f32.mrb[0].mxu0
    %v1179 = vadd.f32 %v100, %v1178
    %v1180 = vpop.f32.mrb[0].mxu0
    %v1181 = vadd.f32 %v104, %v1180
    %1182 = vmatprep.mubr.f32.mxu0 0.0
    %1183 = vmatmul.mubr.f32.gmra.mrb[0].mxu0 %v1111
    %v1184 = vpop.f32.mrb[0].mxu0
    %v1185 = vadd.f32 %v100, %v1184
    %v1186 = vpop.f32.mrb[0].mxu0
    %v1187 = vadd.f32 %v104, %v1186
    %1188 = vdwg.mxu0
    %v1189 = vtanh.pop %v1179
    %v1190 = vtanh.pop %v1185
    %v1191 = vxor.u32 %v1181, 2147483648
    %v1192 = vxor.u32 %v1187, 2147483648
    %v1193 = vmul.f32 %v1191, 1.442695
    %v1194 = vpow.pop %v1193
    %v1195 = vmul.f32 %v1192, 1.442695
    %v1196 = vpow.pop %v1195
    %v1197 = vadd.f32 %v1194, 1.0
    %v1198 = vadd.f32 %v1196, 1.0
    %v1199 = vrcp.pop %v1197
    %v1200 = vmul.f32 1.0, %v1199
    %v1201 = vrcp.pop %v1198
    %v1202 = vmul.f32 1.0, %v1201
    %v1203 = vsub.f32 %v1189, %v1076
    %v1204 = vsub.f32 %v1190, %v1077
    %v1205 = vmul.f32 %v1203, %v1200
    %v1206 = vmul.f32 %v1204, %v1202
    %v1207 = vadd.f32 %v1205, %v1076
    %v1208 = vadd.f32 %v1206, %v1077
    %s1209 = scalar_lea.vmem [#allocation12], 48
    %1210 = vst [vmem:[%s1209] sm:$0xff] %v1207
    %1211 = vst [vmem:[%s1209 + $0x8] sm:$0xff] %v1208
    %s1212 = scalar_lea.vmem [#allocation3], 128
    %v1213 = vld [vmem:[%s1212] sm:$0xff]
    %v1214 = vld [vmem:[%s1212 + $0x8] sm:$0xff]
    %v1215 = vld [vmem:[%s1212 + $0x10] sm:$0xff]
    %v1216 = vld [vmem:[%s1212 + $0x18] sm:$0xff]
    %v1217 = vld [vmem:[#allocation9] sm:$0xff]
    %v1218 = vld [vmem:[#allocation9 + $0x8] sm:$0xff]
    %v1219 = vld [vmem:[#allocation9 + $0x10] sm:$0xff]
    %v1220 = vld [vmem:[#allocation9 + $0x18] sm:$0xff]
    %v1221 = vld [vmem:[#allocation9 + $0x20] sm:$0xff]
    %v1222 = vld [vmem:[#allocation9 + $0x28] sm:$0xff]
    %v1223 = vld [vmem:[#allocation9 + $0x30] sm:$0xff]
    %v1224 = vld [vmem:[#allocation9 + $0x38] sm:$0xff]
    %v1225 = vld [vmem:[#allocation9 + $0x40] sm:$0xff]
    %v1226 = vld [vmem:[#allocation9 + $0x48] sm:$0xff]
    %v1227 = vld [vmem:[#allocation9 + $0x50] sm:$0xff]
    %v1228 = vld [vmem:[#allocation9 + $0x58] sm:$0xff]
    %v1229 = vld [vmem:[#allocation9 + $0x60] sm:$0xff]
    %v1230 = vld [vmem:[#allocation9 + $0x68] sm:$0xff]
    %v1231 = vld [vmem:[#allocation9 + $0x70] sm:$0xff]
    %v1232 = vld [vmem:[#allocation9 + $0x78] sm:$0xff]
    %v1233 = vld [vmem:[#allocation9 + $0x80] sm:$0xff]
    %v1234 = vld [vmem:[#allocation9 + $0x88] sm:$0xff]
    %v1235 = vld [vmem:[#allocation9 + $0x90] sm:$0xff]
    %v1236 = vld [vmem:[#allocation9 + $0x98] sm:$0xff]
    %v1237 = vld [vmem:[#allocation9 + $0xa0] sm:$0xff]
    %v1238 = vld [vmem:[#allocation9 + $0xa8] sm:$0xff]
    %v1239 = vld [vmem:[#allocation9 + $0xb0] sm:$0xff]
    %v1240 = vld [vmem:[#allocation9 + $0xb8] sm:$0xff]
    %v1241 = vld [vmem:[#allocation9 + $0xc0] sm:$0xff]
    %v1242 = vld [vmem:[#allocation9 + $0xc8] sm:$0xff]
    %v1243 = vld [vmem:[#allocation9 + $0xd0] sm:$0xff]
    %v1244 = vld [vmem:[#allocation9 + $0xd8] sm:$0xff]
    %v1245 = vld [vmem:[#allocation9 + $0xe0] sm:$0xff]
    %v1246 = vld [vmem:[#allocation9 + $0xe8] sm:$0xff]
    %v1247 = vld [vmem:[#allocation9 + $0xf0] sm:$0xff]
    %v1248 = vld [vmem:[#allocation9 + $0xf8] sm:$0xff]
    %v1249 = vmul.f32 %v92, %v1207
    %v1250 = vmul.f32 %v93, %v1208
    %1251 = vmatprep.subr.mxu0 %v1218
    %1252 = vmatpush1.msra.mxu0 %v1217
    %1253 = vmatprep.subr.mxu0 %v1220
    %1254 = vmatpush1.msra.mxu0 %v1219
    %1255 = vmatprep.subr.mxu0 %v1222
    %1256 = vmatpush1.msra.mxu0 %v1221
    %1257 = vmatprep.subr.mxu0 %v1224
    %1258 = vmatpush1.msra.mxu0 %v1223
    %1259 = vmatprep.subr.mxu0 %v1226
    %1260 = vmatpush1.msra.mxu0 %v1225
    %1261 = vmatprep.subr.mxu0 %v1228
    %1262 = vmatpush1.msra.mxu0 %v1227
    %1263 = vmatprep.subr.mxu0 %v1230
    %1264 = vmatpush1.msra.mxu0 %v1229
    %1265 = vmatprep.subr.mxu0 %v1232
    %1266 = vmatpush1.msra.mxu0 %v1231
    %1267 = vmatprep.subr.mxu0 %v1234
    %1268 = vmatpush1.msra.mxu0 %v1233
    %1269 = vmatprep.subr.mxu0 %v1236
    %1270 = vmatpush1.msra.mxu0 %v1235
    %1271 = vmatprep.subr.mxu0 %v1238
    %1272 = vmatpush1.msra.mxu0 %v1237
    %1273 = vmatprep.subr.mxu0 %v1240
    %1274 = vmatpush1.msra.mxu0 %v1239
    %1275 = vmatprep.subr.mxu0 %v1242
    %1276 = vmatpush1.msra.mxu0 %v1241
    %1277 = vmatprep.subr.mxu0 %v1244
    %1278 = vmatpush1.msra.mxu0 %v1243
    %1279 = vmatprep.subr.mxu0 %v1246
    %1280 = vmatpush1.msra.mxu0 %v1245
    %1281 = vmatprep.subr.mxu0 %v1248
    %1282 = vmatpush1.msra.mxu0 %v1247
    %1283 = vmatprep.subr.mxu0 0.0
    %1284 = vmatpush1.msra.mxu0 0.0
    %1285 = vmatprep.subr.mxu0 0.0
    %1286 = vmatpush1.msra.mxu0 0.0
    %1287 = vmatprep.subr.mxu0 0.0
    %1288 = vmatpush1.msra.mxu0 0.0
    %1289 = vmatprep.subr.mxu0 0.0
    %1290 = vmatpush1.msra.mxu0 0.0
    %1291 = vmatprep.subr.mxu0 0.0
    %1292 = vmatpush1.msra.mxu0 0.0
    %1293 = vmatprep.subr.mxu0 0.0
    %1294 = vmatpush1.msra.mxu0 0.0
    %1295 = vmatprep.subr.mxu0 0.0
    %1296 = vmatpush1.msra.mxu0 0.0
    %1297 = vmatprep.subr.mxu0 0.0
    %1298 = vmatpush1.msra.mxu0 0.0
    %1299 = vmatprep.subr.mxu0 0.0
    %1300 = vmatpush1.msra.mxu0 0.0
    %1301 = vmatprep.subr.mxu0 0.0
    %1302 = vmatpush1.msra.mxu0 0.0
    %1303 = vmatprep.subr.mxu0 0.0
    %1304 = vmatpush1.msra.mxu0 0.0
    %1305 = vmatprep.subr.mxu0 0.0
    %1306 = vmatpush1.msra.mxu0 0.0
    %1307 = vmatprep.subr.mxu0 0.0
    %1308 = vmatpush1.msra.mxu0 0.0
    %1309 = vmatprep.subr.mxu0 0.0
    %1310 = vmatpush1.msra.mxu0 0.0
    %1311 = vmatprep.subr.mxu0 0.0
    %1312 = vmatpush1.msra.mxu0 0.0
    %1313 = vmatprep.subr.mxu0 0.0
    %1314 = vmatpush1.msra.mxu0 0.0
    %1315 = vmatprep.mubr.f32.mxu0 0.0
    %1316 = vmatmul.mubr.f32.gmra.mrb[0].mxu0 %v1249
    %v1317 = vpop.f32.mrb[0].mxu0
    %v1318 = vadd.f32 0.0, %v1317
    %v1319 = vpop.f32.mrb[0].mxu0
    %v1320 = vadd.f32 0.0, %v1319
    %1321 = vmatprep.mubr.f32.mxu0 0.0
    %1322 = vmatmul.mubr.f32.gmra.mrb[0].mxu0 %v1250
    %v1323 = vpop.f32.mrb[0].mxu0
    %v1324 = vadd.f32 0.0, %v1323
    %v1325 = vpop.f32.mrb[0].mxu0
    %v1326 = vadd.f32 0.0, %v1325
    %1327 = vdwg.mxu0
    %v1328 = vadd.f32 %v1213, %v1318
    %v1329 = vadd.f32 %v1215, %v1324
    %v1330 = vtanh.pop %v1328
    %v1331 = vtanh.pop %v1329
    %v1332 = vadd.f32 %v1214, %v1320
    %v1333 = vadd.f32 %v1216, %v1326
    %v1334 = vxor.u32 %v1332, 2147483648
    %v1335 = vxor.u32 %v1333, 2147483648
    %v1336 = vmul.f32 %v1334, 1.442695
    %v1337 = vpow.pop %v1336
    %v1338 = vmul.f32 %v1335, 1.442695
    %v1339 = vpow.pop %v1338
    %v1340 = vadd.f32 %v1337, 1.0
    %v1341 = vadd.f32 %v1339, 1.0
    %v1342 = vrcp.pop %v1340
    %v1343 = vmul.f32 1.0, %v1342
    %v1344 = vrcp.pop %v1341
    %v1345 = vmul.f32 1.0, %v1344
    %v1346 = vsub.f32 %v1330, %v1207
    %v1347 = vsub.f32 %v1331, %v1208
    %v1348 = vmul.f32 %v1346, %v1343
    %v1349 = vmul.f32 %v1347, %v1345
    %v1350 = vadd.f32 %v1348, %v1207
    %v1351 = vadd.f32 %v1349, %v1208
    %v1352 = vld [vmem:[%s256] sm:$0xff]
    %v1353 = vld [vmem:[%s256 + $0x8] sm:$0xff]
    %v1354 = vld [vmem:[%s256 + $0x10] sm:$0xff]
    %v1355 = vld [vmem:[%s256 + $0x18] sm:$0xff]
    %v1356 = vld [vmem:[%s256 + $0x20] sm:$0xff]
    %v1357 = vld [vmem:[%s256 + $0x28] sm:$0xff]
    %v1358 = vld [vmem:[%s256 + $0x30] sm:$0xff]
    %v1359 = vld [vmem:[%s256 + $0x38] sm:$0xff]
    %v1360 = vld [vmem:[%s256 + $0x40] sm:$0xff]
    %v1361 = vld [vmem:[%s256 + $0x48] sm:$0xff]
    %v1362 = vld [vmem:[%s256 + $0x50] sm:$0xff]
    %v1363 = vld [vmem:[%s256 + $0x58] sm:$0xff]
    %v1364 = vld [vmem:[%s256 + $0x60] sm:$0xff]
    %v1365 = vld [vmem:[%s256 + $0x68] sm:$0xff]
    %v1366 = vld [vmem:[%s256 + $0x70] sm:$0xff]
    %v1367 = vld [vmem:[%s256 + $0x78] sm:$0xff]
    %v1368 = vld [vmem:[%s256 + $0x80] sm:$0xff]
    %v1369 = vld [vmem:[%s256 + $0x88] sm:$0xff]
    %v1370 = vld [vmem:[%s256 + $0x90] sm:$0xff]
    %v1371 = vld [vmem:[%s256 + $0x98] sm:$0xff]
    %v1372 = vld [vmem:[%s256 + $0xa0] sm:$0xff]
    %v1373 = vld [vmem:[%s256 + $0xa8] sm:$0xff]
    %v1374 = vld [vmem:[%s256 + $0xb0] sm:$0xff]
    %v1375 = vld [vmem:[%s256 + $0xb8] sm:$0xff]
    %v1376 = vld [vmem:[%s256 + $0xc0] sm:$0xff]
    %v1377 = vld [vmem:[%s256 + $0xc8] sm:$0xff]
    %v1378 = vld [vmem:[%s256 + $0xd0] sm:$0xff]
    %v1379 = vld [vmem:[%s256 + $0xd8] sm:$0xff]
    %v1380 = vld [vmem:[%s256 + $0xe0] sm:$0xff]
    %v1381 = vld [vmem:[%s256 + $0xe8] sm:$0xff]
    %v1382 = vld [vmem:[%s256 + $0xf0] sm:$0xff]
    %v1383 = vld [vmem:[%s256 + $0xf8] sm:$0xff]
    %v1384 = vmul.f32 %v92, %v1350
    %v1385 = vmul.f32 %v93, %v1351
    %1386 = vmatprep.subr.mxu0 %v1353
    %1387 = vmatpush1.msra.mxu0 %v1352
    %1388 = vmatprep.subr.mxu0 %v1355
    %1389 = vmatpush1.msra.mxu0 %v1354
    %1390 = vmatprep.subr.mxu0 %v1357
    %1391 = vmatpush1.msra.mxu0 %v1356
    %1392 = vmatprep.subr.mxu0 %v1359
    %1393 = vmatpush1.msra.mxu0 %v1358
    %1394 = vmatprep.subr.mxu0 %v1361
    %1395 = vmatpush1.msra.mxu0 %v1360
    %1396 = vmatprep.subr.mxu0 %v1363
    %1397 = vmatpush1.msra.mxu0 %v1362
    %1398 = vmatprep.subr.mxu0 %v1365
    %1399 = vmatpush1.msra.mxu0 %v1364
    %1400 = vmatprep.subr.mxu0 %v1367
    %1401 = vmatpush1.msra.mxu0 %v1366
    %1402 = vmatprep.subr.mxu0 %v1369
    %1403 = vmatpush1.msra.mxu0 %v1368
    %1404 = vmatprep.subr.mxu0 %v1371
    %1405 = vmatpush1.msra.mxu0 %v1370
    %1406 = vmatprep.subr.mxu0 %v1373
    %1407 = vmatpush1.msra.mxu0 %v1372
    %1408 = vmatprep.subr.mxu0 %v1375
    %1409 = vmatpush1.msra.mxu0 %v1374
    %1410 = vmatprep.subr.mxu0 %v1377
    %1411 = vmatpush1.msra.mxu0 %v1376
    %1412 = vmatprep.subr.mxu0 %v1379
    %1413 = vmatpush1.msra.mxu0 %v1378
    %1414 = vmatprep.subr.mxu0 %v1381
    %1415 = vmatpush1.msra.mxu0 %v1380
    %1416 = vmatprep.subr.mxu0 %v1383
    %1417 = vmatpush1.msra.mxu0 %v1382
    %1418 = vmatprep.subr.mxu0 0.0
    %1419 = vmatpush1.msra.mxu0 0.0
    %1420 = vmatprep.subr.mxu0 0.0
    %1421 = vmatpush1.msra.mxu0 0.0
    %1422 = vmatprep.subr.mxu0 0.0
    %1423 = vmatpush1.msra.mxu0 0.0
    %1424 = vmatprep.subr.mxu0 0.0
    %1425 = vmatpush1.msra.mxu0 0.0
    %1426 = vmatprep.subr.mxu0 0.0
    %1427 = vmatpush1.msra.mxu0 0.0
    %1428 = vmatprep.subr.mxu0 0.0
    %1429 = vmatpush1.msra.mxu0 0.0
    %1430 = vmatprep.subr.mxu0 0.0
    %1431 = vmatpush1.msra.mxu0 0.0
    %1432 = vmatprep.subr.mxu0 0.0
    %1433 = vmatpush1.msra.mxu0 0.0
    %1434 = vmatprep.subr.mxu0 0.0
    %1435 = vmatpush1.msra.mxu0 0.0
    %1436 = vmatprep.subr.mxu0 0.0
    %1437 = vmatpush1.msra.mxu0 0.0
    %1438 = vmatprep.subr.mxu0 0.0
    %1439 = vmatpush1.msra.mxu0 0.0
    %1440 = vmatprep.subr.mxu0 0.0
    %1441 = vmatpush1.msra.mxu0 0.0
    %1442 = vmatprep.subr.mxu0 0.0
    %1443 = vmatpush1.msra.mxu0 0.0
    %1444 = vmatprep.subr.mxu0 0.0
    %1445 = vmatpush1.msra.mxu0 0.0
    %1446 = vmatprep.subr.mxu0 0.0
    %1447 = vmatpush1.msra.mxu0 0.0
    %1448 = vmatprep.subr.mxu0 0.0
    %1449 = vmatpush1.msra.mxu0 0.0
    %1450 = vmatprep.mubr.f32.mxu0 0.0
    %1451 = vmatmul.mubr.f32.gmra.mrb[0].mxu0 %v1384
    %v1452 = vpop.f32.mrb[0].mxu0
    %v1453 = vadd.f32 %v100, %v1452
    %v1454 = vpop.f32.mrb[0].mxu0
    %v1455 = vadd.f32 %v104, %v1454
    %1456 = vmatprep.mubr.f32.mxu0 0.0
    %1457 = vmatmul.mubr.f32.gmra.mrb[0].mxu0 %v1385
    %v1458 = vpop.f32.mrb[0].mxu0
    %v1459 = vadd.f32 %v100, %v1458
    %v1460 = vpop.f32.mrb[0].mxu0
    %v1461 = vadd.f32 %v104, %v1460
    %1462 = vdwg.mxu0
    %v1463 = vtanh.pop %v1453
    %v1464 = vtanh.pop %v1459
    %v1465 = vxor.u32 %v1455, 2147483648
    %v1466 = vxor.u32 %v1461, 2147483648
    %v1467 = vmul.f32 %v1465, 1.442695
    %v1468 = vpow.pop %v1467
    %v1469 = vmul.f32 %v1466, 1.442695
    %v1470 = vpow.pop %v1469
    %v1471 = vadd.f32 %v1468, 1.0
    %v1472 = vadd.f32 %v1470, 1.0
    %v1473 = vrcp.pop %v1471
    %v1474 = vmul.f32 1.0, %v1473
    %v1475 = vrcp.pop %v1472
    %v1476 = vmul.f32 1.0, %v1475
    %v1477 = vsub.f32 %v1463, %v1350
    %v1478 = vsub.f32 %v1464, %v1351
    %v1479 = vmul.f32 %v1477, %v1474
    %v1480 = vmul.f32 %v1478, %v1476
    %v1481 = vadd.f32 %v1479, %v1350
    %v1482 = vadd.f32 %v1480, %v1351
    %s1483 = scalar_lea.vmem [#allocation12], 64
    %1484 = vst [vmem:[%s1483] sm:$0xff] %v1481
    %1485 = vst [vmem:[%s1483 + $0x8] sm:$0xff] %v1482
    %s1486 = scalar_lea.vmem [#allocation3], 160
    %v1487 = vld [vmem:[%s1486] sm:$0xff]
    %v1488 = vld [vmem:[%s1486 + $0x8] sm:$0xff]
    %v1489 = vld [vmem:[%s1486 + $0x10] sm:$0xff]
    %v1490 = vld [vmem:[%s1486 + $0x18] sm:$0xff]
    %v1491 = vld [vmem:[#allocation9] sm:$0xff]
    %v1492 = vld [vmem:[#allocation9 + $0x8] sm:$0xff]
    %v1493 = vld [vmem:[#allocation9 + $0x10] sm:$0xff]
    %v1494 = vld [vmem:[#allocation9 + $0x18] sm:$0xff]
    %v1495 = vld [vmem:[#allocation9 + $0x20] sm:$0xff]
    %v1496 = vld [vmem:[#allocation9 + $0x28] sm:$0xff]
    %v1497 = vld [vmem:[#allocation9 + $0x30] sm:$0xff]
    %v1498 = vld [vmem:[#allocation9 + $0x38] sm:$0xff]
    %v1499 = vld [vmem:[#allocation9 + $0x40] sm:$0xff]
    %v1500 = vld [vmem:[#allocation9 + $0x48] sm:$0xff]
    %v1501 = vld [vmem:[#allocation9 + $0x50] sm:$0xff]
    %v1502 = vld [vmem:[#allocation9 + $0x58] sm:$0xff]
    %v1503 = vld [vmem:[#allocation9 + $0x60] sm:$0xff]
    %v1504 = vld [vmem:[#allocation9 + $0x68] sm:$0xff]
    %v1505 = vld [vmem:[#allocation9 + $0x70] sm:$0xff]
    %v1506 = vld [vmem:[#allocation9 + $0x78] sm:$0xff]
    %v1507 = vld [vmem:[#allocation9 + $0x80] sm:$0xff]
    %v1508 = vld [vmem:[#allocation9 + $0x88] sm:$0xff]
    %v1509 = vld [vmem:[#allocation9 + $0x90] sm:$0xff]
    %v1510 = vld [vmem:[#allocation9 + $0x98] sm:$0xff]
    %v1511 = vld [vmem:[#allocation9 + $0xa0] sm:$0xff]
    %v1512 = vld [vmem:[#allocation9 + $0xa8] sm:$0xff]
    %v1513 = vld [vmem:[#allocation9 + $0xb0] sm:$0xff]
    %v1514 = vld [vmem:[#allocation9 + $0xb8] sm:$0xff]
    %v1515 = vld [vmem:[#allocation9 + $0xc0] sm:$0xff]
    %v1516 = vld [vmem:[#allocation9 + $0xc8] sm:$0xff]
    %v1517 = vld [vmem:[#allocation9 + $0xd0] sm:$0xff]
    %v1518 = vld [vmem:[#allocation9 + $0xd8] sm:$0xff]
    %v1519 = vld [vmem:[#allocation9 + $0xe0] sm:$0xff]
    %v1520 = vld [vmem:[#allocation9 + $0xe8] sm:$0xff]
    %v1521 = vld [vmem:[#allocation9 + $0xf0] sm:$0xff]
    %v1522 = vld [vmem:[#allocation9 + $0xf8] sm:$0xff]
    %v1523 = vmul.f32 %v92, %v1481
    %v1524 = vmul.f32 %v93, %v1482
    %1525 = vmatprep.subr.mxu0 %v1492
    %1526 = vmatpush1.msra.mxu0 %v1491
    %1527 = vmatprep.subr.mxu0 %v1494
    %1528 = vmatpush1.msra.mxu0 %v1493
    %1529 = vmatprep.subr.mxu0 %v1496
    %1530 = vmatpush1.msra.mxu0 %v1495
    %1531 = vmatprep.subr.mxu0 %v1498
    %1532 = vmatpush1.msra.mxu0 %v1497
    %1533 = vmatprep.subr.mxu0 %v1500
    %1534 = vmatpush1.msra.mxu0 %v1499
    %1535 = vmatprep.subr.mxu0 %v1502
    %1536 = vmatpush1.msra.mxu0 %v1501
    %1537 = vmatprep.subr.mxu0 %v1504
    %1538 = vmatpush1.msra.mxu0 %v1503
    %1539 = vmatprep.subr.mxu0 %v1506
    %1540 = vmatpush1.msra.mxu0 %v1505
    %1541 = vmatprep.subr.mxu0 %v1508
    %1542 = vmatpush1.msra.mxu0 %v1507
    %1543 = vmatprep.subr.mxu0 %v1510
    %1544 = vmatpush1.msra.mxu0 %v1509
    %1545 = vmatprep.subr.mxu0 %v1512
    %1546 = vmatpush1.msra.mxu0 %v1511
    %1547 = vmatprep.subr.mxu0 %v1514
    %1548 = vmatpush1.msra.mxu0 %v1513
    %1549 = vmatprep.subr.mxu0 %v1516
    %1550 = vmatpush1.msra.mxu0 %v1515
    %1551 = vmatprep.subr.mxu0 %v1518
    %1552 = vmatpush1.msra.mxu0 %v1517
    %1553 = vmatprep.subr.mxu0 %v1520
    %1554 = vmatpush1.msra.mxu0 %v1519
    %1555 = vmatprep.subr.mxu0 %v1522
    %1556 = vmatpush1.msra.mxu0 %v1521
    %1557 = vmatprep.subr.mxu0 0.0
    %1558 = vmatpush1.msra.mxu0 0.0
    %1559 = vmatprep.subr.mxu0 0.0
    %1560 = vmatpush1.msra.mxu0 0.0
    %1561 = vmatprep.subr.mxu0 0.0
    %1562 = vmatpush1.msra.mxu0 0.0
    %1563 = vmatprep.subr.mxu0 0.0
    %1564 = vmatpush1.msra.mxu0 0.0
    %1565 = vmatprep.subr.mxu0 0.0
    %1566 = vmatpush1.msra.mxu0 0.0
    %1567 = vmatprep.subr.mxu0 0.0
    %1568 = vmatpush1.msra.mxu0 0.0
    %1569 = vmatprep.subr.mxu0 0.0
    %1570 = vmatpush1.msra.mxu0 0.0
    %1571 = vmatprep.subr.mxu0 0.0
    %1572 = vmatpush1.msra.mxu0 0.0
    %1573 = vmatprep.subr.mxu0 0.0
    %1574 = vmatpush1.msra.mxu0 0.0
    %1575 = vmatprep.subr.mxu0 0.0
    %1576 = vmatpush1.msra.mxu0 0.0
    %1577 = vmatprep.subr.mxu0 0.0
    %1578 = vmatpush1.msra.mxu0 0.0
    %1579 = vmatprep.subr.mxu0 0.0
    %1580 = vmatpush1.msra.mxu0 0.0
    %1581 = vmatprep.subr.mxu0 0.0
    %1582 = vmatpush1.msra.mxu0 0.0
    %1583 = vmatprep.subr.mxu0 0.0
    %1584 = vmatpush1.msra.mxu0 0.0
    %1585 = vmatprep.subr.mxu0 0.0
    %1586 = vmatpush1.msra.mxu0 0.0
    %1587 = vmatprep.subr.mxu0 0.0
    %1588 = vmatpush1.msra.mxu0 0.0
    %1589 = vmatprep.mubr.f32.mxu0 0.0
    %1590 = vmatmul.mubr.f32.gmra.mrb[0].mxu0 %v1523
    %v1591 = vpop.f32.mrb[0].mxu0
    %v1592 = vadd.f32 0.0, %v1591
    %v1593 = vpop.f32.mrb[0].mxu0
    %v1594 = vadd.f32 0.0, %v1593
    %1595 = vmatprep.mubr.f32.mxu0 0.0
    %1596 = vmatmul.mubr.f32.gmra.mrb[0].mxu0 %v1524
    %v1597 = vpop.f32.mrb[0].mxu0
    %v1598 = vadd.f32 0.0, %v1597
    %v1599 = vpop.f32.mrb[0].mxu0
    %v1600 = vadd.f32 0.0, %v1599
    %1601 = vdwg.mxu0
    %v1602 = vadd.f32 %v1487, %v1592
    %v1603 = vadd.f32 %v1489, %v1598
    %v1604 = vtanh.pop %v1602
    %v1605 = vtanh.pop %v1603
    %v1606 = vadd.f32 %v1488, %v1594
    %v1607 = vadd.f32 %v1490, %v1600
    %v1608 = vxor.u32 %v1606, 2147483648
    %v1609 = vxor.u32 %v1607, 2147483648
    %v1610 = vmul.f32 %v1608, 1.442695
    %v1611 = vpow.pop %v1610
    %v1612 = vmul.f32 %v1609, 1.442695
    %v1613 = vpow.pop %v1612
    %v1614 = vadd.f32 %v1611, 1.0
    %v1615 = vadd.f32 %v1613, 1.0
    %v1616 = vrcp.pop %v1614
    %v1617 = vmul.f32 1.0, %v1616
    %v1618 = vrcp.pop %v1615
    %v1619 = vmul.f32 1.0, %v1618
    %v1620 = vsub.f32 %v1604, %v1481
    %v1621 = vsub.f32 %v1605, %v1482
    %v1622 = vmul.f32 %v1620, %v1617
    %v1623 = vmul.f32 %v1621, %v1619
    %v1624 = vadd.f32 %v1622, %v1481
    %v1625 = vadd.f32 %v1623, %v1482
    %v1626 = vld [vmem:[%s256] sm:$0xff]
    %v1627 = vld [vmem:[%s256 + $0x8] sm:$0xff]
    %v1628 = vld [vmem:[%s256 + $0x10] sm:$0xff]
    %v1629 = vld [vmem:[%s256 + $0x18] sm:$0xff]
    %v1630 = vld [vmem:[%s256 + $0x20] sm:$0xff]
    %v1631 = vld [vmem:[%s256 + $0x28] sm:$0xff]
    %v1632 = vld [vmem:[%s256 + $0x30] sm:$0xff]
    %v1633 = vld [vmem:[%s256 + $0x38] sm:$0xff]
    %v1634 = vld [vmem:[%s256 + $0x40] sm:$0xff]
    %v1635 = vld [vmem:[%s256 + $0x48] sm:$0xff]
    %v1636 = vld [vmem:[%s256 + $0x50] sm:$0xff]
    %v1637 = vld [vmem:[%s256 + $0x58] sm:$0xff]
    %v1638 = vld [vmem:[%s256 + $0x60] sm:$0xff]
    %v1639 = vld [vmem:[%s256 + $0x68] sm:$0xff]
    %v1640 = vld [vmem:[%s256 + $0x70] sm:$0xff]
    %v1641 = vld [vmem:[%s256 + $0x78] sm:$0xff]
    %v1642 = vld [vmem:[%s256 + $0x80] sm:$0xff]
    %v1643 = vld [vmem:[%s256 + $0x88] sm:$0xff]
    %v1644 = vld [vmem:[%s256 + $0x90] sm:$0xff]
    %v1645 = vld [vmem:[%s256 + $0x98] sm:$0xff]
    %v1646 = vld [vmem:[%s256 + $0xa0] sm:$0xff]
    %v1647 = vld [vmem:[%s256 + $0xa8] sm:$0xff]
    %v1648 = vld [vmem:[%s256 + $0xb0] sm:$0xff]
    %v1649 = vld [vmem:[%s256 + $0xb8] sm:$0xff]
    %v1650 = vld [vmem:[%s256 + $0xc0] sm:$0xff]
    %v1651 = vld [vmem:[%s256 + $0xc8] sm:$0xff]
    %v1652 = vld [vmem:[%s256 + $0xd0] sm:$0xff]
    %v1653 = vld [vmem:[%s256 + $0xd8] sm:$0xff]
    %v1654 = vld [vmem:[%s256 + $0xe0] sm:$0xff]
    %v1655 = vld [vmem:[%s256 + $0xe8] sm:$0xff]
    %v1656 = vld [vmem:[%s256 + $0xf0] sm:$0xff]
    %v1657 = vld [vmem:[%s256 + $0xf8] sm:$0xff]
    %v1658 = vmul.f32 %v92, %v1624
    %v1659 = vmul.f32 %v93, %v1625
    %1660 = vmatprep.subr.mxu0 %v1627
    %1661 = vmatpush1.msra.mxu0 %v1626
    %1662 = vmatprep.subr.mxu0 %v1629
    %1663 = vmatpush1.msra.mxu0 %v1628
    %1664 = vmatprep.subr.mxu0 %v1631
    %1665 = vmatpush1.msra.mxu0 %v1630
    %1666 = vmatprep.subr.mxu0 %v1633
    %1667 = vmatpush1.msra.mxu0 %v1632
    %1668 = vmatprep.subr.mxu0 %v1635
    %1669 = vmatpush1.msra.mxu0 %v1634
    %1670 = vmatprep.subr.mxu0 %v1637
    %1671 = vmatpush1.msra.mxu0 %v1636
    %1672 = vmatprep.subr.mxu0 %v1639
    %1673 = vmatpush1.msra.mxu0 %v1638
    %1674 = vmatprep.subr.mxu0 %v1641
    %1675 = vmatpush1.msra.mxu0 %v1640
    %1676 = vmatprep.subr.mxu0 %v1643
    %1677 = vmatpush1.msra.mxu0 %v1642
    %1678 = vmatprep.subr.mxu0 %v1645
    %1679 = vmatpush1.msra.mxu0 %v1644
    %1680 = vmatprep.subr.mxu0 %v1647
    %1681 = vmatpush1.msra.mxu0 %v1646
    %1682 = vmatprep.subr.mxu0 %v1649
    %1683 = vmatpush1.msra.mxu0 %v1648
    %1684 = vmatprep.subr.mxu0 %v1651
    %1685 = vmatpush1.msra.mxu0 %v1650
    %1686 = vmatprep.subr.mxu0 %v1653
    %1687 = vmatpush1.msra.mxu0 %v1652
    %1688 = vmatprep.subr.mxu0 %v1655
    %1689 = vmatpush1.msra.mxu0 %v1654
    %1690 = vmatprep.subr.mxu0 %v1657
    %1691 = vmatpush1.msra.mxu0 %v1656
    %1692 = vmatprep.subr.mxu0 0.0
    %1693 = vmatpush1.msra.mxu0 0.0
    %1694 = vmatprep.subr.mxu0 0.0
    %1695 = vmatpush1.msra.mxu0 0.0
    %1696 = vmatprep.subr.mxu0 0.0
    %1697 = vmatpush1.msra.mxu0 0.0
    %1698 = vmatprep.subr.mxu0 0.0
    %1699 = vmatpush1.msra.mxu0 0.0
    %1700 = vmatprep.subr.mxu0 0.0
    %1701 = vmatpush1.msra.mxu0 0.0
    %1702 = vmatprep.subr.mxu0 0.0
    %1703 = vmatpush1.msra.mxu0 0.0
    %1704 = vmatprep.subr.mxu0 0.0
    %1705 = vmatpush1.msra.mxu0 0.0
    %1706 = vmatprep.subr.mxu0 0.0
    %1707 = vmatpush1.msra.mxu0 0.0
    %1708 = vmatprep.subr.mxu0 0.0
    %1709 = vmatpush1.msra.mxu0 0.0
    %1710 = vmatprep.subr.mxu0 0.0
    %1711 = vmatpush1.msra.mxu0 0.0
    %1712 = vmatprep.subr.mxu0 0.0
    %1713 = vmatpush1.msra.mxu0 0.0
    %1714 = vmatprep.subr.mxu0 0.0
    %1715 = vmatpush1.msra.mxu0 0.0
    %1716 = vmatprep.subr.mxu0 0.0
    %1717 = vmatpush1.msra.mxu0 0.0
    %1718 = vmatprep.subr.mxu0 0.0
    %1719 = vmatpush1.msra.mxu0 0.0
    %1720 = vmatprep.subr.mxu0 0.0
    %1721 = vmatpush1.msra.mxu0 0.0
    %1722 = vmatprep.subr.mxu0 0.0
    %1723 = vmatpush1.msra.mxu0 0.0
    %1724 = vmatprep.mubr.f32.mxu0 0.0
    %1725 = vmatmul.mubr.f32.gmra.mrb[0].mxu0 %v1658
    %v1726 = vpop.f32.mrb[0].mxu0
    %v1727 = vadd.f32 %v100, %v1726
    %v1728 = vpop.f32.mrb[0].mxu0
    %v1729 = vadd.f32 %v104, %v1728
    %1730 = vmatprep.mubr.f32.mxu0 0.0
    %1731 = vmatmul.mubr.f32.gmra.mrb[0].mxu0 %v1659
    %v1732 = vpop.f32.mrb[0].mxu0
    %v1733 = vadd.f32 %v100, %v1732
    %v1734 = vpop.f32.mrb[0].mxu0
    %v1735 = vadd.f32 %v104, %v1734
    %1736 = vdwg.mxu0
    %v1737 = vtanh.pop %v1727
    %v1738 = vtanh.pop %v1733
    %v1739 = vxor.u32 %v1729, 2147483648
    %v1740 = vxor.u32 %v1735, 2147483648
    %v1741 = vmul.f32 %v1739, 1.442695
    %v1742 = vpow.pop %v1741
    %v1743 = vmul.f32 %v1740, 1.442695
    %v1744 = vpow.pop %v1743
    %v1745 = vadd.f32 %v1742, 1.0
    %v1746 = vadd.f32 %v1744, 1.0
    %v1747 = vrcp.pop %v1745
    %v1748 = vmul.f32 1.0, %v1747
    %v1749 = vrcp.pop %v1746
    %v1750 = vmul.f32 1.0, %v1749
    %v1751 = vsub.f32 %v1737, %v1624
    %v1752 = vsub.f32 %v1738, %v1625
    %v1753 = vmul.f32 %v1751, %v1748
    %v1754 = vmul.f32 %v1752, %v1750
    %v1755 = vadd.f32 %v1753, %v1624
    %v1756 = vadd.f32 %v1754, %v1625
    %s1757 = scalar_lea.vmem [#allocation12], 80
    %1758 = vst [vmem:[%s1757] sm:$0xff] %v1755
    %1759 = vst [vmem:[%s1757 + $0x8] sm:$0xff] %v1756
    %s1760 = scalar_lea.vmem [#allocation3], 192
    %v1761 = vld [vmem:[%s1760] sm:$0xff]
    %v1762 = vld [vmem:[%s1760 + $0x8] sm:$0xff]
    %v1763 = vld [vmem:[%s1760 + $0x10] sm:$0xff]
    %v1764 = vld [vmem:[%s1760 + $0x18] sm:$0xff]
    %v1765 = vld [vmem:[#allocation9] sm:$0xff]
    %v1766 = vld [vmem:[#allocation9 + $0x8] sm:$0xff]
    %v1767 = vld [vmem:[#allocation9 + $0x10] sm:$0xff]
    %v1768 = vld [vmem:[#allocation9 + $0x18] sm:$0xff]
    %v1769 = vld [vmem:[#allocation9 + $0x20] sm:$0xff]
    %v1770 = vld [vmem:[#allocation9 + $0x28] sm:$0xff]
    %v1771 = vld [vmem:[#allocation9 + $0x30] sm:$0xff]
    %v1772 = vld [vmem:[#allocation9 + $0x38] sm:$0xff]
    %v1773 = vld [vmem:[#allocation9 + $0x40] sm:$0xff]
    %v1774 = vld [vmem:[#allocation9 + $0x48] sm:$0xff]
    %v1775 = vld [vmem:[#allocation9 + $0x50] sm:$0xff]
    %v1776 = vld [vmem:[#allocation9 + $0x58] sm:$0xff]
    %v1777 = vld [vmem:[#allocation9 + $0x60] sm:$0xff]
    %v1778 = vld [vmem:[#allocation9 + $0x68] sm:$0xff]
    %v1779 = vld [vmem:[#allocation9 + $0x70] sm:$0xff]
    %v1780 = vld [vmem:[#allocation9 + $0x78] sm:$0xff]
    %v1781 = vld [vmem:[#allocation9 + $0x80] sm:$0xff]
    %v1782 = vld [vmem:[#allocation9 + $0x88] sm:$0xff]
    %v1783 = vld [vmem:[#allocation9 + $0x90] sm:$0xff]
    %v1784 = vld [vmem:[#allocation9 + $0x98] sm:$0xff]
    %v1785 = vld [vmem:[#allocation9 + $0xa0] sm:$0xff]
    %v1786 = vld [vmem:[#allocation9 + $0xa8] sm:$0xff]
    %v1787 = vld [vmem:[#allocation9 + $0xb0] sm:$0xff]
    %v1788 = vld [vmem:[#allocation9 + $0xb8] sm:$0xff]
    %v1789 = vld [vmem:[#allocation9 + $0xc0] sm:$0xff]
    %v1790 = vld [vmem:[#allocation9 + $0xc8] sm:$0xff]
    %v1791 = vld [vmem:[#allocation9 + $0xd0] sm:$0xff]
    %v1792 = vld [vmem:[#allocation9 + $0xd8] sm:$0xff]
    %v1793 = vld [vmem:[#allocation9 + $0xe0] sm:$0xff]
    %v1794 = vld [vmem:[#allocation9 + $0xe8] sm:$0xff]
    %v1795 = vld [vmem:[#allocation9 + $0xf0] sm:$0xff]
    %v1796 = vld [vmem:[#allocation9 + $0xf8] sm:$0xff]
    %v1797 = vmul.f32 %v92, %v1755
    %v1798 = vmul.f32 %v93, %v1756
    %1799 = vmatprep.subr.mxu0 %v1766
    %1800 = vmatpush1.msra.mxu0 %v1765
    %1801 = vmatprep.subr.mxu0 %v1768
    %1802 = vmatpush1.msra.mxu0 %v1767
    %1803 = vmatprep.subr.mxu0 %v1770
    %1804 = vmatpush1.msra.mxu0 %v1769
    %1805 = vmatprep.subr.mxu0 %v1772
    %1806 = vmatpush1.msra.mxu0 %v1771
    %1807 = vmatprep.subr.mxu0 %v1774
    %1808 = vmatpush1.msra.mxu0 %v1773
    %1809 = vmatprep.subr.mxu0 %v1776
    %1810 = vmatpush1.msra.mxu0 %v1775
    %1811 = vmatprep.subr.mxu0 %v1778
    %1812 = vmatpush1.msra.mxu0 %v1777
    %1813 = vmatprep.subr.mxu0 %v1780
    %1814 = vmatpush1.msra.mxu0 %v1779
    %1815 = vmatprep.subr.mxu0 %v1782
    %1816 = vmatpush1.msra.mxu0 %v1781
    %1817 = vmatprep.subr.mxu0 %v1784
    %1818 = vmatpush1.msra.mxu0 %v1783
    %1819 = vmatprep.subr.mxu0 %v1786
    %1820 = vmatpush1.msra.mxu0 %v1785
    %1821 = vmatprep.subr.mxu0 %v1788
    %1822 = vmatpush1.msra.mxu0 %v1787
    %1823 = vmatprep.subr.mxu0 %v1790
    %1824 = vmatpush1.msra.mxu0 %v1789
    %1825 = vmatprep.subr.mxu0 %v1792
    %1826 = vmatpush1.msra.mxu0 %v1791
    %1827 = vmatprep.subr.mxu0 %v1794
    %1828 = vmatpush1.msra.mxu0 %v1793
    %1829 = vmatprep.subr.mxu0 %v1796
    %1830 = vmatpush1.msra.mxu0 %v1795
    %1831 = vmatprep.subr.mxu0 0.0
    %1832 = vmatpush1.msra.mxu0 0.0
    %1833 = vmatprep.subr.mxu0 0.0
    %1834 = vmatpush1.msra.mxu0 0.0
    %1835 = vmatprep.subr.mxu0 0.0
    %1836 = vmatpush1.msra.mxu0 0.0
    %1837 = vmatprep.subr.mxu0 0.0
    %1838 = vmatpush1.msra.mxu0 0.0
    %1839 = vmatprep.subr.mxu0 0.0
    %1840 = vmatpush1.msra.mxu0 0.0
    %1841 = vmatprep.subr.mxu0 0.0
    %1842 = vmatpush1.msra.mxu0 0.0
    %1843 = vmatprep.subr.mxu0 0.0
    %1844 = vmatpush1.msra.mxu0 0.0
    %1845 = vmatprep.subr.mxu0 0.0
    %1846 = vmatpush1.msra.mxu0 0.0
    %1847 = vmatprep.subr.mxu0 0.0
    %1848 = vmatpush1.msra.mxu0 0.0
    %1849 = vmatprep.subr.mxu0 0.0
    %1850 = vmatpush1.msra.mxu0 0.0
    %1851 = vmatprep.subr.mxu0 0.0
    %1852 = vmatpush1.msra.mxu0 0.0
    %1853 = vmatprep.subr.mxu0 0.0
    %1854 = vmatpush1.msra.mxu0 0.0
    %1855 = vmatprep.subr.mxu0 0.0
    %1856 = vmatpush1.msra.mxu0 0.0
    %1857 = vmatprep.subr.mxu0 0.0
    %1858 = vmatpush1.msra.mxu0 0.0
    %1859 = vmatprep.subr.mxu0 0.0
    %1860 = vmatpush1.msra.mxu0 0.0
    %1861 = vmatprep.subr.mxu0 0.0
    %1862 = vmatpush1.msra.mxu0 0.0
    %1863 = vmatprep.mubr.f32.mxu0 0.0
    %1864 = vmatmul.mubr.f32.gmra.mrb[0].mxu0 %v1797
    %v1865 = vpop.f32.mrb[0].mxu0
    %v1866 = vadd.f32 0.0, %v1865
    %v1867 = vpop.f32.mrb[0].mxu0
    %v1868 = vadd.f32 0.0, %v1867
    %1869 = vmatprep.mubr.f32.mxu0 0.0
    %1870 = vmatmul.mubr.f32.gmra.mrb[0].mxu0 %v1798
    %v1871 = vpop.f32.mrb[0].mxu0
    %v1872 = vadd.f32 0.0, %v1871
    %v1873 = vpop.f32.mrb[0].mxu0
    %v1874 = vadd.f32 0.0, %v1873
    %1875 = vdwg.mxu0
    %v1876 = vadd.f32 %v1761, %v1866
    %v1877 = vadd.f32 %v1763, %v1872
    %v1878 = vtanh.pop %v1876
    %v1879 = vtanh.pop %v1877
    %v1880 = vadd.f32 %v1762, %v1868
    %v1881 = vadd.f32 %v1764, %v1874
    %v1882 = vxor.u32 %v1880, 2147483648
    %v1883 = vxor.u32 %v1881, 2147483648
    %v1884 = vmul.f32 %v1882, 1.442695
    %v1885 = vpow.pop %v1884
    %v1886 = vmul.f32 %v1883, 1.442695
    %v1887 = vpow.pop %v1886
    %v1888 = vadd.f32 %v1885, 1.0
    %v1889 = vadd.f32 %v1887, 1.0
    %v1890 = vrcp.pop %v1888
    %v1891 = vmul.f32 1.0, %v1890
    %v1892 = vrcp.pop %v1889
    %v1893 = vmul.f32 1.0, %v1892
    %v1894 = vsub.f32 %v1878, %v1755
    %v1895 = vsub.f32 %v1879, %v1756
    %v1896 = vmul.f32 %v1894, %v1891
    %v1897 = vmul.f32 %v1895, %v1893
    %v1898 = vadd.f32 %v1896, %v1755
    %v1899 = vadd.f32 %v1897, %v1756
    %v1900 = vld [vmem:[%s256] sm:$0xff]
    %v1901 = vld [vmem:[%s256 + $0x8] sm:$0xff]
    %v1902 = vld [vmem:[%s256 + $0x10] sm:$0xff]
    %v1903 = vld [vmem:[%s256 + $0x18] sm:$0xff]
    %v1904 = vld [vmem:[%s256 + $0x20] sm:$0xff]
    %v1905 = vld [vmem:[%s256 + $0x28] sm:$0xff]
    %v1906 = vld [vmem:[%s256 + $0x30] sm:$0xff]
    %v1907 = vld [vmem:[%s256 + $0x38] sm:$0xff]
    %v1908 = vld [vmem:[%s256 + $0x40] sm:$0xff]
    %v1909 = vld [vmem:[%s256 + $0x48] sm:$0xff]
    %v1910 = vld [vmem:[%s256 + $0x50] sm:$0xff]
    %v1911 = vld [vmem:[%s256 + $0x58] sm:$0xff]
    %v1912 = vld [vmem:[%s256 + $0x60] sm:$0xff]
    %v1913 = vld [vmem:[%s256 + $0x68] sm:$0xff]
    %v1914 = vld [vmem:[%s256 + $0x70] sm:$0xff]
    %v1915 = vld [vmem:[%s256 + $0x78] sm:$0xff]
    %v1916 = vld [vmem:[%s256 + $0x80] sm:$0xff]
    %v1917 = vld [vmem:[%s256 + $0x88] sm:$0xff]
    %v1918 = vld [vmem:[%s256 + $0x90] sm:$0xff]
    %v1919 = vld [vmem:[%s256 + $0x98] sm:$0xff]
    %v1920 = vld [vmem:[%s256 + $0xa0] sm:$0xff]
    %v1921 = vld [vmem:[%s256 + $0xa8] sm:$0xff]
    %v1922 = vld [vmem:[%s256 + $0xb0] sm:$0xff]
    %v1923 = vld [vmem:[%s256 + $0xb8] sm:$0xff]
    %v1924 = vld [vmem:[%s256 + $0xc0] sm:$0xff]
    %v1925 = vld [vmem:[%s256 + $0xc8] sm:$0xff]
    %v1926 = vld [vmem:[%s256 + $0xd0] sm:$0xff]
    %v1927 = vld [vmem:[%s256 + $0xd8] sm:$0xff]
    %v1928 = vld [vmem:[%s256 + $0xe0] sm:$0xff]
    %v1929 = vld [vmem:[%s256 + $0xe8] sm:$0xff]
    %v1930 = vld [vmem:[%s256 + $0xf0] sm:$0xff]
    %v1931 = vld [vmem:[%s256 + $0xf8] sm:$0xff]
    %v1932 = vmul.f32 %v92, %v1898
    %v1933 = vmul.f32 %v93, %v1899
    %1934 = vmatprep.subr.mxu0 %v1901
    %1935 = vmatpush1.msra.mxu0 %v1900
    %1936 = vmatprep.subr.mxu0 %v1903
    %1937 = vmatpush1.msra.mxu0 %v1902
    %1938 = vmatprep.subr.mxu0 %v1905
    %1939 = vmatpush1.msra.mxu0 %v1904
    %1940 = vmatprep.subr.mxu0 %v1907
    %1941 = vmatpush1.msra.mxu0 %v1906
    %1942 = vmatprep.subr.mxu0 %v1909
    %1943 = vmatpush1.msra.mxu0 %v1908
    %1944 = vmatprep.subr.mxu0 %v1911
    %1945 = vmatpush1.msra.mxu0 %v1910
    %1946 = vmatprep.subr.mxu0 %v1913
    %1947 = vmatpush1.msra.mxu0 %v1912
    %1948 = vmatprep.subr.mxu0 %v1915
    %1949 = vmatpush1.msra.mxu0 %v1914
    %1950 = vmatprep.subr.mxu0 %v1917
    %1951 = vmatpush1.msra.mxu0 %v1916
    %1952 = vmatprep.subr.mxu0 %v1919
    %1953 = vmatpush1.msra.mxu0 %v1918
    %1954 = vmatprep.subr.mxu0 %v1921
    %1955 = vmatpush1.msra.mxu0 %v1920
    %1956 = vmatprep.subr.mxu0 %v1923
    %1957 = vmatpush1.msra.mxu0 %v1922
    %1958 = vmatprep.subr.mxu0 %v1925
    %1959 = vmatpush1.msra.mxu0 %v1924
    %1960 = vmatprep.subr.mxu0 %v1927
    %1961 = vmatpush1.msra.mxu0 %v1926
    %1962 = vmatprep.subr.mxu0 %v1929
    %1963 = vmatpush1.msra.mxu0 %v1928
    %1964 = vmatprep.subr.mxu0 %v1931
    %1965 = vmatpush1.msra.mxu0 %v1930
    %1966 = vmatprep.subr.mxu0 0.0
    %1967 = vmatpush1.msra.mxu0 0.0
    %1968 = vmatprep.subr.mxu0 0.0
    %1969 = vmatpush1.msra.mxu0 0.0
    %1970 = vmatprep.subr.mxu0 0.0
    %1971 = vmatpush1.msra.mxu0 0.0
    %1972 = vmatprep.subr.mxu0 0.0
    %1973 = vmatpush1.msra.mxu0 0.0
    %1974 = vmatprep.subr.mxu0 0.0
    %1975 = vmatpush1.msra.mxu0 0.0
    %1976 = vmatprep.subr.mxu0 0.0
    %1977 = vmatpush1.msra.mxu0 0.0
    %1978 = vmatprep.subr.mxu0 0.0
    %1979 = vmatpush1.msra.mxu0 0.0
    %1980 = vmatprep.subr.mxu0 0.0
    %1981 = vmatpush1.msra.mxu0 0.0
    %1982 = vmatprep.subr.mxu0 0.0
    %1983 = vmatpush1.msra.mxu0 0.0
    %1984 = vmatprep.subr.mxu0 0.0
    %1985 = vmatpush1.msra.mxu0 0.0
    %1986 = vmatprep.subr.mxu0 0.0
    %1987 = vmatpush1.msra.mxu0 0.0
    %1988 = vmatprep.subr.mxu0 0.0
    %1989 = vmatpush1.msra.mxu0 0.0
    %1990 = vmatprep.subr.mxu0 0.0
    %1991 = vmatpush1.msra.mxu0 0.0
    %1992 = vmatprep.subr.mxu0 0.0
    %1993 = vmatpush1.msra.mxu0 0.0
    %1994 = vmatprep.subr.mxu0 0.0
    %1995 = vmatpush1.msra.mxu0 0.0
    %1996 = vmatprep.subr.mxu0 0.0
    %1997 = vmatpush1.msra.mxu0 0.0
    %1998 = vmatprep.mubr.f32.mxu0 0.0
    %1999 = vmatmul.mubr.f32.gmra.mrb[0].mxu0 %v1932
    %v2000 = vpop.f32.mrb[0].mxu0
    %v2001 = vadd.f32 %v100, %v2000
    %v2002 = vpop.f32.mrb[0].mxu0
    %v2003 = vadd.f32 %v104, %v2002
    %2004 = vmatprep.mubr.f32.mxu0 0.0
    %2005 = vmatmul.mubr.f32.gmra.mrb[0].mxu0 %v1933
    %v2006 = vpop.f32.mrb[0].mxu0
    %v2007 = vadd.f32 %v100, %v2006
    %v2008 = vpop.f32.mrb[0].mxu0
    %v2009 = vadd.f32 %v104, %v2008
    %2010 = vdwg.mxu0
    %v2011 = vtanh.pop %v2001
    %v2012 = vtanh.pop %v2007
    %v2013 = vxor.u32 %v2003, 2147483648
    %v2014 = vxor.u32 %v2009, 2147483648
    %v2015 = vmul.f32 %v2013, 1.442695
    %v2016 = vpow.pop %v2015
    %v2017 = vmul.f32 %v2014, 1.442695
    %v2018 = vpow.pop %v2017
    %v2019 = vadd.f32 %v2016, 1.0
    %v2020 = vadd.f32 %v2018, 1.0
    %v2021 = vrcp.pop %v2019
    %v2022 = vmul.f32 1.0, %v2021
    %v2023 = vrcp.pop %v2020
    %v2024 = vmul.f32 1.0, %v2023
    %v2025 = vsub.f32 %v2011, %v1898
    %v2026 = vsub.f32 %v2012, %v1899
    %v2027 = vmul.f32 %v2025, %v2022
    %v2028 = vmul.f32 %v2026, %v2024
    %v2029 = vadd.f32 %v2027, %v1898
    %v2030 = vadd.f32 %v2028, %v1899
    %s2031 = scalar_lea.vmem [#allocation12], 96
    %2032 = vst [vmem:[%s2031] sm:$0xff] %v2029
    %2033 = vst [vmem:[%s2031 + $0x8] sm:$0xff] %v2030
    %s2034 = scalar_lea.vmem [#allocation3], 224
    %v2035 = vld [vmem:[%s2034] sm:$0xff]
    %v2036 = vld [vmem:[%s2034 + $0x8] sm:$0xff]
    %v2037 = vld [vmem:[%s2034 + $0x10] sm:$0xff]
    %v2038 = vld [vmem:[%s2034 + $0x18] sm:$0xff]
    %v2039 = vld [vmem:[#allocation9] sm:$0xff]
    %v2040 = vld [vmem:[#allocation9 + $0x8] sm:$0xff]
    %v2041 = vld [vmem:[#allocation9 + $0x10] sm:$0xff]
    %v2042 = vld [vmem:[#allocation9 + $0x18] sm:$0xff]
    %v2043 = vld [vmem:[#allocation9 + $0x20] sm:$0xff]
    %v2044 = vld [vmem:[#allocation9 + $0x28] sm:$0xff]
    %v2045 = vld [vmem:[#allocation9 + $0x30] sm:$0xff]
    %v2046 = vld [vmem:[#allocation9 + $0x38] sm:$0xff]
    %v2047 = vld [vmem:[#allocation9 + $0x40] sm:$0xff]
    %v2048 = vld [vmem:[#allocation9 + $0x48] sm:$0xff]
    %v2049 = vld [vmem:[#allocation9 + $0x50] sm:$0xff]
    %v2050 = vld [vmem:[#allocation9 + $0x58] sm:$0xff]
    %v2051 = vld [vmem:[#allocation9 + $0x60] sm:$0xff]
    %v2052 = vld [vmem:[#allocation9 + $0x68] sm:$0xff]
    %v2053 = vld [vmem:[#allocation9 + $0x70] sm:$0xff]
    %v2054 = vld [vmem:[#allocation9 + $0x78] sm:$0xff]
    %v2055 = vld [vmem:[#allocation9 + $0x80] sm:$0xff]
    %v2056 = vld [vmem:[#allocation9 + $0x88] sm:$0xff]
    %v2057 = vld [vmem:[#allocation9 + $0x90] sm:$0xff]
    %v2058 = vld [vmem:[#allocation9 + $0x98] sm:$0xff]
    %v2059 = vld [vmem:[#allocation9 + $0xa0] sm:$0xff]
    %v2060 = vld [vmem:[#allocation9 + $0xa8] sm:$0xff]
    %v2061 = vld [vmem:[#allocation9 + $0xb0] sm:$0xff]
    %v2062 = vld [vmem:[#allocation9 + $0xb8] sm:$0xff]
    %v2063 = vld [vmem:[#allocation9 + $0xc0] sm:$0xff]
    %v2064 = vld [vmem:[#allocation9 + $0xc8] sm:$0xff]
    %v2065 = vld [vmem:[#allocation9 + $0xd0] sm:$0xff]
    %v2066 = vld [vmem:[#allocation9 + $0xd8] sm:$0xff]
    %v2067 = vld [vmem:[#allocation9 + $0xe0] sm:$0xff]
    %v2068 = vld [vmem:[#allocation9 + $0xe8] sm:$0xff]
    %v2069 = vld [vmem:[#allocation9 + $0xf0] sm:$0xff]
    %v2070 = vld [vmem:[#allocation9 + $0xf8] sm:$0xff]
    %v2071 = vmul.f32 %v92, %v2029
    %v2072 = vmul.f32 %v93, %v2030
    %2073 = vmatprep.subr.mxu0 %v2040
    %2074 = vmatpush1.msra.mxu0 %v2039
    %2075 = vmatprep.subr.mxu0 %v2042
    %2076 = vmatpush1.msra.mxu0 %v2041
    %2077 = vmatprep.subr.mxu0 %v2044
    %2078 = vmatpush1.msra.mxu0 %v2043
    %2079 = vmatprep.subr.mxu0 %v2046
    %2080 = vmatpush1.msra.mxu0 %v2045
    %2081 = vmatprep.subr.mxu0 %v2048
    %2082 = vmatpush1.msra.mxu0 %v2047
    %2083 = vmatprep.subr.mxu0 %v2050
    %2084 = vmatpush1.msra.mxu0 %v2049
    %2085 = vmatprep.subr.mxu0 %v2052
    %2086 = vmatpush1.msra.mxu0 %v2051
    %2087 = vmatprep.subr.mxu0 %v2054
    %2088 = vmatpush1.msra.mxu0 %v2053
    %2089 = vmatprep.subr.mxu0 %v2056
    %2090 = vmatpush1.msra.mxu0 %v2055
    %2091 = vmatprep.subr.mxu0 %v2058
    %2092 = vmatpush1.msra.mxu0 %v2057
    %2093 = vmatprep.subr.mxu0 %v2060
    %2094 = vmatpush1.msra.mxu0 %v2059
    %2095 = vmatprep.subr.mxu0 %v2062
    %2096 = vmatpush1.msra.mxu0 %v2061
    %2097 = vmatprep.subr.mxu0 %v2064
    %2098 = vmatpush1.msra.mxu0 %v2063
    %2099 = vmatprep.subr.mxu0 %v2066
    %2100 = vmatpush1.msra.mxu0 %v2065
    %2101 = vmatprep.subr.mxu0 %v2068
    %2102 = vmatpush1.msra.mxu0 %v2067
    %2103 = vmatprep.subr.mxu0 %v2070
    %2104 = vmatpush1.msra.mxu0 %v2069
    %2105 = vmatprep.subr.mxu0 0.0
    %2106 = vmatpush1.msra.mxu0 0.0
    %2107 = vmatprep.subr.mxu0 0.0
    %2108 = vmatpush1.msra.mxu0 0.0
    %2109 = vmatprep.subr.mxu0 0.0
    %2110 = vmatpush1.msra.mxu0 0.0
    %2111 = vmatprep.subr.mxu0 0.0
    %2112 = vmatpush1.msra.mxu0 0.0
    %2113 = vmatprep.subr.mxu0 0.0
    %2114 = vmatpush1.msra.mxu0 0.0
    %2115 = vmatprep.subr.mxu0 0.0
    %2116 = vmatpush1.msra.mxu0 0.0
    %2117 = vmatprep.subr.mxu0 0.0
    %2118 = vmatpush1.msra.mxu0 0.0
    %2119 = vmatprep.subr.mxu0 0.0
    %2120 = vmatpush1.msra.mxu0 0.0
    %2121 = vmatprep.subr.mxu0 0.0
    %2122 = vmatpush1.msra.mxu0 0.0
    %2123 = vmatprep.subr.mxu0 0.0
    %2124 = vmatpush1.msra.mxu0 0.0
    %2125 = vmatprep.subr.mxu0 0.0
    %2126 = vmatpush1.msra.mxu0 0.0
    %2127 = vmatprep.subr.mxu0 0.0
    %2128 = vmatpush1.msra.mxu0 0.0
    %2129 = vmatprep.subr.mxu0 0.0
    %2130 = vmatpush1.msra.mxu0 0.0
    %2131 = vmatprep.subr.mxu0 0.0
    %2132 = vmatpush1.msra.mxu0 0.0
    %2133 = vmatprep.subr.mxu0 0.0
    %2134 = vmatpush1.msra.mxu0 0.0
    %2135 = vmatprep.subr.mxu0 0.0
    %2136 = vmatpush1.msra.mxu0 0.0
    %2137 = vmatprep.mubr.f32.mxu0 0.0
    %2138 = vmatmul.mubr.f32.gmra.mrb[0].mxu0 %v2071
    %v2139 = vpop.f32.mrb[0].mxu0
    %v2140 = vadd.f32 0.0, %v2139
    %v2141 = vpop.f32.mrb[0].mxu0
    %v2142 = vadd.f32 0.0, %v2141
    %2143 = vmatprep.mubr.f32.mxu0 0.0
    %2144 = vmatmul.mubr.f32.gmra.mrb[0].mxu0 %v2072
    %v2145 = vpop.f32.mrb[0].mxu0
    %v2146 = vadd.f32 0.0, %v2145
    %v2147 = vpop.f32.mrb[0].mxu0
    %v2148 = vadd.f32 0.0, %v2147
    %2149 = vdwg.mxu0
    %v2150 = vadd.f32 %v2035, %v2140
    %v2151 = vadd.f32 %v2037, %v2146
    %v2152 = vtanh.pop %v2150
    %v2153 = vtanh.pop %v2151
    %v2154 = vadd.f32 %v2036, %v2142
    %v2155 = vadd.f32 %v2038, %v2148
    %v2156 = vxor.u32 %v2154, 2147483648
    %v2157 = vxor.u32 %v2155, 2147483648
    %v2158 = vmul.f32 %v2156, 1.442695
    %v2159 = vpow.pop %v2158
    %v2160 = vmul.f32 %v2157, 1.442695
    %v2161 = vpow.pop %v2160
    %v2162 = vadd.f32 %v2159, 1.0
    %v2163 = vadd.f32 %v2161, 1.0
    %v2164 = vrcp.pop %v2162
    %v2165 = vmul.f32 1.0, %v2164
    %v2166 = vrcp.pop %v2163
    %v2167 = vmul.f32 1.0, %v2166
    %v2168 = vsub.f32 %v2152, %v2029
    %v2169 = vsub.f32 %v2153, %v2030
    %v2170 = vmul.f32 %v2168, %v2165
    %v2171 = vmul.f32 %v2169, %v2167
    %v2172 = vadd.f32 %v2170, %v2029
    %v2173 = vadd.f32 %v2171, %v2030
    %v2174 = vld [vmem:[%s256] sm:$0xff]
    %v2175 = vld [vmem:[%s256 + $0x8] sm:$0xff]
    %v2176 = vld [vmem:[%s256 + $0x10] sm:$0xff]
    %v2177 = vld [vmem:[%s256 + $0x18] sm:$0xff]
    %v2178 = vld [vmem:[%s256 + $0x20] sm:$0xff]
    %v2179 = vld [vmem:[%s256 + $0x28] sm:$0xff]
    %v2180 = vld [vmem:[%s256 + $0x30] sm:$0xff]
    %v2181 = vld [vmem:[%s256 + $0x38] sm:$0xff]
    %v2182 = vld [vmem:[%s256 + $0x40] sm:$0xff]
    %v2183 = vld [vmem:[%s256 + $0x48] sm:$0xff]
    %v2184 = vld [vmem:[%s256 + $0x50] sm:$0xff]
    %v2185 = vld [vmem:[%s256 + $0x58] sm:$0xff]
    %v2186 = vld [vmem:[%s256 + $0x60] sm:$0xff]
    %v2187 = vld [vmem:[%s256 + $0x68] sm:$0xff]
    %v2188 = vld [vmem:[%s256 + $0x70] sm:$0xff]
    %v2189 = vld [vmem:[%s256 + $0x78] sm:$0xff]
    %v2190 = vld [vmem:[%s256 + $0x80] sm:$0xff]
    %v2191 = vld [vmem:[%s256 + $0x88] sm:$0xff]
    %v2192 = vld [vmem:[%s256 + $0x90] sm:$0xff]
    %v2193 = vld [vmem:[%s256 + $0x98] sm:$0xff]
    %v2194 = vld [vmem:[%s256 + $0xa0] sm:$0xff]
    %v2195 = vld [vmem:[%s256 + $0xa8] sm:$0xff]
    %v2196 = vld [vmem:[%s256 + $0xb0] sm:$0xff]
    %v2197 = vld [vmem:[%s256 + $0xb8] sm:$0xff]
    %v2198 = vld [vmem:[%s256 + $0xc0] sm:$0xff]
    %v2199 = vld [vmem:[%s256 + $0xc8] sm:$0xff]
    %v2200 = vld [vmem:[%s256 + $0xd0] sm:$0xff]
    %v2201 = vld [vmem:[%s256 + $0xd8] sm:$0xff]
    %v2202 = vld [vmem:[%s256 + $0xe0] sm:$0xff]
    %v2203 = vld [vmem:[%s256 + $0xe8] sm:$0xff]
    %v2204 = vld [vmem:[%s256 + $0xf0] sm:$0xff]
    %v2205 = vld [vmem:[%s256 + $0xf8] sm:$0xff]
    %v2206 = vmul.f32 %v92, %v2172
    %v2207 = vmul.f32 %v93, %v2173
    %2208 = vmatprep.subr.mxu0 %v2175
    %2209 = vmatpush1.msra.mxu0 %v2174
    %2210 = vmatprep.subr.mxu0 %v2177
    %2211 = vmatpush1.msra.mxu0 %v2176
    %2212 = vmatprep.subr.mxu0 %v2179
    %2213 = vmatpush1.msra.mxu0 %v2178
    %2214 = vmatprep.subr.mxu0 %v2181
    %2215 = vmatpush1.msra.mxu0 %v2180
    %2216 = vmatprep.subr.mxu0 %v2183
    %2217 = vmatpush1.msra.mxu0 %v2182
    %2218 = vmatprep.subr.mxu0 %v2185
    %2219 = vmatpush1.msra.mxu0 %v2184
    %2220 = vmatprep.subr.mxu0 %v2187
    %2221 = vmatpush1.msra.mxu0 %v2186
    %2222 = vmatprep.subr.mxu0 %v2189
    %2223 = vmatpush1.msra.mxu0 %v2188
    %2224 = vmatprep.subr.mxu0 %v2191
    %2225 = vmatpush1.msra.mxu0 %v2190
    %2226 = vmatprep.subr.mxu0 %v2193
    %2227 = vmatpush1.msra.mxu0 %v2192
    %2228 = vmatprep.subr.mxu0 %v2195
    %2229 = vmatpush1.msra.mxu0 %v2194
    %2230 = vmatprep.subr.mxu0 %v2197
    %2231 = vmatpush1.msra.mxu0 %v2196
    %2232 = vmatprep.subr.mxu0 %v2199
    %2233 = vmatpush1.msra.mxu0 %v2198
    %2234 = vmatprep.subr.mxu0 %v2201
    %2235 = vmatpush1.msra.mxu0 %v2200
    %2236 = vmatprep.subr.mxu0 %v2203
    %2237 = vmatpush1.msra.mxu0 %v2202
    %2238 = vmatprep.subr.mxu0 %v2205
    %2239 = vmatpush1.msra.mxu0 %v2204
    %2240 = vmatprep.subr.mxu0 0.0
    %2241 = vmatpush1.msra.mxu0 0.0
    %2242 = vmatprep.subr.mxu0 0.0
    %2243 = vmatpush1.msra.mxu0 0.0
    %2244 = vmatprep.subr.mxu0 0.0
    %2245 = vmatpush1.msra.mxu0 0.0
    %2246 = vmatprep.subr.mxu0 0.0
    %2247 = vmatpush1.msra.mxu0 0.0
    %2248 = vmatprep.subr.mxu0 0.0
    %2249 = vmatpush1.msra.mxu0 0.0
    %2250 = vmatprep.subr.mxu0 0.0
    %2251 = vmatpush1.msra.mxu0 0.0
    %2252 = vmatprep.subr.mxu0 0.0
    %2253 = vmatpush1.msra.mxu0 0.0
    %2254 = vmatprep.subr.mxu0 0.0
    %2255 = vmatpush1.msra.mxu0 0.0
    %2256 = vmatprep.subr.mxu0 0.0
    %2257 = vmatpush1.msra.mxu0 0.0
    %2258 = vmatprep.subr.mxu0 0.0
    %2259 = vmatpush1.msra.mxu0 0.0
    %2260 = vmatprep.subr.mxu0 0.0
    %2261 = vmatpush1.msra.mxu0 0.0
    %2262 = vmatprep.subr.mxu0 0.0
    %2263 = vmatpush1.msra.mxu0 0.0
    %2264 = vmatprep.subr.mxu0 0.0
    %2265 = vmatpush1.msra.mxu0 0.0
    %2266 = vmatprep.subr.mxu0 0.0
    %2267 = vmatpush1.msra.mxu0 0.0
    %2268 = vmatprep.subr.mxu0 0.0
    %2269 = vmatpush1.msra.mxu0 0.0
    %2270 = vmatprep.subr.mxu0 0.0
    %2271 = vmatpush1.msra.mxu0 0.0
    %2272 = vmatprep.mubr.f32.mxu0 0.0
    %2273 = vmatmul.mubr.f32.gmra.mrb[0].mxu0 %v2206
    %v2274 = vpop.f32.mrb[0].mxu0
    %v2275 = vadd.f32 %v100, %v2274
    %v2276 = vpop.f32.mrb[0].mxu0
    %v2277 = vadd.f32 %v104, %v2276
    %2278 = vmatprep.mubr.f32.mxu0 0.0
    %2279 = vmatmul.mubr.f32.gmra.mrb[0].mxu0 %v2207
    %v2280 = vpop.f32.mrb[0].mxu0
    %v2281 = vadd.f32 %v100, %v2280
    %v2282 = vpop.f32.mrb[0].mxu0
    %v2283 = vadd.f32 %v104, %v2282
    %2284 = vdwg.mxu0
    %v2285 = vtanh.pop %v2275
    %v2286 = vtanh.pop %v2281
    %v2287 = vxor.u32 %v2277, 2147483648
    %v2288 = vxor.u32 %v2283, 2147483648
    %v2289 = vmul.f32 %v2287, 1.442695
    %v2290 = vpow.pop %v2289
    %v2291 = vmul.f32 %v2288, 1.442695
    %v2292 = vpow.pop %v2291
    %v2293 = vadd.f32 %v2290, 1.0
    %v2294 = vadd.f32 %v2292, 1.0
    %v2295 = vrcp.pop %v2293
    %v2296 = vmul.f32 1.0, %v2295
    %v2297 = vrcp.pop %v2294
    %v2298 = vmul.f32 1.0, %v2297
    %v2299 = vsub.f32 %v2285, %v2172
    %v2300 = vsub.f32 %v2286, %v2173
    %v2301 = vmul.f32 %v2299, %v2296
    %v2302 = vmul.f32 %v2300, %v2298
    %v2303 = vadd.f32 %v2301, %v2172
    %v2304 = vadd.f32 %v2302, %v2173
    %s2305 = scalar_lea.vmem [#allocation12], 112
    %2306 = vst [vmem:[%s2305] sm:$0xff] %v2303
    %2307 = vst [vmem:[%s2305 + $0x8] sm:$0xff] %v2304
    %s2308 = scalar_lea.vmem [#allocation3], 256
    %v2309 = vld [vmem:[%s2308] sm:$0xff]
    %v2310 = vld [vmem:[%s2308 + $0x8] sm:$0xff]
    %v2311 = vld [vmem:[%s2308 + $0x10] sm:$0xff]
    %v2312 = vld [vmem:[%s2308 + $0x18] sm:$0xff]
    %v2313 = vld [vmem:[#allocation9] sm:$0xff]
    %v2314 = vld [vmem:[#allocation9 + $0x8] sm:$0xff]
    %v2315 = vld [vmem:[#allocation9 + $0x10] sm:$0xff]
    %v2316 = vld [vmem:[#allocation9 + $0x18] sm:$0xff]
    %v2317 = vld [vmem:[#allocation9 + $0x20] sm:$0xff]
    %v2318 = vld [vmem:[#allocation9 + $0x28] sm:$0xff]
    %v2319 = vld [vmem:[#allocation9 + $0x30] sm:$0xff]
    %v2320 = vld [vmem:[#allocation9 + $0x38] sm:$0xff]
    %v2321 = vld [vmem:[#allocation9 + $0x40] sm:$0xff]
    %v2322 = vld [vmem:[#allocation9 + $0x48] sm:$0xff]
    %v2323 = vld [vmem:[#allocation9 + $0x50] sm:$0xff]
    %v2324 = vld [vmem:[#allocation9 + $0x58] sm:$0xff]
    %v2325 = vld [vmem:[#allocation9 + $0x60] sm:$0xff]
    %v2326 = vld [vmem:[#allocation9 + $0x68] sm:$0xff]
    %v2327 = vld [vmem:[#allocation9 + $0x70] sm:$0xff]
    %v2328 = vld [vmem:[#allocation9 + $0x78] sm:$0xff]
    %v2329 = vld [vmem:[#allocation9 + $0x80] sm:$0xff]
    %v2330 = vld [vmem:[#allocation9 + $0x88] sm:$0xff]
    %v2331 = vld [vmem:[#allocation9 + $0x90] sm:$0xff]
    %v2332 = vld [vmem:[#allocation9 + $0x98] sm:$0xff]
    %v2333 = vld [vmem:[#allocation9 + $0xa0] sm:$0xff]
    %v2334 = vld [vmem:[#allocation9 + $0xa8] sm:$0xff]
    %v2335 = vld [vmem:[#allocation9 + $0xb0] sm:$0xff]
    %v2336 = vld [vmem:[#allocation9 + $0xb8] sm:$0xff]
    %v2337 = vld [vmem:[#allocation9 + $0xc0] sm:$0xff]
    %v2338 = vld [vmem:[#allocation9 + $0xc8] sm:$0xff]
    %v2339 = vld [vmem:[#allocation9 + $0xd0] sm:$0xff]
    %v2340 = vld [vmem:[#allocation9 + $0xd8] sm:$0xff]
    %v2341 = vld [vmem:[#allocation9 + $0xe0] sm:$0xff]
    %v2342 = vld [vmem:[#allocation9 + $0xe8] sm:$0xff]
    %v2343 = vld [vmem:[#allocation9 + $0xf0] sm:$0xff]
    %v2344 = vld [vmem:[#allocation9 + $0xf8] sm:$0xff]
    %v2345 = vmul.f32 %v92, %v2303
    %v2346 = vmul.f32 %v93, %v2304
    %2347 = vmatprep.subr.mxu0 %v2314
    %2348 = vmatpush1.msra.mxu0 %v2313
    %2349 = vmatprep.subr.mxu0 %v2316
    %2350 = vmatpush1.msra.mxu0 %v2315
    %2351 = vmatprep.subr.mxu0 %v2318
    %2352 = vmatpush1.msra.mxu0 %v2317
    %2353 = vmatprep.subr.mxu0 %v2320
    %2354 = vmatpush1.msra.mxu0 %v2319
    %2355 = vmatprep.subr.mxu0 %v2322
    %2356 = vmatpush1.msra.mxu0 %v2321
    %2357 = vmatprep.subr.mxu0 %v2324
    %2358 = vmatpush1.msra.mxu0 %v2323
    %2359 = vmatprep.subr.mxu0 %v2326
    %2360 = vmatpush1.msra.mxu0 %v2325
    %2361 = vmatprep.subr.mxu0 %v2328
    %2362 = vmatpush1.msra.mxu0 %v2327
    %2363 = vmatprep.subr.mxu0 %v2330
    %2364 = vmatpush1.msra.mxu0 %v2329
    %2365 = vmatprep.subr.mxu0 %v2332
    %2366 = vmatpush1.msra.mxu0 %v2331
    %2367 = vmatprep.subr.mxu0 %v2334
    %2368 = vmatpush1.msra.mxu0 %v2333
    %2369 = vmatprep.subr.mxu0 %v2336
    %2370 = vmatpush1.msra.mxu0 %v2335
    %2371 = vmatprep.subr.mxu0 %v2338
    %2372 = vmatpush1.msra.mxu0 %v2337
    %2373 = vmatprep.subr.mxu0 %v2340
    %2374 = vmatpush1.msra.mxu0 %v2339
    %2375 = vmatprep.subr.mxu0 %v2342
    %2376 = vmatpush1.msra.mxu0 %v2341
    %2377 = vmatprep.subr.mxu0 %v2344
    %2378 = vmatpush1.msra.mxu0 %v2343
    %2379 = vmatprep.subr.mxu0 0.0
    %2380 = vmatpush1.msra.mxu0 0.0
    %2381 = vmatprep.subr.mxu0 0.0
    %2382 = vmatpush1.msra.mxu0 0.0
    %2383 = vmatprep.subr.mxu0 0.0
    %2384 = vmatpush1.msra.mxu0 0.0
    %2385 = vmatprep.subr.mxu0 0.0
    %2386 = vmatpush1.msra.mxu0 0.0
    %2387 = vmatprep.subr.mxu0 0.0
    %2388 = vmatpush1.msra.mxu0 0.0
    %2389 = vmatprep.subr.mxu0 0.0
    %2390 = vmatpush1.msra.mxu0 0.0
    %2391 = vmatprep.subr.mxu0 0.0
    %2392 = vmatpush1.msra.mxu0 0.0
    %2393 = vmatprep.subr.mxu0 0.0
    %2394 = vmatpush1.msra.mxu0 0.0
    %2395 = vmatprep.subr.mxu0 0.0
    %2396 = vmatpush1.msra.mxu0 0.0
    %2397 = vmatprep.subr.mxu0 0.0
    %2398 = vmatpush1.msra.mxu0 0.0
    %2399 = vmatprep.subr.mxu0 0.0
    %2400 = vmatpush1.msra.mxu0 0.0
    %2401 = vmatprep.subr.mxu0 0.0
    %2402 = vmatpush1.msra.mxu0 0.0
    %2403 = vmatprep.subr.mxu0 0.0
    %2404 = vmatpush1.msra.mxu0 0.0
    %2405 = vmatprep.subr.mxu0 0.0
    %2406 = vmatpush1.msra.mxu0 0.0
    %2407 = vmatprep.subr.mxu0 0.0
    %2408 = vmatpush1.msra.mxu0 0.0
    %2409 = vmatprep.subr.mxu0 0.0
    %2410 = vmatpush1.msra.mxu0 0.0
    %2411 = vmatprep.mubr.f32.mxu0 0.0
    %2412 = vmatmul.mubr.f32.gmra.mrb[0].mxu0 %v2345
    %v2413 = vpop.f32.mrb[0].mxu0
    %v2414 = vadd.f32 0.0, %v2413
    %v2415 = vpop.f32.mrb[0].mxu0
    %v2416 = vadd.f32 0.0, %v2415
    %2417 = vmatprep.mubr.f32.mxu0 0.0
    %2418 = vmatmul.mubr.f32.gmra.mrb[0].mxu0 %v2346
    %v2419 = vpop.f32.mrb[0].mxu0
    %v2420 = vadd.f32 0.0, %v2419
    %v2421 = vpop.f32.mrb[0].mxu0
    %v2422 = vadd.f32 0.0, %v2421
    %2423 = vdwg.mxu0
    %v2424 = vadd.f32 %v2309, %v2414
    %v2425 = vadd.f32 %v2311, %v2420
    %v2426 = vtanh.pop %v2424
    %v2427 = vtanh.pop %v2425
    %v2428 = vadd.f32 %v2310, %v2416
    %v2429 = vadd.f32 %v2312, %v2422
    %v2430 = vxor.u32 %v2428, 2147483648
    %v2431 = vxor.u32 %v2429, 2147483648
    %v2432 = vmul.f32 %v2430, 1.442695
    %v2433 = vpow.pop %v2432
    %v2434 = vmul.f32 %v2431, 1.442695
    %v2435 = vpow.pop %v2434
    %v2436 = vadd.f32 %v2433, 1.0
    %v2437 = vadd.f32 %v2435, 1.0
    %v2438 = vrcp.pop %v2436
    %v2439 = vmul.f32 1.0, %v2438
    %v2440 = vrcp.pop %v2437
    %v2441 = vmul.f32 1.0, %v2440
    %v2442 = vsub.f32 %v2426, %v2303
    %v2443 = vsub.f32 %v2427, %v2304
    %v2444 = vmul.f32 %v2442, %v2439
    %v2445 = vmul.f32 %v2443, %v2441
    %v2446 = vadd.f32 %v2444, %v2303
    %v2447 = vadd.f32 %v2445, %v2304
    %v2448 = vld [vmem:[%s256] sm:$0xff]
    %v2449 = vld [vmem:[%s256 + $0x8] sm:$0xff]
    %v2450 = vld [vmem:[%s256 + $0x10] sm:$0xff]
    %v2451 = vld [vmem:[%s256 + $0x18] sm:$0xff]
    %v2452 = vld [vmem:[%s256 + $0x20] sm:$0xff]
    %v2453 = vld [vmem:[%s256 + $0x28] sm:$0xff]
    %v2454 = vld [vmem:[%s256 + $0x30] sm:$0xff]
    %v2455 = vld [vmem:[%s256 + $0x38] sm:$0xff]
    %v2456 = vld [vmem:[%s256 + $0x40] sm:$0xff]
    %v2457 = vld [vmem:[%s256 + $0x48] sm:$0xff]
    %v2458 = vld [vmem:[%s256 + $0x50] sm:$0xff]
    %v2459 = vld [vmem:[%s256 + $0x58] sm:$0xff]
    %v2460 = vld [vmem:[%s256 + $0x60] sm:$0xff]
    %v2461 = vld [vmem:[%s256 + $0x68] sm:$0xff]
    %v2462 = vld [vmem:[%s256 + $0x70] sm:$0xff]
    %v2463 = vld [vmem:[%s256 + $0x78] sm:$0xff]
    %v2464 = vld [vmem:[%s256 + $0x80] sm:$0xff]
    %v2465 = vld [vmem:[%s256 + $0x88] sm:$0xff]
    %v2466 = vld [vmem:[%s256 + $0x90] sm:$0xff]
    %v2467 = vld [vmem:[%s256 + $0x98] sm:$0xff]
    %v2468 = vld [vmem:[%s256 + $0xa0] sm:$0xff]
    %v2469 = vld [vmem:[%s256 + $0xa8] sm:$0xff]
    %v2470 = vld [vmem:[%s256 + $0xb0] sm:$0xff]
    %v2471 = vld [vmem:[%s256 + $0xb8] sm:$0xff]
    %v2472 = vld [vmem:[%s256 + $0xc0] sm:$0xff]
    %v2473 = vld [vmem:[%s256 + $0xc8] sm:$0xff]
    %v2474 = vld [vmem:[%s256 + $0xd0] sm:$0xff]
    %v2475 = vld [vmem:[%s256 + $0xd8] sm:$0xff]
    %v2476 = vld [vmem:[%s256 + $0xe0] sm:$0xff]
    %v2477 = vld [vmem:[%s256 + $0xe8] sm:$0xff]
    %v2478 = vld [vmem:[%s256 + $0xf0] sm:$0xff]
    %v2479 = vld [vmem:[%s256 + $0xf8] sm:$0xff]
    %v2480 = vmul.f32 %v92, %v2446
    %v2481 = vmul.f32 %v93, %v2447
    %2482 = vmatprep.subr.mxu0 %v2449
    %2483 = vmatpush1.msra.mxu0 %v2448
    %2484 = vmatprep.subr.mxu0 %v2451
    %2485 = vmatpush1.msra.mxu0 %v2450
    %2486 = vmatprep.subr.mxu0 %v2453
    %2487 = vmatpush1.msra.mxu0 %v2452
    %2488 = vmatprep.subr.mxu0 %v2455
    %2489 = vmatpush1.msra.mxu0 %v2454
    %2490 = vmatprep.subr.mxu0 %v2457
    %2491 = vmatpush1.msra.mxu0 %v2456
    %2492 = vmatprep.subr.mxu0 %v2459
    %2493 = vmatpush1.msra.mxu0 %v2458
    %2494 = vmatprep.subr.mxu0 %v2461
    %2495 = vmatpush1.msra.mxu0 %v2460
    %2496 = vmatprep.subr.mxu0 %v2463
    %2497 = vmatpush1.msra.mxu0 %v2462
    %2498 = vmatprep.subr.mxu0 %v2465
    %2499 = vmatpush1.msra.mxu0 %v2464
    %2500 = vmatprep.subr.mxu0 %v2467
    %2501 = vmatpush1.msra.mxu0 %v2466
    %2502 = vmatprep.subr.mxu0 %v2469
    %2503 = vmatpush1.msra.mxu0 %v2468
    %2504 = vmatprep.subr.mxu0 %v2471
    %2505 = vmatpush1.msra.mxu0 %v2470
    %2506 = vmatprep.subr.mxu0 %v2473
    %2507 = vmatpush1.msra.mxu0 %v2472
    %2508 = vmatprep.subr.mxu0 %v2475
    %2509 = vmatpush1.msra.mxu0 %v2474
    %2510 = vmatprep.subr.mxu0 %v2477
    %2511 = vmatpush1.msra.mxu0 %v2476
    %2512 = vmatprep.subr.mxu0 %v2479
    %2513 = vmatpush1.msra.mxu0 %v2478
    %2514 = vmatprep.subr.mxu0 0.0
    %2515 = vmatpush1.msra.mxu0 0.0
    %2516 = vmatprep.subr.mxu0 0.0
    %2517 = vmatpush1.msra.mxu0 0.0
    %2518 = vmatprep.subr.mxu0 0.0
    %2519 = vmatpush1.msra.mxu0 0.0
    %2520 = vmatprep.subr.mxu0 0.0
    %2521 = vmatpush1.msra.mxu0 0.0
    %2522 = vmatprep.subr.mxu0 0.0
    %2523 = vmatpush1.msra.mxu0 0.0
    %2524 = vmatprep.subr.mxu0 0.0
    %2525 = vmatpush1.msra.mxu0 0.0
    %2526 = vmatprep.subr.mxu0 0.0
    %2527 = vmatpush1.msra.mxu0 0.0
    %2528 = vmatprep.subr.mxu0 0.0
    %2529 = vmatpush1.msra.mxu0 0.0
    %2530 = vmatprep.subr.mxu0 0.0
    %2531 = vmatpush1.msra.mxu0 0.0
    %2532 = vmatprep.subr.mxu0 0.0
    %2533 = vmatpush1.msra.mxu0 0.0
    %2534 = vmatprep.subr.mxu0 0.0
    %2535 = vmatpush1.msra.mxu0 0.0
    %2536 = vmatprep.subr.mxu0 0.0
    %2537 = vmatpush1.msra.mxu0 0.0
    %2538 = vmatprep.subr.mxu0 0.0
    %2539 = vmatpush1.msra.mxu0 0.0
    %2540 = vmatprep.subr.mxu0 0.0
    %2541 = vmatpush1.msra.mxu0 0.0
    %2542 = vmatprep.subr.mxu0 0.0
    %2543 = vmatpush1.msra.mxu0 0.0
    %2544 = vmatprep.subr.mxu0 0.0
    %2545 = vmatpush1.msra.mxu0 0.0
    %2546 = vmatprep.mubr.f32.mxu0 0.0
    %2547 = vmatmul.mubr.f32.gmra.mrb[0].mxu0 %v2480
    %v2548 = vpop.f32.mrb[0].mxu0
    %v2549 = vadd.f32 %v100, %v2548
    %v2550 = vpop.f32.mrb[0].mxu0
    %v2551 = vadd.f32 %v104, %v2550
    %2552 = vmatprep.mubr.f32.mxu0 0.0
    %2553 = vmatmul.mubr.f32.gmra.mrb[0].mxu0 %v2481
    %v2554 = vpop.f32.mrb[0].mxu0
    %v2555 = vadd.f32 %v100, %v2554
    %v2556 = vpop.f32.mrb[0].mxu0
    %v2557 = vadd.f32 %v104, %v2556
    %2558 = vdwg.mxu0
    %v2559 = vtanh.pop %v2549
    %v2560 = vtanh.pop %v2555
    %v2561 = vxor.u32 %v2551, 2147483648
    %v2562 = vxor.u32 %v2557, 2147483648
    %v2563 = vmul.f32 %v2561, 1.442695
    %v2564 = vpow.pop %v2563
    %v2565 = vmul.f32 %v2562, 1.442695
    %v2566 = vpow.pop %v2565
    %v2567 = vadd.f32 %v2564, 1.0
    %v2568 = vadd.f32 %v2566, 1.0
    %v2569 = vrcp.pop %v2567
    %v2570 = vmul.f32 1.0, %v2569
    %v2571 = vrcp.pop %v2568
    %v2572 = vmul.f32 1.0, %v2571
    %v2573 = vsub.f32 %v2559, %v2446
    %v2574 = vsub.f32 %v2560, %v2447
    %v2575 = vmul.f32 %v2573, %v2570
    %v2576 = vmul.f32 %v2574, %v2572
    %v2577 = vadd.f32 %v2575, %v2446
    %v2578 = vadd.f32 %v2576, %v2447
    %s2579 = scalar_lea.vmem [#allocation12], 128
    %2580 = vst [vmem:[%s2579] sm:$0xff] %v2577
    %2581 = vst [vmem:[%s2579 + $0x8] sm:$0xff] %v2578
    %s2582 = scalar_lea.vmem [#allocation3], 288
    %v2583 = vld [vmem:[%s2582] sm:$0xff]
    %v2584 = vld [vmem:[%s2582 + $0x8] sm:$0xff]
    %v2585 = vld [vmem:[%s2582 + $0x10] sm:$0xff]
    %v2586 = vld [vmem:[%s2582 + $0x18] sm:$0xff]
    %v2587 = vld [vmem:[#allocation9] sm:$0xff]
    %v2588 = vld [vmem:[#allocation9 + $0x8] sm:$0xff]
    %v2589 = vld [vmem:[#allocation9 + $0x10] sm:$0xff]
    %v2590 = vld [vmem:[#allocation9 + $0x18] sm:$0xff]
    %v2591 = vld [vmem:[#allocation9 + $0x20] sm:$0xff]
    %v2592 = vld [vmem:[#allocation9 + $0x28] sm:$0xff]
    %v2593 = vld [vmem:[#allocation9 + $0x30] sm:$0xff]
    %v2594 = vld [vmem:[#allocation9 + $0x38] sm:$0xff]
    %v2595 = vld [vmem:[#allocation9 + $0x40] sm:$0xff]
    %v2596 = vld [vmem:[#allocation9 + $0x48] sm:$0xff]
    %v2597 = vld [vmem:[#allocation9 + $0x50] sm:$0xff]
    %v2598 = vld [vmem:[#allocation9 + $0x58] sm:$0xff]
    %v2599 = vld [vmem:[#allocation9 + $0x60] sm:$0xff]
    %v2600 = vld [vmem:[#allocation9 + $0x68] sm:$0xff]
    %v2601 = vld [vmem:[#allocation9 + $0x70] sm:$0xff]
    %v2602 = vld [vmem:[#allocation9 + $0x78] sm:$0xff]
    %v2603 = vld [vmem:[#allocation9 + $0x80] sm:$0xff]
    %v2604 = vld [vmem:[#allocation9 + $0x88] sm:$0xff]
    %v2605 = vld [vmem:[#allocation9 + $0x90] sm:$0xff]
    %v2606 = vld [vmem:[#allocation9 + $0x98] sm:$0xff]
    %v2607 = vld [vmem:[#allocation9 + $0xa0] sm:$0xff]
    %v2608 = vld [vmem:[#allocation9 + $0xa8] sm:$0xff]
    %v2609 = vld [vmem:[#allocation9 + $0xb0] sm:$0xff]
    %v2610 = vld [vmem:[#allocation9 + $0xb8] sm:$0xff]
    %v2611 = vld [vmem:[#allocation9 + $0xc0] sm:$0xff]
    %v2612 = vld [vmem:[#allocation9 + $0xc8] sm:$0xff]
    %v2613 = vld [vmem:[#allocation9 + $0xd0] sm:$0xff]
    %v2614 = vld [vmem:[#allocation9 + $0xd8] sm:$0xff]
    %v2615 = vld [vmem:[#allocation9 + $0xe0] sm:$0xff]
    %v2616 = vld [vmem:[#allocation9 + $0xe8] sm:$0xff]
    %v2617 = vld [vmem:[#allocation9 + $0xf0] sm:$0xff]
    %v2618 = vld [vmem:[#allocation9 + $0xf8] sm:$0xff]
    %v2619 = vmul.f32 %v92, %v2577
    %v2620 = vmul.f32 %v93, %v2578
    %2621 = vmatprep.subr.mxu0 %v2588
    %2622 = vmatpush1.msra.mxu0 %v2587
    %2623 = vmatprep.subr.mxu0 %v2590
    %2624 = vmatpush1.msra.mxu0 %v2589
    %2625 = vmatprep.subr.mxu0 %v2592
    %2626 = vmatpush1.msra.mxu0 %v2591
    %2627 = vmatprep.subr.mxu0 %v2594
    %2628 = vmatpush1.msra.mxu0 %v2593
    %2629 = vmatprep.subr.mxu0 %v2596
    %2630 = vmatpush1.msra.mxu0 %v2595
    %2631 = vmatprep.subr.mxu0 %v2598
    %2632 = vmatpush1.msra.mxu0 %v2597
    %2633 = vmatprep.subr.mxu0 %v2600
    %2634 = vmatpush1.msra.mxu0 %v2599
    %2635 = vmatprep.subr.mxu0 %v2602
    %2636 = vmatpush1.msra.mxu0 %v2601
    %2637 = vmatprep.subr.mxu0 %v2604
    %2638 = vmatpush1.msra.mxu0 %v2603
    %2639 = vmatprep.subr.mxu0 %v2606
    %2640 = vmatpush1.msra.mxu0 %v2605
    %2641 = vmatprep.subr.mxu0 %v2608
    %2642 = vmatpush1.msra.mxu0 %v2607
    %2643 = vmatprep.subr.mxu0 %v2610
    %2644 = vmatpush1.msra.mxu0 %v2609
    %2645 = vmatprep.subr.mxu0 %v2612
    %2646 = vmatpush1.msra.mxu0 %v2611
    %2647 = vmatprep.subr.mxu0 %v2614
    %2648 = vmatpush1.msra.mxu0 %v2613
    %2649 = vmatprep.subr.mxu0 %v2616
    %2650 = vmatpush1.msra.mxu0 %v2615
    %2651 = vmatprep.subr.mxu0 %v2618
    %2652 = vmatpush1.msra.mxu0 %v2617
    %2653 = vmatprep.subr.mxu0 0.0
    %2654 = vmatpush1.msra.mxu0 0.0
    %2655 = vmatprep.subr.mxu0 0.0
    %2656 = vmatpush1.msra.mxu0 0.0
    %2657 = vmatprep.subr.mxu0 0.0
    %2658 = vmatpush1.msra.mxu0 0.0
    %2659 = vmatprep.subr.mxu0 0.0
    %2660 = vmatpush1.msra.mxu0 0.0
    %2661 = vmatprep.subr.mxu0 0.0
    %2662 = vmatpush1.msra.mxu0 0.0
    %2663 = vmatprep.subr.mxu0 0.0
    %2664 = vmatpush1.msra.mxu0 0.0
    %2665 = vmatprep.subr.mxu0 0.0
    %2666 = vmatpush1.msra.mxu0 0.0
    %2667 = vmatprep.subr.mxu0 0.0
    %2668 = vmatpush1.msra.mxu0 0.0
    %2669 = vmatprep.subr.mxu0 0.0
    %2670 = vmatpush1.msra.mxu0 0.0
    %2671 = vmatprep.subr.mxu0 0.0
    %2672 = vmatpush1.msra.mxu0 0.0
    %2673 = vmatprep.subr.mxu0 0.0
    %2674 = vmatpush1.msra.mxu0 0.0
    %2675 = vmatprep.subr.mxu0 0.0
    %2676 = vmatpush1.msra.mxu0 0.0
    %2677 = vmatprep.subr.mxu0 0.0
    %2678 = vmatpush1.msra.mxu0 0.0
    %2679 = vmatprep.subr.mxu0 0.0
    %2680 = vmatpush1.msra.mxu0 0.0
    %2681 = vmatprep.subr.mxu0 0.0
    %2682 = vmatpush1.msra.mxu0 0.0
    %2683 = vmatprep.subr.mxu0 0.0
    %2684 = vmatpush1.msra.mxu0 0.0
    %2685 = vmatprep.mubr.f32.mxu0 0.0
    %2686 = vmatmul.mubr.f32.gmra.mrb[0].mxu0 %v2619
    %v2687 = vpop.f32.mrb[0].mxu0
    %v2688 = vadd.f32 0.0, %v2687
    %v2689 = vpop.f32.mrb[0].mxu0
    %v2690 = vadd.f32 0.0, %v2689
    %2691 = vmatprep.mubr.f32.mxu0 0.0
    %2692 = vmatmul.mubr.f32.gmra.mrb[0].mxu0 %v2620
    %v2693 = vpop.f32.mrb[0].mxu0
    %v2694 = vadd.f32 0.0, %v2693
    %v2695 = vpop.f32.mrb[0].mxu0
    %v2696 = vadd.f32 0.0, %v2695
    %2697 = vdwg.mxu0
    %v2698 = vadd.f32 %v2583, %v2688
    %v2699 = vadd.f32 %v2585, %v2694
    %v2700 = vtanh.pop %v2698
    %v2701 = vtanh.pop %v2699
    %v2702 = vadd.f32 %v2584, %v2690
    %v2703 = vadd.f32 %v2586, %v2696
    %v2704 = vxor.u32 %v2702, 2147483648
    %v2705 = vxor.u32 %v2703, 2147483648
    %v2706 = vmul.f32 %v2704, 1.442695
    %v2707 = vpow.pop %v2706
    %v2708 = vmul.f32 %v2705, 1.442695
    %v2709 = vpow.pop %v2708
    %v2710 = vadd.f32 %v2707, 1.0
    %v2711 = vadd.f32 %v2709, 1.0
    %v2712 = vrcp.pop %v2710
    %v2713 = vmul.f32 1.0, %v2712
    %v2714 = vrcp.pop %v2711
    %v2715 = vmul.f32 1.0, %v2714
    %v2716 = vsub.f32 %v2700, %v2577
    %v2717 = vsub.f32 %v2701, %v2578
    %v2718 = vmul.f32 %v2716, %v2713
    %v2719 = vmul.f32 %v2717, %v2715
    %v2720 = vadd.f32 %v2718, %v2577
    %v2721 = vadd.f32 %v2719, %v2578
    %v2722 = vld [vmem:[%s256] sm:$0xff]
    %v2723 = vld [vmem:[%s256 + $0x8] sm:$0xff]
    %v2724 = vld [vmem:[%s256 + $0x10] sm:$0xff]
    %v2725 = vld [vmem:[%s256 + $0x18] sm:$0xff]
    %v2726 = vld [vmem:[%s256 + $0x20] sm:$0xff]
    %v2727 = vld [vmem:[%s256 + $0x28] sm:$0xff]
    %v2728 = vld [vmem:[%s256 + $0x30] sm:$0xff]
    %v2729 = vld [vmem:[%s256 + $0x38] sm:$0xff]
    %v2730 = vld [vmem:[%s256 + $0x40] sm:$0xff]
    %v2731 = vld [vmem:[%s256 + $0x48] sm:$0xff]
    %v2732 = vld [vmem:[%s256 + $0x50] sm:$0xff]
    %v2733 = vld [vmem:[%s256 + $0x58] sm:$0xff]
    %v2734 = vld [vmem:[%s256 + $0x60] sm:$0xff]
    %v2735 = vld [vmem:[%s256 + $0x68] sm:$0xff]
    %v2736 = vld [vmem:[%s256 + $0x70] sm:$0xff]
    %v2737 = vld [vmem:[%s256 + $0x78] sm:$0xff]
    %v2738 = vld [vmem:[%s256 + $0x80] sm:$0xff]
    %v2739 = vld [vmem:[%s256 + $0x88] sm:$0xff]
    %v2740 = vld [vmem:[%s256 + $0x90] sm:$0xff]
    %v2741 = vld [vmem:[%s256 + $0x98] sm:$0xff]
    %v2742 = vld [vmem:[%s256 + $0xa0] sm:$0xff]
    %v2743 = vld [vmem:[%s256 + $0xa8] sm:$0xff]
    %v2744 = vld [vmem:[%s256 + $0xb0] sm:$0xff]
    %v2745 = vld [vmem:[%s256 + $0xb8] sm:$0xff]
    %v2746 = vld [vmem:[%s256 + $0xc0] sm:$0xff]
    %v2747 = vld [vmem:[%s256 + $0xc8] sm:$0xff]
    %v2748 = vld [vmem:[%s256 + $0xd0] sm:$0xff]
    %v2749 = vld [vmem:[%s256 + $0xd8] sm:$0xff]
    %v2750 = vld [vmem:[%s256 + $0xe0] sm:$0xff]
    %v2751 = vld [vmem:[%s256 + $0xe8] sm:$0xff]
    %v2752 = vld [vmem:[%s256 + $0xf0] sm:$0xff]
    %v2753 = vld [vmem:[%s256 + $0xf8] sm:$0xff]
    %v2754 = vmul.f32 %v92, %v2720
    %v2755 = vmul.f32 %v93, %v2721
    %2756 = vmatprep.subr.mxu0 %v2723
    %2757 = vmatpush1.msra.mxu0 %v2722
    %2758 = vmatprep.subr.mxu0 %v2725
    %2759 = vmatpush1.msra.mxu0 %v2724
    %2760 = vmatprep.subr.mxu0 %v2727
    %2761 = vmatpush1.msra.mxu0 %v2726
    %2762 = vmatprep.subr.mxu0 %v2729
    %2763 = vmatpush1.msra.mxu0 %v2728
    %2764 = vmatprep.subr.mxu0 %v2731
    %2765 = vmatpush1.msra.mxu0 %v2730
    %2766 = vmatprep.subr.mxu0 %v2733
    %2767 = vmatpush1.msra.mxu0 %v2732
    %2768 = vmatprep.subr.mxu0 %v2735
    %2769 = vmatpush1.msra.mxu0 %v2734
    %2770 = vmatprep.subr.mxu0 %v2737
    %2771 = vmatpush1.msra.mxu0 %v2736
    %2772 = vmatprep.subr.mxu0 %v2739
    %2773 = vmatpush1.msra.mxu0 %v2738
    %2774 = vmatprep.subr.mxu0 %v2741
    %2775 = vmatpush1.msra.mxu0 %v2740
    %2776 = vmatprep.subr.mxu0 %v2743
    %2777 = vmatpush1.msra.mxu0 %v2742
    %2778 = vmatprep.subr.mxu0 %v2745
    %2779 = vmatpush1.msra.mxu0 %v2744
    %2780 = vmatprep.subr.mxu0 %v2747
    %2781 = vmatpush1.msra.mxu0 %v2746
    %2782 = vmatprep.subr.mxu0 %v2749
    %2783 = vmatpush1.msra.mxu0 %v2748
    %2784 = vmatprep.subr.mxu0 %v2751
    %2785 = vmatpush1.msra.mxu0 %v2750
    %2786 = vmatprep.subr.mxu0 %v2753
    %2787 = vmatpush1.msra.mxu0 %v2752
    %2788 = vmatprep.subr.mxu0 0.0
    %2789 = vmatpush1.msra.mxu0 0.0
    %2790 = vmatprep.subr.mxu0 0.0
    %2791 = vmatpush1.msra.mxu0 0.0
    %2792 = vmatprep.subr.mxu0 0.0
    %2793 = vmatpush1.msra.mxu0 0.0
    %2794 = vmatprep.subr.mxu0 0.0
    %2795 = vmatpush1.msra.mxu0 0.0
    %2796 = vmatprep.subr.mxu0 0.0
    %2797 = vmatpush1.msra.mxu0 0.0
    %2798 = vmatprep.subr.mxu0 0.0
    %2799 = vmatpush1.msra.mxu0 0.0
    %2800 = vmatprep.subr.mxu0 0.0
    %2801 = vmatpush1.msra.mxu0 0.0
    %2802 = vmatprep.subr.mxu0 0.0
    %2803 = vmatpush1.msra.mxu0 0.0
    %2804 = vmatprep.subr.mxu0 0.0
    %2805 = vmatpush1.msra.mxu0 0.0
    %2806 = vmatprep.subr.mxu0 0.0
    %2807 = vmatpush1.msra.mxu0 0.0
    %2808 = vmatprep.subr.mxu0 0.0
    %2809 = vmatpush1.msra.mxu0 0.0
    %2810 = vmatprep.subr.mxu0 0.0
    %2811 = vmatpush1.msra.mxu0 0.0
    %2812 = vmatprep.subr.mxu0 0.0
    %2813 = vmatpush1.msra.mxu0 0.0
    %2814 = vmatprep.subr.mxu0 0.0
    %2815 = vmatpush1.msra.mxu0 0.0
    %2816 = vmatprep.subr.mxu0 0.0
    %2817 = vmatpush1.msra.mxu0 0.0
    %2818 = vmatprep.subr.mxu0 0.0
    %2819 = vmatpush1.msra.mxu0 0.0
    %2820 = vmatprep.mubr.f32.mxu0 0.0
    %2821 = vmatmul.mubr.f32.gmra.mrb[0].mxu0 %v2754
    %v2822 = vpop.f32.mrb[0].mxu0
    %v2823 = vadd.f32 %v100, %v2822
    %v2824 = vpop.f32.mrb[0].mxu0
    %v2825 = vadd.f32 %v104, %v2824
    %2826 = vmatprep.mubr.f32.mxu0 0.0
    %2827 = vmatmul.mubr.f32.gmra.mrb[0].mxu0 %v2755
    %v2828 = vpop.f32.mrb[0].mxu0
    %v2829 = vadd.f32 %v100, %v2828
    %v2830 = vpop.f32.mrb[0].mxu0
    %v2831 = vadd.f32 %v104, %v2830
    %2832 = vdwg.mxu0
    %v2833 = vtanh.pop %v2823
    %v2834 = vtanh.pop %v2829
    %v2835 = vxor.u32 %v2825, 2147483648
    %v2836 = vxor.u32 %v2831, 2147483648
    %v2837 = vmul.f32 %v2835, 1.442695
    %v2838 = vpow.pop %v2837
    %v2839 = vmul.f32 %v2836, 1.442695
    %v2840 = vpow.pop %v2839
    %v2841 = vadd.f32 %v2838, 1.0
    %v2842 = vadd.f32 %v2840, 1.0
    %v2843 = vrcp.pop %v2841
    %v2844 = vmul.f32 1.0, %v2843
    %v2845 = vrcp.pop %v2842
    %v2846 = vmul.f32 1.0, %v2845
    %v2847 = vsub.f32 %v2833, %v2720
    %v2848 = vsub.f32 %v2834, %v2721
    %v2849 = vmul.f32 %v2847, %v2844
    %v2850 = vmul.f32 %v2848, %v2846
    %v2851 = vadd.f32 %v2849, %v2720
    %v2852 = vadd.f32 %v2850, %v2721
    %s2853 = scalar_lea.vmem [#allocation12], 144
    %2854 = vst [vmem:[%s2853] sm:$0xff] %v2851
    %2855 = vst [vmem:[%s2853 + $0x8] sm:$0xff] %v2852
    %s2856 = scalar_lea.vmem [#allocation3], 320
    %v2857 = vld [vmem:[%s2856] sm:$0xff]
    %v2858 = vld [vmem:[%s2856 + $0x8] sm:$0xff]
    %v2859 = vld [vmem:[%s2856 + $0x10] sm:$0xff]
    %v2860 = vld [vmem:[%s2856 + $0x18] sm:$0xff]
    %v2861 = vld [vmem:[#allocation9] sm:$0xff]
    %v2862 = vld [vmem:[#allocation9 + $0x8] sm:$0xff]
    %v2863 = vld [vmem:[#allocation9 + $0x10] sm:$0xff]
    %v2864 = vld [vmem:[#allocation9 + $0x18] sm:$0xff]
    %v2865 = vld [vmem:[#allocation9 + $0x20] sm:$0xff]
    %v2866 = vld [vmem:[#allocation9 + $0x28] sm:$0xff]
    %v2867 = vld [vmem:[#allocation9 + $0x30] sm:$0xff]
    %v2868 = vld [vmem:[#allocation9 + $0x38] sm:$0xff]
    %v2869 = vld [vmem:[#allocation9 + $0x40] sm:$0xff]
    %v2870 = vld [vmem:[#allocation9 + $0x48] sm:$0xff]
    %v2871 = vld [vmem:[#allocation9 + $0x50] sm:$0xff]
    %v2872 = vld [vmem:[#allocation9 + $0x58] sm:$0xff]
    %v2873 = vld [vmem:[#allocation9 + $0x60] sm:$0xff]
    %v2874 = vld [vmem:[#allocation9 + $0x68] sm:$0xff]
    %v2875 = vld [vmem:[#allocation9 + $0x70] sm:$0xff]
    %v2876 = vld [vmem:[#allocation9 + $0x78] sm:$0xff]
    %v2877 = vld [vmem:[#allocation9 + $0x80] sm:$0xff]
    %v2878 = vld [vmem:[#allocation9 + $0x88] sm:$0xff]
    %v2879 = vld [vmem:[#allocation9 + $0x90] sm:$0xff]
    %v2880 = vld [vmem:[#allocation9 + $0x98] sm:$0xff]
    %v2881 = vld [vmem:[#allocation9 + $0xa0] sm:$0xff]
    %v2882 = vld [vmem:[#allocation9 + $0xa8] sm:$0xff]
    %v2883 = vld [vmem:[#allocation9 + $0xb0] sm:$0xff]
    %v2884 = vld [vmem:[#allocation9 + $0xb8] sm:$0xff]
    %v2885 = vld [vmem:[#allocation9 + $0xc0] sm:$0xff]
    %v2886 = vld [vmem:[#allocation9 + $0xc8] sm:$0xff]
    %v2887 = vld [vmem:[#allocation9 + $0xd0] sm:$0xff]
    %v2888 = vld [vmem:[#allocation9 + $0xd8] sm:$0xff]
    %v2889 = vld [vmem:[#allocation9 + $0xe0] sm:$0xff]
    %v2890 = vld [vmem:[#allocation9 + $0xe8] sm:$0xff]
    %v2891 = vld [vmem:[#allocation9 + $0xf0] sm:$0xff]
    %v2892 = vld [vmem:[#allocation9 + $0xf8] sm:$0xff]
    %v2893 = vmul.f32 %v92, %v2851
    %v2894 = vmul.f32 %v93, %v2852
    %2895 = vmatprep.subr.mxu0 %v2862
    %2896 = vmatpush1.msra.mxu0 %v2861
    %2897 = vmatprep.subr.mxu0 %v2864
    %2898 = vmatpush1.msra.mxu0 %v2863
    %2899 = vmatprep.subr.mxu0 %v2866
    %2900 = vmatpush1.msra.mxu0 %v2865
    %2901 = vmatprep.subr.mxu0 %v2868
    %2902 = vmatpush1.msra.mxu0 %v2867
    %2903 = vmatprep.subr.mxu0 %v2870
    %2904 = vmatpush1.msra.mxu0 %v2869
    %2905 = vmatprep.subr.mxu0 %v2872
    %2906 = vmatpush1.msra.mxu0 %v2871
    %2907 = vmatprep.subr.mxu0 %v2874
    %2908 = vmatpush1.msra.mxu0 %v2873
    %2909 = vmatprep.subr.mxu0 %v2876
    %2910 = vmatpush1.msra.mxu0 %v2875
    %2911 = vmatprep.subr.mxu0 %v2878
    %2912 = vmatpush1.msra.mxu0 %v2877
    %2913 = vmatprep.subr.mxu0 %v2880
    %2914 = vmatpush1.msra.mxu0 %v2879
    %2915 = vmatprep.subr.mxu0 %v2882
    %2916 = vmatpush1.msra.mxu0 %v2881
    %2917 = vmatprep.subr.mxu0 %v2884
    %2918 = vmatpush1.msra.mxu0 %v2883
    %2919 = vmatprep.subr.mxu0 %v2886
    %2920 = vmatpush1.msra.mxu0 %v2885
    %2921 = vmatprep.subr.mxu0 %v2888
    %2922 = vmatpush1.msra.mxu0 %v2887
    %2923 = vmatprep.subr.mxu0 %v2890
    %2924 = vmatpush1.msra.mxu0 %v2889
    %2925 = vmatprep.subr.mxu0 %v2892
    %2926 = vmatpush1.msra.mxu0 %v2891
    %2927 = vmatprep.subr.mxu0 0.0
    %2928 = vmatpush1.msra.mxu0 0.0
    %2929 = vmatprep.subr.mxu0 0.0
    %2930 = vmatpush1.msra.mxu0 0.0
    %2931 = vmatprep.subr.mxu0 0.0
    %2932 = vmatpush1.msra.mxu0 0.0
    %2933 = vmatprep.subr.mxu0 0.0
    %2934 = vmatpush1.msra.mxu0 0.0
    %2935 = vmatprep.subr.mxu0 0.0
    %2936 = vmatpush1.msra.mxu0 0.0
    %2937 = vmatprep.subr.mxu0 0.0
    %2938 = vmatpush1.msra.mxu0 0.0
    %2939 = vmatprep.subr.mxu0 0.0
    %2940 = vmatpush1.msra.mxu0 0.0
    %2941 = vmatprep.subr.mxu0 0.0
    %2942 = vmatpush1.msra.mxu0 0.0
    %2943 = vmatprep.subr.mxu0 0.0
    %2944 = vmatpush1.msra.mxu0 0.0
    %2945 = vmatprep.subr.mxu0 0.0
    %2946 = vmatpush1.msra.mxu0 0.0
    %2947 = vmatprep.subr.mxu0 0.0
    %2948 = vmatpush1.msra.mxu0 0.0
    %2949 = vmatprep.subr.mxu0 0.0
    %2950 = vmatpush1.msra.mxu0 0.0
    %2951 = vmatprep.subr.mxu0 0.0
    %2952 = vmatpush1.msra.mxu0 0.0
    %2953 = vmatprep.subr.mxu0 0.0
    %2954 = vmatpush1.msra.mxu0 0.0
    %2955 = vmatprep.subr.mxu0 0.0
    %2956 = vmatpush1.msra.mxu0 0.0
    %2957 = vmatprep.subr.mxu0 0.0
    %2958 = vmatpush1.msra.mxu0 0.0
    %2959 = vmatprep.mubr.f32.mxu0 0.0
    %2960 = vmatmul.mubr.f32.gmra.mrb[0].mxu0 %v2893
    %v2961 = vpop.f32.mrb[0].mxu0
    %v2962 = vadd.f32 0.0, %v2961
    %v2963 = vpop.f32.mrb[0].mxu0
    %v2964 = vadd.f32 0.0, %v2963
    %2965 = vmatprep.mubr.f32.mxu0 0.0
    %2966 = vmatmul.mubr.f32.gmra.mrb[0].mxu0 %v2894
    %v2967 = vpop.f32.mrb[0].mxu0
    %v2968 = vadd.f32 0.0, %v2967
    %v2969 = vpop.f32.mrb[0].mxu0
    %v2970 = vadd.f32 0.0, %v2969
    %2971 = vdwg.mxu0
    %v2972 = vadd.f32 %v2857, %v2962
    %v2973 = vadd.f32 %v2859, %v2968
    %v2974 = vtanh.pop %v2972
    %v2975 = vtanh.pop %v2973
    %v2976 = vadd.f32 %v2858, %v2964
    %v2977 = vadd.f32 %v2860, %v2970
    %v2978 = vxor.u32 %v2976, 2147483648
    %v2979 = vxor.u32 %v2977, 2147483648
    %v2980 = vmul.f32 %v2978, 1.442695
    %v2981 = vpow.pop %v2980
    %v2982 = vmul.f32 %v2979, 1.442695
    %v2983 = vpow.pop %v2982
    %v2984 = vadd.f32 %v2981, 1.0
    %v2985 = vadd.f32 %v2983, 1.0
    %v2986 = vrcp.pop %v2984
    %v2987 = vmul.f32 1.0, %v2986
    %v2988 = vrcp.pop %v2985
    %v2989 = vmul.f32 1.0, %v2988
    %v2990 = vsub.f32 %v2974, %v2851
    %v2991 = vsub.f32 %v2975, %v2852
    %v2992 = vmul.f32 %v2990, %v2987
    %v2993 = vmul.f32 %v2991, %v2989
    %v2994 = vadd.f32 %v2992, %v2851
    %v2995 = vadd.f32 %v2993, %v2852
    %v2996 = vld [vmem:[%s256] sm:$0xff]
    %v2997 = vld [vmem:[%s256 + $0x8] sm:$0xff]
    %v2998 = vld [vmem:[%s256 + $0x10] sm:$0xff]
    %v2999 = vld [vmem:[%s256 + $0x18] sm:$0xff]
    %v3000 = vld [vmem:[%s256 + $0x20] sm:$0xff]
    %v3001 = vld [vmem:[%s256 + $0x28] sm:$0xff]
    %v3002 = vld [vmem:[%s256 + $0x30] sm:$0xff]
    %v3003 = vld [vmem:[%s256 + $0x38] sm:$0xff]
    %v3004 = vld [vmem:[%s256 + $0x40] sm:$0xff]
    %v3005 = vld [vmem:[%s256 + $0x48] sm:$0xff]
    %v3006 = vld [vmem:[%s256 + $0x50] sm:$0xff]
    %v3007 = vld [vmem:[%s256 + $0x58] sm:$0xff]
    %v3008 = vld [vmem:[%s256 + $0x60] sm:$0xff]
    %v3009 = vld [vmem:[%s256 + $0x68] sm:$0xff]
    %v3010 = vld [vmem:[%s256 + $0x70] sm:$0xff]
    %v3011 = vld [vmem:[%s256 + $0x78] sm:$0xff]
    %v3012 = vld [vmem:[%s256 + $0x80] sm:$0xff]
    %v3013 = vld [vmem:[%s256 + $0x88] sm:$0xff]
    %v3014 = vld [vmem:[%s256 + $0x90] sm:$0xff]
    %v3015 = vld [vmem:[%s256 + $0x98] sm:$0xff]
    %v3016 = vld [vmem:[%s256 + $0xa0] sm:$0xff]
    %v3017 = vld [vmem:[%s256 + $0xa8] sm:$0xff]
    %v3018 = vld [vmem:[%s256 + $0xb0] sm:$0xff]
    %v3019 = vld [vmem:[%s256 + $0xb8] sm:$0xff]
    %v3020 = vld [vmem:[%s256 + $0xc0] sm:$0xff]
    %v3021 = vld [vmem:[%s256 + $0xc8] sm:$0xff]
    %v3022 = vld [vmem:[%s256 + $0xd0] sm:$0xff]
    %v3023 = vld [vmem:[%s256 + $0xd8] sm:$0xff]
    %v3024 = vld [vmem:[%s256 + $0xe0] sm:$0xff]
    %v3025 = vld [vmem:[%s256 + $0xe8] sm:$0xff]
    %v3026 = vld [vmem:[%s256 + $0xf0] sm:$0xff]
    %v3027 = vld [vmem:[%s256 + $0xf8] sm:$0xff]
    %v3028 = vmul.f32 %v92, %v2994
    %v3029 = vmul.f32 %v93, %v2995
    %3030 = vmatprep.subr.mxu0 %v2997
    %3031 = vmatpush1.msra.mxu0 %v2996
    %3032 = vmatprep.subr.mxu0 %v2999
    %3033 = vmatpush1.msra.mxu0 %v2998
    %3034 = vmatprep.subr.mxu0 %v3001
    %3035 = vmatpush1.msra.mxu0 %v3000
    %3036 = vmatprep.subr.mxu0 %v3003
    %3037 = vmatpush1.msra.mxu0 %v3002
    %3038 = vmatprep.subr.mxu0 %v3005
    %3039 = vmatpush1.msra.mxu0 %v3004
    %3040 = vmatprep.subr.mxu0 %v3007
    %3041 = vmatpush1.msra.mxu0 %v3006
    %3042 = vmatprep.subr.mxu0 %v3009
    %3043 = vmatpush1.msra.mxu0 %v3008
    %3044 = vmatprep.subr.mxu0 %v3011
    %3045 = vmatpush1.msra.mxu0 %v3010
    %3046 = vmatprep.subr.mxu0 %v3013
    %3047 = vmatpush1.msra.mxu0 %v3012
    %3048 = vmatprep.subr.mxu0 %v3015
    %3049 = vmatpush1.msra.mxu0 %v3014
    %3050 = vmatprep.subr.mxu0 %v3017
    %3051 = vmatpush1.msra.mxu0 %v3016
    %3052 = vmatprep.subr.mxu0 %v3019
    %3053 = vmatpush1.msra.mxu0 %v3018
    %3054 = vmatprep.subr.mxu0 %v3021
    %3055 = vmatpush1.msra.mxu0 %v3020
    %3056 = vmatprep.subr.mxu0 %v3023
    %3057 = vmatpush1.msra.mxu0 %v3022
    %3058 = vmatprep.subr.mxu0 %v3025
    %3059 = vmatpush1.msra.mxu0 %v3024
    %3060 = vmatprep.subr.mxu0 %v3027
    %3061 = vmatpush1.msra.mxu0 %v3026
    %3062 = vmatprep.subr.mxu0 0.0
    %3063 = vmatpush1.msra.mxu0 0.0
    %3064 = vmatprep.subr.mxu0 0.0
    %3065 = vmatpush1.msra.mxu0 0.0
    %3066 = vmatprep.subr.mxu0 0.0
    %3067 = vmatpush1.msra.mxu0 0.0
    %3068 = vmatprep.subr.mxu0 0.0
    %3069 = vmatpush1.msra.mxu0 0.0
    %3070 = vmatprep.subr.mxu0 0.0
    %3071 = vmatpush1.msra.mxu0 0.0
    %3072 = vmatprep.subr.mxu0 0.0
    %3073 = vmatpush1.msra.mxu0 0.0
    %3074 = vmatprep.subr.mxu0 0.0
    %3075 = vmatpush1.msra.mxu0 0.0
    %3076 = vmatprep.subr.mxu0 0.0
    %3077 = vmatpush1.msra.mxu0 0.0
    %3078 = vmatprep.subr.mxu0 0.0
    %3079 = vmatpush1.msra.mxu0 0.0
    %3080 = vmatprep.subr.mxu0 0.0
    %3081 = vmatpush1.msra.mxu0 0.0
    %3082 = vmatprep.subr.mxu0 0.0
    %3083 = vmatpush1.msra.mxu0 0.0
    %3084 = vmatprep.subr.mxu0 0.0
    %3085 = vmatpush1.msra.mxu0 0.0
    %3086 = vmatprep.subr.mxu0 0.0
    %3087 = vmatpush1.msra.mxu0 0.0
    %3088 = vmatprep.subr.mxu0 0.0
    %3089 = vmatpush1.msra.mxu0 0.0
    %3090 = vmatprep.subr.mxu0 0.0
    %3091 = vmatpush1.msra.mxu0 0.0
    %3092 = vmatprep.subr.mxu0 0.0
    %3093 = vmatpush1.msra.mxu0 0.0
    %3094 = vmatprep.mubr.f32.mxu0 0.0
    %3095 = vmatmul.mubr.f32.gmra.mrb[0].mxu0 %v3028
    %v3096 = vpop.f32.mrb[0].mxu0
    %v3097 = vadd.f32 %v100, %v3096
    %v3098 = vpop.f32.mrb[0].mxu0
    %v3099 = vadd.f32 %v104, %v3098
    %3100 = vmatprep.mubr.f32.mxu0 0.0
    %3101 = vmatmul.mubr.f32.gmra.mrb[0].mxu0 %v3029
    %v3102 = vpop.f32.mrb[0].mxu0
    %v3103 = vadd.f32 %v100, %v3102
    %v3104 = vpop.f32.mrb[0].mxu0
    %v3105 = vadd.f32 %v104, %v3104
    %3106 = vdwg.mxu0
    %v3107 = vtanh.pop %v3097
    %v3108 = vtanh.pop %v3103
    %v3109 = vxor.u32 %v3099, 2147483648
    %v3110 = vxor.u32 %v3105, 2147483648
    %v3111 = vmul.f32 %v3109, 1.442695
    %v3112 = vpow.pop %v3111
    %v3113 = vmul.f32 %v3110, 1.442695
    %v3114 = vpow.pop %v3113
    %v3115 = vadd.f32 %v3112, 1.0
    %v3116 = vadd.f32 %v3114, 1.0
    %v3117 = vrcp.pop %v3115
    %v3118 = vmul.f32 1.0, %v3117
    %v3119 = vrcp.pop %v3116
    %v3120 = vmul.f32 1.0, %v3119
    %v3121 = vsub.f32 %v3107, %v2994
    %v3122 = vsub.f32 %v3108, %v2995
    %v3123 = vmul.f32 %v3121, %v3118
    %v3124 = vmul.f32 %v3122, %v3120
    %v3125 = vadd.f32 %v3123, %v2994
    %v3126 = vadd.f32 %v3124, %v2995
    %s3127 = scalar_lea.vmem [#allocation12], 160
    %3128 = vst [vmem:[%s3127] sm:$0xff] %v3125
    %3129 = vst [vmem:[%s3127 + $0x8] sm:$0xff] %v3126
    %s3130 = scalar_lea.vmem [#allocation3], 352
    %v3131 = vld [vmem:[%s3130] sm:$0xff]
    %v3132 = vld [vmem:[%s3130 + $0x8] sm:$0xff]
    %v3133 = vld [vmem:[%s3130 + $0x10] sm:$0xff]
    %v3134 = vld [vmem:[%s3130 + $0x18] sm:$0xff]
    %v3135 = vld [vmem:[#allocation9] sm:$0xff]
    %v3136 = vld [vmem:[#allocation9 + $0x8] sm:$0xff]
    %v3137 = vld [vmem:[#allocation9 + $0x10] sm:$0xff]
    %v3138 = vld [vmem:[#allocation9 + $0x18] sm:$0xff]
    %v3139 = vld [vmem:[#allocation9 + $0x20] sm:$0xff]
    %v3140 = vld [vmem:[#allocation9 + $0x28] sm:$0xff]
    %v3141 = vld [vmem:[#allocation9 + $0x30] sm:$0xff]
    %v3142 = vld [vmem:[#allocation9 + $0x38] sm:$0xff]
    %v3143 = vld [vmem:[#allocation9 + $0x40] sm:$0xff]
    %v3144 = vld [vmem:[#allocation9 + $0x48] sm:$0xff]
    %v3145 = vld [vmem:[#allocation9 + $0x50] sm:$0xff]
    %v3146 = vld [vmem:[#allocation9 + $0x58] sm:$0xff]
    %v3147 = vld [vmem:[#allocation9 + $0x60] sm:$0xff]
    %v3148 = vld [vmem:[#allocation9 + $0x68] sm:$0xff]
    %v3149 = vld [vmem:[#allocation9 + $0x70] sm:$0xff]
    %v3150 = vld [vmem:[#allocation9 + $0x78] sm:$0xff]
    %v3151 = vld [vmem:[#allocation9 + $0x80] sm:$0xff]
    %v3152 = vld [vmem:[#allocation9 + $0x88] sm:$0xff]
    %v3153 = vld [vmem:[#allocation9 + $0x90] sm:$0xff]
    %v3154 = vld [vmem:[#allocation9 + $0x98] sm:$0xff]
    %v3155 = vld [vmem:[#allocation9 + $0xa0] sm:$0xff]
    %v3156 = vld [vmem:[#allocation9 + $0xa8] sm:$0xff]
    %v3157 = vld [vmem:[#allocation9 + $0xb0] sm:$0xff]
    %v3158 = vld [vmem:[#allocation9 + $0xb8] sm:$0xff]
    %v3159 = vld [vmem:[#allocation9 + $0xc0] sm:$0xff]
    %v3160 = vld [vmem:[#allocation9 + $0xc8] sm:$0xff]
    %v3161 = vld [vmem:[#allocation9 + $0xd0] sm:$0xff]
    %v3162 = vld [vmem:[#allocation9 + $0xd8] sm:$0xff]
    %v3163 = vld [vmem:[#allocation9 + $0xe0] sm:$0xff]
    %v3164 = vld [vmem:[#allocation9 + $0xe8] sm:$0xff]
    %v3165 = vld [vmem:[#allocation9 + $0xf0] sm:$0xff]
    %v3166 = vld [vmem:[#allocation9 + $0xf8] sm:$0xff]
    %v3167 = vmul.f32 %v92, %v3125
    %v3168 = vmul.f32 %v93, %v3126
    %3169 = vmatprep.subr.mxu0 %v3136
    %3170 = vmatpush1.msra.mxu0 %v3135
    %3171 = vmatprep.subr.mxu0 %v3138
    %3172 = vmatpush1.msra.mxu0 %v3137
    %3173 = vmatprep.subr.mxu0 %v3140
    %3174 = vmatpush1.msra.mxu0 %v3139
    %3175 = vmatprep.subr.mxu0 %v3142
    %3176 = vmatpush1.msra.mxu0 %v3141
    %3177 = vmatprep.subr.mxu0 %v3144
    %3178 = vmatpush1.msra.mxu0 %v3143
    %3179 = vmatprep.subr.mxu0 %v3146
    %3180 = vmatpush1.msra.mxu0 %v3145
    %3181 = vmatprep.subr.mxu0 %v3148
    %3182 = vmatpush1.msra.mxu0 %v3147
    %3183 = vmatprep.subr.mxu0 %v3150
    %3184 = vmatpush1.msra.mxu0 %v3149
    %3185 = vmatprep.subr.mxu0 %v3152
    %3186 = vmatpush1.msra.mxu0 %v3151
    %3187 = vmatprep.subr.mxu0 %v3154
    %3188 = vmatpush1.msra.mxu0 %v3153
    %3189 = vmatprep.subr.mxu0 %v3156
    %3190 = vmatpush1.msra.mxu0 %v3155
    %3191 = vmatprep.subr.mxu0 %v3158
    %3192 = vmatpush1.msra.mxu0 %v3157
    %3193 = vmatprep.subr.mxu0 %v3160
    %3194 = vmatpush1.msra.mxu0 %v3159
    %3195 = vmatprep.subr.mxu0 %v3162
    %3196 = vmatpush1.msra.mxu0 %v3161
    %3197 = vmatprep.subr.mxu0 %v3164
    %3198 = vmatpush1.msra.mxu0 %v3163
    %3199 = vmatprep.subr.mxu0 %v3166
    %3200 = vmatpush1.msra.mxu0 %v3165
    %3201 = vmatprep.subr.mxu0 0.0
    %3202 = vmatpush1.msra.mxu0 0.0
    %3203 = vmatprep.subr.mxu0 0.0
    %3204 = vmatpush1.msra.mxu0 0.0
    %3205 = vmatprep.subr.mxu0 0.0
    %3206 = vmatpush1.msra.mxu0 0.0
    %3207 = vmatprep.subr.mxu0 0.0
    %3208 = vmatpush1.msra.mxu0 0.0
    %3209 = vmatprep.subr.mxu0 0.0
    %3210 = vmatpush1.msra.mxu0 0.0
    %3211 = vmatprep.subr.mxu0 0.0
    %3212 = vmatpush1.msra.mxu0 0.0
    %3213 = vmatprep.subr.mxu0 0.0
    %3214 = vmatpush1.msra.mxu0 0.0
    %3215 = vmatprep.subr.mxu0 0.0
    %3216 = vmatpush1.msra.mxu0 0.0
    %3217 = vmatprep.subr.mxu0 0.0
    %3218 = vmatpush1.msra.mxu0 0.0
    %3219 = vmatprep.subr.mxu0 0.0
    %3220 = vmatpush1.msra.mxu0 0.0
    %3221 = vmatprep.subr.mxu0 0.0
    %3222 = vmatpush1.msra.mxu0 0.0
    %3223 = vmatprep.subr.mxu0 0.0
    %3224 = vmatpush1.msra.mxu0 0.0
    %3225 = vmatprep.subr.mxu0 0.0
    %3226 = vmatpush1.msra.mxu0 0.0
    %3227 = vmatprep.subr.mxu0 0.0
    %3228 = vmatpush1.msra.mxu0 0.0
    %3229 = vmatprep.subr.mxu0 0.0
    %3230 = vmatpush1.msra.mxu0 0.0
    %3231 = vmatprep.subr.mxu0 0.0
    %3232 = vmatpush1.msra.mxu0 0.0
    %3233 = vmatprep.mubr.f32.mxu0 0.0
    %3234 = vmatmul.mubr.f32.gmra.mrb[0].mxu0 %v3167
    %v3235 = vpop.f32.mrb[0].mxu0
    %v3236 = vadd.f32 0.0, %v3235
    %v3237 = vpop.f32.mrb[0].mxu0
    %v3238 = vadd.f32 0.0, %v3237
    %3239 = vmatprep.mubr.f32.mxu0 0.0
    %3240 = vmatmul.mubr.f32.gmra.mrb[0].mxu0 %v3168
    %v3241 = vpop.f32.mrb[0].mxu0
    %v3242 = vadd.f32 0.0, %v3241
    %v3243 = vpop.f32.mrb[0].mxu0
    %v3244 = vadd.f32 0.0, %v3243
    %3245 = vdwg.mxu0
    %v3246 = vadd.f32 %v3131, %v3236
    %v3247 = vadd.f32 %v3133, %v3242
    %v3248 = vtanh.pop %v3246
    %v3249 = vtanh.pop %v3247
    %v3250 = vadd.f32 %v3132, %v3238
    %v3251 = vadd.f32 %v3134, %v3244
    %v3252 = vxor.u32 %v3250, 2147483648
    %v3253 = vxor.u32 %v3251, 2147483648
    %v3254 = vmul.f32 %v3252, 1.442695
    %v3255 = vpow.pop %v3254
    %v3256 = vmul.f32 %v3253, 1.442695
    %v3257 = vpow.pop %v3256
    %v3258 = vadd.f32 %v3255, 1.0
    %v3259 = vadd.f32 %v3257, 1.0
    %v3260 = vrcp.pop %v3258
    %v3261 = vmul.f32 1.0, %v3260
    %v3262 = vrcp.pop %v3259
    %v3263 = vmul.f32 1.0, %v3262
    %v3264 = vsub.f32 %v3248, %v3125
    %v3265 = vsub.f32 %v3249, %v3126
    %v3266 = vmul.f32 %v3264, %v3261
    %v3267 = vmul.f32 %v3265, %v3263
    %v3268 = vadd.f32 %v3266, %v3125
    %v3269 = vadd.f32 %v3267, %v3126
    %v3270 = vld [vmem:[%s256] sm:$0xff]
    %v3271 = vld [vmem:[%s256 + $0x8] sm:$0xff]
    %v3272 = vld [vmem:[%s256 + $0x10] sm:$0xff]
    %v3273 = vld [vmem:[%s256 + $0x18] sm:$0xff]
    %v3274 = vld [vmem:[%s256 + $0x20] sm:$0xff]
    %v3275 = vld [vmem:[%s256 + $0x28] sm:$0xff]
    %v3276 = vld [vmem:[%s256 + $0x30] sm:$0xff]
    %v3277 = vld [vmem:[%s256 + $0x38] sm:$0xff]
    %v3278 = vld [vmem:[%s256 + $0x40] sm:$0xff]
    %v3279 = vld [vmem:[%s256 + $0x48] sm:$0xff]
    %v3280 = vld [vmem:[%s256 + $0x50] sm:$0xff]
    %v3281 = vld [vmem:[%s256 + $0x58] sm:$0xff]
    %v3282 = vld [vmem:[%s256 + $0x60] sm:$0xff]
    %v3283 = vld [vmem:[%s256 + $0x68] sm:$0xff]
    %v3284 = vld [vmem:[%s256 + $0x70] sm:$0xff]
    %v3285 = vld [vmem:[%s256 + $0x78] sm:$0xff]
    %v3286 = vld [vmem:[%s256 + $0x80] sm:$0xff]
    %v3287 = vld [vmem:[%s256 + $0x88] sm:$0xff]
    %v3288 = vld [vmem:[%s256 + $0x90] sm:$0xff]
    %v3289 = vld [vmem:[%s256 + $0x98] sm:$0xff]
    %v3290 = vld [vmem:[%s256 + $0xa0] sm:$0xff]
    %v3291 = vld [vmem:[%s256 + $0xa8] sm:$0xff]
    %v3292 = vld [vmem:[%s256 + $0xb0] sm:$0xff]
    %v3293 = vld [vmem:[%s256 + $0xb8] sm:$0xff]
    %v3294 = vld [vmem:[%s256 + $0xc0] sm:$0xff]
    %v3295 = vld [vmem:[%s256 + $0xc8] sm:$0xff]
    %v3296 = vld [vmem:[%s256 + $0xd0] sm:$0xff]
    %v3297 = vld [vmem:[%s256 + $0xd8] sm:$0xff]
    %v3298 = vld [vmem:[%s256 + $0xe0] sm:$0xff]
    %v3299 = vld [vmem:[%s256 + $0xe8] sm:$0xff]
    %v3300 = vld [vmem:[%s256 + $0xf0] sm:$0xff]
    %v3301 = vld [vmem:[%s256 + $0xf8] sm:$0xff]
    %v3302 = vmul.f32 %v92, %v3268
    %v3303 = vmul.f32 %v93, %v3269
    %3304 = vmatprep.subr.mxu0 %v3271
    %3305 = vmatpush1.msra.mxu0 %v3270
    %3306 = vmatprep.subr.mxu0 %v3273
    %3307 = vmatpush1.msra.mxu0 %v3272
    %3308 = vmatprep.subr.mxu0 %v3275
    %3309 = vmatpush1.msra.mxu0 %v3274
    %3310 = vmatprep.subr.mxu0 %v3277
    %3311 = vmatpush1.msra.mxu0 %v3276
    %3312 = vmatprep.subr.mxu0 %v3279
    %3313 = vmatpush1.msra.mxu0 %v3278
    %3314 = vmatprep.subr.mxu0 %v3281
    %3315 = vmatpush1.msra.mxu0 %v3280
    %3316 = vmatprep.subr.mxu0 %v3283
    %3317 = vmatpush1.msra.mxu0 %v3282
    %3318 = vmatprep.subr.mxu0 %v3285
    %3319 = vmatpush1.msra.mxu0 %v3284
    %3320 = vmatprep.subr.mxu0 %v3287
    %3321 = vmatpush1.msra.mxu0 %v3286
    %3322 = vmatprep.subr.mxu0 %v3289
    %3323 = vmatpush1.msra.mxu0 %v3288
    %3324 = vmatprep.subr.mxu0 %v3291
    %3325 = vmatpush1.msra.mxu0 %v3290
    %3326 = vmatprep.subr.mxu0 %v3293
    %3327 = vmatpush1.msra.mxu0 %v3292
    %3328 = vmatprep.subr.mxu0 %v3295
    %3329 = vmatpush1.msra.mxu0 %v3294
    %3330 = vmatprep.subr.mxu0 %v3297
    %3331 = vmatpush1.msra.mxu0 %v3296
    %3332 = vmatprep.subr.mxu0 %v3299
    %3333 = vmatpush1.msra.mxu0 %v3298
    %3334 = vmatprep.subr.mxu0 %v3301
    %3335 = vmatpush1.msra.mxu0 %v3300
    %3336 = vmatprep.subr.mxu0 0.0
    %3337 = vmatpush1.msra.mxu0 0.0
    %3338 = vmatprep.subr.mxu0 0.0
    %3339 = vmatpush1.msra.mxu0 0.0
    %3340 = vmatprep.subr.mxu0 0.0
    %3341 = vmatpush1.msra.mxu0 0.0
    %3342 = vmatprep.subr.mxu0 0.0
    %3343 = vmatpush1.msra.mxu0 0.0
    %3344 = vmatprep.subr.mxu0 0.0
    %3345 = vmatpush1.msra.mxu0 0.0
    %3346 = vmatprep.subr.mxu0 0.0
    %3347 = vmatpush1.msra.mxu0 0.0
    %3348 = vmatprep.subr.mxu0 0.0
    %3349 = vmatpush1.msra.mxu0 0.0
    %3350 = vmatprep.subr.mxu0 0.0
    %3351 = vmatpush1.msra.mxu0 0.0
    %3352 = vmatprep.subr.mxu0 0.0
    %3353 = vmatpush1.msra.mxu0 0.0
    %3354 = vmatprep.subr.mxu0 0.0
    %3355 = vmatpush1.msra.mxu0 0.0
    %3356 = vmatprep.subr.mxu0 0.0
    %3357 = vmatpush1.msra.mxu0 0.0
    %3358 = vmatprep.subr.mxu0 0.0
    %3359 = vmatpush1.msra.mxu0 0.0
    %3360 = vmatprep.subr.mxu0 0.0
    %3361 = vmatpush1.msra.mxu0 0.0
    %3362 = vmatprep.subr.mxu0 0.0
    %3363 = vmatpush1.msra.mxu0 0.0
    %3364 = vmatprep.subr.mxu0 0.0
    %3365 = vmatpush1.msra.mxu0 0.0
    %3366 = vmatprep.subr.mxu0 0.0
    %3367 = vmatpush1.msra.mxu0 0.0
    %3368 = vmatprep.mubr.f32.mxu0 0.0
    %3369 = vmatmul.mubr.f32.gmra.mrb[0].mxu0 %v3302
    %v3370 = vpop.f32.mrb[0].mxu0
    %v3371 = vadd.f32 %v100, %v3370
    %v3372 = vpop.f32.mrb[0].mxu0
    %v3373 = vadd.f32 %v104, %v3372
    %3374 = vmatprep.mubr.f32.mxu0 0.0
    %3375 = vmatmul.mubr.f32.gmra.mrb[0].mxu0 %v3303
    %v3376 = vpop.f32.mrb[0].mxu0
    %v3377 = vadd.f32 %v100, %v3376
    %v3378 = vpop.f32.mrb[0].mxu0
    %v3379 = vadd.f32 %v104, %v3378
    %3380 = vdwg.mxu0
    %v3381 = vtanh.pop %v3371
    %v3382 = vtanh.pop %v3377
    %v3383 = vxor.u32 %v3373, 2147483648
    %v3384 = vxor.u32 %v3379, 2147483648
    %v3385 = vmul.f32 %v3383, 1.442695
    %v3386 = vpow.pop %v3385
    %v3387 = vmul.f32 %v3384, 1.442695
    %v3388 = vpow.pop %v3387
    %v3389 = vadd.f32 %v3386, 1.0
    %v3390 = vadd.f32 %v3388, 1.0
    %v3391 = vrcp.pop %v3389
    %v3392 = vmul.f32 1.0, %v3391
    %v3393 = vrcp.pop %v3390
    %v3394 = vmul.f32 1.0, %v3393
    %v3395 = vsub.f32 %v3381, %v3268
    %v3396 = vsub.f32 %v3382, %v3269
    %v3397 = vmul.f32 %v3395, %v3392
    %v3398 = vmul.f32 %v3396, %v3394
    %v3399 = vadd.f32 %v3397, %v3268
    %v3400 = vadd.f32 %v3398, %v3269
    %s3401 = scalar_lea.vmem [#allocation12], 176
    %3402 = vst [vmem:[%s3401] sm:$0xff] %v3399
    %3403 = vst [vmem:[%s3401 + $0x8] sm:$0xff] %v3400
    %s3404 = scalar_lea.vmem [#allocation3], 384
    %v3405 = vld [vmem:[%s3404] sm:$0xff]
    %v3406 = vld [vmem:[%s3404 + $0x8] sm:$0xff]
    %v3407 = vld [vmem:[%s3404 + $0x10] sm:$0xff]
    %v3408 = vld [vmem:[%s3404 + $0x18] sm:$0xff]
    %v3409 = vld [vmem:[#allocation9] sm:$0xff]
    %v3410 = vld [vmem:[#allocation9 + $0x8] sm:$0xff]
    %v3411 = vld [vmem:[#allocation9 + $0x10] sm:$0xff]
    %v3412 = vld [vmem:[#allocation9 + $0x18] sm:$0xff]
    %v3413 = vld [vmem:[#allocation9 + $0x20] sm:$0xff]
    %v3414 = vld [vmem:[#allocation9 + $0x28] sm:$0xff]
    %v3415 = vld [vmem:[#allocation9 + $0x30] sm:$0xff]
    %v3416 = vld [vmem:[#allocation9 + $0x38] sm:$0xff]
    %v3417 = vld [vmem:[#allocation9 + $0x40] sm:$0xff]
    %v3418 = vld [vmem:[#allocation9 + $0x48] sm:$0xff]
    %v3419 = vld [vmem:[#allocation9 + $0x50] sm:$0xff]
    %v3420 = vld [vmem:[#allocation9 + $0x58] sm:$0xff]
    %v3421 = vld [vmem:[#allocation9 + $0x60] sm:$0xff]
    %v3422 = vld [vmem:[#allocation9 + $0x68] sm:$0xff]
    %v3423 = vld [vmem:[#allocation9 + $0x70] sm:$0xff]
    %v3424 = vld [vmem:[#allocation9 + $0x78] sm:$0xff]
    %v3425 = vld [vmem:[#allocation9 + $0x80] sm:$0xff]
    %v3426 = vld [vmem:[#allocation9 + $0x88] sm:$0xff]
    %v3427 = vld [vmem:[#allocation9 + $0x90] sm:$0xff]
    %v3428 = vld [vmem:[#allocation9 + $0x98] sm:$0xff]
    %v3429 = vld [vmem:[#allocation9 + $0xa0] sm:$0xff]
    %v3430 = vld [vmem:[#allocation9 + $0xa8] sm:$0xff]
    %v3431 = vld [vmem:[#allocation9 + $0xb0] sm:$0xff]
    %v3432 = vld [vmem:[#allocation9 + $0xb8] sm:$0xff]
    %v3433 = vld [vmem:[#allocation9 + $0xc0] sm:$0xff]
    %v3434 = vld [vmem:[#allocation9 + $0xc8] sm:$0xff]
    %v3435 = vld [vmem:[#allocation9 + $0xd0] sm:$0xff]
    %v3436 = vld [vmem:[#allocation9 + $0xd8] sm:$0xff]
    %v3437 = vld [vmem:[#allocation9 + $0xe0] sm:$0xff]
    %v3438 = vld [vmem:[#allocation9 + $0xe8] sm:$0xff]
    %v3439 = vld [vmem:[#allocation9 + $0xf0] sm:$0xff]
    %v3440 = vld [vmem:[#allocation9 + $0xf8] sm:$0xff]
    %v3441 = vmul.f32 %v92, %v3399
    %v3442 = vmul.f32 %v93, %v3400
    %3443 = vmatprep.subr.mxu0 %v3410
    %3444 = vmatpush1.msra.mxu0 %v3409
    %3445 = vmatprep.subr.mxu0 %v3412
    %3446 = vmatpush1.msra.mxu0 %v3411
    %3447 = vmatprep.subr.mxu0 %v3414
    %3448 = vmatpush1.msra.mxu0 %v3413
    %3449 = vmatprep.subr.mxu0 %v3416
    %3450 = vmatpush1.msra.mxu0 %v3415
    %3451 = vmatprep.subr.mxu0 %v3418
    %3452 = vmatpush1.msra.mxu0 %v3417
    %3453 = vmatprep.subr.mxu0 %v3420
    %3454 = vmatpush1.msra.mxu0 %v3419
    %3455 = vmatprep.subr.mxu0 %v3422
    %3456 = vmatpush1.msra.mxu0 %v3421
    %3457 = vmatprep.subr.mxu0 %v3424
    %3458 = vmatpush1.msra.mxu0 %v3423
    %3459 = vmatprep.subr.mxu0 %v3426
    %3460 = vmatpush1.msra.mxu0 %v3425
    %3461 = vmatprep.subr.mxu0 %v3428
    %3462 = vmatpush1.msra.mxu0 %v3427
    %3463 = vmatprep.subr.mxu0 %v3430
    %3464 = vmatpush1.msra.mxu0 %v3429
    %3465 = vmatprep.subr.mxu0 %v3432
    %3466 = vmatpush1.msra.mxu0 %v3431
    %3467 = vmatprep.subr.mxu0 %v3434
    %3468 = vmatpush1.msra.mxu0 %v3433
    %3469 = vmatprep.subr.mxu0 %v3436
    %3470 = vmatpush1.msra.mxu0 %v3435
    %3471 = vmatprep.subr.mxu0 %v3438
    %3472 = vmatpush1.msra.mxu0 %v3437
    %3473 = vmatprep.subr.mxu0 %v3440
    %3474 = vmatpush1.msra.mxu0 %v3439
    %3475 = vmatprep.subr.mxu0 0.0
    %3476 = vmatpush1.msra.mxu0 0.0
    %3477 = vmatprep.subr.mxu0 0.0
    %3478 = vmatpush1.msra.mxu0 0.0
    %3479 = vmatprep.subr.mxu0 0.0
    %3480 = vmatpush1.msra.mxu0 0.0
    %3481 = vmatprep.subr.mxu0 0.0
    %3482 = vmatpush1.msra.mxu0 0.0
    %3483 = vmatprep.subr.mxu0 0.0
    %3484 = vmatpush1.msra.mxu0 0.0
    %3485 = vmatprep.subr.mxu0 0.0
    %3486 = vmatpush1.msra.mxu0 0.0
    %3487 = vmatprep.subr.mxu0 0.0
    %3488 = vmatpush1.msra.mxu0 0.0
    %3489 = vmatprep.subr.mxu0 0.0
    %3490 = vmatpush1.msra.mxu0 0.0
    %3491 = vmatprep.subr.mxu0 0.0
    %3492 = vmatpush1.msra.mxu0 0.0
    %3493 = vmatprep.subr.mxu0 0.0
    %3494 = vmatpush1.msra.mxu0 0.0
    %3495 = vmatprep.subr.mxu0 0.0
    %3496 = vmatpush1.msra.mxu0 0.0
    %3497 = vmatprep.subr.mxu0 0.0
    %3498 = vmatpush1.msra.mxu0 0.0
    %3499 = vmatprep.subr.mxu0 0.0
    %3500 = vmatpush1.msra.mxu0 0.0
    %3501 = vmatprep.subr.mxu0 0.0
    %3502 = vmatpush1.msra.mxu0 0.0
    %3503 = vmatprep.subr.mxu0 0.0
    %3504 = vmatpush1.msra.mxu0 0.0
    %3505 = vmatprep.subr.mxu0 0.0
    %3506 = vmatpush1.msra.mxu0 0.0
    %3507 = vmatprep.mubr.f32.mxu0 0.0
    %3508 = vmatmul.mubr.f32.gmra.mrb[0].mxu0 %v3441
    %v3509 = vpop.f32.mrb[0].mxu0
    %v3510 = vadd.f32 0.0, %v3509
    %v3511 = vpop.f32.mrb[0].mxu0
    %v3512 = vadd.f32 0.0, %v3511
    %3513 = vmatprep.mubr.f32.mxu0 0.0
    %3514 = vmatmul.mubr.f32.gmra.mrb[0].mxu0 %v3442
    %v3515 = vpop.f32.mrb[0].mxu0
    %v3516 = vadd.f32 0.0, %v3515
    %v3517 = vpop.f32.mrb[0].mxu0
    %v3518 = vadd.f32 0.0, %v3517
    %3519 = vdwg.mxu0
    %v3520 = vadd.f32 %v3405, %v3510
    %v3521 = vadd.f32 %v3407, %v3516
    %v3522 = vtanh.pop %v3520
    %v3523 = vtanh.pop %v3521
    %v3524 = vadd.f32 %v3406, %v3512
    %v3525 = vadd.f32 %v3408, %v3518
    %v3526 = vxor.u32 %v3524, 2147483648
    %v3527 = vxor.u32 %v3525, 2147483648
    %v3528 = vmul.f32 %v3526, 1.442695
    %v3529 = vpow.pop %v3528
    %v3530 = vmul.f32 %v3527, 1.442695
    %v3531 = vpow.pop %v3530
    %v3532 = vadd.f32 %v3529, 1.0
    %v3533 = vadd.f32 %v3531, 1.0
    %v3534 = vrcp.pop %v3532
    %v3535 = vmul.f32 1.0, %v3534
    %v3536 = vrcp.pop %v3533
    %v3537 = vmul.f32 1.0, %v3536
    %v3538 = vsub.f32 %v3522, %v3399
    %v3539 = vsub.f32 %v3523, %v3400
    %v3540 = vmul.f32 %v3538, %v3535
    %v3541 = vmul.f32 %v3539, %v3537
    %v3542 = vadd.f32 %v3540, %v3399
    %v3543 = vadd.f32 %v3541, %v3400
    %v3544 = vld [vmem:[%s256] sm:$0xff]
    %v3545 = vld [vmem:[%s256 + $0x8] sm:$0xff]
    %v3546 = vld [vmem:[%s256 + $0x10] sm:$0xff]
    %v3547 = vld [vmem:[%s256 + $0x18] sm:$0xff]
    %v3548 = vld [vmem:[%s256 + $0x20] sm:$0xff]
    %v3549 = vld [vmem:[%s256 + $0x28] sm:$0xff]
    %v3550 = vld [vmem:[%s256 + $0x30] sm:$0xff]
    %v3551 = vld [vmem:[%s256 + $0x38] sm:$0xff]
    %v3552 = vld [vmem:[%s256 + $0x40] sm:$0xff]
    %v3553 = vld [vmem:[%s256 + $0x48] sm:$0xff]
    %v3554 = vld [vmem:[%s256 + $0x50] sm:$0xff]
    %v3555 = vld [vmem:[%s256 + $0x58] sm:$0xff]
    %v3556 = vld [vmem:[%s256 + $0x60] sm:$0xff]
    %v3557 = vld [vmem:[%s256 + $0x68] sm:$0xff]
    %v3558 = vld [vmem:[%s256 + $0x70] sm:$0xff]
    %v3559 = vld [vmem:[%s256 + $0x78] sm:$0xff]
    %v3560 = vld [vmem:[%s256 + $0x80] sm:$0xff]
    %v3561 = vld [vmem:[%s256 + $0x88] sm:$0xff]
    %v3562 = vld [vmem:[%s256 + $0x90] sm:$0xff]
    %v3563 = vld [vmem:[%s256 + $0x98] sm:$0xff]
    %v3564 = vld [vmem:[%s256 + $0xa0] sm:$0xff]
    %v3565 = vld [vmem:[%s256 + $0xa8] sm:$0xff]
    %v3566 = vld [vmem:[%s256 + $0xb0] sm:$0xff]
    %v3567 = vld [vmem:[%s256 + $0xb8] sm:$0xff]
    %v3568 = vld [vmem:[%s256 + $0xc0] sm:$0xff]
    %v3569 = vld [vmem:[%s256 + $0xc8] sm:$0xff]
    %v3570 = vld [vmem:[%s256 + $0xd0] sm:$0xff]
    %v3571 = vld [vmem:[%s256 + $0xd8] sm:$0xff]
    %v3572 = vld [vmem:[%s256 + $0xe0] sm:$0xff]
    %v3573 = vld [vmem:[%s256 + $0xe8] sm:$0xff]
    %v3574 = vld [vmem:[%s256 + $0xf0] sm:$0xff]
    %v3575 = vld [vmem:[%s256 + $0xf8] sm:$0xff]
    %v3576 = vmul.f32 %v92, %v3542
    %v3577 = vmul.f32 %v93, %v3543
    %3578 = vmatprep.subr.mxu0 %v3545
    %3579 = vmatpush1.msra.mxu0 %v3544
    %3580 = vmatprep.subr.mxu0 %v3547
    %3581 = vmatpush1.msra.mxu0 %v3546
    %3582 = vmatprep.subr.mxu0 %v3549
    %3583 = vmatpush1.msra.mxu0 %v3548
    %3584 = vmatprep.subr.mxu0 %v3551
    %3585 = vmatpush1.msra.mxu0 %v3550
    %3586 = vmatprep.subr.mxu0 %v3553
    %3587 = vmatpush1.msra.mxu0 %v3552
    %3588 = vmatprep.subr.mxu0 %v3555
    %3589 = vmatpush1.msra.mxu0 %v3554
    %3590 = vmatprep.subr.mxu0 %v3557
    %3591 = vmatpush1.msra.mxu0 %v3556
    %3592 = vmatprep.subr.mxu0 %v3559
    %3593 = vmatpush1.msra.mxu0 %v3558
    %3594 = vmatprep.subr.mxu0 %v3561
    %3595 = vmatpush1.msra.mxu0 %v3560
    %3596 = vmatprep.subr.mxu0 %v3563
    %3597 = vmatpush1.msra.mxu0 %v3562
    %3598 = vmatprep.subr.mxu0 %v3565
    %3599 = vmatpush1.msra.mxu0 %v3564
    %3600 = vmatprep.subr.mxu0 %v3567
    %3601 = vmatpush1.msra.mxu0 %v3566
    %3602 = vmatprep.subr.mxu0 %v3569
    %3603 = vmatpush1.msra.mxu0 %v3568
    %3604 = vmatprep.subr.mxu0 %v3571
    %3605 = vmatpush1.msra.mxu0 %v3570
    %3606 = vmatprep.subr.mxu0 %v3573
    %3607 = vmatpush1.msra.mxu0 %v3572
    %3608 = vmatprep.subr.mxu0 %v3575
    %3609 = vmatpush1.msra.mxu0 %v3574
    %3610 = vmatprep.subr.mxu0 0.0
    %3611 = vmatpush1.msra.mxu0 0.0
    %3612 = vmatprep.subr.mxu0 0.0
    %3613 = vmatpush1.msra.mxu0 0.0
    %3614 = vmatprep.subr.mxu0 0.0
    %3615 = vmatpush1.msra.mxu0 0.0
    %3616 = vmatprep.subr.mxu0 0.0
    %3617 = vmatpush1.msra.mxu0 0.0
    %3618 = vmatprep.subr.mxu0 0.0
    %3619 = vmatpush1.msra.mxu0 0.0
    %3620 = vmatprep.subr.mxu0 0.0
    %3621 = vmatpush1.msra.mxu0 0.0
    %3622 = vmatprep.subr.mxu0 0.0
    %3623 = vmatpush1.msra.mxu0 0.0
    %3624 = vmatprep.subr.mxu0 0.0
    %3625 = vmatpush1.msra.mxu0 0.0
    %3626 = vmatprep.subr.mxu0 0.0
    %3627 = vmatpush1.msra.mxu0 0.0
    %3628 = vmatprep.subr.mxu0 0.0
    %3629 = vmatpush1.msra.mxu0 0.0
    %3630 = vmatprep.subr.mxu0 0.0
    %3631 = vmatpush1.msra.mxu0 0.0
    %3632 = vmatprep.subr.mxu0 0.0
    %3633 = vmatpush1.msra.mxu0 0.0
    %3634 = vmatprep.subr.mxu0 0.0
    %3635 = vmatpush1.msra.mxu0 0.0
    %3636 = vmatprep.subr.mxu0 0.0
    %3637 = vmatpush1.msra.mxu0 0.0
    %3638 = vmatprep.subr.mxu0 0.0
    %3639 = vmatpush1.msra.mxu0 0.0
    %3640 = vmatprep.subr.mxu0 0.0
    %3641 = vmatpush1.msra.mxu0 0.0
    %3642 = vmatprep.mubr.f32.mxu0 0.0
    %3643 = vmatmul.mubr.f32.gmra.mrb[0].mxu0 %v3576
    %v3644 = vpop.f32.mrb[0].mxu0
    %v3645 = vadd.f32 %v100, %v3644
    %v3646 = vpop.f32.mrb[0].mxu0
    %v3647 = vadd.f32 %v104, %v3646
    %3648 = vmatprep.mubr.f32.mxu0 0.0
    %3649 = vmatmul.mubr.f32.gmra.mrb[0].mxu0 %v3577
    %v3650 = vpop.f32.mrb[0].mxu0
    %v3651 = vadd.f32 %v100, %v3650
    %v3652 = vpop.f32.mrb[0].mxu0
    %v3653 = vadd.f32 %v104, %v3652
    %3654 = vdwg.mxu0
    %v3655 = vtanh.pop %v3645
    %v3656 = vtanh.pop %v3651
    %v3657 = vxor.u32 %v3647, 2147483648
    %v3658 = vxor.u32 %v3653, 2147483648
    %v3659 = vmul.f32 %v3657, 1.442695
    %v3660 = vpow.pop %v3659
    %v3661 = vmul.f32 %v3658, 1.442695
    %v3662 = vpow.pop %v3661
    %v3663 = vadd.f32 %v3660, 1.0
    %v3664 = vadd.f32 %v3662, 1.0
    %v3665 = vrcp.pop %v3663
    %v3666 = vmul.f32 1.0, %v3665
    %v3667 = vrcp.pop %v3664
    %v3668 = vmul.f32 1.0, %v3667
    %v3669 = vsub.f32 %v3655, %v3542
    %v3670 = vsub.f32 %v3656, %v3543
    %v3671 = vmul.f32 %v3669, %v3666
    %v3672 = vmul.f32 %v3670, %v3668
    %v3673 = vadd.f32 %v3671, %v3542
    %v3674 = vadd.f32 %v3672, %v3543
    %s3675 = scalar_lea.vmem [#allocation12], 192
    %3676 = vst [vmem:[%s3675] sm:$0xff] %v3673
    %3677 = vst [vmem:[%s3675 + $0x8] sm:$0xff] %v3674
    %s3678 = scalar_lea.vmem [#allocation3], 416
    %v3679 = vld [vmem:[%s3678] sm:$0xff]
    %v3680 = vld [vmem:[%s3678 + $0x8] sm:$0xff]
    %v3681 = vld [vmem:[%s3678 + $0x10] sm:$0xff]
    %v3682 = vld [vmem:[%s3678 + $0x18] sm:$0xff]
    %v3683 = vld [vmem:[#allocation9] sm:$0xff]
    %v3684 = vld [vmem:[#allocation9 + $0x8] sm:$0xff]
    %v3685 = vld [vmem:[#allocation9 + $0x10] sm:$0xff]
    %v3686 = vld [vmem:[#allocation9 + $0x18] sm:$0xff]
    %v3687 = vld [vmem:[#allocation9 + $0x20] sm:$0xff]
    %v3688 = vld [vmem:[#allocation9 + $0x28] sm:$0xff]
    %v3689 = vld [vmem:[#allocation9 + $0x30] sm:$0xff]
    %v3690 = vld [vmem:[#allocation9 + $0x38] sm:$0xff]
    %v3691 = vld [vmem:[#allocation9 + $0x40] sm:$0xff]
    %v3692 = vld [vmem:[#allocation9 + $0x48] sm:$0xff]
    %v3693 = vld [vmem:[#allocation9 + $0x50] sm:$0xff]
    %v3694 = vld [vmem:[#allocation9 + $0x58] sm:$0xff]
    %v3695 = vld [vmem:[#allocation9 + $0x60] sm:$0xff]
    %v3696 = vld [vmem:[#allocation9 + $0x68] sm:$0xff]
    %v3697 = vld [vmem:[#allocation9 + $0x70] sm:$0xff]
    %v3698 = vld [vmem:[#allocation9 + $0x78] sm:$0xff]
    %v3699 = vld [vmem:[#allocation9 + $0x80] sm:$0xff]
    %v3700 = vld [vmem:[#allocation9 + $0x88] sm:$0xff]
    %v3701 = vld [vmem:[#allocation9 + $0x90] sm:$0xff]
    %v3702 = vld [vmem:[#allocation9 + $0x98] sm:$0xff]
    %v3703 = vld [vmem:[#allocation9 + $0xa0] sm:$0xff]
    %v3704 = vld [vmem:[#allocation9 + $0xa8] sm:$0xff]
    %v3705 = vld [vmem:[#allocation9 + $0xb0] sm:$0xff]
    %v3706 = vld [vmem:[#allocation9 + $0xb8] sm:$0xff]
    %v3707 = vld [vmem:[#allocation9 + $0xc0] sm:$0xff]
    %v3708 = vld [vmem:[#allocation9 + $0xc8] sm:$0xff]
    %v3709 = vld [vmem:[#allocation9 + $0xd0] sm:$0xff]
    %v3710 = vld [vmem:[#allocation9 + $0xd8] sm:$0xff]
    %v3711 = vld [vmem:[#allocation9 + $0xe0] sm:$0xff]
    %v3712 = vld [vmem:[#allocation9 + $0xe8] sm:$0xff]
    %v3713 = vld [vmem:[#allocation9 + $0xf0] sm:$0xff]
    %v3714 = vld [vmem:[#allocation9 + $0xf8] sm:$0xff]
    %v3715 = vmul.f32 %v92, %v3673
    %v3716 = vmul.f32 %v93, %v3674
    %3717 = vmatprep.subr.mxu0 %v3684
    %3718 = vmatpush1.msra.mxu0 %v3683
    %3719 = vmatprep.subr.mxu0 %v3686
    %3720 = vmatpush1.msra.mxu0 %v3685
    %3721 = vmatprep.subr.mxu0 %v3688
    %3722 = vmatpush1.msra.mxu0 %v3687
    %3723 = vmatprep.subr.mxu0 %v3690
    %3724 = vmatpush1.msra.mxu0 %v3689
    %3725 = vmatprep.subr.mxu0 %v3692
    %3726 = vmatpush1.msra.mxu0 %v3691
    %3727 = vmatprep.subr.mxu0 %v3694
    %3728 = vmatpush1.msra.mxu0 %v3693
    %3729 = vmatprep.subr.mxu0 %v3696
    %3730 = vmatpush1.msra.mxu0 %v3695
    %3731 = vmatprep.subr.mxu0 %v3698
    %3732 = vmatpush1.msra.mxu0 %v3697
    %3733 = vmatprep.subr.mxu0 %v3700
    %3734 = vmatpush1.msra.mxu0 %v3699
    %3735 = vmatprep.subr.mxu0 %v3702
    %3736 = vmatpush1.msra.mxu0 %v3701
    %3737 = vmatprep.subr.mxu0 %v3704
    %3738 = vmatpush1.msra.mxu0 %v3703
    %3739 = vmatprep.subr.mxu0 %v3706
    %3740 = vmatpush1.msra.mxu0 %v3705
    %3741 = vmatprep.subr.mxu0 %v3708
    %3742 = vmatpush1.msra.mxu0 %v3707
    %3743 = vmatprep.subr.mxu0 %v3710
    %3744 = vmatpush1.msra.mxu0 %v3709
    %3745 = vmatprep.subr.mxu0 %v3712
    %3746 = vmatpush1.msra.mxu0 %v3711
    %3747 = vmatprep.subr.mxu0 %v3714
    %3748 = vmatpush1.msra.mxu0 %v3713
    %3749 = vmatprep.subr.mxu0 0.0
    %3750 = vmatpush1.msra.mxu0 0.0
    %3751 = vmatprep.subr.mxu0 0.0
    %3752 = vmatpush1.msra.mxu0 0.0
    %3753 = vmatprep.subr.mxu0 0.0
    %3754 = vmatpush1.msra.mxu0 0.0
    %3755 = vmatprep.subr.mxu0 0.0
    %3756 = vmatpush1.msra.mxu0 0.0
    %3757 = vmatprep.subr.mxu0 0.0
    %3758 = vmatpush1.msra.mxu0 0.0
    %3759 = vmatprep.subr.mxu0 0.0
    %3760 = vmatpush1.msra.mxu0 0.0
    %3761 = vmatprep.subr.mxu0 0.0
    %3762 = vmatpush1.msra.mxu0 0.0
    %3763 = vmatprep.subr.mxu0 0.0
    %3764 = vmatpush1.msra.mxu0 0.0
    %3765 = vmatprep.subr.mxu0 0.0
    %3766 = vmatpush1.msra.mxu0 0.0
    %3767 = vmatprep.subr.mxu0 0.0
    %3768 = vmatpush1.msra.mxu0 0.0
    %3769 = vmatprep.subr.mxu0 0.0
    %3770 = vmatpush1.msra.mxu0 0.0
    %3771 = vmatprep.subr.mxu0 0.0
    %3772 = vmatpush1.msra.mxu0 0.0
    %3773 = vmatprep.subr.mxu0 0.0
    %3774 = vmatpush1.msra.mxu0 0.0
    %3775 = vmatprep.subr.mxu0 0.0
    %3776 = vmatpush1.msra.mxu0 0.0
    %3777 = vmatprep.subr.mxu0 0.0
    %3778 = vmatpush1.msra.mxu0 0.0
    %3779 = vmatprep.subr.mxu0 0.0
    %3780 = vmatpush1.msra.mxu0 0.0
    %3781 = vmatprep.mubr.f32.mxu0 0.0
    %3782 = vmatmul.mubr.f32.gmra.mrb[0].mxu0 %v3715
    %v3783 = vpop.f32.mrb[0].mxu0
    %v3784 = vadd.f32 0.0, %v3783
    %v3785 = vpop.f32.mrb[0].mxu0
    %v3786 = vadd.f32 0.0, %v3785
    %3787 = vmatprep.mubr.f32.mxu0 0.0
    %3788 = vmatmul.mubr.f32.gmra.mrb[0].mxu0 %v3716
    %v3789 = vpop.f32.mrb[0].mxu0
    %v3790 = vadd.f32 0.0, %v3789
    %v3791 = vpop.f32.mrb[0].mxu0
    %v3792 = vadd.f32 0.0, %v3791
    %3793 = vdwg.mxu0
    %v3794 = vadd.f32 %v3679, %v3784
    %v3795 = vadd.f32 %v3681, %v3790
    %v3796 = vtanh.pop %v3794
    %v3797 = vtanh.pop %v3795
    %v3798 = vadd.f32 %v3680, %v3786
    %v3799 = vadd.f32 %v3682, %v3792
    %v3800 = vxor.u32 %v3798, 2147483648
    %v3801 = vxor.u32 %v3799, 2147483648
    %v3802 = vmul.f32 %v3800, 1.442695
    %v3803 = vpow.pop %v3802
    %v3804 = vmul.f32 %v3801, 1.442695
    %v3805 = vpow.pop %v3804
    %v3806 = vadd.f32 %v3803, 1.0
    %v3807 = vadd.f32 %v3805, 1.0
    %v3808 = vrcp.pop %v3806
    %v3809 = vmul.f32 1.0, %v3808
    %v3810 = vrcp.pop %v3807
    %v3811 = vmul.f32 1.0, %v3810
    %v3812 = vsub.f32 %v3796, %v3673
    %v3813 = vsub.f32 %v3797, %v3674
    %v3814 = vmul.f32 %v3812, %v3809
    %v3815 = vmul.f32 %v3813, %v3811
    %v3816 = vadd.f32 %v3814, %v3673
    %v3817 = vadd.f32 %v3815, %v3674
    %v3818 = vld [vmem:[%s256] sm:$0xff]
    %v3819 = vld [vmem:[%s256 + $0x8] sm:$0xff]
    %v3820 = vld [vmem:[%s256 + $0x10] sm:$0xff]
    %v3821 = vld [vmem:[%s256 + $0x18] sm:$0xff]
    %v3822 = vld [vmem:[%s256 + $0x20] sm:$0xff]
    %v3823 = vld [vmem:[%s256 + $0x28] sm:$0xff]
    %v3824 = vld [vmem:[%s256 + $0x30] sm:$0xff]
    %v3825 = vld [vmem:[%s256 + $0x38] sm:$0xff]
    %v3826 = vld [vmem:[%s256 + $0x40] sm:$0xff]
    %v3827 = vld [vmem:[%s256 + $0x48] sm:$0xff]
    %v3828 = vld [vmem:[%s256 + $0x50] sm:$0xff]
    %v3829 = vld [vmem:[%s256 + $0x58] sm:$0xff]
    %v3830 = vld [vmem:[%s256 + $0x60] sm:$0xff]
    %v3831 = vld [vmem:[%s256 + $0x68] sm:$0xff]
    %v3832 = vld [vmem:[%s256 + $0x70] sm:$0xff]
    %v3833 = vld [vmem:[%s256 + $0x78] sm:$0xff]
    %v3834 = vld [vmem:[%s256 + $0x80] sm:$0xff]
    %v3835 = vld [vmem:[%s256 + $0x88] sm:$0xff]
    %v3836 = vld [vmem:[%s256 + $0x90] sm:$0xff]
    %v3837 = vld [vmem:[%s256 + $0x98] sm:$0xff]
    %v3838 = vld [vmem:[%s256 + $0xa0] sm:$0xff]
    %v3839 = vld [vmem:[%s256 + $0xa8] sm:$0xff]
    %v3840 = vld [vmem:[%s256 + $0xb0] sm:$0xff]
    %v3841 = vld [vmem:[%s256 + $0xb8] sm:$0xff]
    %v3842 = vld [vmem:[%s256 + $0xc0] sm:$0xff]
    %v3843 = vld [vmem:[%s256 + $0xc8] sm:$0xff]
    %v3844 = vld [vmem:[%s256 + $0xd0] sm:$0xff]
    %v3845 = vld [vmem:[%s256 + $0xd8] sm:$0xff]
    %v3846 = vld [vmem:[%s256 + $0xe0] sm:$0xff]
    %v3847 = vld [vmem:[%s256 + $0xe8] sm:$0xff]
    %v3848 = vld [vmem:[%s256 + $0xf0] sm:$0xff]
    %v3849 = vld [vmem:[%s256 + $0xf8] sm:$0xff]
    %v3850 = vmul.f32 %v92, %v3816
    %v3851 = vmul.f32 %v93, %v3817
    %3852 = vmatprep.subr.mxu0 %v3819
    %3853 = vmatpush1.msra.mxu0 %v3818
    %3854 = vmatprep.subr.mxu0 %v3821
    %3855 = vmatpush1.msra.mxu0 %v3820
    %3856 = vmatprep.subr.mxu0 %v3823
    %3857 = vmatpush1.msra.mxu0 %v3822
    %3858 = vmatprep.subr.mxu0 %v3825
    %3859 = vmatpush1.msra.mxu0 %v3824
    %3860 = vmatprep.subr.mxu0 %v3827
    %3861 = vmatpush1.msra.mxu0 %v3826
    %3862 = vmatprep.subr.mxu0 %v3829
    %3863 = vmatpush1.msra.mxu0 %v3828
    %3864 = vmatprep.subr.mxu0 %v3831
    %3865 = vmatpush1.msra.mxu0 %v3830
    %3866 = vmatprep.subr.mxu0 %v3833
    %3867 = vmatpush1.msra.mxu0 %v3832
    %3868 = vmatprep.subr.mxu0 %v3835
    %3869 = vmatpush1.msra.mxu0 %v3834
    %3870 = vmatprep.subr.mxu0 %v3837
    %3871 = vmatpush1.msra.mxu0 %v3836
    %3872 = vmatprep.subr.mxu0 %v3839
    %3873 = vmatpush1.msra.mxu0 %v3838
    %3874 = vmatprep.subr.mxu0 %v3841
    %3875 = vmatpush1.msra.mxu0 %v3840
    %3876 = vmatprep.subr.mxu0 %v3843
    %3877 = vmatpush1.msra.mxu0 %v3842
    %3878 = vmatprep.subr.mxu0 %v3845
    %3879 = vmatpush1.msra.mxu0 %v3844
    %3880 = vmatprep.subr.mxu0 %v3847
    %3881 = vmatpush1.msra.mxu0 %v3846
    %3882 = vmatprep.subr.mxu0 %v3849
    %3883 = vmatpush1.msra.mxu0 %v3848
    %3884 = vmatprep.subr.mxu0 0.0
    %3885 = vmatpush1.msra.mxu0 0.0
    %3886 = vmatprep.subr.mxu0 0.0
    %3887 = vmatpush1.msra.mxu0 0.0
    %3888 = vmatprep.subr.mxu0 0.0
    %3889 = vmatpush1.msra.mxu0 0.0
    %3890 = vmatprep.subr.mxu0 0.0
    %3891 = vmatpush1.msra.mxu0 0.0
    %3892 = vmatprep.subr.mxu0 0.0
    %3893 = vmatpush1.msra.mxu0 0.0
    %3894 = vmatprep.subr.mxu0 0.0
    %3895 = vmatpush1.msra.mxu0 0.0
    %3896 = vmatprep.subr.mxu0 0.0
    %3897 = vmatpush1.msra.mxu0 0.0
    %3898 = vmatprep.subr.mxu0 0.0
    %3899 = vmatpush1.msra.mxu0 0.0
    %3900 = vmatprep.subr.mxu0 0.0
    %3901 = vmatpush1.msra.mxu0 0.0
    %3902 = vmatprep.subr.mxu0 0.0
    %3903 = vmatpush1.msra.mxu0 0.0
    %3904 = vmatprep.subr.mxu0 0.0
    %3905 = vmatpush1.msra.mxu0 0.0
    %3906 = vmatprep.subr.mxu0 0.0
    %3907 = vmatpush1.msra.mxu0 0.0
    %3908 = vmatprep.subr.mxu0 0.0
    %3909 = vmatpush1.msra.mxu0 0.0
    %3910 = vmatprep.subr.mxu0 0.0
    %3911 = vmatpush1.msra.mxu0 0.0
    %3912 = vmatprep.subr.mxu0 0.0
    %3913 = vmatpush1.msra.mxu0 0.0
    %3914 = vmatprep.subr.mxu0 0.0
    %3915 = vmatpush1.msra.mxu0 0.0
    %3916 = vmatprep.mubr.f32.mxu0 0.0
    %3917 = vmatmul.mubr.f32.gmra.mrb[0].mxu0 %v3850
    %v3918 = vpop.f32.mrb[0].mxu0
    %v3919 = vadd.f32 %v100, %v3918
    %v3920 = vpop.f32.mrb[0].mxu0
    %v3921 = vadd.f32 %v104, %v3920
    %3922 = vmatprep.mubr.f32.mxu0 0.0
    %3923 = vmatmul.mubr.f32.gmra.mrb[0].mxu0 %v3851
    %v3924 = vpop.f32.mrb[0].mxu0
    %v3925 = vadd.f32 %v100, %v3924
    %v3926 = vpop.f32.mrb[0].mxu0
    %v3927 = vadd.f32 %v104, %v3926
    %3928 = vdwg.mxu0
    %v3929 = vtanh.pop %v3919
    %v3930 = vtanh.pop %v3925
    %v3931 = vxor.u32 %v3921, 2147483648
    %v3932 = vxor.u32 %v3927, 2147483648
    %v3933 = vmul.f32 %v3931, 1.442695
    %v3934 = vpow.pop %v3933
    %v3935 = vmul.f32 %v3932, 1.442695
    %v3936 = vpow.pop %v3935
    %v3937 = vadd.f32 %v3934, 1.0
    %v3938 = vadd.f32 %v3936, 1.0
    %v3939 = vrcp.pop %v3937
    %v3940 = vmul.f32 1.0, %v3939
    %v3941 = vrcp.pop %v3938
    %v3942 = vmul.f32 1.0, %v3941
    %v3943 = vsub.f32 %v3929, %v3816
    %v3944 = vsub.f32 %v3930, %v3817
    %v3945 = vmul.f32 %v3943, %v3940
    %v3946 = vmul.f32 %v3944, %v3942
    %v3947 = vadd.f32 %v3945, %v3816
    %v3948 = vadd.f32 %v3946, %v3817
    %s3949 = scalar_lea.vmem [#allocation12], 208
    %3950 = vst [vmem:[%s3949] sm:$0xff] %v3947
    %3951 = vst [vmem:[%s3949 + $0x8] sm:$0xff] %v3948
    %s3952 = scalar_lea.vmem [#allocation3], 448
    %v3953 = vld [vmem:[%s3952] sm:$0xff]
    %v3954 = vld [vmem:[%s3952 + $0x8] sm:$0xff]
    %v3955 = vld [vmem:[%s3952 + $0x10] sm:$0xff]
    %v3956 = vld [vmem:[%s3952 + $0x18] sm:$0xff]
    %v3957 = vld [vmem:[#allocation9] sm:$0xff]
    %v3958 = vld [vmem:[#allocation9 + $0x8] sm:$0xff]
    %v3959 = vld [vmem:[#allocation9 + $0x10] sm:$0xff]
    %v3960 = vld [vmem:[#allocation9 + $0x18] sm:$0xff]
    %v3961 = vld [vmem:[#allocation9 + $0x20] sm:$0xff]
    %v3962 = vld [vmem:[#allocation9 + $0x28] sm:$0xff]
    %v3963 = vld [vmem:[#allocation9 + $0x30] sm:$0xff]
    %v3964 = vld [vmem:[#allocation9 + $0x38] sm:$0xff]
    %v3965 = vld [vmem:[#allocation9 + $0x40] sm:$0xff]
    %v3966 = vld [vmem:[#allocation9 + $0x48] sm:$0xff]
    %v3967 = vld [vmem:[#allocation9 + $0x50] sm:$0xff]
    %v3968 = vld [vmem:[#allocation9 + $0x58] sm:$0xff]
    %v3969 = vld [vmem:[#allocation9 + $0x60] sm:$0xff]
    %v3970 = vld [vmem:[#allocation9 + $0x68] sm:$0xff]
    %v3971 = vld [vmem:[#allocation9 + $0x70] sm:$0xff]
    %v3972 = vld [vmem:[#allocation9 + $0x78] sm:$0xff]
    %v3973 = vld [vmem:[#allocation9 + $0x80] sm:$0xff]
    %v3974 = vld [vmem:[#allocation9 + $0x88] sm:$0xff]
    %v3975 = vld [vmem:[#allocation9 + $0x90] sm:$0xff]
    %v3976 = vld [vmem:[#allocation9 + $0x98] sm:$0xff]
    %v3977 = vld [vmem:[#allocation9 + $0xa0] sm:$0xff]
    %v3978 = vld [vmem:[#allocation9 + $0xa8] sm:$0xff]
    %v3979 = vld [vmem:[#allocation9 + $0xb0] sm:$0xff]
    %v3980 = vld [vmem:[#allocation9 + $0xb8] sm:$0xff]
    %v3981 = vld [vmem:[#allocation9 + $0xc0] sm:$0xff]
    %v3982 = vld [vmem:[#allocation9 + $0xc8] sm:$0xff]
    %v3983 = vld [vmem:[#allocation9 + $0xd0] sm:$0xff]
    %v3984 = vld [vmem:[#allocation9 + $0xd8] sm:$0xff]
    %v3985 = vld [vmem:[#allocation9 + $0xe0] sm:$0xff]
    %v3986 = vld [vmem:[#allocation9 + $0xe8] sm:$0xff]
    %v3987 = vld [vmem:[#allocation9 + $0xf0] sm:$0xff]
    %v3988 = vld [vmem:[#allocation9 + $0xf8] sm:$0xff]
    %v3989 = vmul.f32 %v92, %v3947
    %v3990 = vmul.f32 %v93, %v3948
    %3991 = vmatprep.subr.mxu0 %v3958
    %3992 = vmatpush1.msra.mxu0 %v3957
    %3993 = vmatprep.subr.mxu0 %v3960
    %3994 = vmatpush1.msra.mxu0 %v3959
    %3995 = vmatprep.subr.mxu0 %v3962
    %3996 = vmatpush1.msra.mxu0 %v3961
    %3997 = vmatprep.subr.mxu0 %v3964
    %3998 = vmatpush1.msra.mxu0 %v3963
    %3999 = vmatprep.subr.mxu0 %v3966
    %4000 = vmatpush1.msra.mxu0 %v3965
    %4001 = vmatprep.subr.mxu0 %v3968
    %4002 = vmatpush1.msra.mxu0 %v3967
    %4003 = vmatprep.subr.mxu0 %v3970
    %4004 = vmatpush1.msra.mxu0 %v3969
    %4005 = vmatprep.subr.mxu0 %v3972
    %4006 = vmatpush1.msra.mxu0 %v3971
    %4007 = vmatprep.subr.mxu0 %v3974
    %4008 = vmatpush1.msra.mxu0 %v3973
    %4009 = vmatprep.subr.mxu0 %v3976
    %4010 = vmatpush1.msra.mxu0 %v3975
    %4011 = vmatprep.subr.mxu0 %v3978
    %4012 = vmatpush1.msra.mxu0 %v3977
    %4013 = vmatprep.subr.mxu0 %v3980
    %4014 = vmatpush1.msra.mxu0 %v3979
    %4015 = vmatprep.subr.mxu0 %v3982
    %4016 = vmatpush1.msra.mxu0 %v3981
    %4017 = vmatprep.subr.mxu0 %v3984
    %4018 = vmatpush1.msra.mxu0 %v3983
    %4019 = vmatprep.subr.mxu0 %v3986
    %4020 = vmatpush1.msra.mxu0 %v3985
    %4021 = vmatprep.subr.mxu0 %v3988
    %4022 = vmatpush1.msra.mxu0 %v3987
    %4023 = vmatprep.subr.mxu0 0.0
    %4024 = vmatpush1.msra.mxu0 0.0
    %4025 = vmatprep.subr.mxu0 0.0
    %4026 = vmatpush1.msra.mxu0 0.0
    %4027 = vmatprep.subr.mxu0 0.0
    %4028 = vmatpush1.msra.mxu0 0.0
    %4029 = vmatprep.subr.mxu0 0.0
    %4030 = vmatpush1.msra.mxu0 0.0
    %4031 = vmatprep.subr.mxu0 0.0
    %4032 = vmatpush1.msra.mxu0 0.0
    %4033 = vmatprep.subr.mxu0 0.0
    %4034 = vmatpush1.msra.mxu0 0.0
    %4035 = vmatprep.subr.mxu0 0.0
    %4036 = vmatpush1.msra.mxu0 0.0
    %4037 = vmatprep.subr.mxu0 0.0
    %4038 = vmatpush1.msra.mxu0 0.0
    %4039 = vmatprep.subr.mxu0 0.0
    %4040 = vmatpush1.msra.mxu0 0.0
    %4041 = vmatprep.subr.mxu0 0.0
    %4042 = vmatpush1.msra.mxu0 0.0
    %4043 = vmatprep.subr.mxu0 0.0
    %4044 = vmatpush1.msra.mxu0 0.0
    %4045 = vmatprep.subr.mxu0 0.0
    %4046 = vmatpush1.msra.mxu0 0.0
    %4047 = vmatprep.subr.mxu0 0.0
    %4048 = vmatpush1.msra.mxu0 0.0
    %4049 = vmatprep.subr.mxu0 0.0
    %4050 = vmatpush1.msra.mxu0 0.0
    %4051 = vmatprep.subr.mxu0 0.0
    %4052 = vmatpush1.msra.mxu0 0.0
    %4053 = vmatprep.subr.mxu0 0.0
    %4054 = vmatpush1.msra.mxu0 0.0
    %4055 = vmatprep.mubr.f32.mxu0 0.0
    %4056 = vmatmul.mubr.f32.gmra.mrb[0].mxu0 %v3989
    %v4057 = vpop.f32.mrb[0].mxu0
    %v4058 = vadd.f32 0.0, %v4057
    %v4059 = vpop.f32.mrb[0].mxu0
    %v4060 = vadd.f32 0.0, %v4059
    %4061 = vmatprep.mubr.f32.mxu0 0.0
    %4062 = vmatmul.mubr.f32.gmra.mrb[0].mxu0 %v3990
    %v4063 = vpop.f32.mrb[0].mxu0
    %v4064 = vadd.f32 0.0, %v4063
    %v4065 = vpop.f32.mrb[0].mxu0
    %v4066 = vadd.f32 0.0, %v4065
    %4067 = vdwg.mxu0
    %v4068 = vadd.f32 %v3953, %v4058
    %v4069 = vadd.f32 %v3955, %v4064
    %v4070 = vtanh.pop %v4068
    %v4071 = vtanh.pop %v4069
    %v4072 = vadd.f32 %v3954, %v4060
    %v4073 = vadd.f32 %v3956, %v4066
    %v4074 = vxor.u32 %v4072, 2147483648
    %v4075 = vxor.u32 %v4073, 2147483648
    %v4076 = vmul.f32 %v4074, 1.442695
    %v4077 = vpow.pop %v4076
    %v4078 = vmul.f32 %v4075, 1.442695
    %v4079 = vpow.pop %v4078
    %v4080 = vadd.f32 %v4077, 1.0
    %v4081 = vadd.f32 %v4079, 1.0
    %v4082 = vrcp.pop %v4080
    %v4083 = vmul.f32 1.0, %v4082
    %v4084 = vrcp.pop %v4081
    %v4085 = vmul.f32 1.0, %v4084
    %v4086 = vsub.f32 %v4070, %v3947
    %v4087 = vsub.f32 %v4071, %v3948
    %v4088 = vmul.f32 %v4086, %v4083
    %v4089 = vmul.f32 %v4087, %v4085
    %v4090 = vadd.f32 %v4088, %v3947
    %v4091 = vadd.f32 %v4089, %v3948
    %v4092 = vld [vmem:[%s256] sm:$0xff]
    %v4093 = vld [vmem:[%s256 + $0x8] sm:$0xff]
    %v4094 = vld [vmem:[%s256 + $0x10] sm:$0xff]
    %v4095 = vld [vmem:[%s256 + $0x18] sm:$0xff]
    %v4096 = vld [vmem:[%s256 + $0x20] sm:$0xff]
    %v4097 = vld [vmem:[%s256 + $0x28] sm:$0xff]
    %v4098 = vld [vmem:[%s256 + $0x30] sm:$0xff]
    %v4099 = vld [vmem:[%s256 + $0x38] sm:$0xff]
    %v4100 = vld [vmem:[%s256 + $0x40] sm:$0xff]
    %v4101 = vld [vmem:[%s256 + $0x48] sm:$0xff]
    %v4102 = vld [vmem:[%s256 + $0x50] sm:$0xff]
    %v4103 = vld [vmem:[%s256 + $0x58] sm:$0xff]
    %v4104 = vld [vmem:[%s256 + $0x60] sm:$0xff]
    %v4105 = vld [vmem:[%s256 + $0x68] sm:$0xff]
    %v4106 = vld [vmem:[%s256 + $0x70] sm:$0xff]
    %v4107 = vld [vmem:[%s256 + $0x78] sm:$0xff]
    %v4108 = vld [vmem:[%s256 + $0x80] sm:$0xff]
    %v4109 = vld [vmem:[%s256 + $0x88] sm:$0xff]
    %v4110 = vld [vmem:[%s256 + $0x90] sm:$0xff]
    %v4111 = vld [vmem:[%s256 + $0x98] sm:$0xff]
    %v4112 = vld [vmem:[%s256 + $0xa0] sm:$0xff]
    %v4113 = vld [vmem:[%s256 + $0xa8] sm:$0xff]
    %v4114 = vld [vmem:[%s256 + $0xb0] sm:$0xff]
    %v4115 = vld [vmem:[%s256 + $0xb8] sm:$0xff]
    %v4116 = vld [vmem:[%s256 + $0xc0] sm:$0xff]
    %v4117 = vld [vmem:[%s256 + $0xc8] sm:$0xff]
    %v4118 = vld [vmem:[%s256 + $0xd0] sm:$0xff]
    %v4119 = vld [vmem:[%s256 + $0xd8] sm:$0xff]
    %v4120 = vld [vmem:[%s256 + $0xe0] sm:$0xff]
    %v4121 = vld [vmem:[%s256 + $0xe8] sm:$0xff]
    %v4122 = vld [vmem:[%s256 + $0xf0] sm:$0xff]
    %v4123 = vld [vmem:[%s256 + $0xf8] sm:$0xff]
    %v4124 = vmul.f32 %v92, %v4090
    %v4125 = vmul.f32 %v93, %v4091
    %4126 = vmatprep.subr.mxu0 %v4093
    %4127 = vmatpush1.msra.mxu0 %v4092
    %4128 = vmatprep.subr.mxu0 %v4095
    %4129 = vmatpush1.msra.mxu0 %v4094
    %4130 = vmatprep.subr.mxu0 %v4097
    %4131 = vmatpush1.msra.mxu0 %v4096
    %4132 = vmatprep.subr.mxu0 %v4099
    %4133 = vmatpush1.msra.mxu0 %v4098
    %4134 = vmatprep.subr.mxu0 %v4101
    %4135 = vmatpush1.msra.mxu0 %v4100
    %4136 = vmatprep.subr.mxu0 %v4103
    %4137 = vmatpush1.msra.mxu0 %v4102
    %4138 = vmatprep.subr.mxu0 %v4105
    %4139 = vmatpush1.msra.mxu0 %v4104
    %4140 = vmatprep.subr.mxu0 %v4107
    %4141 = vmatpush1.msra.mxu0 %v4106
    %4142 = vmatprep.subr.mxu0 %v4109
    %4143 = vmatpush1.msra.mxu0 %v4108
    %4144 = vmatprep.subr.mxu0 %v4111
    %4145 = vmatpush1.msra.mxu0 %v4110
    %4146 = vmatprep.subr.mxu0 %v4113
    %4147 = vmatpush1.msra.mxu0 %v4112
    %4148 = vmatprep.subr.mxu0 %v4115
    %4149 = vmatpush1.msra.mxu0 %v4114
    %4150 = vmatprep.subr.mxu0 %v4117
    %4151 = vmatpush1.msra.mxu0 %v4116
    %4152 = vmatprep.subr.mxu0 %v4119
    %4153 = vmatpush1.msra.mxu0 %v4118
    %4154 = vmatprep.subr.mxu0 %v4121
    %4155 = vmatpush1.msra.mxu0 %v4120
    %4156 = vmatprep.subr.mxu0 %v4123
    %4157 = vmatpush1.msra.mxu0 %v4122
    %4158 = vmatprep.subr.mxu0 0.0
    %4159 = vmatpush1.msra.mxu0 0.0
    %4160 = vmatprep.subr.mxu0 0.0
    %4161 = vmatpush1.msra.mxu0 0.0
    %4162 = vmatprep.subr.mxu0 0.0
    %4163 = vmatpush1.msra.mxu0 0.0
    %4164 = vmatprep.subr.mxu0 0.0
    %4165 = vmatpush1.msra.mxu0 0.0
    %4166 = vmatprep.subr.mxu0 0.0
    %4167 = vmatpush1.msra.mxu0 0.0
    %4168 = vmatprep.subr.mxu0 0.0
    %4169 = vmatpush1.msra.mxu0 0.0
    %4170 = vmatprep.subr.mxu0 0.0
    %4171 = vmatpush1.msra.mxu0 0.0
    %4172 = vmatprep.subr.mxu0 0.0
    %4173 = vmatpush1.msra.mxu0 0.0
    %4174 = vmatprep.subr.mxu0 0.0
    %4175 = vmatpush1.msra.mxu0 0.0
    %4176 = vmatprep.subr.mxu0 0.0
    %4177 = vmatpush1.msra.mxu0 0.0
    %4178 = vmatprep.subr.mxu0 0.0
    %4179 = vmatpush1.msra.mxu0 0.0
    %4180 = vmatprep.subr.mxu0 0.0
    %4181 = vmatpush1.msra.mxu0 0.0
    %4182 = vmatprep.subr.mxu0 0.0
    %4183 = vmatpush1.msra.mxu0 0.0
    %4184 = vmatprep.subr.mxu0 0.0
    %4185 = vmatpush1.msra.mxu0 0.0
    %4186 = vmatprep.subr.mxu0 0.0
    %4187 = vmatpush1.msra.mxu0 0.0
    %4188 = vmatprep.subr.mxu0 0.0
    %4189 = vmatpush1.msra.mxu0 0.0
    %4190 = vmatprep.mubr.f32.mxu0 0.0
    %4191 = vmatmul.mubr.f32.gmra.mrb[0].mxu0 %v4124
    %v4192 = vpop.f32.mrb[0].mxu0
    %v4193 = vadd.f32 %v100, %v4192
    %v4194 = vpop.f32.mrb[0].mxu0
    %v4195 = vadd.f32 %v104, %v4194
    %4196 = vmatprep.mubr.f32.mxu0 0.0
    %4197 = vmatmul.mubr.f32.gmra.mrb[0].mxu0 %v4125
    %v4198 = vpop.f32.mrb[0].mxu0
    %v4199 = vadd.f32 %v100, %v4198
    %v4200 = vpop.f32.mrb[0].mxu0
    %v4201 = vadd.f32 %v104, %v4200
    %4202 = vdwg.mxu0
    %v4203 = vtanh.pop %v4193
    %v4204 = vtanh.pop %v4199
    %v4205 = vxor.u32 %v4195, 2147483648
    %v4206 = vxor.u32 %v4201, 2147483648
    %v4207 = vmul.f32 %v4205, 1.442695
    %v4208 = vpow.pop %v4207
    %v4209 = vmul.f32 %v4206, 1.442695
    %v4210 = vpow.pop %v4209
    %v4211 = vadd.f32 %v4208, 1.0
    %v4212 = vadd.f32 %v4210, 1.0
    %v4213 = vrcp.pop %v4211
    %v4214 = vmul.f32 1.0, %v4213
    %v4215 = vrcp.pop %v4212
    %v4216 = vmul.f32 1.0, %v4215
    %v4217 = vsub.f32 %v4203, %v4090
    %v4218 = vsub.f32 %v4204, %v4091
    %v4219 = vmul.f32 %v4217, %v4214
    %v4220 = vmul.f32 %v4218, %v4216
    %v4221 = vadd.f32 %v4219, %v4090
    %v4222 = vadd.f32 %v4220, %v4091
    %s4223 = scalar_lea.vmem [#allocation12], 224
    %4224 = vst [vmem:[%s4223] sm:$0xff] %v4221
    %4225 = vst [vmem:[%s4223 + $0x8] sm:$0xff] %v4222
    %s4226 = scalar_lea.vmem [#allocation3], 480
    %v4227 = vld [vmem:[%s4226] sm:$0xff]
    %v4228 = vld [vmem:[%s4226 + $0x8] sm:$0xff]
    %v4229 = vld [vmem:[%s4226 + $0x10] sm:$0xff]
    %v4230 = vld [vmem:[%s4226 + $0x18] sm:$0xff]
    %v4231 = vld [vmem:[#allocation9] sm:$0xff]
    %v4232 = vld [vmem:[#allocation9 + $0x8] sm:$0xff]
    %v4233 = vld [vmem:[#allocation9 + $0x10] sm:$0xff]
    %v4234 = vld [vmem:[#allocation9 + $0x18] sm:$0xff]
    %v4235 = vld [vmem:[#allocation9 + $0x20] sm:$0xff]
    %v4236 = vld [vmem:[#allocation9 + $0x28] sm:$0xff]
    %v4237 = vld [vmem:[#allocation9 + $0x30] sm:$0xff]
    %v4238 = vld [vmem:[#allocation9 + $0x38] sm:$0xff]
    %v4239 = vld [vmem:[#allocation9 + $0x40] sm:$0xff]
    %v4240 = vld [vmem:[#allocation9 + $0x48] sm:$0xff]
    %v4241 = vld [vmem:[#allocation9 + $0x50] sm:$0xff]
    %v4242 = vld [vmem:[#allocation9 + $0x58] sm:$0xff]
    %v4243 = vld [vmem:[#allocation9 + $0x60] sm:$0xff]
    %v4244 = vld [vmem:[#allocation9 + $0x68] sm:$0xff]
    %v4245 = vld [vmem:[#allocation9 + $0x70] sm:$0xff]
    %v4246 = vld [vmem:[#allocation9 + $0x78] sm:$0xff]
    %v4247 = vld [vmem:[#allocation9 + $0x80] sm:$0xff]
    %v4248 = vld [vmem:[#allocation9 + $0x88] sm:$0xff]
    %v4249 = vld [vmem:[#allocation9 + $0x90] sm:$0xff]
    %v4250 = vld [vmem:[#allocation9 + $0x98] sm:$0xff]
    %v4251 = vld [vmem:[#allocation9 + $0xa0] sm:$0xff]
    %v4252 = vld [vmem:[#allocation9 + $0xa8] sm:$0xff]
    %v4253 = vld [vmem:[#allocation9 + $0xb0] sm:$0xff]
    %v4254 = vld [vmem:[#allocation9 + $0xb8] sm:$0xff]
    %v4255 = vld [vmem:[#allocation9 + $0xc0] sm:$0xff]
    %v4256 = vld [vmem:[#allocation9 + $0xc8] sm:$0xff]
    %v4257 = vld [vmem:[#allocation9 + $0xd0] sm:$0xff]
    %v4258 = vld [vmem:[#allocation9 + $0xd8] sm:$0xff]
    %v4259 = vld [vmem:[#allocation9 + $0xe0] sm:$0xff]
    %v4260 = vld [vmem:[#allocation9 + $0xe8] sm:$0xff]
    %v4261 = vld [vmem:[#allocation9 + $0xf0] sm:$0xff]
    %v4262 = vld [vmem:[#allocation9 + $0xf8] sm:$0xff]
    %v4263 = vmul.f32 %v92, %v4221
    %v4264 = vmul.f32 %v93, %v4222
    %4265 = vmatprep.subr.mxu0 %v4232
    %4266 = vmatpush1.msra.mxu0 %v4231
    %4267 = vmatprep.subr.mxu0 %v4234
    %4268 = vmatpush1.msra.mxu0 %v4233
    %4269 = vmatprep.subr.mxu0 %v4236
    %4270 = vmatpush1.msra.mxu0 %v4235
    %4271 = vmatprep.subr.mxu0 %v4238
    %4272 = vmatpush1.msra.mxu0 %v4237
    %4273 = vmatprep.subr.mxu0 %v4240
    %4274 = vmatpush1.msra.mxu0 %v4239
    %4275 = vmatprep.subr.mxu0 %v4242
    %4276 = vmatpush1.msra.mxu0 %v4241
    %4277 = vmatprep.subr.mxu0 %v4244
    %4278 = vmatpush1.msra.mxu0 %v4243
    %4279 = vmatprep.subr.mxu0 %v4246
    %4280 = vmatpush1.msra.mxu0 %v4245
    %4281 = vmatprep.subr.mxu0 %v4248
    %4282 = vmatpush1.msra.mxu0 %v4247
    %4283 = vmatprep.subr.mxu0 %v4250
    %4284 = vmatpush1.msra.mxu0 %v4249
    %4285 = vmatprep.subr.mxu0 %v4252
    %4286 = vmatpush1.msra.mxu0 %v4251
    %4287 = vmatprep.subr.mxu0 %v4254
    %4288 = vmatpush1.msra.mxu0 %v4253
    %4289 = vmatprep.subr.mxu0 %v4256
    %4290 = vmatpush1.msra.mxu0 %v4255
    %4291 = vmatprep.subr.mxu0 %v4258
    %4292 = vmatpush1.msra.mxu0 %v4257
    %4293 = vmatprep.subr.mxu0 %v4260
    %4294 = vmatpush1.msra.mxu0 %v4259
    %4295 = vmatprep.subr.mxu0 %v4262
    %4296 = vmatpush1.msra.mxu0 %v4261
    %4297 = vmatprep.subr.mxu0 0.0
    %4298 = vmatpush1.msra.mxu0 0.0
    %4299 = vmatprep.subr.mxu0 0.0
    %4300 = vmatpush1.msra.mxu0 0.0
    %4301 = vmatprep.subr.mxu0 0.0
    %4302 = vmatpush1.msra.mxu0 0.0
    %4303 = vmatprep.subr.mxu0 0.0
    %4304 = vmatpush1.msra.mxu0 0.0
    %4305 = vmatprep.subr.mxu0 0.0
    %4306 = vmatpush1.msra.mxu0 0.0
    %4307 = vmatprep.subr.mxu0 0.0
    %4308 = vmatpush1.msra.mxu0 0.0
    %4309 = vmatprep.subr.mxu0 0.0
    %4310 = vmatpush1.msra.mxu0 0.0
    %4311 = vmatprep.subr.mxu0 0.0
    %4312 = vmatpush1.msra.mxu0 0.0
    %4313 = vmatprep.subr.mxu0 0.0
    %4314 = vmatpush1.msra.mxu0 0.0
    %4315 = vmatprep.subr.mxu0 0.0
    %4316 = vmatpush1.msra.mxu0 0.0
    %4317 = vmatprep.subr.mxu0 0.0
    %4318 = vmatpush1.msra.mxu0 0.0
    %4319 = vmatprep.subr.mxu0 0.0
    %4320 = vmatpush1.msra.mxu0 0.0
    %4321 = vmatprep.subr.mxu0 0.0
    %4322 = vmatpush1.msra.mxu0 0.0
    %4323 = vmatprep.subr.mxu0 0.0
    %4324 = vmatpush1.msra.mxu0 0.0
    %4325 = vmatprep.subr.mxu0 0.0
    %4326 = vmatpush1.msra.mxu0 0.0
    %4327 = vmatprep.subr.mxu0 0.0
    %4328 = vmatpush1.msra.mxu0 0.0
    %4329 = vmatprep.mubr.f32.mxu0 0.0
    %4330 = vmatmul.mubr.f32.gmra.mrb[0].mxu0 %v4263
    %v4331 = vpop.f32.mrb[0].mxu0
    %v4332 = vadd.f32 0.0, %v4331
    %v4333 = vpop.f32.mrb[0].mxu0
    %v4334 = vadd.f32 0.0, %v4333
    %4335 = vmatprep.mubr.f32.mxu0 0.0
    %4336 = vmatmul.mubr.f32.gmra.mrb[0].mxu0 %v4264
    %v4337 = vpop.f32.mrb[0].mxu0
    %v4338 = vadd.f32 0.0, %v4337
    %v4339 = vpop.f32.mrb[0].mxu0
    %v4340 = vadd.f32 0.0, %v4339
    %4341 = vdwg.mxu0
    %v4342 = vadd.f32 %v4227, %v4332
    %v4343 = vadd.f32 %v4229, %v4338
    %v4344 = vtanh.pop %v4342
    %v4345 = vtanh.pop %v4343
    %v4346 = vadd.f32 %v4228, %v4334
    %v4347 = vadd.f32 %v4230, %v4340
    %v4348 = vxor.u32 %v4346, 2147483648
    %v4349 = vxor.u32 %v4347, 2147483648
    %v4350 = vmul.f32 %v4348, 1.442695
    %v4351 = vpow.pop %v4350
    %v4352 = vmul.f32 %v4349, 1.442695
    %v4353 = vpow.pop %v4352
    %v4354 = vadd.f32 %v4351, 1.0
    %v4355 = vadd.f32 %v4353, 1.0
    %v4356 = vrcp.pop %v4354
    %v4357 = vmul.f32 1.0, %v4356
    %v4358 = vrcp.pop %v4355
    %v4359 = vmul.f32 1.0, %v4358
    %v4360 = vsub.f32 %v4344, %v4221
    %v4361 = vsub.f32 %v4345, %v4222
    %v4362 = vmul.f32 %v4360, %v4357
    %v4363 = vmul.f32 %v4361, %v4359
    %v4364 = vadd.f32 %v4362, %v4221
    %v4365 = vadd.f32 %v4363, %v4222
    %v4366 = vld [vmem:[%s256] sm:$0xff]
    %v4367 = vld [vmem:[%s256 + $0x8] sm:$0xff]
    %v4368 = vld [vmem:[%s256 + $0x10] sm:$0xff]
    %v4369 = vld [vmem:[%s256 + $0x18] sm:$0xff]
    %v4370 = vld [vmem:[%s256 + $0x20] sm:$0xff]
    %v4371 = vld [vmem:[%s256 + $0x28] sm:$0xff]
    %v4372 = vld [vmem:[%s256 + $0x30] sm:$0xff]
    %v4373 = vld [vmem:[%s256 + $0x38] sm:$0xff]
    %v4374 = vld [vmem:[%s256 + $0x40] sm:$0xff]
    %v4375 = vld [vmem:[%s256 + $0x48] sm:$0xff]
    %v4376 = vld [vmem:[%s256 + $0x50] sm:$0xff]
    %v4377 = vld [vmem:[%s256 + $0x58] sm:$0xff]
    %v4378 = vld [vmem:[%s256 + $0x60] sm:$0xff]
    %v4379 = vld [vmem:[%s256 + $0x68] sm:$0xff]
    %v4380 = vld [vmem:[%s256 + $0x70] sm:$0xff]
    %v4381 = vld [vmem:[%s256 + $0x78] sm:$0xff]
    %v4382 = vld [vmem:[%s256 + $0x80] sm:$0xff]
    %v4383 = vld [vmem:[%s256 + $0x88] sm:$0xff]
    %v4384 = vld [vmem:[%s256 + $0x90] sm:$0xff]
    %v4385 = vld [vmem:[%s256 + $0x98] sm:$0xff]
    %v4386 = vld [vmem:[%s256 + $0xa0] sm:$0xff]
    %v4387 = vld [vmem:[%s256 + $0xa8] sm:$0xff]
    %v4388 = vld [vmem:[%s256 + $0xb0] sm:$0xff]
    %v4389 = vld [vmem:[%s256 + $0xb8] sm:$0xff]
    %v4390 = vld [vmem:[%s256 + $0xc0] sm:$0xff]
    %v4391 = vld [vmem:[%s256 + $0xc8] sm:$0xff]
    %v4392 = vld [vmem:[%s256 + $0xd0] sm:$0xff]
    %v4393 = vld [vmem:[%s256 + $0xd8] sm:$0xff]
    %v4394 = vld [vmem:[%s256 + $0xe0] sm:$0xff]
    %v4395 = vld [vmem:[%s256 + $0xe8] sm:$0xff]
    %v4396 = vld [vmem:[%s256 + $0xf0] sm:$0xff]
    %v4397 = vld [vmem:[%s256 + $0xf8] sm:$0xff]
    %v4398 = vmul.f32 %v92, %v4364
    %v4399 = vmul.f32 %v93, %v4365
    %4400 = vmatprep.subr.mxu0 %v4367
    %4401 = vmatpush1.msra.mxu0 %v4366
    %4402 = vmatprep.subr.mxu0 %v4369
    %4403 = vmatpush1.msra.mxu0 %v4368
    %4404 = vmatprep.subr.mxu0 %v4371
    %4405 = vmatpush1.msra.mxu0 %v4370
    %4406 = vmatprep.subr.mxu0 %v4373
    %4407 = vmatpush1.msra.mxu0 %v4372
    %4408 = vmatprep.subr.mxu0 %v4375
    %4409 = vmatpush1.msra.mxu0 %v4374
    %4410 = vmatprep.subr.mxu0 %v4377
    %4411 = vmatpush1.msra.mxu0 %v4376
    %4412 = vmatprep.subr.mxu0 %v4379
    %4413 = vmatpush1.msra.mxu0 %v4378
    %4414 = vmatprep.subr.mxu0 %v4381
    %4415 = vmatpush1.msra.mxu0 %v4380
    %4416 = vmatprep.subr.mxu0 %v4383
    %4417 = vmatpush1.msra.mxu0 %v4382
    %4418 = vmatprep.subr.mxu0 %v4385
    %4419 = vmatpush1.msra.mxu0 %v4384
    %4420 = vmatprep.subr.mxu0 %v4387
    %4421 = vmatpush1.msra.mxu0 %v4386
    %4422 = vmatprep.subr.mxu0 %v4389
    %4423 = vmatpush1.msra.mxu0 %v4388
    %4424 = vmatprep.subr.mxu0 %v4391
    %4425 = vmatpush1.msra.mxu0 %v4390
    %4426 = vmatprep.subr.mxu0 %v4393
    %4427 = vmatpush1.msra.mxu0 %v4392
    %4428 = vmatprep.subr.mxu0 %v4395
    %4429 = vmatpush1.msra.mxu0 %v4394
    %4430 = vmatprep.subr.mxu0 %v4397
    %4431 = vmatpush1.msra.mxu0 %v4396
    %4432 = vmatprep.subr.mxu0 0.0
    %4433 = vmatpush1.msra.mxu0 0.0
    %4434 = vmatprep.subr.mxu0 0.0
    %4435 = vmatpush1.msra.mxu0 0.0
    %4436 = vmatprep.subr.mxu0 0.0
    %4437 = vmatpush1.msra.mxu0 0.0
    %4438 = vmatprep.subr.mxu0 0.0
    %4439 = vmatpush1.msra.mxu0 0.0
    %4440 = vmatprep.subr.mxu0 0.0
    %4441 = vmatpush1.msra.mxu0 0.0
    %4442 = vmatprep.subr.mxu0 0.0
    %4443 = vmatpush1.msra.mxu0 0.0
    %4444 = vmatprep.subr.mxu0 0.0
    %4445 = vmatpush1.msra.mxu0 0.0
    %4446 = vmatprep.subr.mxu0 0.0
    %4447 = vmatpush1.msra.mxu0 0.0
    %4448 = vmatprep.subr.mxu0 0.0
    %4449 = vmatpush1.msra.mxu0 0.0
    %4450 = vmatprep.subr.mxu0 0.0
    %4451 = vmatpush1.msra.mxu0 0.0
    %4452 = vmatprep.subr.mxu0 0.0
    %4453 = vmatpush1.msra.mxu0 0.0
    %4454 = vmatprep.subr.mxu0 0.0
    %4455 = vmatpush1.msra.mxu0 0.0
    %4456 = vmatprep.subr.mxu0 0.0
    %4457 = vmatpush1.msra.mxu0 0.0
    %4458 = vmatprep.subr.mxu0 0.0
    %4459 = vmatpush1.msra.mxu0 0.0
    %4460 = vmatprep.subr.mxu0 0.0
    %4461 = vmatpush1.msra.mxu0 0.0
    %4462 = vmatprep.subr.mxu0 0.0
    %4463 = vmatpush1.msra.mxu0 0.0
    %4464 = vmatprep.mubr.f32.mxu0 0.0
    %4465 = vmatmul.mubr.f32.gmra.mrb[0].mxu0 %v4398
    %v4466 = vpop.f32.mrb[0].mxu0
    %v4467 = vadd.f32 %v100, %v4466
    %v4468 = vpop.f32.mrb[0].mxu0
    %v4469 = vadd.f32 %v104, %v4468
    %4470 = vmatprep.mubr.f32.mxu0 0.0
    %4471 = vmatmul.mubr.f32.gmra.mrb[0].mxu0 %v4399
    %v4472 = vpop.f32.mrb[0].mxu0
    %v4473 = vadd.f32 %v100, %v4472
    %v4474 = vpop.f32.mrb[0].mxu0
    %v4475 = vadd.f32 %v104, %v4474
    %4476 = vdwg.mxu0
    %v4477 = vtanh.pop %v4467
    %v4478 = vtanh.pop %v4473
    %v4479 = vxor.u32 %v4469, 2147483648
    %v4480 = vxor.u32 %v4475, 2147483648
    %v4481 = vmul.f32 %v4479, 1.442695
    %v4482 = vpow.pop %v4481
    %v4483 = vmul.f32 %v4480, 1.442695
    %v4484 = vpow.pop %v4483
    %v4485 = vadd.f32 %v4482, 1.0
    %v4486 = vadd.f32 %v4484, 1.0
    %v4487 = vrcp.pop %v4485
    %v4488 = vmul.f32 1.0, %v4487
    %v4489 = vrcp.pop %v4486
    %v4490 = vmul.f32 1.0, %v4489
    %v4491 = vsub.f32 %v4477, %v4364
    %v4492 = vsub.f32 %v4478, %v4365
    %v4493 = vmul.f32 %v4491, %v4488
    %v4494 = vmul.f32 %v4492, %v4490
    %v4495 = vadd.f32 %v4493, %v4364
    %v4496 = vadd.f32 %v4494, %v4365
    %s4497 = scalar_lea.vmem [#allocation12], 240
    %4498 = vst [vmem:[%s4497] sm:$0xff] %v4495
    %4499 = vst [vmem:[%s4497 + $0x8] sm:$0xff] %v4496
    %4500 = vst [vmem:[#allocation2] sm:$0xff] %v4495
    %4501 = vst [vmem:[#allocation2 + $0x8] sm:$0xff] %v4496
    // Predicated region
    $region46: #{tpu_custom_call.1} parent=1 // pred_check
      _
    $region47: #{tpu_custom_call.1} parent=1 // pred_check_branch
      %4503 = sbr.rel (0) target = $region49
    $region48: #{tpu_custom_call.1} parent=1 // pred_region
      %s4505 = ssub.s32 4096, 4096
      %4506 = vsyncadd [#allocation5], %s4505
      %s4507 = sshll.u32 [#allocation12], 4
      %s4508 = int_to_ptr.vmem [resolvable:$true] %s4507
      %4513 = dma.vmem_to_hbm [thread:$0]  %s4508, 4096, %s6, [#allocation5], 128, 128, 8
    $region49: #{tpu_custom_call.1} parent=1 // pred_fallthru
      _
    // Predicated region
    $region50: #{tpu_custom_call.1} parent=1 // pred_check
      _
    $region51: #{tpu_custom_call.1} parent=1 // pred_check_branch
      %4515 = sbr.rel (0) target = $region53
    $region52: #{tpu_custom_call.1} parent=1 // pred_region
      %4516 = dma.done [#allocation5], 4096
    $region53: #{tpu_custom_call.1} parent=1 // pred_fallthru
      _
    %4517 = vsyncpa [#allocation4], 1
    %4518 = vsyncpa [#allocation7], 1
    %4519 = vsyncpa [#allocation10], 1
    %4520 = vsyncpa [#allocation5], 1

</llo_original>
